<compile_context>
chip_gen: v7x
topology: tpu7x:2x2x1
jax: 0.10.0
libtpu: 0.0.40
codegen_flags: <defaults>
</compile_context>

<pallas_src>
import jax
import jax.numpy as jnp
import numpy as np
from jax.experimental import pallas as pl
from jax.experimental.pallas import tpu as pltpu

# Small sizes consistent with the module (obs_space.shape == (num_light, obs_size)).
BATCH = 2
NUM_LIGHT = 8        # == decoder.max_length == encoder sequence length
OBS_SIZE = 16
ACTION_SIZE = 4      # == num_outputs
HIDDEN = 128         # hard-coded in AttentionSeqModel.__init__


def _r16(n):
    """Round up to a multiple of 16 rows (bf16 sublane tile)."""
    return ((n + 15) // 16) * 16


# ---- packed-slab row offsets (all 16-row aligned -> every weight slice is tile-aligned) ----
# enc slab  [ENC_ROWS, 3H] (immediate, VMEM): e_emb (lane-padded to 3H) | e_ih | e_hh
E_EMB_OFF = 0
E_IH_OFF = _r16(OBS_SIZE + 1)                     # 32
E_HH_OFF = E_IH_OFF + _r16(HIDDEN + 1)            # 176
ENC_ROWS = E_HH_OFF + _r16(HIDDEN + 1)            # 320

# dec-gru slab [DGRU_ROWS, 3H] (deferred DMA): d_ih | d_hh
D_IH_OFF = 0
D_HH_OFF = _r16(HIDDEN + 1)                       # 144
DGRU_ROWS = 2 * _r16(HIDDEN + 1)                  # 288

# dec-misc slab [DMISC_ROWS, H] (deferred DMA): everything else, lane-padded to H=128
D_EMB_OFF = 0                                     # fan_in zero-padded ACTION_SIZE -> H
D_ATTN_OFF = _r16(HIDDEN + 1)                     # 144 ; padded bias lanes = -1e30
D_COMB_OFF = D_ATTN_OFF + _r16(2 * HIDDEN + 1)    # 416
D_OUT_OFF = D_COMB_OFF + _r16(2 * HIDDEN + 1)     # 688 ; fan_out zero-padded to H
V0_OFF = D_OUT_OFF + _r16(HIDDEN + 1)             # 832
V1_OFF = V0_OFF + _r16(HIDDEN + 1)                # 976
V2_OFF = V1_OFF + _r16(HIDDEN + 1)                # 1120; weight lives in lane ACTION_SIZE
DMISC_ROWS = V2_OFF + _r16(HIDDEN + 1)            # 1264


def attention_seq_kernel(
    # inputs
    x_ref, obs_flat_ref, enc_ref, dgru_hbm, dmisc_hbm,
    # output: [B, 128] lane-dense slab = [dec_out (A) | value (1) | zeros]
    out_ref,
    # scratch
    dgru, dmisc, sem,
):
    f32, bf16 = jnp.float32, jnp.bfloat16
    B = obs_flat_ref.shape[0]
    L = x_ref.shape[0] // B
    H = HIDDEN

    # Deferred decoder / value-branch weights: start the HBM->VMEM DMAs now so they
    # complete under the encoder recurrence; wait only where the decoder needs them.
    cp_gru = pltpu.make_async_copy(dgru_hbm, dgru, sem.at[0])
    cp_misc = pltpu.make_async_copy(dmisc_hbm, dmisc, sem.at[1])
    cp_gru.start()
    cp_misc.start()

    def linear(x, ref, off, fan_in, lanes=None):
        # Slab layout: rows [off : off+fan_in] = W (pre-transposed), row off+fan_in = bias.
        lanes = ref.shape[1] if lanes is None else lanes
        w = ref[off:off + fan_in, 0:lanes]
        b = ref[off + fan_in:off + fan_in + 1, 0:lanes]
        # bf16 operands (MXU-native on v5e/v6e/v7x), f32 accumulate, f32 elementwise.
        return jnp.dot(x.astype(bf16), w, preferred_element_type=f32) + b.astype(f32)

    def gru_step(gi, h, ref, off):
        # PyTorch GRU, gate order (r, z, n); gi already includes the ih bias.
        gh = linear(h, ref, off, H)
        r = jax.nn.sigmoid(gi[:, 0:H] + gh[:, 0:H])
        z = jax.nn.sigmoid(gi[:, H:2 * H] + gh[:, H:2 * H])
        n = jnp.tanh(gi[:, 2 * H:3 * H] + r * gh[:, 2 * H:3 * H])
        return n + z * (h - n)        # == (1-z)*n + z*h, one fewer serial VPU op

    # ---- encoder: embedding + input-gate matmuls hoisted out of the recurrence ----
    emb_all = linear(x_ref[...], enc_ref, E_EMB_OFF, OBS_SIZE, lanes=H)   # [L*B, H]
    gi_all = linear(emb_all, enc_ref, E_IH_OFF, H)                        # [L*B, 3H]

    h = jnp.zeros((B, H), f32)
    enc_rows = []
    for i in range(L):                                                    # static unroll (L=8)
        h = gru_step(gi_all[i * B:(i + 1) * B, :], h, enc_ref, E_HH_OFF)
        # PyTorch quirk (mirrored faithfully): encoder_outputs[i] = encoder_output[0, 0]
        enc_rows.append(h[0:1, :])
    # Zero-pad to 128 rows so the lane-padded attention weights can be applied directly.
    enc_rows.append(jnp.zeros((H - L, H), f32))
    enc_mat = jnp.concatenate(enc_rows, axis=0)                           # [128, H]

    # Decoder / value weights must be resident beyond this point.
    cp_gru.wait()
    cp_misc.wait()

    # ---- value branch: Linear -> ReLU -> Linear -> ReLU -> Linear ----
    # Independent of the decoder chain; free filler under the MXU-latency-bound GRU.
    v = jnp.maximum(linear(obs_flat_ref[...], dmisc, V0_OFF, L * OBS_SIZE), 0.0)
    v = jnp.maximum(linear(v, dmisc, V1_OFF, H), 0.0)
    value_col = linear(v, dmisc, V2_OFF, H)          # [B, 128]; value in lane A, zeros elsewhere

    # ---- decoder: attention + attn_combine + GRU + output head ----
    dec_in = jnp.zeros((B, H), f32)                  # lane-dense; cols >= ACTION_SIZE stay 0
    for i in range(L):                               # static unroll (L = 8)
        emb = linear(dec_in, dmisc, D_EMB_OFF, H)    # [B, H]  (dropout_p = 0 -> identity)
        # single K=2H contraction on a lane-aligned concat (MXU-accumulated)
        logits = linear(jnp.concatenate([emb, h], axis=1), dmisc, D_ATTN_OFF, 2 * H)
        m = jnp.max(logits, axis=1, keepdims=True)   # padded lanes are -1e30 -> never win
        e = jnp.exp(logits - m)                      # padded lanes underflow to exactly 0
        attn = e * pl.reciprocal(jnp.sum(e, axis=1, keepdims=True), approx=True)
        applied = jnp.dot(attn.astype(bf16), enc_mat.astype(bf16),
                          preferred_element_type=f32)                    # [B, H]
        x = jnp.tanh(linear(jnp.concatenate([emb, applied], axis=1),
                            dmisc, D_COMB_OFF, 2 * H))                   # [B, H]
        gi = linear(x, dgru, D_IH_OFF, H)                                # [B, 3H]
        h = gru_step(gi, h, dgru, D_HH_OFF)
        dec_in = jnp.tanh(linear(h, dmisc, D_OUT_OFF, H))                # [B, 128], cols>=A == 0

    # ---- single lane-dense unmasked output store ----
    out_ref[...] = dec_in + value_col


def pack_params(params):
    """One-time packing (off the hot path) of all Linear/GRU tensors into 3 bf16 slabs."""
    (e_emb_w, e_emb_b, e_ih_w, e_ih_b, e_hh_w, e_hh_b,
     d_emb_w, d_emb_b, d_attn_w, d_attn_b, d_comb_w, d_comb_b,
     d_ih_w, d_ih_b, d_hh_w, d_hh_b, d_out_w, d_out_b,
     v0_w, v0_b, v1_w, v1_b, v2_w, v2_b) = params
    H, A = HIDDEN, ACTION_SIZE

    def block(w, b, rows, lanes, *, bias_row=None, col_off=0, bias_pad=0.0):
        """[W ; b] placed into a zeroed [rows, lanes] block, starting at lane col_off."""
        fi, fo = w.shape
        bias_row = fi if bias_row is None else bias_row
        blk = jnp.zeros((rows, lanes), jnp.float32)
        blk = blk.at[:fi, col_off:col_off + fo].set(w.astype(jnp.float32))
        brow = jnp.full((1, lanes), bias_pad, jnp.float32)
        brow = brow.at[:, col_off:col_off + fo].set(b.astype(jnp.float32))
        blk = blk.at[bias_row:bias_row + 1, :].set(brow)
        return blk

    enc = jnp.concatenate([
        block(e_emb_w, e_emb_b, _r16(OBS_SIZE + 1), 3 * H),
        block(e_ih_w, e_ih_b, _r16(H + 1), 3 * H),
        block(e_hh_w, e_hh_b, _r16(H + 1), 3 * H),
    ], axis=0)
    dgru = jnp.concatenate([
        block(d_ih_w, d_ih_b, _r16(H + 1), 3 * H),
        block(d_hh_w, d_hh_b, _r16(H + 1), 3 * H),
    ], axis=0)
    dmisc = jnp.concatenate([
        block(d_emb_w, d_emb_b, _r16(H + 1), H, bias_row=H),       # fan_in padded A -> H
        block(d_attn_w, d_attn_b, _r16(2 * H + 1), H, bias_pad=-1e30),  # pad lanes -> -inf-ish
        block(d_comb_w, d_comb_b, _r16(2 * H + 1), H),
        block(d_out_w, d_out_b, _r16(H + 1), H),                   # fan_out padded A -> H
        block(v0_w, v0_b, _r16(H + 1), H),
        block(v1_w, v1_b, _r16(H + 1), H),
        block(v2_w, v2_b, _r16(H + 1), H, col_off=A),              # value column at lane A
    ], axis=0)
    assert enc.shape[0] == ENC_ROWS and dgru.shape[0] == DGRU_ROWS and dmisc.shape[0] == DMISC_ROWS
    bf16 = jnp.bfloat16
    return (jax.device_put(enc.astype(bf16)),
            jax.device_put(dgru.astype(bf16)),
            jax.device_put(dmisc.astype(bf16)))


@jax.jit
def attention_seq_forward(obs, packed):
    """obs: [B, num_light, obs_size] float32 -> (decoder_out [B, A], value [B, 1])."""
    enc_slab, dgru_slab, dmisc_slab = packed
    B, L, O = obs.shape
    obs = obs.astype(jnp.float32)
    x_lbo = jnp.transpose(obs, (1, 0, 2)).reshape(L * B, O)      # time-major [L*B, O]
    obs_flat = obs.reshape(B, L * O)                             # [B, L*O] (== obs_flat)

    vmem = pl.BlockSpec(memory_space=pltpu.MemorySpace.VMEM)
    hbm = pl.BlockSpec(memory_space=pl.ANY)                      # deferred, manual DMA
    out = pl.pallas_call(
        attention_seq_kernel,
        out_shape=jax.ShapeDtypeStruct((B, HIDDEN), jnp.float32),
        in_specs=[vmem, vmem, vmem, hbm, hbm],
        out_specs=vmem,
        scratch_shapes=[
            pltpu.VMEM((DGRU_ROWS, 3 * HIDDEN), jnp.bfloat16),
            pltpu.VMEM((DMISC_ROWS, HIDDEN), jnp.bfloat16),
            pltpu.SemaphoreType.DMA((2,)),
        ],
    )(x_lbo, obs_flat, enc_slab, dgru_slab, dmisc_slab)
    return out[:, :ACTION_SIZE], out[:, ACTION_SIZE:ACTION_SIZE + 1]


def init_params(key):
    """Deterministic PyTorch-style uniform(-1/sqrt(fan_in), 1/sqrt(fan_in)) init."""
    def linear_params(k, fan_in, fan_out):
        k1, k2 = jax.random.split(k)
        bound = 1.0 / np.sqrt(fan_in)
        w = jax.random.uniform(k1, (fan_in, fan_out), jnp.float32, -bound, bound)
        b = jax.random.uniform(k2, (1, fan_out), jnp.float32, -bound, bound)
        return w, b

    H, O, A, L = HIDDEN, OBS_SIZE, ACTION_SIZE, NUM_LIGHT
    ks = jax.random.split(key, 12)
    e_emb_w, e_emb_b = linear_params(ks[0], O, H)          # encoder.embedding
    e_ih_w, e_ih_b = linear_params(ks[1], H, 3 * H)        # encoder.gru weight_ih / bias_ih
    e_hh_w, e_hh_b = linear_params(ks[2], H, 3 * H)        # encoder.gru weight_hh / bias_hh
    d_emb_w, d_emb_b = linear_params(ks[3], A, H)          # decoder.embedding
    d_attn_w, d_attn_b = linear_params(ks[4], 2 * H, L)    # decoder.attn
    d_comb_w, d_comb_b = linear_params(ks[5], 2 * H, H)    # decoder.attn_combine
    d_ih_w, d_ih_b = linear_params(ks[6], H, 3 * H)        # decoder.gru weight_ih / bias_ih
    d_hh_w, d_hh_b = linear_params(ks[7], H, 3 * H)        # decoder.gru weight_hh / bias_hh
    d_out_w, d_out_b = linear_params(ks[8], H, A)          # decoder.out
    v0_w, v0_b = linear_params(ks[9], O * L, 128)          # value branch
    v1_w, v1_b = linear_params(ks[10], 128, 128)
    v2_w, v2_b = linear_params(ks[11], 128, 1)
    # decoder.fc is unused in forward() -> not instantiated.
    return (e_emb_w, e_emb_b, e_ih_w, e_ih_b, e_hh_w, e_hh_b,
            d_emb_w, d_emb_b, d_attn_w, d_attn_b, d_comb_w, d_comb_b,
            d_ih_w, d_ih_b, d_hh_w, d_hh_b, d_out_w, d_out_b,
            v0_w, v0_b, v1_w, v1_b, v2_w, v2_b)


def reference_forward(obs, params):
    """Pure-JAX mirror of the PyTorch forward() for a correctness check."""
    (e_emb_w, e_emb_b, e_ih_w, e_ih_b, e_hh_w, e_hh_b,
     d_emb_w, d_emb_b, d_attn_w, d_attn_b, d_comb_w, d_comb_b,
     d_ih_w, d_ih_b, d_hh_w, d_hh_b, d_out_w, d_out_b,
     v0_w, v0_b, v1_w, v1_b, v2_w, v2_b) = params
    H = HIDDEN
    B, L, O = obs.shape

    def lin(x, w, b):
        return jnp.dot(x, w, preferred_element_type=jnp.float32) + b

    def gru(x, h, wi, bi, wh, bh):
        gi, gh = lin(x, wi, bi), lin(h, wh, bh)
        r = jax.nn.sigmoid(gi[:, :H] + gh[:, :H])
        z = jax.nn.sigmoid(gi[:, H:2 * H] + gh[:, H:2 * H])
        n = jnp.tanh(gi[:, 2 * H:] + r * gh[:, 2 * H:])
        return (1.0 - z) * n + z * h

    obs_flat = obs.reshape(B, L * O)
    v = jax.nn.relu(lin(obs_flat, v0_w, v0_b))
    v = jax.nn.relu(lin(v, v1_w, v1_b))
    value = lin(v, v2_w, v2_b)

    h = jnp.zeros((B, H), jnp.float32)
    enc_outs = jnp.zeros((L, H), jnp.float32)
    for i in range(L):
        emb = lin(obs[:, i, :], e_emb_w, e_emb_b)
        h = gru(emb, h, e_ih_w, e_ih_b, e_hh_w, e_hh_b)
        enc_outs = enc_outs.at[i].set(h[0])

    dec_in, dh = jnp.zeros((B, ACTION_SIZE), jnp.float32), h
    for i in range(L):
        emb = lin(dec_in, d_emb_w, d_emb_b)
        attn = jax.nn.softmax(lin(jnp.concatenate([emb, dh], 1), d_attn_w, d_attn_b), axis=1)
        applied = jnp.dot(attn, enc_outs, preferred_element_type=jnp.float32)
        x = jnp.tanh(lin(jnp.concatenate([emb, applied], 1), d_comb_w, d_comb_b))
        dh = gru(x, dh, d_ih_w, d_ih_b, d_hh_w, d_hh_b)
        dec_in = jnp.tanh(lin(dh, d_out_w, d_out_b))
    return dec_in, value


if __name__ == "__main__":
    key = jax.random.PRNGKey(0)
    k_obs, k_par = jax.random.split(key)
    obs = jax.random.normal(k_obs, (BATCH, NUM_LIGHT, OBS_SIZE), jnp.float32)
    params = init_params(k_par)
    packed = pack_params(params)          # one-time packing, off the per-call hot path

    dec_out, value_out = jax.block_until_ready(attention_seq_forward(obs, packed))

    # The kernel stores weights in bf16 (deliberate HBM-bandwidth optimization, per
    # perf review); the reference uses the same bf16-roundtripped weights so the
    # check isolates kernel-structure correctness. Elementwise math is f32 in both.
    params_q = jax.tree_util.tree_map(
        lambda p: p.astype(jnp.bfloat16).astype(jnp.float32), params)
    ref_dec, ref_val = reference_forward(obs, params_q)

    assert dec_out.shape == (BATCH, ACTION_SIZE) and value_out.shape == (BATCH, 1)
    np.testing.assert_allclose(np.asarray(dec_out), np.asarray(ref_dec), rtol=2e-2, atol=2e-2)
    np.testing.assert_allclose(np.asarray(value_out), np.asarray(ref_val), rtol=2e-2, atol=2e-2)
    print("KERNEL_OK")
</pallas_src>

<mosaic_0001>
module attributes {stable_mosaic.version = 11 : i64} {
  func.func @attention_seq_kernel(%arg0: memref<16x16xf32, #tpu.memory_space<vmem>>, %arg1: memref<2x128xf32, #tpu.memory_space<vmem>>, %arg2: memref<320x384xbf16, #tpu.memory_space<vmem>>, %arg3: memref<288x384xbf16, #tpu.memory_space<any>>, %arg4: memref<1264x128xbf16, #tpu.memory_space<any>>, %arg5: memref<2x128xf32, #tpu.memory_space<vmem>>, %arg6: memref<288x384xbf16, #tpu.memory_space<vmem>>, %arg7: memref<1264x128xbf16, #tpu.memory_space<vmem>>, %arg8: memref<2x!tpu.dma_semaphore, #tpu.memory_space<semaphore_mem>>) attributes {dimension_semantics = [], scalar_prefetch = 0 : i64, scratch_operands = 3 : i64, tpu.core_type = #tpu.core_type<tc>} {
    %c0_i32 = arith.constant 0 : i32
    %0 = tpu.memref_slice %arg8[%c0_i32] : memref<2x!tpu.dma_semaphore, #tpu.memory_space<semaphore_mem>> -> memref<1x!tpu.dma_semaphore, #tpu.memory_space<semaphore_mem>>
    %1 = tpu.memref_squeeze %0 : memref<1x!tpu.dma_semaphore, #tpu.memory_space<semaphore_mem>> -> memref<!tpu.dma_semaphore, #tpu.memory_space<semaphore_mem>>
    tpu.enqueue_dma source(%arg3 : memref<288x384xbf16, #tpu.memory_space<any>>) target(%arg6 : memref<288x384xbf16, #tpu.memory_space<vmem>>) target_semaphore(%1 : memref<!tpu.dma_semaphore, #tpu.memory_space<semaphore_mem>>)
    %c1_i32 = arith.constant 1 : i32
    %2 = tpu.memref_slice %arg8[%c1_i32] : memref<2x!tpu.dma_semaphore, #tpu.memory_space<semaphore_mem>> -> memref<1x!tpu.dma_semaphore, #tpu.memory_space<semaphore_mem>>
    %3 = tpu.memref_squeeze %2 : memref<1x!tpu.dma_semaphore, #tpu.memory_space<semaphore_mem>> -> memref<!tpu.dma_semaphore, #tpu.memory_space<semaphore_mem>>
    tpu.enqueue_dma source(%arg4 : memref<1264x128xbf16, #tpu.memory_space<any>>) target(%arg7 : memref<1264x128xbf16, #tpu.memory_space<vmem>>) target_semaphore(%3 : memref<!tpu.dma_semaphore, #tpu.memory_space<semaphore_mem>>)
    %c0 = arith.constant 0 : index
    %c0_0 = arith.constant 0 : index
    %4 = vector.load %arg0[%c0, %c0_0] : memref<16x16xf32, #tpu.memory_space<vmem>>, vector<16x16xf32>
    %c0_1 = arith.constant 0 : index
    %c0_2 = arith.constant 0 : index
    %5 = vector.load %arg2[%c0_1, %c0_2] : memref<320x384xbf16, #tpu.memory_space<vmem>>, vector<16x128xbf16>
    %c16 = arith.constant 16 : index
    %c0_3 = arith.constant 0 : index
    %6 = vector.load %arg2[%c16, %c0_3] : memref<320x384xbf16, #tpu.memory_space<vmem>>, vector<1x128xbf16>
    %7 = arith.truncf %4 : vector<16x16xf32> to vector<16x16xbf16>
    %cst = arith.constant dense<0.000000e+00> : vector<16x128xf32>
    %8 = tpu.matmul %7, %5, %cst {dimension_numbers = #tpu.dot_dimension_numbers<[1], [0], [0], [1], [0, 0, 1, 1], [], []>} : vector<16x16xbf16>, vector<16x128xbf16>, vector<16x128xf32> -> vector<16x128xf32>
    %9 = arith.extf %6 : vector<1x128xbf16> to vector<1x128xf32>
    %10 = vector.broadcast %9 : vector<1x128xf32> to vector<16x128xf32>
    %11 = arith.addf %8, %10 : vector<16x128xf32>
    %c32 = arith.constant 32 : index
    %c0_4 = arith.constant 0 : index
    %12 = vector.load %arg2[%c32, %c0_4] : memref<320x384xbf16, #tpu.memory_space<vmem>>, vector<128x384xbf16>
    %c160 = arith.constant 160 : index
    %c0_5 = arith.constant 0 : index
    %13 = vector.load %arg2[%c160, %c0_5] : memref<320x384xbf16, #tpu.memory_space<vmem>>, vector<1x384xbf16>
    %14 = arith.truncf %11 : vector<16x128xf32> to vector<16x128xbf16>
    %cst_6 = arith.constant dense<0.000000e+00> : vector<16x384xf32>
    %15 = tpu.matmul %14, %12, %cst_6 {dimension_numbers = #tpu.dot_dimension_numbers<[1], [0], [0], [1], [0, 0, 1, 1], [], []>} : vector<16x128xbf16>, vector<128x384xbf16>, vector<16x384xf32> -> vector<16x384xf32>
    %16 = arith.extf %13 : vector<1x384xbf16> to vector<1x384xf32>
    %17 = vector.broadcast %16 : vector<1x384xf32> to vector<16x384xf32>
    %18 = arith.addf %15, %17 : vector<16x384xf32>
    %cst_7 = arith.constant 0.000000e+00 : f32
    %19 = vector.broadcast %cst_7 : f32 to vector<2x128xf32>
    %20 = vector.extract_strided_slice %18 {offsets = [0, 0], sizes = [2, 384], strides = [1, 1]} : vector<16x384xf32> to vector<2x384xf32>
    %c176 = arith.constant 176 : index
    %c0_8 = arith.constant 0 : index
    %21 = vector.load %arg2[%c176, %c0_8] : memref<320x384xbf16, #tpu.memory_space<vmem>>, vector<128x384xbf16>
    %c304 = arith.constant 304 : index
    %c0_9 = arith.constant 0 : index
    %22 = vector.load %arg2[%c304, %c0_9] : memref<320x384xbf16, #tpu.memory_space<vmem>>, vector<1x384xbf16>
    %23 = arith.truncf %19 : vector<2x128xf32> to vector<2x128xbf16>
    %cst_10 = arith.constant dense<0.000000e+00> : vector<2x384xf32>
    %24 = tpu.matmul %23, %21, %cst_10 {dimension_numbers = #tpu.dot_dimension_numbers<[1], [0], [0], [1], [0, 0, 1, 1], [], []>} : vector<2x128xbf16>, vector<128x384xbf16>, vector<2x384xf32> -> vector<2x384xf32>
    %25 = arith.extf %22 : vector<1x384xbf16> to vector<1x384xf32>
    %26 = vector.broadcast %25 : vector<1x384xf32> to vector<2x384xf32>
    %27 = arith.addf %24, %26 : vector<2x384xf32>
    %28 = vector.extract_strided_slice %20 {offsets = [0, 0], sizes = [2, 128], strides = [1, 1]} : vector<2x384xf32> to vector<2x128xf32>
    %29 = vector.extract_strided_slice %27 {offsets = [0, 0], sizes = [2, 128], strides = [1, 1]} : vector<2x384xf32> to vector<2x128xf32>
    %30 = arith.addf %28, %29 : vector<2x128xf32>
    %31 = arith.negf %30 : vector<2x128xf32>
    %32 = math.exp %31 : vector<2x128xf32>
    %cst_11 = arith.constant 1.000000e+00 : f32
    %33 = vector.broadcast %cst_11 : f32 to vector<2x128xf32>
    %34 = arith.addf %33, %32 : vector<2x128xf32>
    %35 = arith.divf %33, %34 : vector<2x128xf32>
    %36 = vector.extract_strided_slice %20 {offsets = [0, 128], sizes = [2, 128], strides = [1, 1]} : vector<2x384xf32> to vector<2x128xf32>
    %37 = vector.extract_strided_slice %27 {offsets = [0, 128], sizes = [2, 128], strides = [1, 1]} : vector<2x384xf32> to vector<2x128xf32>
    %38 = arith.addf %36, %37 : vector<2x128xf32>
    %39 = arith.negf %38 : vector<2x128xf32>
    %40 = math.exp %39 : vector<2x128xf32>
    %cst_12 = arith.constant 1.000000e+00 : f32
    %41 = vector.broadcast %cst_12 : f32 to vector<2x128xf32>
    %42 = arith.addf %41, %40 : vector<2x128xf32>
    %43 = arith.divf %41, %42 : vector<2x128xf32>
    %44 = vector.extract_strided_slice %20 {offsets = [0, 256], sizes = [2, 128], strides = [1, 1]} : vector<2x384xf32> to vector<2x128xf32>
    %45 = vector.extract_strided_slice %27 {offsets = [0, 256], sizes = [2, 128], strides = [1, 1]} : vector<2x384xf32> to vector<2x128xf32>
    %46 = arith.mulf %35, %45 : vector<2x128xf32>
    %47 = arith.addf %44, %46 : vector<2x128xf32>
    %48 = math.tanh %47 : vector<2x128xf32>
    %49 = arith.subf %19, %48 : vector<2x128xf32>
    %50 = arith.mulf %43, %49 : vector<2x128xf32>
    %51 = arith.addf %48, %50 : vector<2x128xf32>
    %52 = vector.extract_strided_slice %51 {offsets = [0, 0], sizes = [1, 128], strides = [1, 1]} : vector<2x128xf32> to vector<1x128xf32>
    %53 = vector.extract_strided_slice %18 {offsets = [2, 0], sizes = [2, 384], strides = [1, 1]} : vector<16x384xf32> to vector<2x384xf32>
    %c176_13 = arith.constant 176 : index
    %c0_14 = arith.constant 0 : index
    %54 = vector.load %arg2[%c176_13, %c0_14] : memref<320x384xbf16, #tpu.memory_space<vmem>>, vector<128x384xbf16>
    %c304_15 = arith.constant 304 : index
    %c0_16 = arith.constant 0 : index
    %55 = vector.load %arg2[%c304_15, %c0_16] : memref<320x384xbf16, #tpu.memory_space<vmem>>, vector<1x384xbf16>
    %56 = arith.truncf %51 : vector<2x128xf32> to vector<2x128xbf16>
    %cst_17 = arith.constant dense<0.000000e+00> : vector<2x384xf32>
    %57 = tpu.matmul %56, %54, %cst_17 {dimension_numbers = #tpu.dot_dimension_numbers<[1], [0], [0], [1], [0, 0, 1, 1], [], []>} : vector<2x128xbf16>, vector<128x384xbf16>, vector<2x384xf32> -> vector<2x384xf32>
    %58 = arith.extf %55 : vector<1x384xbf16> to vector<1x384xf32>
    %59 = vector.broadcast %58 : vector<1x384xf32> to vector<2x384xf32>
    %60 = arith.addf %57, %59 : vector<2x384xf32>
    %61 = vector.extract_strided_slice %53 {offsets = [0, 0], sizes = [2, 128], strides = [1, 1]} : vector<2x384xf32> to vector<2x128xf32>
    %62 = vector.extract_strided_slice %60 {offsets = [0, 0], sizes = [2, 128], strides = [1, 1]} : vector<2x384xf32> to vector<2x128xf32>
    %63 = arith.addf %61, %62 : vector<2x128xf32>
    %64 = arith.negf %63 : vector<2x128xf32>
    %65 = math.exp %64 : vector<2x128xf32>
    %cst_18 = arith.constant 1.000000e+00 : f32
    %66 = vector.broadcast %cst_18 : f32 to vector<2x128xf32>
    %67 = arith.addf %66, %65 : vector<2x128xf32>
    %68 = arith.divf %66, %67 : vector<2x128xf32>
    %69 = vector.extract_strided_slice %53 {offsets = [0, 128], sizes = [2, 128], strides = [1, 1]} : vector<2x384xf32> to vector<2x128xf32>
    %70 = vector.extract_strided_slice %60 {offsets = [0, 128], sizes = [2, 128], strides = [1, 1]} : vector<2x384xf32> to vector<2x128xf32>
    %71 = arith.addf %69, %70 : vector<2x128xf32>
    %72 = arith.negf %71 : vector<2x128xf32>
    %73 = math.exp %72 : vector<2x128xf32>
    %cst_19 = arith.constant 1.000000e+00 : f32
    %74 = vector.broadcast %cst_19 : f32 to vector<2x128xf32>
    %75 = arith.addf %74, %73 : vector<2x128xf32>
    %76 = arith.divf %74, %75 : vector<2x128xf32>
    %77 = vector.extract_strided_slice %53 {offsets = [0, 256], sizes = [2, 128], strides = [1, 1]} : vector<2x384xf32> to vector<2x128xf32>
    %78 = vector.extract_strided_slice %60 {offsets = [0, 256], sizes = [2, 128], strides = [1, 1]} : vector<2x384xf32> to vector<2x128xf32>
    %79 = arith.mulf %68, %78 : vector<2x128xf32>
    %80 = arith.addf %77, %79 : vector<2x128xf32>
    %81 = math.tanh %80 : vector<2x128xf32>
    %82 = arith.subf %51, %81 : vector<2x128xf32>
    %83 = arith.mulf %76, %82 : vector<2x128xf32>
    %84 = arith.addf %81, %83 : vector<2x128xf32>
    %85 = vector.extract_strided_slice %84 {offsets = [0, 0], sizes = [1, 128], strides = [1, 1]} : vector<2x128xf32> to vector<1x128xf32>
    %86 = vector.extract_strided_slice %18 {offsets = [4, 0], sizes = [2, 384], strides = [1, 1]} : vector<16x384xf32> to vector<2x384xf32>
    %c176_20 = arith.constant 176 : index
    %c0_21 = arith.constant 0 : index
    %87 = vector.load %arg2[%c176_20, %c0_21] : memref<320x384xbf16, #tpu.memory_space<vmem>>, vector<128x384xbf16>
    %c304_22 = arith.constant 304 : index
    %c0_23 = arith.constant 0 : index
    %88 = vector.load %arg2[%c304_22, %c0_23] : memref<320x384xbf16, #tpu.memory_space<vmem>>, vector<1x384xbf16>
    %89 = arith.truncf %84 : vector<2x128xf32> to vector<2x128xbf16>
    %cst_24 = arith.constant dense<0.000000e+00> : vector<2x384xf32>
    %90 = tpu.matmul %89, %87, %cst_24 {dimension_numbers = #tpu.dot_dimension_numbers<[1], [0], [0], [1], [0, 0, 1, 1], [], []>} : vector<2x128xbf16>, vector<128x384xbf16>, vector<2x384xf32> -> vector<2x384xf32>
    %91 = arith.extf %88 : vector<1x384xbf16> to vector<1x384xf32>
    %92 = vector.broadcast %91 : vector<1x384xf32> to vector<2x384xf32>
    %93 = arith.addf %90, %92 : vector<2x384xf32>
    %94 = vector.extract_strided_slice %86 {offsets = [0, 0], sizes = [2, 128], strides = [1, 1]} : vector<2x384xf32> to vector<2x128xf32>
    %95 = vector.extract_strided_slice %93 {offsets = [0, 0], sizes = [2, 128], strides = [1, 1]} : vector<2x384xf32> to vector<2x128xf32>
    %96 = arith.addf %94, %95 : vector<2x128xf32>
    %97 = arith.negf %96 : vector<2x128xf32>
    %98 = math.exp %97 : vector<2x128xf32>
    %cst_25 = arith.constant 1.000000e+00 : f32
    %99 = vector.broadcast %cst_25 : f32 to vector<2x128xf32>
    %100 = arith.addf %99, %98 : vector<2x128xf32>
    %101 = arith.divf %99, %100 : vector<2x128xf32>
    %102 = vector.extract_strided_slice %86 {offsets = [0, 128], sizes = [2, 128], strides = [1, 1]} : vector<2x384xf32> to vector<2x128xf32>
    %103 = vector.extract_strided_slice %93 {offsets = [0, 128], sizes = [2, 128], strides = [1, 1]} : vector<2x384xf32> to vector<2x128xf32>
    %104 = arith.addf %102, %103 : vector<2x128xf32>
    %105 = arith.negf %104 : vector<2x128xf32>
    %106 = math.exp %105 : vector<2x128xf32>
    %cst_26 = arith.constant 1.000000e+00 : f32
    %107 = vector.broadcast %cst_26 : f32 to vector<2x128xf32>
    %108 = arith.addf %107, %106 : vector<2x128xf32>
    %109 = arith.divf %107, %108 : vector<2x128xf32>
    %110 = vector.extract_strided_slice %86 {offsets = [0, 256], sizes = [2, 128], strides = [1, 1]} : vector<2x384xf32> to vector<2x128xf32>
    %111 = vector.extract_strided_slice %93 {offsets = [0, 256], sizes = [2, 128], strides = [1, 1]} : vector<2x384xf32> to vector<2x128xf32>
    %112 = arith.mulf %101, %111 : vector<2x128xf32>
    %113 = arith.addf %110, %112 : vector<2x128xf32>
    %114 = math.tanh %113 : vector<2x128xf32>
    %115 = arith.subf %84, %114 : vector<2x128xf32>
    %116 = arith.mulf %109, %115 : vector<2x128xf32>
    %117 = arith.addf %114, %116 : vector<2x128xf32>
    %118 = vector.extract_strided_slice %117 {offsets = [0, 0], sizes = [1, 128], strides = [1, 1]} : vector<2x128xf32> to vector<1x128xf32>
    %119 = vector.extract_strided_slice %18 {offsets = [6, 0], sizes = [2, 384], strides = [1, 1]} : vector<16x384xf32> to vector<2x384xf32>
    %c176_27 = arith.constant 176 : index
    %c0_28 = arith.constant 0 : index
    %120 = vector.load %arg2[%c176_27, %c0_28] : memref<320x384xbf16, #tpu.memory_space<vmem>>, vector<128x384xbf16>
    %c304_29 = arith.constant 304 : index
    %c0_30 = arith.constant 0 : index
    %121 = vector.load %arg2[%c304_29, %c0_30] : memref<320x384xbf16, #tpu.memory_space<vmem>>, vector<1x384xbf16>
    %122 = arith.truncf %117 : vector<2x128xf32> to vector<2x128xbf16>
    %cst_31 = arith.constant dense<0.000000e+00> : vector<2x384xf32>
    %123 = tpu.matmul %122, %120, %cst_31 {dimension_numbers = #tpu.dot_dimension_numbers<[1], [0], [0], [1], [0, 0, 1, 1], [], []>} : vector<2x128xbf16>, vector<128x384xbf16>, vector<2x384xf32> -> vector<2x384xf32>
    %124 = arith.extf %121 : vector<1x384xbf16> to vector<1x384xf32>
    %125 = vector.broadcast %124 : vector<1x384xf32> to vector<2x384xf32>
    %126 = arith.addf %123, %125 : vector<2x384xf32>
    %127 = vector.extract_strided_slice %119 {offsets = [0, 0], sizes = [2, 128], strides = [1, 1]} : vector<2x384xf32> to vector<2x128xf32>
    %128 = vector.extract_strided_slice %126 {offsets = [0, 0], sizes = [2, 128], strides = [1, 1]} : vector<2x384xf32> to vector<2x128xf32>
    %129 = arith.addf %127, %128 : vector<2x128xf32>
    %130 = arith.negf %129 : vector<2x128xf32>
    %131 = math.exp %130 : vector<2x128xf32>
    %cst_32 = arith.constant 1.000000e+00 : f32
    %132 = vector.broadcast %cst_32 : f32 to vector<2x128xf32>
    %133 = arith.addf %132, %131 : vector<2x128xf32>
    %134 = arith.divf %132, %133 : vector<2x128xf32>
    %135 = vector.extract_strided_slice %119 {offsets = [0, 128], sizes = [2, 128], strides = [1, 1]} : vector<2x384xf32> to vector<2x128xf32>
    %136 = vector.extract_strided_slice %126 {offsets = [0, 128], sizes = [2, 128], strides = [1, 1]} : vector<2x384xf32> to vector<2x128xf32>
    %137 = arith.addf %135, %136 : vector<2x128xf32>
    %138 = arith.negf %137 : vector<2x128xf32>
    %139 = math.exp %138 : vector<2x128xf32>
    %cst_33 = arith.constant 1.000000e+00 : f32
    %140 = vector.broadcast %cst_33 : f32 to vector<2x128xf32>
    %141 = arith.addf %140, %139 : vector<2x128xf32>
    %142 = arith.divf %140, %141 : vector<2x128xf32>
    %143 = vector.extract_strided_slice %119 {offsets = [0, 256], sizes = [2, 128], strides = [1, 1]} : vector<2x384xf32> to vector<2x128xf32>
    %144 = vector.extract_strided_slice %126 {offsets = [0, 256], sizes = [2, 128], strides = [1, 1]} : vector<2x384xf32> to vector<2x128xf32>
    %145 = arith.mulf %134, %144 : vector<2x128xf32>
    %146 = arith.addf %143, %145 : vector<2x128xf32>
    %147 = math.tanh %146 : vector<2x128xf32>
    %148 = arith.subf %117, %147 : vector<2x128xf32>
    %149 = arith.mulf %142, %148 : vector<2x128xf32>
    %150 = arith.addf %147, %149 : vector<2x128xf32>
    %151 = vector.extract_strided_slice %150 {offsets = [0, 0], sizes = [1, 128], strides = [1, 1]} : vector<2x128xf32> to vector<1x128xf32>
    %152 = vector.extract_strided_slice %18 {offsets = [8, 0], sizes = [2, 384], strides = [1, 1]} : vector<16x384xf32> to vector<2x384xf32>
    %c176_34 = arith.constant 176 : index
    %c0_35 = arith.constant 0 : index
    %153 = vector.load %arg2[%c176_34, %c0_35] : memref<320x384xbf16, #tpu.memory_space<vmem>>, vector<128x384xbf16>
    %c304_36 = arith.constant 304 : index
    %c0_37 = arith.constant 0 : index
    %154 = vector.load %arg2[%c304_36, %c0_37] : memref<320x384xbf16, #tpu.memory_space<vmem>>, vector<1x384xbf16>
    %155 = arith.truncf %150 : vector<2x128xf32> to vector<2x128xbf16>
    %cst_38 = arith.constant dense<0.000000e+00> : vector<2x384xf32>
    %156 = tpu.matmul %155, %153, %cst_38 {dimension_numbers = #tpu.dot_dimension_numbers<[1], [0], [0], [1], [0, 0, 1, 1], [], []>} : vector<2x128xbf16>, vector<128x384xbf16>, vector<2x384xf32> -> vector<2x384xf32>
    %157 = arith.extf %154 : vector<1x384xbf16> to vector<1x384xf32>
    %158 = vector.broadcast %157 : vector<1x384xf32> to vector<2x384xf32>
    %159 = arith.addf %156, %158 : vector<2x384xf32>
    %160 = vector.extract_strided_slice %152 {offsets = [0, 0], sizes = [2, 128], strides = [1, 1]} : vector<2x384xf32> to vector<2x128xf32>
    %161 = vector.extract_strided_slice %159 {offsets = [0, 0], sizes = [2, 128], strides = [1, 1]} : vector<2x384xf32> to vector<2x128xf32>
    %162 = arith.addf %160, %161 : vector<2x128xf32>
    %163 = arith.negf %162 : vector<2x128xf32>
    %164 = math.exp %163 : vector<2x128xf32>
    %cst_39 = arith.constant 1.000000e+00 : f32
    %165 = vector.broadcast %cst_39 : f32 to vector<2x128xf32>
    %166 = arith.addf %165, %164 : vector<2x128xf32>
    %167 = arith.divf %165, %166 : vector<2x128xf32>
    %168 = vector.extract_strided_slice %152 {offsets = [0, 128], sizes = [2, 128], strides = [1, 1]} : vector<2x384xf32> to vector<2x128xf32>
    %169 = vector.extract_strided_slice %159 {offsets = [0, 128], sizes = [2, 128], strides = [1, 1]} : vector<2x384xf32> to vector<2x128xf32>
    %170 = arith.addf %168, %169 : vector<2x128xf32>
    %171 = arith.negf %170 : vector<2x128xf32>
    %172 = math.exp %171 : vector<2x128xf32>
    %cst_40 = arith.constant 1.000000e+00 : f32
    %173 = vector.broadcast %cst_40 : f32 to vector<2x128xf32>
    %174 = arith.addf %173, %172 : vector<2x128xf32>
    %175 = arith.divf %173, %174 : vector<2x128xf32>
    %176 = vector.extract_strided_slice %152 {offsets = [0, 256], sizes = [2, 128], strides = [1, 1]} : vector<2x384xf32> to vector<2x128xf32>
    %177 = vector.extract_strided_slice %159 {offsets = [0, 256], sizes = [2, 128], strides = [1, 1]} : vector<2x384xf32> to vector<2x128xf32>
    %178 = arith.mulf %167, %177 : vector<2x128xf32>
    %179 = arith.addf %176, %178 : vector<2x128xf32>
    %180 = math.tanh %179 : vector<2x128xf32>
    %181 = arith.subf %150, %180 : vector<2x128xf32>
    %182 = arith.mulf %175, %181 : vector<2x128xf32>
    %183 = arith.addf %180, %182 : vector<2x128xf32>
    %184 = vector.extract_strided_slice %183 {offsets = [0, 0], sizes = [1, 128], strides = [1, 1]} : vector<2x128xf32> to vector<1x128xf32>
    %185 = vector.extract_strided_slice %18 {offsets = [10, 0], sizes = [2, 384], strides = [1, 1]} : vector<16x384xf32> to vector<2x384xf32>
    %c176_41 = arith.constant 176 : index
    %c0_42 = arith.constant 0 : index
    %186 = vector.load %arg2[%c176_41, %c0_42] : memref<320x384xbf16, #tpu.memory_space<vmem>>, vector<128x384xbf16>
    %c304_43 = arith.constant 304 : index
    %c0_44 = arith.constant 0 : index
    %187 = vector.load %arg2[%c304_43, %c0_44] : memref<320x384xbf16, #tpu.memory_space<vmem>>, vector<1x384xbf16>
    %188 = arith.truncf %183 : vector<2x128xf32> to vector<2x128xbf16>
    %cst_45 = arith.constant dense<0.000000e+00> : vector<2x384xf32>
    %189 = tpu.matmul %188, %186, %cst_45 {dimension_numbers = #tpu.dot_dimension_numbers<[1], [0], [0], [1], [0, 0, 1, 1], [], []>} : vector<2x128xbf16>, vector<128x384xbf16>, vector<2x384xf32> -> vector<2x384xf32>
    %190 = arith.extf %187 : vector<1x384xbf16> to vector<1x384xf32>
    %191 = vector.broadcast %190 : vector<1x384xf32> to vector<2x384xf32>
    %192 = arith.addf %189, %191 : vector<2x384xf32>
    %193 = vector.extract_strided_slice %185 {offsets = [0, 0], sizes = [2, 128], strides = [1, 1]} : vector<2x384xf32> to vector<2x128xf32>
    %194 = vector.extract_strided_slice %192 {offsets = [0, 0], sizes = [2, 128], strides = [1, 1]} : vector<2x384xf32> to vector<2x128xf32>
    %195 = arith.addf %193, %194 : vector<2x128xf32>
    %196 = arith.negf %195 : vector<2x128xf32>
    %197 = math.exp %196 : vector<2x128xf32>
    %cst_46 = arith.constant 1.000000e+00 : f32
    %198 = vector.broadcast %cst_46 : f32 to vector<2x128xf32>
    %199 = arith.addf %198, %197 : vector<2x128xf32>
    %200 = arith.divf %198, %199 : vector<2x128xf32>
    %201 = vector.extract_strided_slice %185 {offsets = [0, 128], sizes = [2, 128], strides = [1, 1]} : vector<2x384xf32> to vector<2x128xf32>
    %202 = vector.extract_strided_slice %192 {offsets = [0, 128], sizes = [2, 128], strides = [1, 1]} : vector<2x384xf32> to vector<2x128xf32>
    %203 = arith.addf %201, %202 : vector<2x128xf32>
    %204 = arith.negf %203 : vector<2x128xf32>
    %205 = math.exp %204 : vector<2x128xf32>
    %cst_47 = arith.constant 1.000000e+00 : f32
    %206 = vector.broadcast %cst_47 : f32 to vector<2x128xf32>
    %207 = arith.addf %206, %205 : vector<2x128xf32>
    %208 = arith.divf %206, %207 : vector<2x128xf32>
    %209 = vector.extract_strided_slice %185 {offsets = [0, 256], sizes = [2, 128], strides = [1, 1]} : vector<2x384xf32> to vector<2x128xf32>
    %210 = vector.extract_strided_slice %192 {offsets = [0, 256], sizes = [2, 128], strides = [1, 1]} : vector<2x384xf32> to vector<2x128xf32>
    %211 = arith.mulf %200, %210 : vector<2x128xf32>
    %212 = arith.addf %209, %211 : vector<2x128xf32>
    %213 = math.tanh %212 : vector<2x128xf32>
    %214 = arith.subf %183, %213 : vector<2x128xf32>
    %215 = arith.mulf %208, %214 : vector<2x128xf32>
    %216 = arith.addf %213, %215 : vector<2x128xf32>
    %217 = vector.extract_strided_slice %216 {offsets = [0, 0], sizes = [1, 128], strides = [1, 1]} : vector<2x128xf32> to vector<1x128xf32>
    %218 = vector.extract_strided_slice %18 {offsets = [12, 0], sizes = [2, 384], strides = [1, 1]} : vector<16x384xf32> to vector<2x384xf32>
    %c176_48 = arith.constant 176 : index
    %c0_49 = arith.constant 0 : index
    %219 = vector.load %arg2[%c176_48, %c0_49] : memref<320x384xbf16, #tpu.memory_space<vmem>>, vector<128x384xbf16>
    %c304_50 = arith.constant 304 : index
    %c0_51 = arith.constant 0 : index
    %220 = vector.load %arg2[%c304_50, %c0_51] : memref<320x384xbf16, #tpu.memory_space<vmem>>, vector<1x384xbf16>
    %221 = arith.truncf %216 : vector<2x128xf32> to vector<2x128xbf16>
    %cst_52 = arith.constant dense<0.000000e+00> : vector<2x384xf32>
    %222 = tpu.matmul %221, %219, %cst_52 {dimension_numbers = #tpu.dot_dimension_numbers<[1], [0], [0], [1], [0, 0, 1, 1], [], []>} : vector<2x128xbf16>, vector<128x384xbf16>, vector<2x384xf32> -> vector<2x384xf32>
    %223 = arith.extf %220 : vector<1x384xbf16> to vector<1x384xf32>
    %224 = vector.broadcast %223 : vector<1x384xf32> to vector<2x384xf32>
    %225 = arith.addf %222, %224 : vector<2x384xf32>
    %226 = vector.extract_strided_slice %218 {offsets = [0, 0], sizes = [2, 128], strides = [1, 1]} : vector<2x384xf32> to vector<2x128xf32>
    %227 = vector.extract_strided_slice %225 {offsets = [0, 0], sizes = [2, 128], strides = [1, 1]} : vector<2x384xf32> to vector<2x128xf32>
    %228 = arith.addf %226, %227 : vector<2x128xf32>
    %229 = arith.negf %228 : vector<2x128xf32>
    %230 = math.exp %229 : vector<2x128xf32>
    %cst_53 = arith.constant 1.000000e+00 : f32
    %231 = vector.broadcast %cst_53 : f32 to vector<2x128xf32>
    %232 = arith.addf %231, %230 : vector<2x128xf32>
    %233 = arith.divf %231, %232 : vector<2x128xf32>
    %234 = vector.extract_strided_slice %218 {offsets = [0, 128], sizes = [2, 128], strides = [1, 1]} : vector<2x384xf32> to vector<2x128xf32>
    %235 = vector.extract_strided_slice %225 {offsets = [0, 128], sizes = [2, 128], strides = [1, 1]} : vector<2x384xf32> to vector<2x128xf32>
    %236 = arith.addf %234, %235 : vector<2x128xf32>
    %237 = arith.negf %236 : vector<2x128xf32>
    %238 = math.exp %237 : vector<2x128xf32>
    %cst_54 = arith.constant 1.000000e+00 : f32
    %239 = vector.broadcast %cst_54 : f32 to vector<2x128xf32>
    %240 = arith.addf %239, %238 : vector<2x128xf32>
    %241 = arith.divf %239, %240 : vector<2x128xf32>
    %242 = vector.extract_strided_slice %218 {offsets = [0, 256], sizes = [2, 128], strides = [1, 1]} : vector<2x384xf32> to vector<2x128xf32>
    %243 = vector.extract_strided_slice %225 {offsets = [0, 256], sizes = [2, 128], strides = [1, 1]} : vector<2x384xf32> to vector<2x128xf32>
    %244 = arith.mulf %233, %243 : vector<2x128xf32>
    %245 = arith.addf %242, %244 : vector<2x128xf32>
    %246 = math.tanh %245 : vector<2x128xf32>
    %247 = arith.subf %216, %246 : vector<2x128xf32>
    %248 = arith.mulf %241, %247 : vector<2x128xf32>
    %249 = arith.addf %246, %248 : vector<2x128xf32>
    %250 = vector.extract_strided_slice %249 {offsets = [0, 0], sizes = [1, 128], strides = [1, 1]} : vector<2x128xf32> to vector<1x128xf32>
    %251 = vector.extract_strided_slice %18 {offsets = [14, 0], sizes = [2, 384], strides = [1, 1]} : vector<16x384xf32> to vector<2x384xf32>
    %c176_55 = arith.constant 176 : index
    %c0_56 = arith.constant 0 : index
    %252 = vector.load %arg2[%c176_55, %c0_56] : memref<320x384xbf16, #tpu.memory_space<vmem>>, vector<128x384xbf16>
    %c304_57 = arith.constant 304 : index
    %c0_58 = arith.constant 0 : index
    %253 = vector.load %arg2[%c304_57, %c0_58] : memref<320x384xbf16, #tpu.memory_space<vmem>>, vector<1x384xbf16>
    %254 = arith.truncf %249 : vector<2x128xf32> to vector<2x128xbf16>
    %cst_59 = arith.constant dense<0.000000e+00> : vector<2x384xf32>
    %255 = tpu.matmul %254, %252, %cst_59 {dimension_numbers = #tpu.dot_dimension_numbers<[1], [0], [0], [1], [0, 0, 1, 1], [], []>} : vector<2x128xbf16>, vector<128x384xbf16>, vector<2x384xf32> -> vector<2x384xf32>
    %256 = arith.extf %253 : vector<1x384xbf16> to vector<1x384xf32>
    %257 = vector.broadcast %256 : vector<1x384xf32> to vector<2x384xf32>
    %258 = arith.addf %255, %257 : vector<2x384xf32>
    %259 = vector.extract_strided_slice %251 {offsets = [0, 0], sizes = [2, 128], strides = [1, 1]} : vector<2x384xf32> to vector<2x128xf32>
    %260 = vector.extract_strided_slice %258 {offsets = [0, 0], sizes = [2, 128], strides = [1, 1]} : vector<2x384xf32> to vector<2x128xf32>
    %261 = arith.addf %259, %260 : vector<2x128xf32>
    %262 = arith.negf %261 : vector<2x128xf32>
    %263 = math.exp %262 : vector<2x128xf32>
    %cst_60 = arith.constant 1.000000e+00 : f32
    %264 = vector.broadcast %cst_60 : f32 to vector<2x128xf32>
    %265 = arith.addf %264, %263 : vector<2x128xf32>
    %266 = arith.divf %264, %265 : vector<2x128xf32>
    %267 = vector.extract_strided_slice %251 {offsets = [0, 128], sizes = [2, 128], strides = [1, 1]} : vector<2x384xf32> to vector<2x128xf32>
    %268 = vector.extract_strided_slice %258 {offsets = [0, 128], sizes = [2, 128], strides = [1, 1]} : vector<2x384xf32> to vector<2x128xf32>
    %269 = arith.addf %267, %268 : vector<2x128xf32>
    %270 = arith.negf %269 : vector<2x128xf32>
    %271 = math.exp %270 : vector<2x128xf32>
    %cst_61 = arith.constant 1.000000e+00 : f32
    %272 = vector.broadcast %cst_61 : f32 to vector<2x128xf32>
    %273 = arith.addf %272, %271 : vector<2x128xf32>
    %274 = arith.divf %272, %273 : vector<2x128xf32>
    %275 = vector.extract_strided_slice %251 {offsets = [0, 256], sizes = [2, 128], strides = [1, 1]} : vector<2x384xf32> to vector<2x128xf32>
    %276 = vector.extract_strided_slice %258 {offsets = [0, 256], sizes = [2, 128], strides = [1, 1]} : vector<2x384xf32> to vector<2x128xf32>
    %277 = arith.mulf %266, %276 : vector<2x128xf32>
    %278 = arith.addf %275, %277 : vector<2x128xf32>
    %279 = math.tanh %278 : vector<2x128xf32>
    %280 = arith.subf %249, %279 : vector<2x128xf32>
    %281 = arith.mulf %274, %280 : vector<2x128xf32>
    %282 = arith.addf %279, %281 : vector<2x128xf32>
    %283 = vector.extract_strided_slice %282 {offsets = [0, 0], sizes = [1, 128], strides = [1, 1]} : vector<2x128xf32> to vector<1x128xf32>
    %cst_62 = arith.constant 0.000000e+00 : f32
    %284 = vector.broadcast %cst_62 : f32 to vector<120x128xf32>
    %285 = tpu.concatenate %52, %85, %118, %151, %184, %217, %250, %283, %284 in 0 : vector<1x128xf32>, vector<1x128xf32>, vector<1x128xf32>, vector<1x128xf32>, vector<1x128xf32>, vector<1x128xf32>, vector<1x128xf32>, vector<1x128xf32>, vector<120x128xf32> -> vector<128x128xf32>
    %c0_i32_63 = arith.constant 0 : i32
    %286 = tpu.memref_slice %arg8[%c0_i32_63] : memref<2x!tpu.dma_semaphore, #tpu.memory_space<semaphore_mem>> -> memref<1x!tpu.dma_semaphore, #tpu.memory_space<semaphore_mem>>
    %287 = tpu.memref_squeeze %286 : memref<1x!tpu.dma_semaphore, #tpu.memory_space<semaphore_mem>> -> memref<!tpu.dma_semaphore, #tpu.memory_space<semaphore_mem>>
    tpu.wait_dma2 semaphore(%287 : memref<!tpu.dma_semaphore, #tpu.memory_space<semaphore_mem>>) src(%arg3 : memref<288x384xbf16, #tpu.memory_space<any>>) dst(%arg6 : memref<288x384xbf16, #tpu.memory_space<vmem>>)
    %c1_i32_64 = arith.constant 1 : i32
    %288 = tpu.memref_slice %arg8[%c1_i32_64] : memref<2x!tpu.dma_semaphore, #tpu.memory_space<semaphore_mem>> -> memref<1x!tpu.dma_semaphore, #tpu.memory_space<semaphore_mem>>
    %289 = tpu.memref_squeeze %288 : memref<1x!tpu.dma_semaphore, #tpu.memory_space<semaphore_mem>> -> memref<!tpu.dma_semaphore, #tpu.memory_space<semaphore_mem>>
    tpu.wait_dma2 semaphore(%289 : memref<!tpu.dma_semaphore, #tpu.memory_space<semaphore_mem>>) src(%arg4 : memref<1264x128xbf16, #tpu.memory_space<any>>) dst(%arg7 : memref<1264x128xbf16, #tpu.memory_space<vmem>>)
    %c0_65 = arith.constant 0 : index
    %c0_66 = arith.constant 0 : index
    %290 = vector.load %arg1[%c0_65, %c0_66] : memref<2x128xf32, #tpu.memory_space<vmem>>, vector<2x128xf32>
    %c832 = arith.constant 832 : index
    %c0_67 = arith.constant 0 : index
    %291 = vector.load %arg7[%c832, %c0_67] : memref<1264x128xbf16, #tpu.memory_space<vmem>>, vector<128x128xbf16>
    %c960 = arith.constant 960 : index
    %c0_68 = arith.constant 0 : index
    %292 = vector.load %arg7[%c960, %c0_68] : memref<1264x128xbf16, #tpu.memory_space<vmem>>, vector<1x128xbf16>
    %293 = arith.truncf %290 : vector<2x128xf32> to vector<2x128xbf16>
    %cst_69 = arith.constant dense<0.000000e+00> : vector<2x128xf32>
    %294 = tpu.matmul %293, %291, %cst_69 {dimension_numbers = #tpu.dot_dimension_numbers<[1], [0], [0], [1], [0, 0, 1, 1], [], []>} : vector<2x128xbf16>, vector<128x128xbf16>, vector<2x128xf32> -> vector<2x128xf32>
    %295 = arith.extf %292 : vector<1x128xbf16> to vector<1x128xf32>
    %296 = vector.broadcast %295 : vector<1x128xf32> to vector<2x128xf32>
    %297 = arith.addf %294, %296 : vector<2x128xf32>
    %cst_70 = arith.constant 0.000000e+00 : f32
    %298 = vector.broadcast %cst_70 : f32 to vector<2x128xf32>
    %299 = arith.maximumf %297, %298 : vector<2x128xf32>
    %c976 = arith.constant 976 : index
    %c0_71 = arith.constant 0 : index
    %300 = vector.load %arg7[%c976, %c0_71] : memref<1264x128xbf16, #tpu.memory_space<vmem>>, vector<128x128xbf16>
    %c1104 = arith.constant 1104 : index
    %c0_72 = arith.constant 0 : index
    %301 = vector.load %arg7[%c1104, %c0_72] : memref<1264x128xbf16, #tpu.memory_space<vmem>>, vector<1x128xbf16>
    %302 = arith.truncf %299 : vector<2x128xf32> to vector<2x128xbf16>
    %cst_73 = arith.constant dense<0.000000e+00> : vector<2x128xf32>
    %303 = tpu.matmul %302, %300, %cst_73 {dimension_numbers = #tpu.dot_dimension_numbers<[1], [0], [0], [1], [0, 0, 1, 1], [], []>} : vector<2x128xbf16>, vector<128x128xbf16>, vector<2x128xf32> -> vector<2x128xf32>
    %304 = arith.extf %301 : vector<1x128xbf16> to vector<1x128xf32>
    %305 = vector.broadcast %304 : vector<1x128xf32> to vector<2x128xf32>
    %306 = arith.addf %303, %305 : vector<2x128xf32>
    %cst_74 = arith.constant 0.000000e+00 : f32
    %307 = vector.broadcast %cst_74 : f32 to vector<2x128xf32>
    %308 = arith.maximumf %306, %307 : vector<2x128xf32>
    %c1120 = arith.constant 1120 : index
    %c0_75 = arith.constant 0 : index
    %309 = vector.load %arg7[%c1120, %c0_75] : memref<1264x128xbf16, #tpu.memory_space<vmem>>, vector<128x128xbf16>
    %c1248 = arith.constant 1248 : index
    %c0_76 = arith.constant 0 : index
    %310 = vector.load %arg7[%c1248, %c0_76] : memref<1264x128xbf16, #tpu.memory_space<vmem>>, vector<1x128xbf16>
    %311 = arith.truncf %308 : vector<2x128xf32> to vector<2x128xbf16>
    %cst_77 = arith.constant dense<0.000000e+00> : vector<2x128xf32>
    %312 = tpu.matmul %311, %309, %cst_77 {dimension_numbers = #tpu.dot_dimension_numbers<[1], [0], [0], [1], [0, 0, 1, 1], [], []>} : vector<2x128xbf16>, vector<128x128xbf16>, vector<2x128xf32> -> vector<2x128xf32>
    %313 = arith.extf %310 : vector<1x128xbf16> to vector<1x128xf32>
    %314 = vector.broadcast %313 : vector<1x128xf32> to vector<2x128xf32>
    %315 = arith.addf %312, %314 : vector<2x128xf32>
    %cst_78 = arith.constant 0.000000e+00 : f32
    %316 = vector.broadcast %cst_78 : f32 to vector<2x128xf32>
    %c0_79 = arith.constant 0 : index
    %c0_80 = arith.constant 0 : index
    %317 = vector.load %arg7[%c0_79, %c0_80] : memref<1264x128xbf16, #tpu.memory_space<vmem>>, vector<128x128xbf16>
    %c128 = arith.constant 128 : index
    %c0_81 = arith.constant 0 : index
    %318 = vector.load %arg7[%c128, %c0_81] : memref<1264x128xbf16, #tpu.memory_space<vmem>>, vector<1x128xbf16>
    %319 = arith.truncf %316 : vector<2x128xf32> to vector<2x128xbf16>
    %cst_82 = arith.constant dense<0.000000e+00> : vector<2x128xf32>
    %320 = tpu.matmul %319, %317, %cst_82 {dimension_numbers = #tpu.dot_dimension_numbers<[1], [0], [0], [1], [0, 0, 1, 1], [], []>} : vector<2x128xbf16>, vector<128x128xbf16>, vector<2x128xf32> -> vector<2x128xf32>
    %321 = arith.extf %318 : vector<1x128xbf16> to vector<1x128xf32>
    %322 = vector.broadcast %321 : vector<1x128xf32> to vector<2x128xf32>
    %323 = arith.addf %320, %322 : vector<2x128xf32>
    %324 = tpu.concatenate %323, %282 in 1 : vector<2x128xf32>, vector<2x128xf32> -> vector<2x256xf32>
    %c144 = arith.constant 144 : index
    %c0_83 = arith.constant 0 : index
    %325 = vector.load %arg7[%c144, %c0_83] : memref<1264x128xbf16, #tpu.memory_space<vmem>>, vector<256x128xbf16>
    %c400 = arith.constant 400 : index
    %c0_84 = arith.constant 0 : index
    %326 = vector.load %arg7[%c400, %c0_84] : memref<1264x128xbf16, #tpu.memory_space<vmem>>, vector<1x128xbf16>
    %327 = arith.truncf %324 : vector<2x256xf32> to vector<2x256xbf16>
    %cst_85 = arith.constant dense<0.000000e+00> : vector<2x128xf32>
    %328 = tpu.matmul %327, %325, %cst_85 {dimension_numbers = #tpu.dot_dimension_numbers<[1], [0], [0], [1], [0, 0, 1, 1], [], []>} : vector<2x256xbf16>, vector<256x128xbf16>, vector<2x128xf32> -> vector<2x128xf32>
    %329 = arith.extf %326 : vector<1x128xbf16> to vector<1x128xf32>
    %330 = vector.broadcast %329 : vector<1x128xf32> to vector<2x128xf32>
    %331 = arith.addf %328, %330 : vector<2x128xf32>
    %cst_86 = arith.constant dense<0xFF800000> : vector<2xf32>
    %332 = vector.multi_reduction <maximumf>, %331, %cst_86 [1] : vector<2x128xf32> to vector<2xf32>
    %333 = vector.shape_cast %332 : vector<2xf32> to vector<2x1xf32>
    %334 = vector.broadcast %333 : vector<2x1xf32> to vector<2x128xf32>
    %335 = arith.subf %331, %334 : vector<2x128xf32>
    %336 = math.exp %335 : vector<2x128xf32>
    %cst_87 = arith.constant dense<0.000000e+00> : vector<2xf32>
    %337 = vector.multi_reduction <add>, %336, %cst_87 [1] : vector<2x128xf32> to vector<2xf32>
    %338 = vector.shape_cast %337 : vector<2xf32> to vector<2x1xf32>
    %339 = tpu.reciprocal %338 {approx = true} : vector<2x1xf32> -> vector<2x1xf32>
    %340 = vector.broadcast %339 : vector<2x1xf32> to vector<2x128xf32>
    %341 = arith.mulf %336, %340 : vector<2x128xf32>
    %342 = arith.truncf %341 : vector<2x128xf32> to vector<2x128xbf16>
    %343 = arith.truncf %285 : vector<128x128xf32> to vector<128x128xbf16>
    %cst_88 = arith.constant dense<0.000000e+00> : vector<2x128xf32>
    %344 = tpu.matmul %342, %343, %cst_88 {dimension_numbers = #tpu.dot_dimension_numbers<[1], [0], [0], [1], [0, 0, 1, 1], [], []>} : vector<2x128xbf16>, vector<128x128xbf16>, vector<2x128xf32> -> vector<2x128xf32>
    %345 = tpu.concatenate %323, %344 in 1 : vector<2x128xf32>, vector<2x128xf32> -> vector<2x256xf32>
    %c416 = arith.constant 416 : index
    %c0_89 = arith.constant 0 : index
    %346 = vector.load %arg7[%c416, %c0_89] : memref<1264x128xbf16, #tpu.memory_space<vmem>>, vector<256x128xbf16>
    %c672 = arith.constant 672 : index
    %c0_90 = arith.constant 0 : index
    %347 = vector.load %arg7[%c672, %c0_90] : memref<1264x128xbf16, #tpu.memory_space<vmem>>, vector<1x128xbf16>
    %348 = arith.truncf %345 : vector<2x256xf32> to vector<2x256xbf16>
    %cst_91 = arith.constant dense<0.000000e+00> : vector<2x128xf32>
    %349 = tpu.matmul %348, %346, %cst_91 {dimension_numbers = #tpu.dot_dimension_numbers<[1], [0], [0], [1], [0, 0, 1, 1], [], []>} : vector<2x256xbf16>, vector<256x128xbf16>, vector<2x128xf32> -> vector<2x128xf32>
    %350 = arith.extf %347 : vector<1x128xbf16> to vector<1x128xf32>
    %351 = vector.broadcast %350 : vector<1x128xf32> to vector<2x128xf32>
    %352 = arith.addf %349, %351 : vector<2x128xf32>
    %353 = math.tanh %352 : vector<2x128xf32>
    %c0_92 = arith.constant 0 : index
    %c0_93 = arith.constant 0 : index
    %354 = vector.load %arg6[%c0_92, %c0_93] : memref<288x384xbf16, #tpu.memory_space<vmem>>, vector<128x384xbf16>
    %c128_94 = arith.constant 128 : index
    %c0_95 = arith.constant 0 : index
    %355 = vector.load %arg6[%c128_94, %c0_95] : memref<288x384xbf16, #tpu.memory_space<vmem>>, vector<1x384xbf16>
    %356 = arith.truncf %353 : vector<2x128xf32> to vector<2x128xbf16>
    %cst_96 = arith.constant dense<0.000000e+00> : vector<2x384xf32>
    %357 = tpu.matmul %356, %354, %cst_96 {dimension_numbers = #tpu.dot_dimension_numbers<[1], [0], [0], [1], [0, 0, 1, 1], [], []>} : vector<2x128xbf16>, vector<128x384xbf16>, vector<2x384xf32> -> vector<2x384xf32>
    %358 = arith.extf %355 : vector<1x384xbf16> to vector<1x384xf32>
    %359 = vector.broadcast %358 : vector<1x384xf32> to vector<2x384xf32>
    %360 = arith.addf %357, %359 : vector<2x384xf32>
    %c144_97 = arith.constant 144 : index
    %c0_98 = arith.constant 0 : index
    %361 = vector.load %arg6[%c144_97, %c0_98] : memref<288x384xbf16, #tpu.memory_space<vmem>>, vector<128x384xbf16>
    %c272 = arith.constant 272 : index
    %c0_99 = arith.constant 0 : index
    %362 = vector.load %arg6[%c272, %c0_99] : memref<288x384xbf16, #tpu.memory_space<vmem>>, vector<1x384xbf16>
    %363 = arith.truncf %282 : vector<2x128xf32> to vector<2x128xbf16>
    %cst_100 = arith.constant dense<0.000000e+00> : vector<2x384xf32>
    %364 = tpu.matmul %363, %361, %cst_100 {dimension_numbers = #tpu.dot_dimension_numbers<[1], [0], [0], [1], [0, 0, 1, 1], [], []>} : vector<2x128xbf16>, vector<128x384xbf16>, vector<2x384xf32> -> vector<2x384xf32>
    %365 = arith.extf %362 : vector<1x384xbf16> to vector<1x384xf32>
    %366 = vector.broadcast %365 : vector<1x384xf32> to vector<2x384xf32>
    %367 = arith.addf %364, %366 : vector<2x384xf32>
    %368 = vector.extract_strided_slice %360 {offsets = [0, 0], sizes = [2, 128], strides = [1, 1]} : vector<2x384xf32> to vector<2x128xf32>
    %369 = vector.extract_strided_slice %367 {offsets = [0, 0], sizes = [2, 128], strides = [1, 1]} : vector<2x384xf32> to vector<2x128xf32>
    %370 = arith.addf %368, %369 : vector<2x128xf32>
    %371 = arith.negf %370 : vector<2x128xf32>
    %372 = math.exp %371 : vector<2x128xf32>
    %cst_101 = arith.constant 1.000000e+00 : f32
    %373 = vector.broadcast %cst_101 : f32 to vector<2x128xf32>
    %374 = arith.addf %373, %372 : vector<2x128xf32>
    %375 = arith.divf %373, %374 : vector<2x128xf32>
    %376 = vector.extract_strided_slice %360 {offsets = [0, 128], sizes = [2, 128], strides = [1, 1]} : vector<2x384xf32> to vector<2x128xf32>
    %377 = vector.extract_strided_slice %367 {offsets = [0, 128], sizes = [2, 128], strides = [1, 1]} : vector<2x384xf32> to vector<2x128xf32>
    %378 = arith.addf %376, %377 : vector<2x128xf32>
    %379 = arith.negf %378 : vector<2x128xf32>
    %380 = math.exp %379 : vector<2x128xf32>
    %cst_102 = arith.constant 1.000000e+00 : f32
    %381 = vector.broadcast %cst_102 : f32 to vector<2x128xf32>
    %382 = arith.addf %381, %380 : vector<2x128xf32>
    %383 = arith.divf %381, %382 : vector<2x128xf32>
    %384 = vector.extract_strided_slice %360 {offsets = [0, 256], sizes = [2, 128], strides = [1, 1]} : vector<2x384xf32> to vector<2x128xf32>
    %385 = vector.extract_strided_slice %367 {offsets = [0, 256], sizes = [2, 128], strides = [1, 1]} : vector<2x384xf32> to vector<2x128xf32>
    %386 = arith.mulf %375, %385 : vector<2x128xf32>
    %387 = arith.addf %384, %386 : vector<2x128xf32>
    %388 = math.tanh %387 : vector<2x128xf32>
    %389 = arith.subf %282, %388 : vector<2x128xf32>
    %390 = arith.mulf %383, %389 : vector<2x128xf32>
    %391 = arith.addf %388, %390 : vector<2x128xf32>
    %c688 = arith.constant 688 : index
    %c0_103 = arith.constant 0 : index
    %392 = vector.load %arg7[%c688, %c0_103] : memref<1264x128xbf16, #tpu.memory_space<vmem>>, vector<128x128xbf16>
    %c816 = arith.constant 816 : index
    %c0_104 = arith.constant 0 : index
    %393 = vector.load %arg7[%c816, %c0_104] : memref<1264x128xbf16, #tpu.memory_space<vmem>>, vector<1x128xbf16>
    %394 = arith.truncf %391 : vector<2x128xf32> to vector<2x128xbf16>
    %cst_105 = arith.constant dense<0.000000e+00> : vector<2x128xf32>
    %395 = tpu.matmul %394, %392, %cst_105 {dimension_numbers = #tpu.dot_dimension_numbers<[1], [0], [0], [1], [0, 0, 1, 1], [], []>} : vector<2x128xbf16>, vector<128x128xbf16>, vector<2x128xf32> -> vector<2x128xf32>
    %396 = arith.extf %393 : vector<1x128xbf16> to vector<1x128xf32>
    %397 = vector.broadcast %396 : vector<1x128xf32> to vector<2x128xf32>
    %398 = arith.addf %395, %397 : vector<2x128xf32>
    %399 = math.tanh %398 : vector<2x128xf32>
    %c0_106 = arith.constant 0 : index
    %c0_107 = arith.constant 0 : index
    %400 = vector.load %arg7[%c0_106, %c0_107] : memref<1264x128xbf16, #tpu.memory_space<vmem>>, vector<128x128xbf16>
    %c128_108 = arith.constant 128 : index
    %c0_109 = arith.constant 0 : index
    %401 = vector.load %arg7[%c128_108, %c0_109] : memref<1264x128xbf16, #tpu.memory_space<vmem>>, vector<1x128xbf16>
    %402 = arith.truncf %399 : vector<2x128xf32> to vector<2x128xbf16>
    %cst_110 = arith.constant dense<0.000000e+00> : vector<2x128xf32>
    %403 = tpu.matmul %402, %400, %cst_110 {dimension_numbers = #tpu.dot_dimension_numbers<[1], [0], [0], [1], [0, 0, 1, 1], [], []>} : vector<2x128xbf16>, vector<128x128xbf16>, vector<2x128xf32> -> vector<2x128xf32>
    %404 = arith.extf %401 : vector<1x128xbf16> to vector<1x128xf32>
    %405 = vector.broadcast %404 : vector<1x128xf32> to vector<2x128xf32>
    %406 = arith.addf %403, %405 : vector<2x128xf32>
    %407 = tpu.concatenate %406, %391 in 1 : vector<2x128xf32>, vector<2x128xf32> -> vector<2x256xf32>
    %c144_111 = arith.constant 144 : index
    %c0_112 = arith.constant 0 : index
    %408 = vector.load %arg7[%c144_111, %c0_112] : memref<1264x128xbf16, #tpu.memory_space<vmem>>, vector<256x128xbf16>
    %c400_113 = arith.constant 400 : index
    %c0_114 = arith.constant 0 : index
    %409 = vector.load %arg7[%c400_113, %c0_114] : memref<1264x128xbf16, #tpu.memory_space<vmem>>, vector<1x128xbf16>
    %410 = arith.truncf %407 : vector<2x256xf32> to vector<2x256xbf16>
    %cst_115 = arith.constant dense<0.000000e+00> : vector<2x128xf32>
    %411 = tpu.matmul %410, %408, %cst_115 {dimension_numbers = #tpu.dot_dimension_numbers<[1], [0], [0], [1], [0, 0, 1, 1], [], []>} : vector<2x256xbf16>, vector<256x128xbf16>, vector<2x128xf32> -> vector<2x128xf32>
    %412 = arith.extf %409 : vector<1x128xbf16> to vector<1x128xf32>
    %413 = vector.broadcast %412 : vector<1x128xf32> to vector<2x128xf32>
    %414 = arith.addf %411, %413 : vector<2x128xf32>
    %cst_116 = arith.constant dense<0xFF800000> : vector<2xf32>
    %415 = vector.multi_reduction <maximumf>, %414, %cst_116 [1] : vector<2x128xf32> to vector<2xf32>
    %416 = vector.shape_cast %415 : vector<2xf32> to vector<2x1xf32>
    %417 = vector.broadcast %416 : vector<2x1xf32> to vector<2x128xf32>
    %418 = arith.subf %414, %417 : vector<2x128xf32>
    %419 = math.exp %418 : vector<2x128xf32>
    %cst_117 = arith.constant dense<0.000000e+00> : vector<2xf32>
    %420 = vector.multi_reduction <add>, %419, %cst_117 [1] : vector<2x128xf32> to vector<2xf32>
    %421 = vector.shape_cast %420 : vector<2xf32> to vector<2x1xf32>
    %422 = tpu.reciprocal %421 {approx = true} : vector<2x1xf32> -> vector<2x1xf32>
    %423 = vector.broadcast %422 : vector<2x1xf32> to vector<2x128xf32>
    %424 = arith.mulf %419, %423 : vector<2x128xf32>
    %425 = arith.truncf %424 : vector<2x128xf32> to vector<2x128xbf16>
    %426 = arith.truncf %285 : vector<128x128xf32> to vector<128x128xbf16>
    %cst_118 = arith.constant dense<0.000000e+00> : vector<2x128xf32>
    %427 = tpu.matmul %425, %426, %cst_118 {dimension_numbers = #tpu.dot_dimension_numbers<[1], [0], [0], [1], [0, 0, 1, 1], [], []>} : vector<2x128xbf16>, vector<128x128xbf16>, vector<2x128xf32> -> vector<2x128xf32>
    %428 = tpu.concatenate %406, %427 in 1 : vector<2x128xf32>, vector<2x128xf32> -> vector<2x256xf32>
    %c416_119 = arith.constant 416 : index
    %c0_120 = arith.constant 0 : index
    %429 = vector.load %arg7[%c416_119, %c0_120] : memref<1264x128xbf16, #tpu.memory_space<vmem>>, vector<256x128xbf16>
    %c672_121 = arith.constant 672 : index
    %c0_122 = arith.constant 0 : index
    %430 = vector.load %arg7[%c672_121, %c0_122] : memref<1264x128xbf16, #tpu.memory_space<vmem>>, vector<1x128xbf16>
    %431 = arith.truncf %428 : vector<2x256xf32> to vector<2x256xbf16>
    %cst_123 = arith.constant dense<0.000000e+00> : vector<2x128xf32>
    %432 = tpu.matmul %431, %429, %cst_123 {dimension_numbers = #tpu.dot_dimension_numbers<[1], [0], [0], [1], [0, 0, 1, 1], [], []>} : vector<2x256xbf16>, vector<256x128xbf16>, vector<2x128xf32> -> vector<2x128xf32>
    %433 = arith.extf %430 : vector<1x128xbf16> to vector<1x128xf32>
    %434 = vector.broadcast %433 : vector<1x128xf32> to vector<2x128xf32>
    %435 = arith.addf %432, %434 : vector<2x128xf32>
    %436 = math.tanh %435 : vector<2x128xf32>
    %c0_124 = arith.constant 0 : index
    %c0_125 = arith.constant 0 : index
    %437 = vector.load %arg6[%c0_124, %c0_125] : memref<288x384xbf16, #tpu.memory_space<vmem>>, vector<128x384xbf16>
    %c128_126 = arith.constant 128 : index
    %c0_127 = arith.constant 0 : index
    %438 = vector.load %arg6[%c128_126, %c0_127] : memref<288x384xbf16, #tpu.memory_space<vmem>>, vector<1x384xbf16>
    %439 = arith.truncf %436 : vector<2x128xf32> to vector<2x128xbf16>
    %cst_128 = arith.constant dense<0.000000e+00> : vector<2x384xf32>
    %440 = tpu.matmul %439, %437, %cst_128 {dimension_numbers = #tpu.dot_dimension_numbers<[1], [0], [0], [1], [0, 0, 1, 1], [], []>} : vector<2x128xbf16>, vector<128x384xbf16>, vector<2x384xf32> -> vector<2x384xf32>
    %441 = arith.extf %438 : vector<1x384xbf16> to vector<1x384xf32>
    %442 = vector.broadcast %441 : vector<1x384xf32> to vector<2x384xf32>
    %443 = arith.addf %440, %442 : vector<2x384xf32>
    %c144_129 = arith.constant 144 : index
    %c0_130 = arith.constant 0 : index
    %444 = vector.load %arg6[%c144_129, %c0_130] : memref<288x384xbf16, #tpu.memory_space<vmem>>, vector<128x384xbf16>
    %c272_131 = arith.constant 272 : index
    %c0_132 = arith.constant 0 : index
    %445 = vector.load %arg6[%c272_131, %c0_132] : memref<288x384xbf16, #tpu.memory_space<vmem>>, vector<1x384xbf16>
    %446 = arith.truncf %391 : vector<2x128xf32> to vector<2x128xbf16>
    %cst_133 = arith.constant dense<0.000000e+00> : vector<2x384xf32>
    %447 = tpu.matmul %446, %444, %cst_133 {dimension_numbers = #tpu.dot_dimension_numbers<[1], [0], [0], [1], [0, 0, 1, 1], [], []>} : vector<2x128xbf16>, vector<128x384xbf16>, vector<2x384xf32> -> vector<2x384xf32>
    %448 = arith.extf %445 : vector<1x384xbf16> to vector<1x384xf32>
    %449 = vector.broadcast %448 : vector<1x384xf32> to vector<2x384xf32>
    %450 = arith.addf %447, %449 : vector<2x384xf32>
    %451 = vector.extract_strided_slice %443 {offsets = [0, 0], sizes = [2, 128], strides = [1, 1]} : vector<2x384xf32> to vector<2x128xf32>
    %452 = vector.extract_strided_slice %450 {offsets = [0, 0], sizes = [2, 128], strides = [1, 1]} : vector<2x384xf32> to vector<2x128xf32>
    %453 = arith.addf %451, %452 : vector<2x128xf32>
    %454 = arith.negf %453 : vector<2x128xf32>
    %455 = math.exp %454 : vector<2x128xf32>
    %cst_134 = arith.constant 1.000000e+00 : f32
    %456 = vector.broadcast %cst_134 : f32 to vector<2x128xf32>
    %457 = arith.addf %456, %455 : vector<2x128xf32>
    %458 = arith.divf %456, %457 : vector<2x128xf32>
    %459 = vector.extract_strided_slice %443 {offsets = [0, 128], sizes = [2, 128], strides = [1, 1]} : vector<2x384xf32> to vector<2x128xf32>
    %460 = vector.extract_strided_slice %450 {offsets = [0, 128], sizes = [2, 128], strides = [1, 1]} : vector<2x384xf32> to vector<2x128xf32>
    %461 = arith.addf %459, %460 : vector<2x128xf32>
    %462 = arith.negf %461 : vector<2x128xf32>
    %463 = math.exp %462 : vector<2x128xf32>
    %cst_135 = arith.constant 1.000000e+00 : f32
    %464 = vector.broadcast %cst_135 : f32 to vector<2x128xf32>
    %465 = arith.addf %464, %463 : vector<2x128xf32>
    %466 = arith.divf %464, %465 : vector<2x128xf32>
    %467 = vector.extract_strided_slice %443 {offsets = [0, 256], sizes = [2, 128], strides = [1, 1]} : vector<2x384xf32> to vector<2x128xf32>
    %468 = vector.extract_strided_slice %450 {offsets = [0, 256], sizes = [2, 128], strides = [1, 1]} : vector<2x384xf32> to vector<2x128xf32>
    %469 = arith.mulf %458, %468 : vector<2x128xf32>
    %470 = arith.addf %467, %469 : vector<2x128xf32>
    %471 = math.tanh %470 : vector<2x128xf32>
    %472 = arith.subf %391, %471 : vector<2x128xf32>
    %473 = arith.mulf %466, %472 : vector<2x128xf32>
    %474 = arith.addf %471, %473 : vector<2x128xf32>
    %c688_136 = arith.constant 688 : index
    %c0_137 = arith.constant 0 : index
    %475 = vector.load %arg7[%c688_136, %c0_137] : memref<1264x128xbf16, #tpu.memory_space<vmem>>, vector<128x128xbf16>
    %c816_138 = arith.constant 816 : index
    %c0_139 = arith.constant 0 : index
    %476 = vector.load %arg7[%c816_138, %c0_139] : memref<1264x128xbf16, #tpu.memory_space<vmem>>, vector<1x128xbf16>
    %477 = arith.truncf %474 : vector<2x128xf32> to vector<2x128xbf16>
    %cst_140 = arith.constant dense<0.000000e+00> : vector<2x128xf32>
    %478 = tpu.matmul %477, %475, %cst_140 {dimension_numbers = #tpu.dot_dimension_numbers<[1], [0], [0], [1], [0, 0, 1, 1], [], []>} : vector<2x128xbf16>, vector<128x128xbf16>, vector<2x128xf32> -> vector<2x128xf32>
    %479 = arith.extf %476 : vector<1x128xbf16> to vector<1x128xf32>
    %480 = vector.broadcast %479 : vector<1x128xf32> to vector<2x128xf32>
    %481 = arith.addf %478, %480 : vector<2x128xf32>
    %482 = math.tanh %481 : vector<2x128xf32>
    %c0_141 = arith.constant 0 : index
    %c0_142 = arith.constant 0 : index
    %483 = vector.load %arg7[%c0_141, %c0_142] : memref<1264x128xbf16, #tpu.memory_space<vmem>>, vector<128x128xbf16>
    %c128_143 = arith.constant 128 : index
    %c0_144 = arith.constant 0 : index
    %484 = vector.load %arg7[%c128_143, %c0_144] : memref<1264x128xbf16, #tpu.memory_space<vmem>>, vector<1x128xbf16>
    %485 = arith.truncf %482 : vector<2x128xf32> to vector<2x128xbf16>
    %cst_145 = arith.constant dense<0.000000e+00> : vector<2x128xf32>
    %486 = tpu.matmul %485, %483, %cst_145 {dimension_numbers = #tpu.dot_dimension_numbers<[1], [0], [0], [1], [0, 0, 1, 1], [], []>} : vector<2x128xbf16>, vector<128x128xbf16>, vector<2x128xf32> -> vector<2x128xf32>
    %487 = arith.extf %484 : vector<1x128xbf16> to vector<1x128xf32>
    %488 = vector.broadcast %487 : vector<1x128xf32> to vector<2x128xf32>
    %489 = arith.addf %486, %488 : vector<2x128xf32>
    %490 = tpu.concatenate %489, %474 in 1 : vector<2x128xf32>, vector<2x128xf32> -> vector<2x256xf32>
    %c144_146 = arith.constant 144 : index
    %c0_147 = arith.constant 0 : index
    %491 = vector.load %arg7[%c144_146, %c0_147] : memref<1264x128xbf16, #tpu.memory_space<vmem>>, vector<256x128xbf16>
    %c400_148 = arith.constant 400 : index
    %c0_149 = arith.constant 0 : index
    %492 = vector.load %arg7[%c400_148, %c0_149] : memref<1264x128xbf16, #tpu.memory_space<vmem>>, vector<1x128xbf16>
    %493 = arith.truncf %490 : vector<2x256xf32> to vector<2x256xbf16>
    %cst_150 = arith.constant dense<0.000000e+00> : vector<2x128xf32>
    %494 = tpu.matmul %493, %491, %cst_150 {dimension_numbers = #tpu.dot_dimension_numbers<[1], [0], [0], [1], [0, 0, 1, 1], [], []>} : vector<2x256xbf16>, vector<256x128xbf16>, vector<2x128xf32> -> vector<2x128xf32>
    %495 = arith.extf %492 : vector<1x128xbf16> to vector<1x128xf32>
    %496 = vector.broadcast %495 : vector<1x128xf32> to vector<2x128xf32>
    %497 = arith.addf %494, %496 : vector<2x128xf32>
    %cst_151 = arith.constant dense<0xFF800000> : vector<2xf32>
    %498 = vector.multi_reduction <maximumf>, %497, %cst_151 [1] : vector<2x128xf32> to vector<2xf32>
    %499 = vector.shape_cast %498 : vector<2xf32> to vector<2x1xf32>
    %500 = vector.broadcast %499 : vector<2x1xf32> to vector<2x128xf32>
    %501 = arith.subf %497, %500 : vector<2x128xf32>
    %502 = math.exp %501 : vector<2x128xf32>
    %cst_152 = arith.constant dense<0.000000e+00> : vector<2xf32>
    %503 = vector.multi_reduction <add>, %502, %cst_152 [1] : vector<2x128xf32> to vector<2xf32>
    %504 = vector.shape_cast %503 : vector<2xf32> to vector<2x1xf32>
    %505 = tpu.reciprocal %504 {approx = true} : vector<2x1xf32> -> vector<2x1xf32>
    %506 = vector.broadcast %505 : vector<2x1xf32> to vector<2x128xf32>
    %507 = arith.mulf %502, %506 : vector<2x128xf32>
    %508 = arith.truncf %507 : vector<2x128xf32> to vector<2x128xbf16>
    %509 = arith.truncf %285 : vector<128x128xf32> to vector<128x128xbf16>
    %cst_153 = arith.constant dense<0.000000e+00> : vector<2x128xf32>
    %510 = tpu.matmul %508, %509, %cst_153 {dimension_numbers = #tpu.dot_dimension_numbers<[1], [0], [0], [1], [0, 0, 1, 1], [], []>} : vector<2x128xbf16>, vector<128x128xbf16>, vector<2x128xf32> -> vector<2x128xf32>
    %511 = tpu.concatenate %489, %510 in 1 : vector<2x128xf32>, vector<2x128xf32> -> vector<2x256xf32>
    %c416_154 = arith.constant 416 : index
    %c0_155 = arith.constant 0 : index
    %512 = vector.load %arg7[%c416_154, %c0_155] : memref<1264x128xbf16, #tpu.memory_space<vmem>>, vector<256x128xbf16>
    %c672_156 = arith.constant 672 : index
    %c0_157 = arith.constant 0 : index
    %513 = vector.load %arg7[%c672_156, %c0_157] : memref<1264x128xbf16, #tpu.memory_space<vmem>>, vector<1x128xbf16>
    %514 = arith.truncf %511 : vector<2x256xf32> to vector<2x256xbf16>
    %cst_158 = arith.constant dense<0.000000e+00> : vector<2x128xf32>
    %515 = tpu.matmul %514, %512, %cst_158 {dimension_numbers = #tpu.dot_dimension_numbers<[1], [0], [0], [1], [0, 0, 1, 1], [], []>} : vector<2x256xbf16>, vector<256x128xbf16>, vector<2x128xf32> -> vector<2x128xf32>
    %516 = arith.extf %513 : vector<1x128xbf16> to vector<1x128xf32>
    %517 = vector.broadcast %516 : vector<1x128xf32> to vector<2x128xf32>
    %518 = arith.addf %515, %517 : vector<2x128xf32>
    %519 = math.tanh %518 : vector<2x128xf32>
    %c0_159 = arith.constant 0 : index
    %c0_160 = arith.constant 0 : index
    %520 = vector.load %arg6[%c0_159, %c0_160] : memref<288x384xbf16, #tpu.memory_space<vmem>>, vector<128x384xbf16>
    %c128_161 = arith.constant 128 : index
    %c0_162 = arith.constant 0 : index
    %521 = vector.load %arg6[%c128_161, %c0_162] : memref<288x384xbf16, #tpu.memory_space<vmem>>, vector<1x384xbf16>
    %522 = arith.truncf %519 : vector<2x128xf32> to vector<2x128xbf16>
    %cst_163 = arith.constant dense<0.000000e+00> : vector<2x384xf32>
    %523 = tpu.matmul %522, %520, %cst_163 {dimension_numbers = #tpu.dot_dimension_numbers<[1], [0], [0], [1], [0, 0, 1, 1], [], []>} : vector<2x128xbf16>, vector<128x384xbf16>, vector<2x384xf32> -> vector<2x384xf32>
    %524 = arith.extf %521 : vector<1x384xbf16> to vector<1x384xf32>
    %525 = vector.broadcast %524 : vector<1x384xf32> to vector<2x384xf32>
    %526 = arith.addf %523, %525 : vector<2x384xf32>
    %c144_164 = arith.constant 144 : index
    %c0_165 = arith.constant 0 : index
    %527 = vector.load %arg6[%c144_164, %c0_165] : memref<288x384xbf16, #tpu.memory_space<vmem>>, vector<128x384xbf16>
    %c272_166 = arith.constant 272 : index
    %c0_167 = arith.constant 0 : index
    %528 = vector.load %arg6[%c272_166, %c0_167] : memref<288x384xbf16, #tpu.memory_space<vmem>>, vector<1x384xbf16>
    %529 = arith.truncf %474 : vector<2x128xf32> to vector<2x128xbf16>
    %cst_168 = arith.constant dense<0.000000e+00> : vector<2x384xf32>
    %530 = tpu.matmul %529, %527, %cst_168 {dimension_numbers = #tpu.dot_dimension_numbers<[1], [0], [0], [1], [0, 0, 1, 1], [], []>} : vector<2x128xbf16>, vector<128x384xbf16>, vector<2x384xf32> -> vector<2x384xf32>
    %531 = arith.extf %528 : vector<1x384xbf16> to vector<1x384xf32>
    %532 = vector.broadcast %531 : vector<1x384xf32> to vector<2x384xf32>
    %533 = arith.addf %530, %532 : vector<2x384xf32>
    %534 = vector.extract_strided_slice %526 {offsets = [0, 0], sizes = [2, 128], strides = [1, 1]} : vector<2x384xf32> to vector<2x128xf32>
    %535 = vector.extract_strided_slice %533 {offsets = [0, 0], sizes = [2, 128], strides = [1, 1]} : vector<2x384xf32> to vector<2x128xf32>
    %536 = arith.addf %534, %535 : vector<2x128xf32>
    %537 = arith.negf %536 : vector<2x128xf32>
    %538 = math.exp %537 : vector<2x128xf32>
    %cst_169 = arith.constant 1.000000e+00 : f32
    %539 = vector.broadcast %cst_169 : f32 to vector<2x128xf32>
    %540 = arith.addf %539, %538 : vector<2x128xf32>
    %541 = arith.divf %539, %540 : vector<2x128xf32>
    %542 = vector.extract_strided_slice %526 {offsets = [0, 128], sizes = [2, 128], strides = [1, 1]} : vector<2x384xf32> to vector<2x128xf32>
    %543 = vector.extract_strided_slice %533 {offsets = [0, 128], sizes = [2, 128], strides = [1, 1]} : vector<2x384xf32> to vector<2x128xf32>
    %544 = arith.addf %542, %543 : vector<2x128xf32>
    %545 = arith.negf %544 : vector<2x128xf32>
    %546 = math.exp %545 : vector<2x128xf32>
    %cst_170 = arith.constant 1.000000e+00 : f32
    %547 = vector.broadcast %cst_170 : f32 to vector<2x128xf32>
    %548 = arith.addf %547, %546 : vector<2x128xf32>
    %549 = arith.divf %547, %548 : vector<2x128xf32>
    %550 = vector.extract_strided_slice %526 {offsets = [0, 256], sizes = [2, 128], strides = [1, 1]} : vector<2x384xf32> to vector<2x128xf32>
    %551 = vector.extract_strided_slice %533 {offsets = [0, 256], sizes = [2, 128], strides = [1, 1]} : vector<2x384xf32> to vector<2x128xf32>
    %552 = arith.mulf %541, %551 : vector<2x128xf32>
    %553 = arith.addf %550, %552 : vector<2x128xf32>
    %554 = math.tanh %553 : vector<2x128xf32>
    %555 = arith.subf %474, %554 : vector<2x128xf32>
    %556 = arith.mulf %549, %555 : vector<2x128xf32>
    %557 = arith.addf %554, %556 : vector<2x128xf32>
    %c688_171 = arith.constant 688 : index
    %c0_172 = arith.constant 0 : index
    %558 = vector.load %arg7[%c688_171, %c0_172] : memref<1264x128xbf16, #tpu.memory_space<vmem>>, vector<128x128xbf16>
    %c816_173 = arith.constant 816 : index
    %c0_174 = arith.constant 0 : index
    %559 = vector.load %arg7[%c816_173, %c0_174] : memref<1264x128xbf16, #tpu.memory_space<vmem>>, vector<1x128xbf16>
    %560 = arith.truncf %557 : vector<2x128xf32> to vector<2x128xbf16>
    %cst_175 = arith.constant dense<0.000000e+00> : vector<2x128xf32>
    %561 = tpu.matmul %560, %558, %cst_175 {dimension_numbers = #tpu.dot_dimension_numbers<[1], [0], [0], [1], [0, 0, 1, 1], [], []>} : vector<2x128xbf16>, vector<128x128xbf16>, vector<2x128xf32> -> vector<2x128xf32>
    %562 = arith.extf %559 : vector<1x128xbf16> to vector<1x128xf32>
    %563 = vector.broadcast %562 : vector<1x128xf32> to vector<2x128xf32>
    %564 = arith.addf %561, %563 : vector<2x128xf32>
    %565 = math.tanh %564 : vector<2x128xf32>
    %c0_176 = arith.constant 0 : index
    %c0_177 = arith.constant 0 : index
    %566 = vector.load %arg7[%c0_176, %c0_177] : memref<1264x128xbf16, #tpu.memory_space<vmem>>, vector<128x128xbf16>
    %c128_178 = arith.constant 128 : index
    %c0_179 = arith.constant 0 : index
    %567 = vector.load %arg7[%c128_178, %c0_179] : memref<1264x128xbf16, #tpu.memory_space<vmem>>, vector<1x128xbf16>
    %568 = arith.truncf %565 : vector<2x128xf32> to vector<2x128xbf16>
    %cst_180 = arith.constant dense<0.000000e+00> : vector<2x128xf32>
    %569 = tpu.matmul %568, %566, %cst_180 {dimension_numbers = #tpu.dot_dimension_numbers<[1], [0], [0], [1], [0, 0, 1, 1], [], []>} : vector<2x128xbf16>, vector<128x128xbf16>, vector<2x128xf32> -> vector<2x128xf32>
    %570 = arith.extf %567 : vector<1x128xbf16> to vector<1x128xf32>
    %571 = vector.broadcast %570 : vector<1x128xf32> to vector<2x128xf32>
    %572 = arith.addf %569, %571 : vector<2x128xf32>
    %573 = tpu.concatenate %572, %557 in 1 : vector<2x128xf32>, vector<2x128xf32> -> vector<2x256xf32>
    %c144_181 = arith.constant 144 : index
    %c0_182 = arith.constant 0 : index
    %574 = vector.load %arg7[%c144_181, %c0_182] : memref<1264x128xbf16, #tpu.memory_space<vmem>>, vector<256x128xbf16>
    %c400_183 = arith.constant 400 : index
    %c0_184 = arith.constant 0 : index
    %575 = vector.load %arg7[%c400_183, %c0_184] : memref<1264x128xbf16, #tpu.memory_space<vmem>>, vector<1x128xbf16>
    %576 = arith.truncf %573 : vector<2x256xf32> to vector<2x256xbf16>
    %cst_185 = arith.constant dense<0.000000e+00> : vector<2x128xf32>
    %577 = tpu.matmul %576, %574, %cst_185 {dimension_numbers = #tpu.dot_dimension_numbers<[1], [0], [0], [1], [0, 0, 1, 1], [], []>} : vector<2x256xbf16>, vector<256x128xbf16>, vector<2x128xf32> -> vector<2x128xf32>
    %578 = arith.extf %575 : vector<1x128xbf16> to vector<1x128xf32>
    %579 = vector.broadcast %578 : vector<1x128xf32> to vector<2x128xf32>
    %580 = arith.addf %577, %579 : vector<2x128xf32>
    %cst_186 = arith.constant dense<0xFF800000> : vector<2xf32>
    %581 = vector.multi_reduction <maximumf>, %580, %cst_186 [1] : vector<2x128xf32> to vector<2xf32>
    %582 = vector.shape_cast %581 : vector<2xf32> to vector<2x1xf32>
    %583 = vector.broadcast %582 : vector<2x1xf32> to vector<2x128xf32>
    %584 = arith.subf %580, %583 : vector<2x128xf32>
    %585 = math.exp %584 : vector<2x128xf32>
    %cst_187 = arith.constant dense<0.000000e+00> : vector<2xf32>
    %586 = vector.multi_reduction <add>, %585, %cst_187 [1] : vector<2x128xf32> to vector<2xf32>
    %587 = vector.shape_cast %586 : vector<2xf32> to vector<2x1xf32>
    %588 = tpu.reciprocal %587 {approx = true} : vector<2x1xf32> -> vector<2x1xf32>
    %589 = vector.broadcast %588 : vector<2x1xf32> to vector<2x128xf32>
    %590 = arith.mulf %585, %589 : vector<2x128xf32>
    %591 = arith.truncf %590 : vector<2x128xf32> to vector<2x128xbf16>
    %592 = arith.truncf %285 : vector<128x128xf32> to vector<128x128xbf16>
    %cst_188 = arith.constant dense<0.000000e+00> : vector<2x128xf32>
    %593 = tpu.matmul %591, %592, %cst_188 {dimension_numbers = #tpu.dot_dimension_numbers<[1], [0], [0], [1], [0, 0, 1, 1], [], []>} : vector<2x128xbf16>, vector<128x128xbf16>, vector<2x128xf32> -> vector<2x128xf32>
    %594 = tpu.concatenate %572, %593 in 1 : vector<2x128xf32>, vector<2x128xf32> -> vector<2x256xf32>
    %c416_189 = arith.constant 416 : index
    %c0_190 = arith.constant 0 : index
    %595 = vector.load %arg7[%c416_189, %c0_190] : memref<1264x128xbf16, #tpu.memory_space<vmem>>, vector<256x128xbf16>
    %c672_191 = arith.constant 672 : index
    %c0_192 = arith.constant 0 : index
    %596 = vector.load %arg7[%c672_191, %c0_192] : memref<1264x128xbf16, #tpu.memory_space<vmem>>, vector<1x128xbf16>
    %597 = arith.truncf %594 : vector<2x256xf32> to vector<2x256xbf16>
    %cst_193 = arith.constant dense<0.000000e+00> : vector<2x128xf32>
    %598 = tpu.matmul %597, %595, %cst_193 {dimension_numbers = #tpu.dot_dimension_numbers<[1], [0], [0], [1], [0, 0, 1, 1], [], []>} : vector<2x256xbf16>, vector<256x128xbf16>, vector<2x128xf32> -> vector<2x128xf32>
    %599 = arith.extf %596 : vector<1x128xbf16> to vector<1x128xf32>
    %600 = vector.broadcast %599 : vector<1x128xf32> to vector<2x128xf32>
    %601 = arith.addf %598, %600 : vector<2x128xf32>
    %602 = math.tanh %601 : vector<2x128xf32>
    %c0_194 = arith.constant 0 : index
    %c0_195 = arith.constant 0 : index
    %603 = vector.load %arg6[%c0_194, %c0_195] : memref<288x384xbf16, #tpu.memory_space<vmem>>, vector<128x384xbf16>
    %c128_196 = arith.constant 128 : index
    %c0_197 = arith.constant 0 : index
    %604 = vector.load %arg6[%c128_196, %c0_197] : memref<288x384xbf16, #tpu.memory_space<vmem>>, vector<1x384xbf16>
    %605 = arith.truncf %602 : vector<2x128xf32> to vector<2x128xbf16>
    %cst_198 = arith.constant dense<0.000000e+00> : vector<2x384xf32>
    %606 = tpu.matmul %605, %603, %cst_198 {dimension_numbers = #tpu.dot_dimension_numbers<[1], [0], [0], [1], [0, 0, 1, 1], [], []>} : vector<2x128xbf16>, vector<128x384xbf16>, vector<2x384xf32> -> vector<2x384xf32>
    %607 = arith.extf %604 : vector<1x384xbf16> to vector<1x384xf32>
    %608 = vector.broadcast %607 : vector<1x384xf32> to vector<2x384xf32>
    %609 = arith.addf %606, %608 : vector<2x384xf32>
    %c144_199 = arith.constant 144 : index
    %c0_200 = arith.constant 0 : index
    %610 = vector.load %arg6[%c144_199, %c0_200] : memref<288x384xbf16, #tpu.memory_space<vmem>>, vector<128x384xbf16>
    %c272_201 = arith.constant 272 : index
    %c0_202 = arith.constant 0 : index
    %611 = vector.load %arg6[%c272_201, %c0_202] : memref<288x384xbf16, #tpu.memory_space<vmem>>, vector<1x384xbf16>
    %612 = arith.truncf %557 : vector<2x128xf32> to vector<2x128xbf16>
    %cst_203 = arith.constant dense<0.000000e+00> : vector<2x384xf32>
    %613 = tpu.matmul %612, %610, %cst_203 {dimension_numbers = #tpu.dot_dimension_numbers<[1], [0], [0], [1], [0, 0, 1, 1], [], []>} : vector<2x128xbf16>, vector<128x384xbf16>, vector<2x384xf32> -> vector<2x384xf32>
    %614 = arith.extf %611 : vector<1x384xbf16> to vector<1x384xf32>
    %615 = vector.broadcast %614 : vector<1x384xf32> to vector<2x384xf32>
    %616 = arith.addf %613, %615 : vector<2x384xf32>
    %617 = vector.extract_strided_slice %609 {offsets = [0, 0], sizes = [2, 128], strides = [1, 1]} : vector<2x384xf32> to vector<2x128xf32>
    %618 = vector.extract_strided_slice %616 {offsets = [0, 0], sizes = [2, 128], strides = [1, 1]} : vector<2x384xf32> to vector<2x128xf32>
    %619 = arith.addf %617, %618 : vector<2x128xf32>
    %620 = arith.negf %619 : vector<2x128xf32>
    %621 = math.exp %620 : vector<2x128xf32>
    %cst_204 = arith.constant 1.000000e+00 : f32
    %622 = vector.broadcast %cst_204 : f32 to vector<2x128xf32>
    %623 = arith.addf %622, %621 : vector<2x128xf32>
    %624 = arith.divf %622, %623 : vector<2x128xf32>
    %625 = vector.extract_strided_slice %609 {offsets = [0, 128], sizes = [2, 128], strides = [1, 1]} : vector<2x384xf32> to vector<2x128xf32>
    %626 = vector.extract_strided_slice %616 {offsets = [0, 128], sizes = [2, 128], strides = [1, 1]} : vector<2x384xf32> to vector<2x128xf32>
    %627 = arith.addf %625, %626 : vector<2x128xf32>
    %628 = arith.negf %627 : vector<2x128xf32>
    %629 = math.exp %628 : vector<2x128xf32>
    %cst_205 = arith.constant 1.000000e+00 : f32
    %630 = vector.broadcast %cst_205 : f32 to vector<2x128xf32>
    %631 = arith.addf %630, %629 : vector<2x128xf32>
    %632 = arith.divf %630, %631 : vector<2x128xf32>
    %633 = vector.extract_strided_slice %609 {offsets = [0, 256], sizes = [2, 128], strides = [1, 1]} : vector<2x384xf32> to vector<2x128xf32>
    %634 = vector.extract_strided_slice %616 {offsets = [0, 256], sizes = [2, 128], strides = [1, 1]} : vector<2x384xf32> to vector<2x128xf32>
    %635 = arith.mulf %624, %634 : vector<2x128xf32>
    %636 = arith.addf %633, %635 : vector<2x128xf32>
    %637 = math.tanh %636 : vector<2x128xf32>
    %638 = arith.subf %557, %637 : vector<2x128xf32>
    %639 = arith.mulf %632, %638 : vector<2x128xf32>
    %640 = arith.addf %637, %639 : vector<2x128xf32>
    %c688_206 = arith.constant 688 : index
    %c0_207 = arith.constant 0 : index
    %641 = vector.load %arg7[%c688_206, %c0_207] : memref<1264x128xbf16, #tpu.memory_space<vmem>>, vector<128x128xbf16>
    %c816_208 = arith.constant 816 : index
    %c0_209 = arith.constant 0 : index
    %642 = vector.load %arg7[%c816_208, %c0_209] : memref<1264x128xbf16, #tpu.memory_space<vmem>>, vector<1x128xbf16>
    %643 = arith.truncf %640 : vector<2x128xf32> to vector<2x128xbf16>
    %cst_210 = arith.constant dense<0.000000e+00> : vector<2x128xf32>
    %644 = tpu.matmul %643, %641, %cst_210 {dimension_numbers = #tpu.dot_dimension_numbers<[1], [0], [0], [1], [0, 0, 1, 1], [], []>} : vector<2x128xbf16>, vector<128x128xbf16>, vector<2x128xf32> -> vector<2x128xf32>
    %645 = arith.extf %642 : vector<1x128xbf16> to vector<1x128xf32>
    %646 = vector.broadcast %645 : vector<1x128xf32> to vector<2x128xf32>
    %647 = arith.addf %644, %646 : vector<2x128xf32>
    %648 = math.tanh %647 : vector<2x128xf32>
    %c0_211 = arith.constant 0 : index
    %c0_212 = arith.constant 0 : index
    %649 = vector.load %arg7[%c0_211, %c0_212] : memref<1264x128xbf16, #tpu.memory_space<vmem>>, vector<128x128xbf16>
    %c128_213 = arith.constant 128 : index
    %c0_214 = arith.constant 0 : index
    %650 = vector.load %arg7[%c128_213, %c0_214] : memref<1264x128xbf16, #tpu.memory_space<vmem>>, vector<1x128xbf16>
    %651 = arith.truncf %648 : vector<2x128xf32> to vector<2x128xbf16>
    %cst_215 = arith.constant dense<0.000000e+00> : vector<2x128xf32>
    %652 = tpu.matmul %651, %649, %cst_215 {dimension_numbers = #tpu.dot_dimension_numbers<[1], [0], [0], [1], [0, 0, 1, 1], [], []>} : vector<2x128xbf16>, vector<128x128xbf16>, vector<2x128xf32> -> vector<2x128xf32>
    %653 = arith.extf %650 : vector<1x128xbf16> to vector<1x128xf32>
    %654 = vector.broadcast %653 : vector<1x128xf32> to vector<2x128xf32>
    %655 = arith.addf %652, %654 : vector<2x128xf32>
    %656 = tpu.concatenate %655, %640 in 1 : vector<2x128xf32>, vector<2x128xf32> -> vector<2x256xf32>
    %c144_216 = arith.constant 144 : index
    %c0_217 = arith.constant 0 : index
    %657 = vector.load %arg7[%c144_216, %c0_217] : memref<1264x128xbf16, #tpu.memory_space<vmem>>, vector<256x128xbf16>
    %c400_218 = arith.constant 400 : index
    %c0_219 = arith.constant 0 : index
    %658 = vector.load %arg7[%c400_218, %c0_219] : memref<1264x128xbf16, #tpu.memory_space<vmem>>, vector<1x128xbf16>
    %659 = arith.truncf %656 : vector<2x256xf32> to vector<2x256xbf16>
    %cst_220 = arith.constant dense<0.000000e+00> : vector<2x128xf32>
    %660 = tpu.matmul %659, %657, %cst_220 {dimension_numbers = #tpu.dot_dimension_numbers<[1], [0], [0], [1], [0, 0, 1, 1], [], []>} : vector<2x256xbf16>, vector<256x128xbf16>, vector<2x128xf32> -> vector<2x128xf32>
    %661 = arith.extf %658 : vector<1x128xbf16> to vector<1x128xf32>
    %662 = vector.broadcast %661 : vector<1x128xf32> to vector<2x128xf32>
    %663 = arith.addf %660, %662 : vector<2x128xf32>
    %cst_221 = arith.constant dense<0xFF800000> : vector<2xf32>
    %664 = vector.multi_reduction <maximumf>, %663, %cst_221 [1] : vector<2x128xf32> to vector<2xf32>
    %665 = vector.shape_cast %664 : vector<2xf32> to vector<2x1xf32>
    %666 = vector.broadcast %665 : vector<2x1xf32> to vector<2x128xf32>
    %667 = arith.subf %663, %666 : vector<2x128xf32>
    %668 = math.exp %667 : vector<2x128xf32>
    %cst_222 = arith.constant dense<0.000000e+00> : vector<2xf32>
    %669 = vector.multi_reduction <add>, %668, %cst_222 [1] : vector<2x128xf32> to vector<2xf32>
    %670 = vector.shape_cast %669 : vector<2xf32> to vector<2x1xf32>
    %671 = tpu.reciprocal %670 {approx = true} : vector<2x1xf32> -> vector<2x1xf32>
    %672 = vector.broadcast %671 : vector<2x1xf32> to vector<2x128xf32>
    %673 = arith.mulf %668, %672 : vector<2x128xf32>
    %674 = arith.truncf %673 : vector<2x128xf32> to vector<2x128xbf16>
    %675 = arith.truncf %285 : vector<128x128xf32> to vector<128x128xbf16>
    %cst_223 = arith.constant dense<0.000000e+00> : vector<2x128xf32>
    %676 = tpu.matmul %674, %675, %cst_223 {dimension_numbers = #tpu.dot_dimension_numbers<[1], [0], [0], [1], [0, 0, 1, 1], [], []>} : vector<2x128xbf16>, vector<128x128xbf16>, vector<2x128xf32> -> vector<2x128xf32>
    %677 = tpu.concatenate %655, %676 in 1 : vector<2x128xf32>, vector<2x128xf32> -> vector<2x256xf32>
    %c416_224 = arith.constant 416 : index
    %c0_225 = arith.constant 0 : index
    %678 = vector.load %arg7[%c416_224, %c0_225] : memref<1264x128xbf16, #tpu.memory_space<vmem>>, vector<256x128xbf16>
    %c672_226 = arith.constant 672 : index
    %c0_227 = arith.constant 0 : index
    %679 = vector.load %arg7[%c672_226, %c0_227] : memref<1264x128xbf16, #tpu.memory_space<vmem>>, vector<1x128xbf16>
    %680 = arith.truncf %677 : vector<2x256xf32> to vector<2x256xbf16>
    %cst_228 = arith.constant dense<0.000000e+00> : vector<2x128xf32>
    %681 = tpu.matmul %680, %678, %cst_228 {dimension_numbers = #tpu.dot_dimension_numbers<[1], [0], [0], [1], [0, 0, 1, 1], [], []>} : vector<2x256xbf16>, vector<256x128xbf16>, vector<2x128xf32> -> vector<2x128xf32>
    %682 = arith.extf %679 : vector<1x128xbf16> to vector<1x128xf32>
    %683 = vector.broadcast %682 : vector<1x128xf32> to vector<2x128xf32>
    %684 = arith.addf %681, %683 : vector<2x128xf32>
    %685 = math.tanh %684 : vector<2x128xf32>
    %c0_229 = arith.constant 0 : index
    %c0_230 = arith.constant 0 : index
    %686 = vector.load %arg6[%c0_229, %c0_230] : memref<288x384xbf16, #tpu.memory_space<vmem>>, vector<128x384xbf16>
    %c128_231 = arith.constant 128 : index
    %c0_232 = arith.constant 0 : index
    %687 = vector.load %arg6[%c128_231, %c0_232] : memref<288x384xbf16, #tpu.memory_space<vmem>>, vector<1x384xbf16>
    %688 = arith.truncf %685 : vector<2x128xf32> to vector<2x128xbf16>
    %cst_233 = arith.constant dense<0.000000e+00> : vector<2x384xf32>
    %689 = tpu.matmul %688, %686, %cst_233 {dimension_numbers = #tpu.dot_dimension_numbers<[1], [0], [0], [1], [0, 0, 1, 1], [], []>} : vector<2x128xbf16>, vector<128x384xbf16>, vector<2x384xf32> -> vector<2x384xf32>
    %690 = arith.extf %687 : vector<1x384xbf16> to vector<1x384xf32>
    %691 = vector.broadcast %690 : vector<1x384xf32> to vector<2x384xf32>
    %692 = arith.addf %689, %691 : vector<2x384xf32>
    %c144_234 = arith.constant 144 : index
    %c0_235 = arith.constant 0 : index
    %693 = vector.load %arg6[%c144_234, %c0_235] : memref<288x384xbf16, #tpu.memory_space<vmem>>, vector<128x384xbf16>
    %c272_236 = arith.constant 272 : index
    %c0_237 = arith.constant 0 : index
    %694 = vector.load %arg6[%c272_236, %c0_237] : memref<288x384xbf16, #tpu.memory_space<vmem>>, vector<1x384xbf16>
    %695 = arith.truncf %640 : vector<2x128xf32> to vector<2x128xbf16>
    %cst_238 = arith.constant dense<0.000000e+00> : vector<2x384xf32>
    %696 = tpu.matmul %695, %693, %cst_238 {dimension_numbers = #tpu.dot_dimension_numbers<[1], [0], [0], [1], [0, 0, 1, 1], [], []>} : vector<2x128xbf16>, vector<128x384xbf16>, vector<2x384xf32> -> vector<2x384xf32>
    %697 = arith.extf %694 : vector<1x384xbf16> to vector<1x384xf32>
    %698 = vector.broadcast %697 : vector<1x384xf32> to vector<2x384xf32>
    %699 = arith.addf %696, %698 : vector<2x384xf32>
    %700 = vector.extract_strided_slice %692 {offsets = [0, 0], sizes = [2, 128], strides = [1, 1]} : vector<2x384xf32> to vector<2x128xf32>
    %701 = vector.extract_strided_slice %699 {offsets = [0, 0], sizes = [2, 128], strides = [1, 1]} : vector<2x384xf32> to vector<2x128xf32>
    %702 = arith.addf %700, %701 : vector<2x128xf32>
    %703 = arith.negf %702 : vector<2x128xf32>
    %704 = math.exp %703 : vector<2x128xf32>
    %cst_239 = arith.constant 1.000000e+00 : f32
    %705 = vector.broadcast %cst_239 : f32 to vector<2x128xf32>
    %706 = arith.addf %705, %704 : vector<2x128xf32>
    %707 = arith.divf %705, %706 : vector<2x128xf32>
    %708 = vector.extract_strided_slice %692 {offsets = [0, 128], sizes = [2, 128], strides = [1, 1]} : vector<2x384xf32> to vector<2x128xf32>
    %709 = vector.extract_strided_slice %699 {offsets = [0, 128], sizes = [2, 128], strides = [1, 1]} : vector<2x384xf32> to vector<2x128xf32>
    %710 = arith.addf %708, %709 : vector<2x128xf32>
    %711 = arith.negf %710 : vector<2x128xf32>
    %712 = math.exp %711 : vector<2x128xf32>
    %cst_240 = arith.constant 1.000000e+00 : f32
    %713 = vector.broadcast %cst_240 : f32 to vector<2x128xf32>
    %714 = arith.addf %713, %712 : vector<2x128xf32>
    %715 = arith.divf %713, %714 : vector<2x128xf32>
    %716 = vector.extract_strided_slice %692 {offsets = [0, 256], sizes = [2, 128], strides = [1, 1]} : vector<2x384xf32> to vector<2x128xf32>
    %717 = vector.extract_strided_slice %699 {offsets = [0, 256], sizes = [2, 128], strides = [1, 1]} : vector<2x384xf32> to vector<2x128xf32>
    %718 = arith.mulf %707, %717 : vector<2x128xf32>
    %719 = arith.addf %716, %718 : vector<2x128xf32>
    %720 = math.tanh %719 : vector<2x128xf32>
    %721 = arith.subf %640, %720 : vector<2x128xf32>
    %722 = arith.mulf %715, %721 : vector<2x128xf32>
    %723 = arith.addf %720, %722 : vector<2x128xf32>
    %c688_241 = arith.constant 688 : index
    %c0_242 = arith.constant 0 : index
    %724 = vector.load %arg7[%c688_241, %c0_242] : memref<1264x128xbf16, #tpu.memory_space<vmem>>, vector<128x128xbf16>
    %c816_243 = arith.constant 816 : index
    %c0_244 = arith.constant 0 : index
    %725 = vector.load %arg7[%c816_243, %c0_244] : memref<1264x128xbf16, #tpu.memory_space<vmem>>, vector<1x128xbf16>
    %726 = arith.truncf %723 : vector<2x128xf32> to vector<2x128xbf16>
    %cst_245 = arith.constant dense<0.000000e+00> : vector<2x128xf32>
    %727 = tpu.matmul %726, %724, %cst_245 {dimension_numbers = #tpu.dot_dimension_numbers<[1], [0], [0], [1], [0, 0, 1, 1], [], []>} : vector<2x128xbf16>, vector<128x128xbf16>, vector<2x128xf32> -> vector<2x128xf32>
    %728 = arith.extf %725 : vector<1x128xbf16> to vector<1x128xf32>
    %729 = vector.broadcast %728 : vector<1x128xf32> to vector<2x128xf32>
    %730 = arith.addf %727, %729 : vector<2x128xf32>
    %731 = math.tanh %730 : vector<2x128xf32>
    %c0_246 = arith.constant 0 : index
    %c0_247 = arith.constant 0 : index
    %732 = vector.load %arg7[%c0_246, %c0_247] : memref<1264x128xbf16, #tpu.memory_space<vmem>>, vector<128x128xbf16>
    %c128_248 = arith.constant 128 : index
    %c0_249 = arith.constant 0 : index
    %733 = vector.load %arg7[%c128_248, %c0_249] : memref<1264x128xbf16, #tpu.memory_space<vmem>>, vector<1x128xbf16>
    %734 = arith.truncf %731 : vector<2x128xf32> to vector<2x128xbf16>
    %cst_250 = arith.constant dense<0.000000e+00> : vector<2x128xf32>
    %735 = tpu.matmul %734, %732, %cst_250 {dimension_numbers = #tpu.dot_dimension_numbers<[1], [0], [0], [1], [0, 0, 1, 1], [], []>} : vector<2x128xbf16>, vector<128x128xbf16>, vector<2x128xf32> -> vector<2x128xf32>
    %736 = arith.extf %733 : vector<1x128xbf16> to vector<1x128xf32>
    %737 = vector.broadcast %736 : vector<1x128xf32> to vector<2x128xf32>
    %738 = arith.addf %735, %737 : vector<2x128xf32>
    %739 = tpu.concatenate %738, %723 in 1 : vector<2x128xf32>, vector<2x128xf32> -> vector<2x256xf32>
    %c144_251 = arith.constant 144 : index
    %c0_252 = arith.constant 0 : index
    %740 = vector.load %arg7[%c144_251, %c0_252] : memref<1264x128xbf16, #tpu.memory_space<vmem>>, vector<256x128xbf16>
    %c400_253 = arith.constant 400 : index
    %c0_254 = arith.constant 0 : index
    %741 = vector.load %arg7[%c400_253, %c0_254] : memref<1264x128xbf16, #tpu.memory_space<vmem>>, vector<1x128xbf16>
    %742 = arith.truncf %739 : vector<2x256xf32> to vector<2x256xbf16>
    %cst_255 = arith.constant dense<0.000000e+00> : vector<2x128xf32>
    %743 = tpu.matmul %742, %740, %cst_255 {dimension_numbers = #tpu.dot_dimension_numbers<[1], [0], [0], [1], [0, 0, 1, 1], [], []>} : vector<2x256xbf16>, vector<256x128xbf16>, vector<2x128xf32> -> vector<2x128xf32>
    %744 = arith.extf %741 : vector<1x128xbf16> to vector<1x128xf32>
    %745 = vector.broadcast %744 : vector<1x128xf32> to vector<2x128xf32>
    %746 = arith.addf %743, %745 : vector<2x128xf32>
    %cst_256 = arith.constant dense<0xFF800000> : vector<2xf32>
    %747 = vector.multi_reduction <maximumf>, %746, %cst_256 [1] : vector<2x128xf32> to vector<2xf32>
    %748 = vector.shape_cast %747 : vector<2xf32> to vector<2x1xf32>
    %749 = vector.broadcast %748 : vector<2x1xf32> to vector<2x128xf32>
    %750 = arith.subf %746, %749 : vector<2x128xf32>
    %751 = math.exp %750 : vector<2x128xf32>
    %cst_257 = arith.constant dense<0.000000e+00> : vector<2xf32>
    %752 = vector.multi_reduction <add>, %751, %cst_257 [1] : vector<2x128xf32> to vector<2xf32>
    %753 = vector.shape_cast %752 : vector<2xf32> to vector<2x1xf32>
    %754 = tpu.reciprocal %753 {approx = true} : vector<2x1xf32> -> vector<2x1xf32>
    %755 = vector.broadcast %754 : vector<2x1xf32> to vector<2x128xf32>
    %756 = arith.mulf %751, %755 : vector<2x128xf32>
    %757 = arith.truncf %756 : vector<2x128xf32> to vector<2x128xbf16>
    %758 = arith.truncf %285 : vector<128x128xf32> to vector<128x128xbf16>
    %cst_258 = arith.constant dense<0.000000e+00> : vector<2x128xf32>
    %759 = tpu.matmul %757, %758, %cst_258 {dimension_numbers = #tpu.dot_dimension_numbers<[1], [0], [0], [1], [0, 0, 1, 1], [], []>} : vector<2x128xbf16>, vector<128x128xbf16>, vector<2x128xf32> -> vector<2x128xf32>
    %760 = tpu.concatenate %738, %759 in 1 : vector<2x128xf32>, vector<2x128xf32> -> vector<2x256xf32>
    %c416_259 = arith.constant 416 : index
    %c0_260 = arith.constant 0 : index
    %761 = vector.load %arg7[%c416_259, %c0_260] : memref<1264x128xbf16, #tpu.memory_space<vmem>>, vector<256x128xbf16>
    %c672_261 = arith.constant 672 : index
    %c0_262 = arith.constant 0 : index
    %762 = vector.load %arg7[%c672_261, %c0_262] : memref<1264x128xbf16, #tpu.memory_space<vmem>>, vector<1x128xbf16>
    %763 = arith.truncf %760 : vector<2x256xf32> to vector<2x256xbf16>
    %cst_263 = arith.constant dense<0.000000e+00> : vector<2x128xf32>
    %764 = tpu.matmul %763, %761, %cst_263 {dimension_numbers = #tpu.dot_dimension_numbers<[1], [0], [0], [1], [0, 0, 1, 1], [], []>} : vector<2x256xbf16>, vector<256x128xbf16>, vector<2x128xf32> -> vector<2x128xf32>
    %765 = arith.extf %762 : vector<1x128xbf16> to vector<1x128xf32>
    %766 = vector.broadcast %765 : vector<1x128xf32> to vector<2x128xf32>
    %767 = arith.addf %764, %766 : vector<2x128xf32>
    %768 = math.tanh %767 : vector<2x128xf32>
    %c0_264 = arith.constant 0 : index
    %c0_265 = arith.constant 0 : index
    %769 = vector.load %arg6[%c0_264, %c0_265] : memref<288x384xbf16, #tpu.memory_space<vmem>>, vector<128x384xbf16>
    %c128_266 = arith.constant 128 : index
    %c0_267 = arith.constant 0 : index
    %770 = vector.load %arg6[%c128_266, %c0_267] : memref<288x384xbf16, #tpu.memory_space<vmem>>, vector<1x384xbf16>
    %771 = arith.truncf %768 : vector<2x128xf32> to vector<2x128xbf16>
    %cst_268 = arith.constant dense<0.000000e+00> : vector<2x384xf32>
    %772 = tpu.matmul %771, %769, %cst_268 {dimension_numbers = #tpu.dot_dimension_numbers<[1], [0], [0], [1], [0, 0, 1, 1], [], []>} : vector<2x128xbf16>, vector<128x384xbf16>, vector<2x384xf32> -> vector<2x384xf32>
    %773 = arith.extf %770 : vector<1x384xbf16> to vector<1x384xf32>
    %774 = vector.broadcast %773 : vector<1x384xf32> to vector<2x384xf32>
    %775 = arith.addf %772, %774 : vector<2x384xf32>
    %c144_269 = arith.constant 144 : index
    %c0_270 = arith.constant 0 : index
    %776 = vector.load %arg6[%c144_269, %c0_270] : memref<288x384xbf16, #tpu.memory_space<vmem>>, vector<128x384xbf16>
    %c272_271 = arith.constant 272 : index
    %c0_272 = arith.constant 0 : index
    %777 = vector.load %arg6[%c272_271, %c0_272] : memref<288x384xbf16, #tpu.memory_space<vmem>>, vector<1x384xbf16>
    %778 = arith.truncf %723 : vector<2x128xf32> to vector<2x128xbf16>
    %cst_273 = arith.constant dense<0.000000e+00> : vector<2x384xf32>
    %779 = tpu.matmul %778, %776, %cst_273 {dimension_numbers = #tpu.dot_dimension_numbers<[1], [0], [0], [1], [0, 0, 1, 1], [], []>} : vector<2x128xbf16>, vector<128x384xbf16>, vector<2x384xf32> -> vector<2x384xf32>
    %780 = arith.extf %777 : vector<1x384xbf16> to vector<1x384xf32>
    %781 = vector.broadcast %780 : vector<1x384xf32> to vector<2x384xf32>
    %782 = arith.addf %779, %781 : vector<2x384xf32>
    %783 = vector.extract_strided_slice %775 {offsets = [0, 0], sizes = [2, 128], strides = [1, 1]} : vector<2x384xf32> to vector<2x128xf32>
    %784 = vector.extract_strided_slice %782 {offsets = [0, 0], sizes = [2, 128], strides = [1, 1]} : vector<2x384xf32> to vector<2x128xf32>
    %785 = arith.addf %783, %784 : vector<2x128xf32>
    %786 = arith.negf %785 : vector<2x128xf32>
    %787 = math.exp %786 : vector<2x128xf32>
    %cst_274 = arith.constant 1.000000e+00 : f32
    %788 = vector.broadcast %cst_274 : f32 to vector<2x128xf32>
    %789 = arith.addf %788, %787 : vector<2x128xf32>
    %790 = arith.divf %788, %789 : vector<2x128xf32>
    %791 = vector.extract_strided_slice %775 {offsets = [0, 128], sizes = [2, 128], strides = [1, 1]} : vector<2x384xf32> to vector<2x128xf32>
    %792 = vector.extract_strided_slice %782 {offsets = [0, 128], sizes = [2, 128], strides = [1, 1]} : vector<2x384xf32> to vector<2x128xf32>
    %793 = arith.addf %791, %792 : vector<2x128xf32>
    %794 = arith.negf %793 : vector<2x128xf32>
    %795 = math.exp %794 : vector<2x128xf32>
    %cst_275 = arith.constant 1.000000e+00 : f32
    %796 = vector.broadcast %cst_275 : f32 to vector<2x128xf32>
    %797 = arith.addf %796, %795 : vector<2x128xf32>
    %798 = arith.divf %796, %797 : vector<2x128xf32>
    %799 = vector.extract_strided_slice %775 {offsets = [0, 256], sizes = [2, 128], strides = [1, 1]} : vector<2x384xf32> to vector<2x128xf32>
    %800 = vector.extract_strided_slice %782 {offsets = [0, 256], sizes = [2, 128], strides = [1, 1]} : vector<2x384xf32> to vector<2x128xf32>
    %801 = arith.mulf %790, %800 : vector<2x128xf32>
    %802 = arith.addf %799, %801 : vector<2x128xf32>
    %803 = math.tanh %802 : vector<2x128xf32>
    %804 = arith.subf %723, %803 : vector<2x128xf32>
    %805 = arith.mulf %798, %804 : vector<2x128xf32>
    %806 = arith.addf %803, %805 : vector<2x128xf32>
    %c688_276 = arith.constant 688 : index
    %c0_277 = arith.constant 0 : index
    %807 = vector.load %arg7[%c688_276, %c0_277] : memref<1264x128xbf16, #tpu.memory_space<vmem>>, vector<128x128xbf16>
    %c816_278 = arith.constant 816 : index
    %c0_279 = arith.constant 0 : index
    %808 = vector.load %arg7[%c816_278, %c0_279] : memref<1264x128xbf16, #tpu.memory_space<vmem>>, vector<1x128xbf16>
    %809 = arith.truncf %806 : vector<2x128xf32> to vector<2x128xbf16>
    %cst_280 = arith.constant dense<0.000000e+00> : vector<2x128xf32>
    %810 = tpu.matmul %809, %807, %cst_280 {dimension_numbers = #tpu.dot_dimension_numbers<[1], [0], [0], [1], [0, 0, 1, 1], [], []>} : vector<2x128xbf16>, vector<128x128xbf16>, vector<2x128xf32> -> vector<2x128xf32>
    %811 = arith.extf %808 : vector<1x128xbf16> to vector<1x128xf32>
    %812 = vector.broadcast %811 : vector<1x128xf32> to vector<2x128xf32>
    %813 = arith.addf %810, %812 : vector<2x128xf32>
    %814 = math.tanh %813 : vector<2x128xf32>
    %c0_281 = arith.constant 0 : index
    %c0_282 = arith.constant 0 : index
    %815 = vector.load %arg7[%c0_281, %c0_282] : memref<1264x128xbf16, #tpu.memory_space<vmem>>, vector<128x128xbf16>
    %c128_283 = arith.constant 128 : index
    %c0_284 = arith.constant 0 : index
    %816 = vector.load %arg7[%c128_283, %c0_284] : memref<1264x128xbf16, #tpu.memory_space<vmem>>, vector<1x128xbf16>
    %817 = arith.truncf %814 : vector<2x128xf32> to vector<2x128xbf16>
    %cst_285 = arith.constant dense<0.000000e+00> : vector<2x128xf32>
    %818 = tpu.matmul %817, %815, %cst_285 {dimension_numbers = #tpu.dot_dimension_numbers<[1], [0], [0], [1], [0, 0, 1, 1], [], []>} : vector<2x128xbf16>, vector<128x128xbf16>, vector<2x128xf32> -> vector<2x128xf32>
    %819 = arith.extf %816 : vector<1x128xbf16> to vector<1x128xf32>
    %820 = vector.broadcast %819 : vector<1x128xf32> to vector<2x128xf32>
    %821 = arith.addf %818, %820 : vector<2x128xf32>
    %822 = tpu.concatenate %821, %806 in 1 : vector<2x128xf32>, vector<2x128xf32> -> vector<2x256xf32>
    %c144_286 = arith.constant 144 : index
    %c0_287 = arith.constant 0 : index
    %823 = vector.load %arg7[%c144_286, %c0_287] : memref<1264x128xbf16, #tpu.memory_space<vmem>>, vector<256x128xbf16>
    %c400_288 = arith.constant 400 : index
    %c0_289 = arith.constant 0 : index
    %824 = vector.load %arg7[%c400_288, %c0_289] : memref<1264x128xbf16, #tpu.memory_space<vmem>>, vector<1x128xbf16>
    %825 = arith.truncf %822 : vector<2x256xf32> to vector<2x256xbf16>
    %cst_290 = arith.constant dense<0.000000e+00> : vector<2x128xf32>
    %826 = tpu.matmul %825, %823, %cst_290 {dimension_numbers = #tpu.dot_dimension_numbers<[1], [0], [0], [1], [0, 0, 1, 1], [], []>} : vector<2x256xbf16>, vector<256x128xbf16>, vector<2x128xf32> -> vector<2x128xf32>
    %827 = arith.extf %824 : vector<1x128xbf16> to vector<1x128xf32>
    %828 = vector.broadcast %827 : vector<1x128xf32> to vector<2x128xf32>
    %829 = arith.addf %826, %828 : vector<2x128xf32>
    %cst_291 = arith.constant dense<0xFF800000> : vector<2xf32>
    %830 = vector.multi_reduction <maximumf>, %829, %cst_291 [1] : vector<2x128xf32> to vector<2xf32>
    %831 = vector.shape_cast %830 : vector<2xf32> to vector<2x1xf32>
    %832 = vector.broadcast %831 : vector<2x1xf32> to vector<2x128xf32>
    %833 = arith.subf %829, %832 : vector<2x128xf32>
    %834 = math.exp %833 : vector<2x128xf32>
    %cst_292 = arith.constant dense<0.000000e+00> : vector<2xf32>
    %835 = vector.multi_reduction <add>, %834, %cst_292 [1] : vector<2x128xf32> to vector<2xf32>
    %836 = vector.shape_cast %835 : vector<2xf32> to vector<2x1xf32>
    %837 = tpu.reciprocal %836 {approx = true} : vector<2x1xf32> -> vector<2x1xf32>
    %838 = vector.broadcast %837 : vector<2x1xf32> to vector<2x128xf32>
    %839 = arith.mulf %834, %838 : vector<2x128xf32>
    %840 = arith.truncf %839 : vector<2x128xf32> to vector<2x128xbf16>
    %841 = arith.truncf %285 : vector<128x128xf32> to vector<128x128xbf16>
    %cst_293 = arith.constant dense<0.000000e+00> : vector<2x128xf32>
    %842 = tpu.matmul %840, %841, %cst_293 {dimension_numbers = #tpu.dot_dimension_numbers<[1], [0], [0], [1], [0, 0, 1, 1], [], []>} : vector<2x128xbf16>, vector<128x128xbf16>, vector<2x128xf32> -> vector<2x128xf32>
    %843 = tpu.concatenate %821, %842 in 1 : vector<2x128xf32>, vector<2x128xf32> -> vector<2x256xf32>
    %c416_294 = arith.constant 416 : index
    %c0_295 = arith.constant 0 : index
    %844 = vector.load %arg7[%c416_294, %c0_295] : memref<1264x128xbf16, #tpu.memory_space<vmem>>, vector<256x128xbf16>
    %c672_296 = arith.constant 672 : index
    %c0_297 = arith.constant 0 : index
    %845 = vector.load %arg7[%c672_296, %c0_297] : memref<1264x128xbf16, #tpu.memory_space<vmem>>, vector<1x128xbf16>
    %846 = arith.truncf %843 : vector<2x256xf32> to vector<2x256xbf16>
    %cst_298 = arith.constant dense<0.000000e+00> : vector<2x128xf32>
    %847 = tpu.matmul %846, %844, %cst_298 {dimension_numbers = #tpu.dot_dimension_numbers<[1], [0], [0], [1], [0, 0, 1, 1], [], []>} : vector<2x256xbf16>, vector<256x128xbf16>, vector<2x128xf32> -> vector<2x128xf32>
    %848 = arith.extf %845 : vector<1x128xbf16> to vector<1x128xf32>
    %849 = vector.broadcast %848 : vector<1x128xf32> to vector<2x128xf32>
    %850 = arith.addf %847, %849 : vector<2x128xf32>
    %851 = math.tanh %850 : vector<2x128xf32>
    %c0_299 = arith.constant 0 : index
    %c0_300 = arith.constant 0 : index
    %852 = vector.load %arg6[%c0_299, %c0_300] : memref<288x384xbf16, #tpu.memory_space<vmem>>, vector<128x384xbf16>
    %c128_301 = arith.constant 128 : index
    %c0_302 = arith.constant 0 : index
    %853 = vector.load %arg6[%c128_301, %c0_302] : memref<288x384xbf16, #tpu.memory_space<vmem>>, vector<1x384xbf16>
    %854 = arith.truncf %851 : vector<2x128xf32> to vector<2x128xbf16>
    %cst_303 = arith.constant dense<0.000000e+00> : vector<2x384xf32>
    %855 = tpu.matmul %854, %852, %cst_303 {dimension_numbers = #tpu.dot_dimension_numbers<[1], [0], [0], [1], [0, 0, 1, 1], [], []>} : vector<2x128xbf16>, vector<128x384xbf16>, vector<2x384xf32> -> vector<2x384xf32>
    %856 = arith.extf %853 : vector<1x384xbf16> to vector<1x384xf32>
    %857 = vector.broadcast %856 : vector<1x384xf32> to vector<2x384xf32>
    %858 = arith.addf %855, %857 : vector<2x384xf32>
    %c144_304 = arith.constant 144 : index
    %c0_305 = arith.constant 0 : index
    %859 = vector.load %arg6[%c144_304, %c0_305] : memref<288x384xbf16, #tpu.memory_space<vmem>>, vector<128x384xbf16>
    %c272_306 = arith.constant 272 : index
    %c0_307 = arith.constant 0 : index
    %860 = vector.load %arg6[%c272_306, %c0_307] : memref<288x384xbf16, #tpu.memory_space<vmem>>, vector<1x384xbf16>
    %861 = arith.truncf %806 : vector<2x128xf32> to vector<2x128xbf16>
    %cst_308 = arith.constant dense<0.000000e+00> : vector<2x384xf32>
    %862 = tpu.matmul %861, %859, %cst_308 {dimension_numbers = #tpu.dot_dimension_numbers<[1], [0], [0], [1], [0, 0, 1, 1], [], []>} : vector<2x128xbf16>, vector<128x384xbf16>, vector<2x384xf32> -> vector<2x384xf32>
    %863 = arith.extf %860 : vector<1x384xbf16> to vector<1x384xf32>
    %864 = vector.broadcast %863 : vector<1x384xf32> to vector<2x384xf32>
    %865 = arith.addf %862, %864 : vector<2x384xf32>
    %866 = vector.extract_strided_slice %858 {offsets = [0, 0], sizes = [2, 128], strides = [1, 1]} : vector<2x384xf32> to vector<2x128xf32>
    %867 = vector.extract_strided_slice %865 {offsets = [0, 0], sizes = [2, 128], strides = [1, 1]} : vector<2x384xf32> to vector<2x128xf32>
    %868 = arith.addf %866, %867 : vector<2x128xf32>
    %869 = arith.negf %868 : vector<2x128xf32>
    %870 = math.exp %869 : vector<2x128xf32>
    %cst_309 = arith.constant 1.000000e+00 : f32
    %871 = vector.broadcast %cst_309 : f32 to vector<2x128xf32>
    %872 = arith.addf %871, %870 : vector<2x128xf32>
    %873 = arith.divf %871, %872 : vector<2x128xf32>
    %874 = vector.extract_strided_slice %858 {offsets = [0, 128], sizes = [2, 128], strides = [1, 1]} : vector<2x384xf32> to vector<2x128xf32>
    %875 = vector.extract_strided_slice %865 {offsets = [0, 128], sizes = [2, 128], strides = [1, 1]} : vector<2x384xf32> to vector<2x128xf32>
    %876 = arith.addf %874, %875 : vector<2x128xf32>
    %877 = arith.negf %876 : vector<2x128xf32>
    %878 = math.exp %877 : vector<2x128xf32>
    %cst_310 = arith.constant 1.000000e+00 : f32
    %879 = vector.broadcast %cst_310 : f32 to vector<2x128xf32>
    %880 = arith.addf %879, %878 : vector<2x128xf32>
    %881 = arith.divf %879, %880 : vector<2x128xf32>
    %882 = vector.extract_strided_slice %858 {offsets = [0, 256], sizes = [2, 128], strides = [1, 1]} : vector<2x384xf32> to vector<2x128xf32>
    %883 = vector.extract_strided_slice %865 {offsets = [0, 256], sizes = [2, 128], strides = [1, 1]} : vector<2x384xf32> to vector<2x128xf32>
    %884 = arith.mulf %873, %883 : vector<2x128xf32>
    %885 = arith.addf %882, %884 : vector<2x128xf32>
    %886 = math.tanh %885 : vector<2x128xf32>
    %887 = arith.subf %806, %886 : vector<2x128xf32>
    %888 = arith.mulf %881, %887 : vector<2x128xf32>
    %889 = arith.addf %886, %888 : vector<2x128xf32>
    %c688_311 = arith.constant 688 : index
    %c0_312 = arith.constant 0 : index
    %890 = vector.load %arg7[%c688_311, %c0_312] : memref<1264x128xbf16, #tpu.memory_space<vmem>>, vector<128x128xbf16>
    %c816_313 = arith.constant 816 : index
    %c0_314 = arith.constant 0 : index
    %891 = vector.load %arg7[%c816_313, %c0_314] : memref<1264x128xbf16, #tpu.memory_space<vmem>>, vector<1x128xbf16>
    %892 = arith.truncf %889 : vector<2x128xf32> to vector<2x128xbf16>
    %cst_315 = arith.constant dense<0.000000e+00> : vector<2x128xf32>
    %893 = tpu.matmul %892, %890, %cst_315 {dimension_numbers = #tpu.dot_dimension_numbers<[1], [0], [0], [1], [0, 0, 1, 1], [], []>} : vector<2x128xbf16>, vector<128x128xbf16>, vector<2x128xf32> -> vector<2x128xf32>
    %894 = arith.extf %891 : vector<1x128xbf16> to vector<1x128xf32>
    %895 = vector.broadcast %894 : vector<1x128xf32> to vector<2x128xf32>
    %896 = arith.addf %893, %895 : vector<2x128xf32>
    %897 = math.tanh %896 : vector<2x128xf32>
    %c0_316 = arith.constant 0 : index
    %c0_317 = arith.constant 0 : index
    %898 = vector.load %arg7[%c0_316, %c0_317] : memref<1264x128xbf16, #tpu.memory_space<vmem>>, vector<128x128xbf16>
    %c128_318 = arith.constant 128 : index
    %c0_319 = arith.constant 0 : index
    %899 = vector.load %arg7[%c128_318, %c0_319] : memref<1264x128xbf16, #tpu.memory_space<vmem>>, vector<1x128xbf16>
    %900 = arith.truncf %897 : vector<2x128xf32> to vector<2x128xbf16>
    %cst_320 = arith.constant dense<0.000000e+00> : vector<2x128xf32>
    %901 = tpu.matmul %900, %898, %cst_320 {dimension_numbers = #tpu.dot_dimension_numbers<[1], [0], [0], [1], [0, 0, 1, 1], [], []>} : vector<2x128xbf16>, vector<128x128xbf16>, vector<2x128xf32> -> vector<2x128xf32>
    %902 = arith.extf %899 : vector<1x128xbf16> to vector<1x128xf32>
    %903 = vector.broadcast %902 : vector<1x128xf32> to vector<2x128xf32>
    %904 = arith.addf %901, %903 : vector<2x128xf32>
    %905 = tpu.concatenate %904, %889 in 1 : vector<2x128xf32>, vector<2x128xf32> -> vector<2x256xf32>
    %c144_321 = arith.constant 144 : index
    %c0_322 = arith.constant 0 : index
    %906 = vector.load %arg7[%c144_321, %c0_322] : memref<1264x128xbf16, #tpu.memory_space<vmem>>, vector<256x128xbf16>
    %c400_323 = arith.constant 400 : index
    %c0_324 = arith.constant 0 : index
    %907 = vector.load %arg7[%c400_323, %c0_324] : memref<1264x128xbf16, #tpu.memory_space<vmem>>, vector<1x128xbf16>
    %908 = arith.truncf %905 : vector<2x256xf32> to vector<2x256xbf16>
    %cst_325 = arith.constant dense<0.000000e+00> : vector<2x128xf32>
    %909 = tpu.matmul %908, %906, %cst_325 {dimension_numbers = #tpu.dot_dimension_numbers<[1], [0], [0], [1], [0, 0, 1, 1], [], []>} : vector<2x256xbf16>, vector<256x128xbf16>, vector<2x128xf32> -> vector<2x128xf32>
    %910 = arith.extf %907 : vector<1x128xbf16> to vector<1x128xf32>
    %911 = vector.broadcast %910 : vector<1x128xf32> to vector<2x128xf32>
    %912 = arith.addf %909, %911 : vector<2x128xf32>
    %cst_326 = arith.constant dense<0xFF800000> : vector<2xf32>
    %913 = vector.multi_reduction <maximumf>, %912, %cst_326 [1] : vector<2x128xf32> to vector<2xf32>
    %914 = vector.shape_cast %913 : vector<2xf32> to vector<2x1xf32>
    %915 = vector.broadcast %914 : vector<2x1xf32> to vector<2x128xf32>
    %916 = arith.subf %912, %915 : vector<2x128xf32>
    %917 = math.exp %916 : vector<2x128xf32>
    %cst_327 = arith.constant dense<0.000000e+00> : vector<2xf32>
    %918 = vector.multi_reduction <add>, %917, %cst_327 [1] : vector<2x128xf32> to vector<2xf32>
    %919 = vector.shape_cast %918 : vector<2xf32> to vector<2x1xf32>
    %920 = tpu.reciprocal %919 {approx = true} : vector<2x1xf32> -> vector<2x1xf32>
    %921 = vector.broadcast %920 : vector<2x1xf32> to vector<2x128xf32>
    %922 = arith.mulf %917, %921 : vector<2x128xf32>
    %923 = arith.truncf %922 : vector<2x128xf32> to vector<2x128xbf16>
    %924 = arith.truncf %285 : vector<128x128xf32> to vector<128x128xbf16>
    %cst_328 = arith.constant dense<0.000000e+00> : vector<2x128xf32>
    %925 = tpu.matmul %923, %924, %cst_328 {dimension_numbers = #tpu.dot_dimension_numbers<[1], [0], [0], [1], [0, 0, 1, 1], [], []>} : vector<2x128xbf16>, vector<128x128xbf16>, vector<2x128xf32> -> vector<2x128xf32>
    %926 = tpu.concatenate %904, %925 in 1 : vector<2x128xf32>, vector<2x128xf32> -> vector<2x256xf32>
    %c416_329 = arith.constant 416 : index
    %c0_330 = arith.constant 0 : index
    %927 = vector.load %arg7[%c416_329, %c0_330] : memref<1264x128xbf16, #tpu.memory_space<vmem>>, vector<256x128xbf16>
    %c672_331 = arith.constant 672 : index
    %c0_332 = arith.constant 0 : index
    %928 = vector.load %arg7[%c672_331, %c0_332] : memref<1264x128xbf16, #tpu.memory_space<vmem>>, vector<1x128xbf16>
    %929 = arith.truncf %926 : vector<2x256xf32> to vector<2x256xbf16>
    %cst_333 = arith.constant dense<0.000000e+00> : vector<2x128xf32>
    %930 = tpu.matmul %929, %927, %cst_333 {dimension_numbers = #tpu.dot_dimension_numbers<[1], [0], [0], [1], [0, 0, 1, 1], [], []>} : vector<2x256xbf16>, vector<256x128xbf16>, vector<2x128xf32> -> vector<2x128xf32>
    %931 = arith.extf %928 : vector<1x128xbf16> to vector<1x128xf32>
    %932 = vector.broadcast %931 : vector<1x128xf32> to vector<2x128xf32>
    %933 = arith.addf %930, %932 : vector<2x128xf32>
    %934 = math.tanh %933 : vector<2x128xf32>
    %c0_334 = arith.constant 0 : index
    %c0_335 = arith.constant 0 : index
    %935 = vector.load %arg6[%c0_334, %c0_335] : memref<288x384xbf16, #tpu.memory_space<vmem>>, vector<128x384xbf16>
    %c128_336 = arith.constant 128 : index
    %c0_337 = arith.constant 0 : index
    %936 = vector.load %arg6[%c128_336, %c0_337] : memref<288x384xbf16, #tpu.memory_space<vmem>>, vector<1x384xbf16>
    %937 = arith.truncf %934 : vector<2x128xf32> to vector<2x128xbf16>
    %cst_338 = arith.constant dense<0.000000e+00> : vector<2x384xf32>
    %938 = tpu.matmul %937, %935, %cst_338 {dimension_numbers = #tpu.dot_dimension_numbers<[1], [0], [0], [1], [0, 0, 1, 1], [], []>} : vector<2x128xbf16>, vector<128x384xbf16>, vector<2x384xf32> -> vector<2x384xf32>
    %939 = arith.extf %936 : vector<1x384xbf16> to vector<1x384xf32>
    %940 = vector.broadcast %939 : vector<1x384xf32> to vector<2x384xf32>
    %941 = arith.addf %938, %940 : vector<2x384xf32>
    %c144_339 = arith.constant 144 : index
    %c0_340 = arith.constant 0 : index
    %942 = vector.load %arg6[%c144_339, %c0_340] : memref<288x384xbf16, #tpu.memory_space<vmem>>, vector<128x384xbf16>
    %c272_341 = arith.constant 272 : index
    %c0_342 = arith.constant 0 : index
    %943 = vector.load %arg6[%c272_341, %c0_342] : memref<288x384xbf16, #tpu.memory_space<vmem>>, vector<1x384xbf16>
    %944 = arith.truncf %889 : vector<2x128xf32> to vector<2x128xbf16>
    %cst_343 = arith.constant dense<0.000000e+00> : vector<2x384xf32>
    %945 = tpu.matmul %944, %942, %cst_343 {dimension_numbers = #tpu.dot_dimension_numbers<[1], [0], [0], [1], [0, 0, 1, 1], [], []>} : vector<2x128xbf16>, vector<128x384xbf16>, vector<2x384xf32> -> vector<2x384xf32>
    %946 = arith.extf %943 : vector<1x384xbf16> to vector<1x384xf32>
    %947 = vector.broadcast %946 : vector<1x384xf32> to vector<2x384xf32>
    %948 = arith.addf %945, %947 : vector<2x384xf32>
    %949 = vector.extract_strided_slice %941 {offsets = [0, 0], sizes = [2, 128], strides = [1, 1]} : vector<2x384xf32> to vector<2x128xf32>
    %950 = vector.extract_strided_slice %948 {offsets = [0, 0], sizes = [2, 128], strides = [1, 1]} : vector<2x384xf32> to vector<2x128xf32>
    %951 = arith.addf %949, %950 : vector<2x128xf32>
    %952 = arith.negf %951 : vector<2x128xf32>
    %953 = math.exp %952 : vector<2x128xf32>
    %cst_344 = arith.constant 1.000000e+00 : f32
    %954 = vector.broadcast %cst_344 : f32 to vector<2x128xf32>
    %955 = arith.addf %954, %953 : vector<2x128xf32>
    %956 = arith.divf %954, %955 : vector<2x128xf32>
    %957 = vector.extract_strided_slice %941 {offsets = [0, 128], sizes = [2, 128], strides = [1, 1]} : vector<2x384xf32> to vector<2x128xf32>
    %958 = vector.extract_strided_slice %948 {offsets = [0, 128], sizes = [2, 128], strides = [1, 1]} : vector<2x384xf32> to vector<2x128xf32>
    %959 = arith.addf %957, %958 : vector<2x128xf32>
    %960 = arith.negf %959 : vector<2x128xf32>
    %961 = math.exp %960 : vector<2x128xf32>
    %cst_345 = arith.constant 1.000000e+00 : f32
    %962 = vector.broadcast %cst_345 : f32 to vector<2x128xf32>
    %963 = arith.addf %962, %961 : vector<2x128xf32>
    %964 = arith.divf %962, %963 : vector<2x128xf32>
    %965 = vector.extract_strided_slice %941 {offsets = [0, 256], sizes = [2, 128], strides = [1, 1]} : vector<2x384xf32> to vector<2x128xf32>
    %966 = vector.extract_strided_slice %948 {offsets = [0, 256], sizes = [2, 128], strides = [1, 1]} : vector<2x384xf32> to vector<2x128xf32>
    %967 = arith.mulf %956, %966 : vector<2x128xf32>
    %968 = arith.addf %965, %967 : vector<2x128xf32>
    %969 = math.tanh %968 : vector<2x128xf32>
    %970 = arith.subf %889, %969 : vector<2x128xf32>
    %971 = arith.mulf %964, %970 : vector<2x128xf32>
    %972 = arith.addf %969, %971 : vector<2x128xf32>
    %c688_346 = arith.constant 688 : index
    %c0_347 = arith.constant 0 : index
    %973 = vector.load %arg7[%c688_346, %c0_347] : memref<1264x128xbf16, #tpu.memory_space<vmem>>, vector<128x128xbf16>
    %c816_348 = arith.constant 816 : index
    %c0_349 = arith.constant 0 : index
    %974 = vector.load %arg7[%c816_348, %c0_349] : memref<1264x128xbf16, #tpu.memory_space<vmem>>, vector<1x128xbf16>
    %975 = arith.truncf %972 : vector<2x128xf32> to vector<2x128xbf16>
    %cst_350 = arith.constant dense<0.000000e+00> : vector<2x128xf32>
    %976 = tpu.matmul %975, %973, %cst_350 {dimension_numbers = #tpu.dot_dimension_numbers<[1], [0], [0], [1], [0, 0, 1, 1], [], []>} : vector<2x128xbf16>, vector<128x128xbf16>, vector<2x128xf32> -> vector<2x128xf32>
    %977 = arith.extf %974 : vector<1x128xbf16> to vector<1x128xf32>
    %978 = vector.broadcast %977 : vector<1x128xf32> to vector<2x128xf32>
    %979 = arith.addf %976, %978 : vector<2x128xf32>
    %980 = math.tanh %979 : vector<2x128xf32>
    %981 = arith.addf %980, %315 : vector<2x128xf32>
    %c0_351 = arith.constant 0 : index
    %c0_352 = arith.constant 0 : index
    %982 = vector.load %arg5[%c0_351, %c0_352] : memref<2x128xf32, #tpu.memory_space<vmem>>, vector<2x128xf32>
    tpu.vector_store %arg5[%c0_351, %c0_352], %981 {strides = array<i32>} : memref<2x128xf32, #tpu.memory_space<vmem>>, vector<2x128xf32>,
    return
  }
}

</mosaic_0001>

<llo_original>
// kernel: attention_seq_forward.1
$region0: #{attention_seq_forward.1}
  #allocation0 [shape = 'u32[]', space=smem, size = 0x4, offset = 0x4, fixed_abs, tag = 'smem constant byte address 0x4 - core index']
  #allocation1 [shape = 'u32[144,128]{1,0:T(1,128)}', space=vmem, size = 0x12000, scoped, tag = 'internal scratch']
  #allocation2 [shape = 'bf16[288,384]{1,0:T(16,128)(2,1)}', space=vmem, size = 0x36000, scoped, tag = 'scratch operand']
  #allocation3 [shape = 'bf16[1264,128]{1,0:T(16,128)(2,1)}', space=vmem, size = 0x4f000, scoped, tag = 'scratch operand']
  #allocation4 [shape = 's32[2]{0}', space=sflag, size = 0x8, scoped, tag = 'scratch operand']
  #allocation7 [shape = 's32[]', space=sflag, size = 0x4, offset = 0, fixed_abs, tag = 'sflag constant byte address 0x0 - dummy sync flag']
  #allocation9 [shape = 's32[]', space=sflag, size = 0x4, offset = 0, fixed_abs, tag = 'sflag constant byte address 0x0 - dummy sync flag']
  #allocation10 [shape = 's32[]', space=sflag, size = 0x4, offset = 0, fixed_abs, tag = 'sflag constant byte address 0x0 - dummy sync flag']
  #allocation11 [shape = 'u32[]', space=smem, size = 0x4, offset = 0x44, fixed_abs, tag = 'smem constant byte address 0x44 - assertion arg 0']
  #allocation12 [shape = 'u32[]', space=smem, size = 0x4, offset = 0x48, fixed_abs, tag = 'smem constant byte address 0x48 - assertion arg 1']
  %s0 = inlined_call_operand.vmem [shape: f32[16,16], index: 0, kind: input, shape index: {}]
  %s1 = inlined_call_operand.vmem [shape: f32[2,128], index: 1, kind: input, shape index: {}]
  %s2 = inlined_call_operand.hbm [shape: bf16[320,384], index: 2, kind: input, shape index: {}]
  %s3 = inlined_call_operand.hbm [shape: bf16[288,384], index: 3, kind: input, shape index: {}]
  %s4 = inlined_call_operand.hbm [shape: bf16[1264,128], index: 4, kind: input, shape index: {}]
  %s5 = inlined_call_operand.vmem [shape: f32[2,128], index: 5, kind: output, shape index: {}]
  %s6 = sld [smem:[#allocation0]]
  $region30: #{attention_seq_forward.1} parent=0
    _
  %s8 = ssub.s32 1, %s6
  %s9 = scalar_select 0, %s8, %s6
  $region1: #{attention_seq_forward.1} parent=0
    #allocation5 [shape = 'u8[245760]{0}', space=vmem, size = 0x3c000, scoped, tag = 'input window, operand 2, single buffered']
    #allocation6 [shape = 's32[1]{0}', space=sflag, size = 0x4, scoped, tag = 'scoped memory for attention_seq_forward.1']
    #allocation8 [shape = 'u32[9]{0}', space=smem, size = 0x24, scoped, tag = 'DMA stride descriptor']
    %10 = vsyncpa [#allocation6], 0
    // Predicated region
    $region2: #{attention_seq_forward.1} parent=1 // pred_check
      _
    $region3: #{attention_seq_forward.1} parent=1 // pred_check_branch
      %12 = sbr.rel (0) target = $region5
    $region4: #{attention_seq_forward.1} parent=1 // pred_region
      _
    $region5: #{attention_seq_forward.1} parent=1 // pred_fallthru
      _
    // Predicated region
    $region6: #{attention_seq_forward.1} parent=1 // pred_check
      _
    $region7: #{attention_seq_forward.1} parent=1 // pred_check_branch
      %14 = sbr.rel (0) target = $region9
    $region8: #{attention_seq_forward.1} parent=1 // pred_region
      _
    $region9: #{attention_seq_forward.1} parent=1 // pred_fallthru
      _
    // Predicated region
    $region10: #{attention_seq_forward.1} parent=1 // pred_check
      _
    $region11: #{attention_seq_forward.1} parent=1 // pred_check_branch
      %16 = sbr.rel (0) target = $region13
    $region12: #{attention_seq_forward.1} parent=1 // pred_region
      %s18 = ssub.s32 7680, 7680
      %19 = vsyncadd [#allocation6], %s18
      %s20 = sshll.u32 [#allocation5], 4
      %s21 = int_to_ptr.vmem [resolvable:$true] %s20
      %26 = dma.hbm_to_vmem [thread:$0]  %s2, 7680, %s21, [#allocation6], 192, 192, 12
    $region13: #{attention_seq_forward.1} parent=1 // pred_fallthru
      _
    // Predicated region
    $region14: #{attention_seq_forward.1} parent=1 // pred_check
      _
    $region15: #{attention_seq_forward.1} parent=1 // pred_check_branch
      %28 = sbr.rel (0) target = $region17
    $region16: #{attention_seq_forward.1} parent=1 // pred_region
      %29 = dma.done [#allocation6], 7680
    $region17: #{attention_seq_forward.1} parent=1 // pred_fallthru
      _
    %s32 = sshll.u32 1, 14
    %s33 = sxor.u32 4294967295, %s32
    %s35 = sld [smem:[#allocation0]]
    %s36 = sadd.s32 2, %s35
    %s38 = sshll.u32 7, 26
    %s39 = sxor.u32 4294967295, %s38
    %s40 = sand.u32 0, %s39
    %s41 = sshll.u32 %s36, 26
    %s42 = sor.u32 %s40, %s41
    %s43 = sshll.u32 [#allocation2], 4
    %s44 = int_to_ptr.vmem [resolvable:$true] %s43
    %47 = sst [smem:[#allocation8]] 384
    %s48 = scalar_lea.smem [#allocation8], 1
    %49 = sst [smem:[%s48]] 384
    %s50 = scalar_lea.smem [#allocation8], 2
    %51 = sst [smem:[%s50]] 3
    %s52 = scalar_lea.smem [#allocation8], 3
    %53 = sst [smem:[%s52]] 64
    %s54 = scalar_lea.smem [#allocation8], 4
    %55 = sst [smem:[%s54]] 128
    %s56 = scalar_lea.smem [#allocation8], 5
    %57 = sst [smem:[%s56]] 2
    %s58 = scalar_lea.smem [#allocation8], 6
    %59 = sst [smem:[%s58]] 192
    %s60 = scalar_lea.smem [#allocation8], 7
    %61 = sst [smem:[%s60]] 64
    %s62 = scalar_lea.smem [#allocation8], 8
    %63 = sst [smem:[%s62]] 4
    %65 = dma.general %s3, 6912, %s44, [#allocation4], [#allocation7], [#allocation8], %s42, 0
    %s66 = scalar_lea.sflag [#allocation4], 1
    // Predicated region
    $region18: #{attention_seq_forward.1} parent=1 // pred_check
      _
    $region19: #{attention_seq_forward.1} parent=1 // pred_check_branch
      %68 = sbr.rel target = $region21
    $region20: #{attention_seq_forward.1} parent=1 // pred_region
      %69 = sst [smem:[#allocation11]] [#allocation10]
      %70 = sst [smem:[#allocation12]] [#allocation9]
    $region21: #{attention_seq_forward.1} parent=1 // pred_fallthru
      _
    %72 = shalt.err (0)
    %s74 = sshll.u32 [#allocation3], 4
    %s75 = int_to_ptr.vmem [resolvable:$true] %s74
    %77 = dma.hbm_to_vmem [thread:$0]  %s4, 10112, %s75, %s66
    %v78 = vld [vmem:[%s0] sm:$0xff]
    %v79 = vld [vmem:[%s0 + $0x8] sm:$0xff]
    %v80 = vld [vmem:[#allocation5] sm:$0xf]
    %v81 = vld [vmem:[#allocation5 + $0xc] sm:$0xf]
    %v82 = vld [vmem:[#allocation5 + $0x18] sm:$0x1]
    %v83 = vpack.c.bf16 %v79, %v78
    %v84 = vunpack.c.l.bf16 %v82
    %v85 = vlaneseq
    %v86 = vshrl.u32 %v85, 7
    %v87 = vsub.s32 0, %v86
    %v88 = vrot.slane %v84, %v87
    %v91 = vunpack.c.l.b16 %v80
    %v92 = vunpack.c.l.b16 %v81
    %v93 = vpack.c.b16 %v92, %v91
    %vm95 = vcmask 130048
    %v97 = vsel %vm95, %v83, 0
    %99 = vmatprep.subr.bf16.mxu0 0
    %100 = vmatpush1.bf16.msra.mxu0 %v93
    %101 = vmatprep.subr.bf16.mxu0 0
    %102 = vmatpush1.bf16.msra.mxu0 0
    %103 = vmatprep.subr.bf16.mxu0 0
    %104 = vmatpush1.bf16.msra.mxu0 0
    %105 = vmatprep.subr.bf16.mxu0 0
    %106 = vmatpush1.bf16.msra.mxu0 0
    %107 = vmatprep.subr.bf16.mxu0 0
    %108 = vmatpush1.bf16.msra.mxu0 0
    %109 = vmatprep.subr.bf16.mxu0 0
    %110 = vmatpush1.bf16.msra.mxu0 0
    %111 = vmatprep.subr.bf16.mxu0 0
    %112 = vmatpush1.bf16.msra.mxu0 0
    %113 = vmatprep.subr.bf16.mxu0 0
    %114 = vmatpush1.bf16.msra.mxu0 0
    %115 = vmatprep.subr.bf16.mxu0 0
    %116 = vmatpush1.bf16.msra.mxu0 0
    %117 = vmatprep.subr.bf16.mxu0 0
    %118 = vmatpush1.bf16.msra.mxu0 0
    %119 = vmatprep.subr.bf16.mxu0 0
    %120 = vmatpush1.bf16.msra.mxu0 0
    %121 = vmatprep.subr.bf16.mxu0 0
    %122 = vmatpush1.bf16.msra.mxu0 0
    %123 = vmatprep.subr.bf16.mxu0 0
    %124 = vmatpush1.bf16.msra.mxu0 0
    %125 = vmatprep.subr.bf16.mxu0 0
    %126 = vmatpush1.bf16.msra.mxu0 0
    %127 = vmatprep.subr.bf16.mxu0 0
    %128 = vmatpush1.bf16.msra.mxu0 0
    %129 = vmatprep.subr.bf16.mxu0 0
    %130 = vmatpush1.bf16.msra.mxu0 0
    %131 = vmatprep.mubr.bf16.mxu0 0
    %132 = vmatmul.mubr.bf16.gmra.mrb[0].mxu0 %v97
    %v133 = vpop.f32.mrb[0].mxu0
    %v134 = vadd.f32 %v88, %v133
    %v135 = vpop.f32.mrb[0].mxu0
    %v136 = vpop.f32.mrb[0].mxu0
    %v137 = vadd.f32 %v88, %v136
    %v138 = vpop.f32.mrb[0].mxu0
    %139 = vdwg.mxu0
    %v140 = vld [vmem:[#allocation5 + $0x30] sm:$0xff]
    %v141 = vld [vmem:[#allocation5 + $0x38] sm:$0xf]
    %v142 = vld [vmem:[#allocation5 + $0x3c] sm:$0xff]
    %v143 = vld [vmem:[#allocation5 + $0x44] sm:$0xf]
    %v144 = vld [vmem:[#allocation5 + $0x48] sm:$0xff]
    %v145 = vld [vmem:[#allocation5 + $0x50] sm:$0xf]
    %v146 = vld [vmem:[#allocation5 + $0x54] sm:$0xff]
    %v147 = vld [vmem:[#allocation5 + $0x5c] sm:$0xf]
    %v148 = vld [vmem:[#allocation5 + $0x60] sm:$0xff]
    %v149 = vld [vmem:[#allocation5 + $0x68] sm:$0xf]
    %v150 = vld [vmem:[#allocation5 + $0x6c] sm:$0xff]
    %v151 = vld [vmem:[#allocation5 + $0x74] sm:$0xf]
    %v152 = vld [vmem:[#allocation5 + $0x78] sm:$0xff]
    %v153 = vld [vmem:[#allocation5 + $0x80] sm:$0xf]
    %v154 = vld [vmem:[#allocation5 + $0x84] sm:$0xff]
    %v155 = vld [vmem:[#allocation5 + $0x8c] sm:$0xf]
    %v156 = vld [vmem:[#allocation5 + $0x90] sm:$0xff]
    %v157 = vld [vmem:[#allocation5 + $0x98] sm:$0xf]
    %v158 = vld [vmem:[#allocation5 + $0x9c] sm:$0xff]
    %v159 = vld [vmem:[#allocation5 + $0xa4] sm:$0xf]
    %v160 = vld [vmem:[#allocation5 + $0xa8] sm:$0xff]
    %v161 = vld [vmem:[#allocation5 + $0xb0] sm:$0xf]
    %v162 = vld [vmem:[#allocation5 + $0xb4] sm:$0xff]
    %v163 = vld [vmem:[#allocation5 + $0xbc] sm:$0xf]
    %v164 = vld [vmem:[#allocation5 + $0xc0] sm:$0xff]
    %v165 = vld [vmem:[#allocation5 + $0xc8] sm:$0xf]
    %v166 = vld [vmem:[#allocation5 + $0xcc] sm:$0xff]
    %v167 = vld [vmem:[#allocation5 + $0xd4] sm:$0xf]
    %v168 = vld [vmem:[#allocation5 + $0xd8] sm:$0xff]
    %v169 = vld [vmem:[#allocation5 + $0xe0] sm:$0xf]
    %v170 = vld [vmem:[#allocation5 + $0xe4] sm:$0xff]
    %v171 = vld [vmem:[#allocation5 + $0xec] sm:$0xf]
    %v172 = vld [vmem:[#allocation5 + $0xf0] sm:$0x11]
    %v173 = vld [vmem:[#allocation5 + $0xf8] sm:$0x1]
    %v174 = vpack.c.bf16 %v137, %v134
    %v175 = vunpack.c.l.bf16 %v172
    %v176 = vunpack.c.h.bf16 %v172
    %v177 = vunpack.c.l.bf16 %v173
    %v178 = vlaneseq
    %v179 = vshrl.u32 %v178, 7
    %v180 = vsub.s32 0, %v179
    %v181 = vrot.slane %v175, %v180
    %v182 = vlaneseq
    %v183 = vshrl.u32 %v182, 7
    %v184 = vsub.s32 0, %v183
    %v185 = vrot.slane %v176, %v184
    %v186 = vlaneseq
    %v187 = vshrl.u32 %v186, 7
    %v188 = vsub.s32 0, %v187
    %v189 = vrot.slane %v177, %v188
    %v222 = vunpack.c.l.b16 %v140
    %v223 = vunpack.c.h.b16 %v140
    %v224 = vunpack.c.l.b16 %v141
    %v225 = vunpack.c.l.b16 %v142
    %v226 = vunpack.c.h.b16 %v142
    %v227 = vunpack.c.l.b16 %v143
    %v228 = vunpack.c.l.b16 %v144
    %v229 = vunpack.c.h.b16 %v144
    %v230 = vunpack.c.l.b16 %v145
    %v231 = vunpack.c.l.b16 %v146
    %v232 = vunpack.c.h.b16 %v146
    %v233 = vunpack.c.l.b16 %v147
    %v234 = vunpack.c.l.b16 %v148
    %v235 = vunpack.c.h.b16 %v148
    %v236 = vunpack.c.l.b16 %v149
    %v237 = vunpack.c.l.b16 %v150
    %v238 = vunpack.c.h.b16 %v150
    %v239 = vunpack.c.l.b16 %v151
    %v240 = vunpack.c.l.b16 %v152
    %v241 = vunpack.c.h.b16 %v152
    %v242 = vunpack.c.l.b16 %v153
    %v243 = vunpack.c.l.b16 %v154
    %v244 = vunpack.c.h.b16 %v154
    %v245 = vunpack.c.l.b16 %v155
    %v246 = vunpack.c.l.b16 %v156
    %v247 = vunpack.c.h.b16 %v156
    %v248 = vunpack.c.l.b16 %v157
    %v249 = vunpack.c.l.b16 %v158
    %v250 = vunpack.c.h.b16 %v158
    %v251 = vunpack.c.l.b16 %v159
    %v252 = vunpack.c.l.b16 %v160
    %v253 = vunpack.c.h.b16 %v160
    %v254 = vunpack.c.l.b16 %v161
    %v255 = vunpack.c.l.b16 %v162
    %v256 = vunpack.c.h.b16 %v162
    %v257 = vunpack.c.l.b16 %v163
    %v258 = vunpack.c.l.b16 %v164
    %v259 = vunpack.c.h.b16 %v164
    %v260 = vunpack.c.l.b16 %v165
    %v261 = vunpack.c.l.b16 %v166
    %v262 = vunpack.c.h.b16 %v166
    %v263 = vunpack.c.l.b16 %v167
    %v264 = vunpack.c.l.b16 %v168
    %v265 = vunpack.c.h.b16 %v168
    %v266 = vunpack.c.l.b16 %v169
    %v267 = vunpack.c.l.b16 %v170
    %v268 = vunpack.c.h.b16 %v170
    %v269 = vunpack.c.l.b16 %v171
    %v270 = vpack.c.b16 %v225, %v222
    %v271 = vpack.c.b16 %v226, %v223
    %v272 = vpack.c.b16 %v227, %v224
    %v273 = vpack.c.b16 %v231, %v228
    %v274 = vpack.c.b16 %v232, %v229
    %v275 = vpack.c.b16 %v233, %v230
    %v276 = vpack.c.b16 %v237, %v234
    %v277 = vpack.c.b16 %v238, %v235
    %v278 = vpack.c.b16 %v239, %v236
    %v279 = vpack.c.b16 %v243, %v240
    %v280 = vpack.c.b16 %v244, %v241
    %v281 = vpack.c.b16 %v245, %v242
    %v282 = vpack.c.b16 %v249, %v246
    %v283 = vpack.c.b16 %v250, %v247
    %v284 = vpack.c.b16 %v251, %v248
    %v285 = vpack.c.b16 %v255, %v252
    %v286 = vpack.c.b16 %v256, %v253
    %v287 = vpack.c.b16 %v257, %v254
    %v288 = vpack.c.b16 %v261, %v258
    %v289 = vpack.c.b16 %v262, %v259
    %v290 = vpack.c.b16 %v263, %v260
    %v291 = vpack.c.b16 %v267, %v264
    %v292 = vpack.c.b16 %v268, %v265
    %v293 = vpack.c.b16 %v269, %v266
    %318 = vmatprep.subr.bf16.mxu0 %v271
    %319 = vmatpush1.bf16.msra.mxu0 %v270
    %320 = vmatprep.subr.bf16.mxu0 %v274
    %321 = vmatpush1.bf16.msra.mxu0 %v273
    %322 = vmatprep.subr.bf16.mxu0 %v277
    %323 = vmatpush1.bf16.msra.mxu0 %v276
    %324 = vmatprep.subr.bf16.mxu0 %v280
    %325 = vmatpush1.bf16.msra.mxu0 %v279
    %326 = vmatprep.subr.bf16.mxu0 %v283
    %327 = vmatpush1.bf16.msra.mxu0 %v282
    %328 = vmatprep.subr.bf16.mxu0 %v286
    %329 = vmatpush1.bf16.msra.mxu0 %v285
    %330 = vmatprep.subr.bf16.mxu0 %v289
    %331 = vmatpush1.bf16.msra.mxu0 %v288
    %332 = vmatprep.subr.bf16.mxu0 %v292
    %333 = vmatpush1.bf16.msra.mxu0 %v291
    %334 = vmatprep.subr.bf16.mxu0 0
    %335 = vmatpush1.bf16.msra.mxu0 0
    %336 = vmatprep.subr.bf16.mxu0 0
    %337 = vmatpush1.bf16.msra.mxu0 0
    %338 = vmatprep.subr.bf16.mxu0 0
    %339 = vmatpush1.bf16.msra.mxu0 0
    %340 = vmatprep.subr.bf16.mxu0 0
    %341 = vmatpush1.bf16.msra.mxu0 0
    %342 = vmatprep.subr.bf16.mxu0 0
    %343 = vmatpush1.bf16.msra.mxu0 0
    %344 = vmatprep.subr.bf16.mxu0 0
    %345 = vmatpush1.bf16.msra.mxu0 0
    %346 = vmatprep.subr.bf16.mxu0 0
    %347 = vmatpush1.bf16.msra.mxu0 0
    %348 = vmatprep.subr.bf16.mxu0 0
    %349 = vmatpush1.bf16.msra.mxu0 0
    %350 = vmatprep.mubr.bf16.mxu0 0
    %351 = vmatmul.mubr.bf16.gmra.mrb[0].mxu0 %v174
    %v352 = vpop.f32.mrb[0].mxu0
    %v353 = vadd.f32 %v181, %v352
    %v354 = vpop.f32.mrb[0].mxu0
    %v355 = vadd.f32 %v185, %v354
    %v356 = vpop.f32.mrb[0].mxu0
    %v357 = vadd.f32 %v181, %v356
    %v358 = vpop.f32.mrb[0].mxu0
    %v359 = vadd.f32 %v185, %v358
    %360 = vdwg.mxu0
    %361 = vmatprep.subr.bf16.mxu0 0
    %362 = vmatpush1.bf16.msra.mxu0 %v272
    %363 = vmatprep.subr.bf16.mxu0 0
    %364 = vmatpush1.bf16.msra.mxu0 %v275
    %365 = vmatprep.subr.bf16.mxu0 0
    %366 = vmatpush1.bf16.msra.mxu0 %v278
    %367 = vmatprep.subr.bf16.mxu0 0
    %368 = vmatpush1.bf16.msra.mxu0 %v281
    %369 = vmatprep.subr.bf16.mxu0 0
    %370 = vmatpush1.bf16.msra.mxu0 %v284
    %371 = vmatprep.subr.bf16.mxu0 0
    %372 = vmatpush1.bf16.msra.mxu0 %v287
    %373 = vmatprep.subr.bf16.mxu0 0
    %374 = vmatpush1.bf16.msra.mxu0 %v290
    %375 = vmatprep.subr.bf16.mxu0 0
    %376 = vmatpush1.bf16.msra.mxu0 %v293
    %377 = vmatprep.subr.bf16.mxu0 0
    %378 = vmatpush1.bf16.msra.mxu0 0
    %379 = vmatprep.subr.bf16.mxu0 0
    %380 = vmatpush1.bf16.msra.mxu0 0
    %381 = vmatprep.subr.bf16.mxu0 0
    %382 = vmatpush1.bf16.msra.mxu0 0
    %383 = vmatprep.subr.bf16.mxu0 0
    %384 = vmatpush1.bf16.msra.mxu0 0
    %385 = vmatprep.subr.bf16.mxu0 0
    %386 = vmatpush1.bf16.msra.mxu0 0
    %387 = vmatprep.subr.bf16.mxu0 0
    %388 = vmatpush1.bf16.msra.mxu0 0
    %389 = vmatprep.subr.bf16.mxu0 0
    %390 = vmatpush1.bf16.msra.mxu0 0
    %391 = vmatprep.subr.bf16.mxu0 0
    %392 = vmatpush1.bf16.msra.mxu0 0
    %393 = vmatprep.mubr.bf16.mxu0 0
    %394 = vmatmul.mubr.bf16.gmra.mrb[0].mxu0 %v174
    %v395 = vpop.f32.mrb[0].mxu0
    %v396 = vadd.f32 %v189, %v395
    %v397 = vpop.f32.mrb[0].mxu0
    %v398 = vpop.f32.mrb[0].mxu0
    %v399 = vadd.f32 %v189, %v398
    %v400 = vpop.f32.mrb[0].mxu0
    %401 = vdwg.mxu0
    %v402 = vld [vmem:[#allocation5 + $0x108] sm:$0xff]
    %v403 = vld [vmem:[#allocation5 + $0x110] sm:$0xf]
    %v404 = vld [vmem:[#allocation5 + $0x114] sm:$0xff]
    %v405 = vld [vmem:[#allocation5 + $0x11c] sm:$0xf]
    %v406 = vld [vmem:[#allocation5 + $0x120] sm:$0xff]
    %v407 = vld [vmem:[#allocation5 + $0x128] sm:$0xf]
    %v408 = vld [vmem:[#allocation5 + $0x12c] sm:$0xff]
    %v409 = vld [vmem:[#allocation5 + $0x134] sm:$0xf]
    %v410 = vld [vmem:[#allocation5 + $0x138] sm:$0xff]
    %v411 = vld [vmem:[#allocation5 + $0x140] sm:$0xf]
    %v412 = vld [vmem:[#allocation5 + $0x144] sm:$0xff]
    %v413 = vld [vmem:[#allocation5 + $0x14c] sm:$0xf]
    %v414 = vld [vmem:[#allocation5 + $0x150] sm:$0xff]
    %v415 = vld [vmem:[#allocation5 + $0x158] sm:$0xf]
    %v416 = vld [vmem:[#allocation5 + $0x15c] sm:$0xff]
    %v417 = vld [vmem:[#allocation5 + $0x164] sm:$0xf]
    %v418 = vld [vmem:[#allocation5 + $0x168] sm:$0xff]
    %v419 = vld [vmem:[#allocation5 + $0x170] sm:$0xf]
    %v420 = vld [vmem:[#allocation5 + $0x174] sm:$0xff]
    %v421 = vld [vmem:[#allocation5 + $0x17c] sm:$0xf]
    %v422 = vld [vmem:[#allocation5 + $0x180] sm:$0xff]
    %v423 = vld [vmem:[#allocation5 + $0x188] sm:$0xf]
    %v424 = vld [vmem:[#allocation5 + $0x18c] sm:$0xff]
    %v425 = vld [vmem:[#allocation5 + $0x194] sm:$0xf]
    %v426 = vld [vmem:[#allocation5 + $0x198] sm:$0xff]
    %v427 = vld [vmem:[#allocation5 + $0x1a0] sm:$0xf]
    %v428 = vld [vmem:[#allocation5 + $0x1a4] sm:$0xff]
    %v429 = vld [vmem:[#allocation5 + $0x1ac] sm:$0xf]
    %v430 = vld [vmem:[#allocation5 + $0x1b0] sm:$0xff]
    %v431 = vld [vmem:[#allocation5 + $0x1b8] sm:$0xf]
    %v432 = vld [vmem:[#allocation5 + $0x1bc] sm:$0xff]
    %v433 = vld [vmem:[#allocation5 + $0x1c4] sm:$0xf]
    %v434 = vld [vmem:[#allocation5 + $0x1c8] sm:$0x11]
    %v435 = vld [vmem:[#allocation5 + $0x1d0] sm:$0x1]
    %v436 = vunpack.c.l.bf16 %v434
    %v437 = vunpack.c.h.bf16 %v434
    %v438 = vunpack.c.l.bf16 %v435
    %v439 = vlaneseq
    %v440 = vshrl.u32 %v439, 7
    %v441 = vsub.s32 0, %v440
    %v442 = vrot.slane %v436, %v441
    %v443 = vlaneseq
    %v444 = vshrl.u32 %v443, 7
    %v445 = vsub.s32 0, %v444
    %v446 = vrot.slane %v437, %v445
    %v447 = vlaneseq
    %v448 = vshrl.u32 %v447, 7
    %v449 = vsub.s32 0, %v448
    %v450 = vrot.slane %v438, %v449
    %v483 = vunpack.c.l.b16 %v402
    %v484 = vunpack.c.h.b16 %v402
    %v485 = vunpack.c.l.b16 %v403
    %v486 = vunpack.c.l.b16 %v404
    %v487 = vunpack.c.h.b16 %v404
    %v488 = vunpack.c.l.b16 %v405
    %v489 = vunpack.c.l.b16 %v406
    %v490 = vunpack.c.h.b16 %v406
    %v491 = vunpack.c.l.b16 %v407
    %v492 = vunpack.c.l.b16 %v408
    %v493 = vunpack.c.h.b16 %v408
    %v494 = vunpack.c.l.b16 %v409
    %v495 = vunpack.c.l.b16 %v410
    %v496 = vunpack.c.h.b16 %v410
    %v497 = vunpack.c.l.b16 %v411
    %v498 = vunpack.c.l.b16 %v412
    %v499 = vunpack.c.h.b16 %v412
    %v500 = vunpack.c.l.b16 %v413
    %v501 = vunpack.c.l.b16 %v414
    %v502 = vunpack.c.h.b16 %v414
    %v503 = vunpack.c.l.b16 %v415
    %v504 = vunpack.c.l.b16 %v416
    %v505 = vunpack.c.h.b16 %v416
    %v506 = vunpack.c.l.b16 %v417
    %v507 = vunpack.c.l.b16 %v418
    %v508 = vunpack.c.h.b16 %v418
    %v509 = vunpack.c.l.b16 %v419
    %v510 = vunpack.c.l.b16 %v420
    %v511 = vunpack.c.h.b16 %v420
    %v512 = vunpack.c.l.b16 %v421
    %v513 = vunpack.c.l.b16 %v422
    %v514 = vunpack.c.h.b16 %v422
    %v515 = vunpack.c.l.b16 %v423
    %v516 = vunpack.c.l.b16 %v424
    %v517 = vunpack.c.h.b16 %v424
    %v518 = vunpack.c.l.b16 %v425
    %v519 = vunpack.c.l.b16 %v426
    %v520 = vunpack.c.h.b16 %v426
    %v521 = vunpack.c.l.b16 %v427
    %v522 = vunpack.c.l.b16 %v428
    %v523 = vunpack.c.h.b16 %v428
    %v524 = vunpack.c.l.b16 %v429
    %v525 = vunpack.c.l.b16 %v430
    %v526 = vunpack.c.h.b16 %v430
    %v527 = vunpack.c.l.b16 %v431
    %v528 = vunpack.c.l.b16 %v432
    %v529 = vunpack.c.h.b16 %v432
    %v530 = vunpack.c.l.b16 %v433
    %v531 = vpack.c.b16 %v486, %v483
    %v532 = vpack.c.b16 %v487, %v484
    %v533 = vpack.c.b16 %v488, %v485
    %v534 = vpack.c.b16 %v492, %v489
    %v535 = vpack.c.b16 %v493, %v490
    %v536 = vpack.c.b16 %v494, %v491
    %v537 = vpack.c.b16 %v498, %v495
    %v538 = vpack.c.b16 %v499, %v496
    %v539 = vpack.c.b16 %v500, %v497
    %v540 = vpack.c.b16 %v504, %v501
    %v541 = vpack.c.b16 %v505, %v502
    %v542 = vpack.c.b16 %v506, %v503
    %v543 = vpack.c.b16 %v510, %v507
    %v544 = vpack.c.b16 %v511, %v508
    %v545 = vpack.c.b16 %v512, %v509
    %v546 = vpack.c.b16 %v516, %v513
    %v547 = vpack.c.b16 %v517, %v514
    %v548 = vpack.c.b16 %v518, %v515
    %v549 = vpack.c.b16 %v522, %v519
    %v550 = vpack.c.b16 %v523, %v520
    %v551 = vpack.c.b16 %v524, %v521
    %v552 = vpack.c.b16 %v528, %v525
    %v553 = vpack.c.b16 %v529, %v526
    %v554 = vpack.c.b16 %v530, %v527
    %579 = vmatprep.subr.bf16.mxu0 %v532
    %580 = vmatpush1.bf16.msra.mxu0 %v531
    %581 = vmatprep.subr.bf16.mxu0 %v535
    %582 = vmatpush1.bf16.msra.mxu0 %v534
    %583 = vmatprep.subr.bf16.mxu0 %v538
    %584 = vmatpush1.bf16.msra.mxu0 %v537
    %585 = vmatprep.subr.bf16.mxu0 %v541
    %586 = vmatpush1.bf16.msra.mxu0 %v540
    %587 = vmatprep.subr.bf16.mxu0 %v544
    %588 = vmatpush1.bf16.msra.mxu0 %v543
    %589 = vmatprep.subr.bf16.mxu0 %v547
    %590 = vmatpush1.bf16.msra.mxu0 %v546
    %591 = vmatprep.subr.bf16.mxu0 %v550
    %592 = vmatpush1.bf16.msra.mxu0 %v549
    %593 = vmatprep.subr.bf16.mxu0 %v553
    %594 = vmatpush1.bf16.msra.mxu0 %v552
    %595 = vmatprep.subr.bf16.mxu0 0
    %596 = vmatpush1.bf16.msra.mxu0 0
    %597 = vmatprep.subr.bf16.mxu0 0
    %598 = vmatpush1.bf16.msra.mxu0 0
    %599 = vmatprep.subr.bf16.mxu0 0
    %600 = vmatpush1.bf16.msra.mxu0 0
    %601 = vmatprep.subr.bf16.mxu0 0
    %602 = vmatpush1.bf16.msra.mxu0 0
    %603 = vmatprep.subr.bf16.mxu0 0
    %604 = vmatpush1.bf16.msra.mxu0 0
    %605 = vmatprep.subr.bf16.mxu0 0
    %606 = vmatpush1.bf16.msra.mxu0 0
    %607 = vmatprep.subr.bf16.mxu0 0
    %608 = vmatpush1.bf16.msra.mxu0 0
    %609 = vmatprep.subr.bf16.mxu0 0
    %610 = vmatpush1.bf16.msra.mxu0 0
    %611 = vmatprep.mubr.bf16.mxu0 0
    %612 = vmatmul.mubr.bf16.gmra.mrb[0].mxu0 0
    %v613 = vpop.f32.mrb[0].mxu0
    %v614 = vadd.f32 %v442, %v613
    %v615 = vpop.f32.mrb[0].mxu0
    %v616 = vadd.f32 %v446, %v615
    %v617 = vpop.f32.mrb[0].mxu0
    %v618 = vpop.f32.mrb[0].mxu0
    %619 = vdwg.mxu0
    %620 = vmatprep.subr.bf16.mxu0 0
    %621 = vmatpush1.bf16.msra.mxu0 %v533
    %622 = vmatprep.subr.bf16.mxu0 0
    %623 = vmatpush1.bf16.msra.mxu0 %v536
    %624 = vmatprep.subr.bf16.mxu0 0
    %625 = vmatpush1.bf16.msra.mxu0 %v539
    %626 = vmatprep.subr.bf16.mxu0 0
    %627 = vmatpush1.bf16.msra.mxu0 %v542
    %628 = vmatprep.subr.bf16.mxu0 0
    %629 = vmatpush1.bf16.msra.mxu0 %v545
    %630 = vmatprep.subr.bf16.mxu0 0
    %631 = vmatpush1.bf16.msra.mxu0 %v548
    %632 = vmatprep.subr.bf16.mxu0 0
    %633 = vmatpush1.bf16.msra.mxu0 %v551
    %634 = vmatprep.subr.bf16.mxu0 0
    %635 = vmatpush1.bf16.msra.mxu0 %v554
    %636 = vmatprep.subr.bf16.mxu0 0
    %637 = vmatpush1.bf16.msra.mxu0 0
    %638 = vmatprep.subr.bf16.mxu0 0
    %639 = vmatpush1.bf16.msra.mxu0 0
    %640 = vmatprep.subr.bf16.mxu0 0
    %641 = vmatpush1.bf16.msra.mxu0 0
    %642 = vmatprep.subr.bf16.mxu0 0
    %643 = vmatpush1.bf16.msra.mxu0 0
    %644 = vmatprep.subr.bf16.mxu0 0
    %645 = vmatpush1.bf16.msra.mxu0 0
    %646 = vmatprep.subr.bf16.mxu0 0
    %647 = vmatpush1.bf16.msra.mxu0 0
    %648 = vmatprep.subr.bf16.mxu0 0
    %649 = vmatpush1.bf16.msra.mxu0 0
    %650 = vmatprep.subr.bf16.mxu0 0
    %651 = vmatpush1.bf16.msra.mxu0 0
    %652 = vmatprep.mubr.bf16.mxu0 0
    %653 = vmatmul.mubr.bf16.gmra.mrb[0].mxu0 0
    %v654 = vpop.f32.mrb[0].mxu0
    %v655 = vadd.f32 %v450, %v654
    %v656 = vpop.f32.mrb[0].mxu0
    %v657 = vpop.f32.mrb[0].mxu0
    %v658 = vpop.f32.mrb[0].mxu0
    %659 = vdwg.mxu0
    %v660 = vadd.f32 %v353, %v614
    %v661 = vxor.u32 %v660, 2147483648
    %v662 = vmul.f32 %v661, 1.442695
    %v663 = vpow.pop %v662
    %v664 = vadd.f32 %v663, 1.0
    %v665 = vrcp.pop %v664
    %v666 = vmul.f32 1.0, %v665
    %v667 = vadd.f32 %v355, %v616
    %v668 = vxor.u32 %v667, 2147483648
    %v669 = vmul.f32 %v668, 1.442695
    %v670 = vpow.pop %v669
    %v671 = vadd.f32 %v670, 1.0
    %v672 = vrcp.pop %v671
    %v673 = vmul.f32 1.0, %v672
    %v674 = vmul.f32 %v666, %v655
    %v675 = vadd.f32 %v396, %v674
    %v676 = vtanh.pop %v675
    %v677 = vsub.f32 0.0, %v676
    %v678 = vmul.f32 %v673, %v677
    %v679 = vadd.f32 %v676, %v678
    %v680 = vpack.c.bf16 %v679, %v679
    %681 = vmatprep.subr.bf16.mxu0 %v532
    %682 = vmatpush1.bf16.msra.mxu0 %v531
    %683 = vmatprep.subr.bf16.mxu0 %v535
    %684 = vmatpush1.bf16.msra.mxu0 %v534
    %685 = vmatprep.subr.bf16.mxu0 %v538
    %686 = vmatpush1.bf16.msra.mxu0 %v537
    %687 = vmatprep.subr.bf16.mxu0 %v541
    %688 = vmatpush1.bf16.msra.mxu0 %v540
    %689 = vmatprep.subr.bf16.mxu0 %v544
    %690 = vmatpush1.bf16.msra.mxu0 %v543
    %691 = vmatprep.subr.bf16.mxu0 %v547
    %692 = vmatpush1.bf16.msra.mxu0 %v546
    %693 = vmatprep.subr.bf16.mxu0 %v550
    %694 = vmatpush1.bf16.msra.mxu0 %v549
    %695 = vmatprep.subr.bf16.mxu0 %v553
    %696 = vmatpush1.bf16.msra.mxu0 %v552
    %697 = vmatprep.subr.bf16.mxu0 0
    %698 = vmatpush1.bf16.msra.mxu0 0
    %699 = vmatprep.subr.bf16.mxu0 0
    %700 = vmatpush1.bf16.msra.mxu0 0
    %701 = vmatprep.subr.bf16.mxu0 0
    %702 = vmatpush1.bf16.msra.mxu0 0
    %703 = vmatprep.subr.bf16.mxu0 0
    %704 = vmatpush1.bf16.msra.mxu0 0
    %705 = vmatprep.subr.bf16.mxu0 0
    %706 = vmatpush1.bf16.msra.mxu0 0
    %707 = vmatprep.subr.bf16.mxu0 0
    %708 = vmatpush1.bf16.msra.mxu0 0
    %709 = vmatprep.subr.bf16.mxu0 0
    %710 = vmatpush1.bf16.msra.mxu0 0
    %711 = vmatprep.subr.bf16.mxu0 0
    %712 = vmatpush1.bf16.msra.mxu0 0
    %713 = vmatprep.mubr.bf16.mxu0 0
    %714 = vmatmul.mubr.bf16.gmra.mrb[0].mxu0 %v680
    %v715 = vpop.f32.mrb[0].mxu0
    %v716 = vadd.f32 %v442, %v715
    %v717 = vpop.f32.mrb[0].mxu0
    %v718 = vadd.f32 %v446, %v717
    %v719 = vpop.f32.mrb[0].mxu0
    %v720 = vpop.f32.mrb[0].mxu0
    %721 = vdwg.mxu0
    %722 = vmatprep.subr.bf16.mxu0 0
    %723 = vmatpush1.bf16.msra.mxu0 %v533
    %724 = vmatprep.subr.bf16.mxu0 0
    %725 = vmatpush1.bf16.msra.mxu0 %v536
    %726 = vmatprep.subr.bf16.mxu0 0
    %727 = vmatpush1.bf16.msra.mxu0 %v539
    %728 = vmatprep.subr.bf16.mxu0 0
    %729 = vmatpush1.bf16.msra.mxu0 %v542
    %730 = vmatprep.subr.bf16.mxu0 0
    %731 = vmatpush1.bf16.msra.mxu0 %v545
    %732 = vmatprep.subr.bf16.mxu0 0
    %733 = vmatpush1.bf16.msra.mxu0 %v548
    %734 = vmatprep.subr.bf16.mxu0 0
    %735 = vmatpush1.bf16.msra.mxu0 %v551
    %736 = vmatprep.subr.bf16.mxu0 0
    %737 = vmatpush1.bf16.msra.mxu0 %v554
    %738 = vmatprep.subr.bf16.mxu0 0
    %739 = vmatpush1.bf16.msra.mxu0 0
    %740 = vmatprep.subr.bf16.mxu0 0
    %741 = vmatpush1.bf16.msra.mxu0 0
    %742 = vmatprep.subr.bf16.mxu0 0
    %743 = vmatpush1.bf16.msra.mxu0 0
    %744 = vmatprep.subr.bf16.mxu0 0
    %745 = vmatpush1.bf16.msra.mxu0 0
    %746 = vmatprep.subr.bf16.mxu0 0
    %747 = vmatpush1.bf16.msra.mxu0 0
    %748 = vmatprep.subr.bf16.mxu0 0
    %749 = vmatpush1.bf16.msra.mxu0 0
    %750 = vmatprep.subr.bf16.mxu0 0
    %751 = vmatpush1.bf16.msra.mxu0 0
    %752 = vmatprep.subr.bf16.mxu0 0
    %753 = vmatpush1.bf16.msra.mxu0 0
    %754 = vmatprep.mubr.bf16.mxu0 0
    %755 = vmatmul.mubr.bf16.gmra.mrb[0].mxu0 %v680
    %v756 = vpop.f32.mrb[0].mxu0
    %v757 = vadd.f32 %v450, %v756
    %v758 = vpop.f32.mrb[0].mxu0
    %v759 = vpop.f32.mrb[0].mxu0
    %v760 = vpop.f32.mrb[0].mxu0
    %761 = vdwg.mxu0
    %v763 = vrot.slane %v716, 6
    %v765 = vadd.f32 %v353, %v763
    %v766 = vxor.u32 %v765, 2147483648
    %v767 = vmul.f32 %v766, 1.442695
    %v768 = vpow.pop %v767
    %v769 = vadd.f32 %v768, 1.0
    %v770 = vrcp.pop %v769
    %v771 = vmul.f32 1.0, %v770
    %v773 = vrot.slane %v718, 6
    %v775 = vadd.f32 %v355, %v773
    %v776 = vxor.u32 %v775, 2147483648
    %v777 = vmul.f32 %v776, 1.442695
    %v778 = vpow.pop %v777
    %v779 = vadd.f32 %v778, 1.0
    %v780 = vrcp.pop %v779
    %v781 = vmul.f32 1.0, %v780
    %v783 = vrot.slane %v757, 6
    %v785 = vmul.f32 %v771, %v783
    %v786 = vadd.f32 %v396, %v785
    %v787 = vtanh.pop %v786
    %v789 = vrot.slane %v787, 2
    %v791 = vsub.f32 %v679, %v789
    %v793 = vrot.slane %v791, 6
    %v795 = vmul.f32 %v781, %v793
    %v796 = vadd.f32 %v787, %v795
    %v797 = vpack.c.bf16 %v796, %v796
    %v799 = vrot.slane %v797, 1
    %801 = vmatprep.subr.bf16.mxu0 %v532
    %802 = vmatpush1.bf16.msra.mxu0 %v531
    %803 = vmatprep.subr.bf16.mxu0 %v535
    %804 = vmatpush1.bf16.msra.mxu0 %v534
    %805 = vmatprep.subr.bf16.mxu0 %v538
    %806 = vmatpush1.bf16.msra.mxu0 %v537
    %807 = vmatprep.subr.bf16.mxu0 %v541
    %808 = vmatpush1.bf16.msra.mxu0 %v540
    %809 = vmatprep.subr.bf16.mxu0 %v544
    %810 = vmatpush1.bf16.msra.mxu0 %v543
    %811 = vmatprep.subr.bf16.mxu0 %v547
    %812 = vmatpush1.bf16.msra.mxu0 %v546
    %813 = vmatprep.subr.bf16.mxu0 %v550
    %814 = vmatpush1.bf16.msra.mxu0 %v549
    %815 = vmatprep.subr.bf16.mxu0 %v553
    %816 = vmatpush1.bf16.msra.mxu0 %v552
    %817 = vmatprep.subr.bf16.mxu0 0
    %818 = vmatpush1.bf16.msra.mxu0 0
    %819 = vmatprep.subr.bf16.mxu0 0
    %820 = vmatpush1.bf16.msra.mxu0 0
    %821 = vmatprep.subr.bf16.mxu0 0
    %822 = vmatpush1.bf16.msra.mxu0 0
    %823 = vmatprep.subr.bf16.mxu0 0
    %824 = vmatpush1.bf16.msra.mxu0 0
    %825 = vmatprep.subr.bf16.mxu0 0
    %826 = vmatpush1.bf16.msra.mxu0 0
    %827 = vmatprep.subr.bf16.mxu0 0
    %828 = vmatpush1.bf16.msra.mxu0 0
    %829 = vmatprep.subr.bf16.mxu0 0
    %830 = vmatpush1.bf16.msra.mxu0 0
    %831 = vmatprep.subr.bf16.mxu0 0
    %832 = vmatpush1.bf16.msra.mxu0 0
    %833 = vmatprep.mubr.bf16.mxu0 0
    %834 = vmatmul.mubr.bf16.gmra.mrb[0].mxu0 %v799
    %v835 = vpop.f32.mrb[0].mxu0
    %v836 = vadd.f32 %v442, %v835
    %v837 = vpop.f32.mrb[0].mxu0
    %v838 = vadd.f32 %v446, %v837
    %v839 = vpop.f32.mrb[0].mxu0
    %v840 = vpop.f32.mrb[0].mxu0
    %841 = vdwg.mxu0
    %842 = vmatprep.subr.bf16.mxu0 0
    %843 = vmatpush1.bf16.msra.mxu0 %v533
    %844 = vmatprep.subr.bf16.mxu0 0
    %845 = vmatpush1.bf16.msra.mxu0 %v536
    %846 = vmatprep.subr.bf16.mxu0 0
    %847 = vmatpush1.bf16.msra.mxu0 %v539
    %848 = vmatprep.subr.bf16.mxu0 0
    %849 = vmatpush1.bf16.msra.mxu0 %v542
    %850 = vmatprep.subr.bf16.mxu0 0
    %851 = vmatpush1.bf16.msra.mxu0 %v545
    %852 = vmatprep.subr.bf16.mxu0 0
    %853 = vmatpush1.bf16.msra.mxu0 %v548
    %854 = vmatprep.subr.bf16.mxu0 0
    %855 = vmatpush1.bf16.msra.mxu0 %v551
    %856 = vmatprep.subr.bf16.mxu0 0
    %857 = vmatpush1.bf16.msra.mxu0 %v554
    %858 = vmatprep.subr.bf16.mxu0 0
    %859 = vmatpush1.bf16.msra.mxu0 0
    %860 = vmatprep.subr.bf16.mxu0 0
    %861 = vmatpush1.bf16.msra.mxu0 0
    %862 = vmatprep.subr.bf16.mxu0 0
    %863 = vmatpush1.bf16.msra.mxu0 0
    %864 = vmatprep.subr.bf16.mxu0 0
    %865 = vmatpush1.bf16.msra.mxu0 0
    %866 = vmatprep.subr.bf16.mxu0 0
    %867 = vmatpush1.bf16.msra.mxu0 0
    %868 = vmatprep.subr.bf16.mxu0 0
    %869 = vmatpush1.bf16.msra.mxu0 0
    %870 = vmatprep.subr.bf16.mxu0 0
    %871 = vmatpush1.bf16.msra.mxu0 0
    %872 = vmatprep.subr.bf16.mxu0 0
    %873 = vmatpush1.bf16.msra.mxu0 0
    %874 = vmatprep.mubr.bf16.mxu0 0
    %875 = vmatmul.mubr.bf16.gmra.mrb[0].mxu0 %v799
    %v876 = vpop.f32.mrb[0].mxu0
    %v877 = vadd.f32 %v450, %v876
    %v878 = vpop.f32.mrb[0].mxu0
    %v879 = vpop.f32.mrb[0].mxu0
    %v880 = vpop.f32.mrb[0].mxu0
    %881 = vdwg.mxu0
    %v883 = vrot.slane %v836, 4
    %v885 = vadd.f32 %v353, %v883
    %v886 = vxor.u32 %v885, 2147483648
    %v887 = vmul.f32 %v886, 1.442695
    %v888 = vpow.pop %v887
    %v889 = vadd.f32 %v888, 1.0
    %v890 = vrcp.pop %v889
    %v891 = vmul.f32 1.0, %v890
    %v893 = vrot.slane %v838, 4
    %v895 = vadd.f32 %v355, %v893
    %v896 = vxor.u32 %v895, 2147483648
    %v897 = vmul.f32 %v896, 1.442695
    %v898 = vpow.pop %v897
    %v899 = vadd.f32 %v898, 1.0
    %v900 = vrcp.pop %v899
    %v901 = vmul.f32 1.0, %v900
    %v903 = vrot.slane %v877, 4
    %v905 = vmul.f32 %v891, %v903
    %v906 = vadd.f32 %v396, %v905
    %v907 = vtanh.pop %v906
    %v909 = vrot.slane %v907, 2
    %v911 = vsub.f32 %v796, %v909
    %v913 = vrot.slane %v911, 6
    %v915 = vmul.f32 %v901, %v913
    %v916 = vadd.f32 %v907, %v915
    %v917 = vpack.c.bf16 %v916, %v916
    %v919 = vrot.slane %v917, 2
    %921 = vmatprep.subr.bf16.mxu0 %v532
    %922 = vmatpush1.bf16.msra.mxu0 %v531
    %923 = vmatprep.subr.bf16.mxu0 %v535
    %924 = vmatpush1.bf16.msra.mxu0 %v534
    %925 = vmatprep.subr.bf16.mxu0 %v538
    %926 = vmatpush1.bf16.msra.mxu0 %v537
    %927 = vmatprep.subr.bf16.mxu0 %v541
    %928 = vmatpush1.bf16.msra.mxu0 %v540
    %929 = vmatprep.subr.bf16.mxu0 %v544
    %930 = vmatpush1.bf16.msra.mxu0 %v543
    %931 = vmatprep.subr.bf16.mxu0 %v547
    %932 = vmatpush1.bf16.msra.mxu0 %v546
    %933 = vmatprep.subr.bf16.mxu0 %v550
    %934 = vmatpush1.bf16.msra.mxu0 %v549
    %935 = vmatprep.subr.bf16.mxu0 %v553
    %936 = vmatpush1.bf16.msra.mxu0 %v552
    %937 = vmatprep.subr.bf16.mxu0 0
    %938 = vmatpush1.bf16.msra.mxu0 0
    %939 = vmatprep.subr.bf16.mxu0 0
    %940 = vmatpush1.bf16.msra.mxu0 0
    %941 = vmatprep.subr.bf16.mxu0 0
    %942 = vmatpush1.bf16.msra.mxu0 0
    %943 = vmatprep.subr.bf16.mxu0 0
    %944 = vmatpush1.bf16.msra.mxu0 0
    %945 = vmatprep.subr.bf16.mxu0 0
    %946 = vmatpush1.bf16.msra.mxu0 0
    %947 = vmatprep.subr.bf16.mxu0 0
    %948 = vmatpush1.bf16.msra.mxu0 0
    %949 = vmatprep.subr.bf16.mxu0 0
    %950 = vmatpush1.bf16.msra.mxu0 0
    %951 = vmatprep.subr.bf16.mxu0 0
    %952 = vmatpush1.bf16.msra.mxu0 0
    %953 = vmatprep.mubr.bf16.mxu0 0
    %954 = vmatmul.mubr.bf16.gmra.mrb[0].mxu0 %v919
    %v955 = vpop.f32.mrb[0].mxu0
    %v956 = vadd.f32 %v442, %v955
    %v957 = vpop.f32.mrb[0].mxu0
    %v958 = vadd.f32 %v446, %v957
    %v959 = vpop.f32.mrb[0].mxu0
    %v960 = vpop.f32.mrb[0].mxu0
    %961 = vdwg.mxu0
    %962 = vmatprep.subr.bf16.mxu0 0
    %963 = vmatpush1.bf16.msra.mxu0 %v533
    %964 = vmatprep.subr.bf16.mxu0 0
    %965 = vmatpush1.bf16.msra.mxu0 %v536
    %966 = vmatprep.subr.bf16.mxu0 0
    %967 = vmatpush1.bf16.msra.mxu0 %v539
    %968 = vmatprep.subr.bf16.mxu0 0
    %969 = vmatpush1.bf16.msra.mxu0 %v542
    %970 = vmatprep.subr.bf16.mxu0 0
    %971 = vmatpush1.bf16.msra.mxu0 %v545
    %972 = vmatprep.subr.bf16.mxu0 0
    %973 = vmatpush1.bf16.msra.mxu0 %v548
    %974 = vmatprep.subr.bf16.mxu0 0
    %975 = vmatpush1.bf16.msra.mxu0 %v551
    %976 = vmatprep.subr.bf16.mxu0 0
    %977 = vmatpush1.bf16.msra.mxu0 %v554
    %978 = vmatprep.subr.bf16.mxu0 0
    %979 = vmatpush1.bf16.msra.mxu0 0
    %980 = vmatprep.subr.bf16.mxu0 0
    %981 = vmatpush1.bf16.msra.mxu0 0
    %982 = vmatprep.subr.bf16.mxu0 0
    %983 = vmatpush1.bf16.msra.mxu0 0
    %984 = vmatprep.subr.bf16.mxu0 0
    %985 = vmatpush1.bf16.msra.mxu0 0
    %986 = vmatprep.subr.bf16.mxu0 0
    %987 = vmatpush1.bf16.msra.mxu0 0
    %988 = vmatprep.subr.bf16.mxu0 0
    %989 = vmatpush1.bf16.msra.mxu0 0
    %990 = vmatprep.subr.bf16.mxu0 0
    %991 = vmatpush1.bf16.msra.mxu0 0
    %992 = vmatprep.subr.bf16.mxu0 0
    %993 = vmatpush1.bf16.msra.mxu0 0
    %994 = vmatprep.mubr.bf16.mxu0 0
    %995 = vmatmul.mubr.bf16.gmra.mrb[0].mxu0 %v919
    %v996 = vpop.f32.mrb[0].mxu0
    %v997 = vadd.f32 %v450, %v996
    %v998 = vpop.f32.mrb[0].mxu0
    %v999 = vpop.f32.mrb[0].mxu0
    %v1000 = vpop.f32.mrb[0].mxu0
    %1001 = vdwg.mxu0
    %v1003 = vrot.slane %v956, 2
    %v1005 = vadd.f32 %v353, %v1003
    %v1006 = vxor.u32 %v1005, 2147483648
    %v1007 = vmul.f32 %v1006, 1.442695
    %v1008 = vpow.pop %v1007
    %v1009 = vadd.f32 %v1008, 1.0
    %v1010 = vrcp.pop %v1009
    %v1011 = vmul.f32 1.0, %v1010
    %v1013 = vrot.slane %v958, 2
    %v1015 = vadd.f32 %v355, %v1013
    %v1016 = vxor.u32 %v1015, 2147483648
    %v1017 = vmul.f32 %v1016, 1.442695
    %v1018 = vpow.pop %v1017
    %v1019 = vadd.f32 %v1018, 1.0
    %v1020 = vrcp.pop %v1019
    %v1021 = vmul.f32 1.0, %v1020
    %v1023 = vrot.slane %v997, 2
    %v1025 = vmul.f32 %v1011, %v1023
    %v1026 = vadd.f32 %v396, %v1025
    %v1027 = vtanh.pop %v1026
    %v1029 = vrot.slane %v1027, 2
    %v1031 = vsub.f32 %v916, %v1029
    %v1033 = vrot.slane %v1031, 6
    %v1035 = vmul.f32 %v1021, %v1033
    %v1036 = vadd.f32 %v1027, %v1035
    %v1037 = vpack.c.bf16 %v1036, %v1036
    %v1039 = vrot.slane %v1037, 3
    %1041 = vmatprep.subr.bf16.mxu0 %v532
    %1042 = vmatpush1.bf16.msra.mxu0 %v531
    %1043 = vmatprep.subr.bf16.mxu0 %v535
    %1044 = vmatpush1.bf16.msra.mxu0 %v534
    %1045 = vmatprep.subr.bf16.mxu0 %v538
    %1046 = vmatpush1.bf16.msra.mxu0 %v537
    %1047 = vmatprep.subr.bf16.mxu0 %v541
    %1048 = vmatpush1.bf16.msra.mxu0 %v540
    %1049 = vmatprep.subr.bf16.mxu0 %v544
    %1050 = vmatpush1.bf16.msra.mxu0 %v543
    %1051 = vmatprep.subr.bf16.mxu0 %v547
    %1052 = vmatpush1.bf16.msra.mxu0 %v546
    %1053 = vmatprep.subr.bf16.mxu0 %v550
    %1054 = vmatpush1.bf16.msra.mxu0 %v549
    %1055 = vmatprep.subr.bf16.mxu0 %v553
    %1056 = vmatpush1.bf16.msra.mxu0 %v552
    %1057 = vmatprep.subr.bf16.mxu0 0
    %1058 = vmatpush1.bf16.msra.mxu0 0
    %1059 = vmatprep.subr.bf16.mxu0 0
    %1060 = vmatpush1.bf16.msra.mxu0 0
    %1061 = vmatprep.subr.bf16.mxu0 0
    %1062 = vmatpush1.bf16.msra.mxu0 0
    %1063 = vmatprep.subr.bf16.mxu0 0
    %1064 = vmatpush1.bf16.msra.mxu0 0
    %1065 = vmatprep.subr.bf16.mxu0 0
    %1066 = vmatpush1.bf16.msra.mxu0 0
    %1067 = vmatprep.subr.bf16.mxu0 0
    %1068 = vmatpush1.bf16.msra.mxu0 0
    %1069 = vmatprep.subr.bf16.mxu0 0
    %1070 = vmatpush1.bf16.msra.mxu0 0
    %1071 = vmatprep.subr.bf16.mxu0 0
    %1072 = vmatpush1.bf16.msra.mxu0 0
    %1073 = vmatprep.mubr.bf16.mxu0 0
    %1074 = vmatmul.mubr.bf16.gmra.mrb[0].mxu0 %v1039
    %v1075 = vpop.f32.mrb[0].mxu0
    %v1076 = vadd.f32 %v442, %v1075
    %v1077 = vpop.f32.mrb[0].mxu0
    %v1078 = vadd.f32 %v446, %v1077
    %v1079 = vpop.f32.mrb[0].mxu0
    %v1080 = vpop.f32.mrb[0].mxu0
    %1081 = vdwg.mxu0
    %1082 = vmatprep.subr.bf16.mxu0 0
    %1083 = vmatpush1.bf16.msra.mxu0 %v533
    %1084 = vmatprep.subr.bf16.mxu0 0
    %1085 = vmatpush1.bf16.msra.mxu0 %v536
    %1086 = vmatprep.subr.bf16.mxu0 0
    %1087 = vmatpush1.bf16.msra.mxu0 %v539
    %1088 = vmatprep.subr.bf16.mxu0 0
    %1089 = vmatpush1.bf16.msra.mxu0 %v542
    %1090 = vmatprep.subr.bf16.mxu0 0
    %1091 = vmatpush1.bf16.msra.mxu0 %v545
    %1092 = vmatprep.subr.bf16.mxu0 0
    %1093 = vmatpush1.bf16.msra.mxu0 %v548
    %1094 = vmatprep.subr.bf16.mxu0 0
    %1095 = vmatpush1.bf16.msra.mxu0 %v551
    %1096 = vmatprep.subr.bf16.mxu0 0
    %1097 = vmatpush1.bf16.msra.mxu0 %v554
    %1098 = vmatprep.subr.bf16.mxu0 0
    %1099 = vmatpush1.bf16.msra.mxu0 0
    %1100 = vmatprep.subr.bf16.mxu0 0
    %1101 = vmatpush1.bf16.msra.mxu0 0
    %1102 = vmatprep.subr.bf16.mxu0 0
    %1103 = vmatpush1.bf16.msra.mxu0 0
    %1104 = vmatprep.subr.bf16.mxu0 0
    %1105 = vmatpush1.bf16.msra.mxu0 0
    %1106 = vmatprep.subr.bf16.mxu0 0
    %1107 = vmatpush1.bf16.msra.mxu0 0
    %1108 = vmatprep.subr.bf16.mxu0 0
    %1109 = vmatpush1.bf16.msra.mxu0 0
    %1110 = vmatprep.subr.bf16.mxu0 0
    %1111 = vmatpush1.bf16.msra.mxu0 0
    %1112 = vmatprep.subr.bf16.mxu0 0
    %1113 = vmatpush1.bf16.msra.mxu0 0
    %1114 = vmatprep.mubr.bf16.mxu0 0
    %1115 = vmatmul.mubr.bf16.gmra.mrb[0].mxu0 %v1039
    %v1116 = vpop.f32.mrb[0].mxu0
    %v1117 = vadd.f32 %v450, %v1116
    %v1118 = vpop.f32.mrb[0].mxu0
    %v1119 = vpop.f32.mrb[0].mxu0
    %v1120 = vpop.f32.mrb[0].mxu0
    %1121 = vdwg.mxu0
    %v1122 = vadd.f32 %v357, %v1076
    %v1123 = vxor.u32 %v1122, 2147483648
    %v1124 = vmul.f32 %v1123, 1.442695
    %v1125 = vpow.pop %v1124
    %v1126 = vadd.f32 %v1125, 1.0
    %v1127 = vrcp.pop %v1126
    %v1128 = vmul.f32 1.0, %v1127
    %v1129 = vadd.f32 %v359, %v1078
    %v1130 = vxor.u32 %v1129, 2147483648
    %v1131 = vmul.f32 %v1130, 1.442695
    %v1132 = vpow.pop %v1131
    %v1133 = vadd.f32 %v1132, 1.0
    %v1134 = vrcp.pop %v1133
    %v1135 = vmul.f32 1.0, %v1134
    %v1136 = vmul.f32 %v1128, %v1117
    %v1137 = vadd.f32 %v399, %v1136
    %v1138 = vtanh.pop %v1137
    %v1140 = vrot.slane %v1138, 2
    %v1142 = vsub.f32 %v1036, %v1140
    %v1144 = vrot.slane %v1142, 6
    %v1146 = vmul.f32 %v1135, %v1144
    %v1147 = vadd.f32 %v1138, %v1146
    %v1148 = vpack.c.bf16 %v1147, %v1147
    %1149 = vmatprep.subr.bf16.mxu0 %v532
    %1150 = vmatpush1.bf16.msra.mxu0 %v531
    %1151 = vmatprep.subr.bf16.mxu0 %v535
    %1152 = vmatpush1.bf16.msra.mxu0 %v534
    %1153 = vmatprep.subr.bf16.mxu0 %v538
    %1154 = vmatpush1.bf16.msra.mxu0 %v537
    %1155 = vmatprep.subr.bf16.mxu0 %v541
    %1156 = vmatpush1.bf16.msra.mxu0 %v540
    %1157 = vmatprep.subr.bf16.mxu0 %v544
    %1158 = vmatpush1.bf16.msra.mxu0 %v543
    %1159 = vmatprep.subr.bf16.mxu0 %v547
    %1160 = vmatpush1.bf16.msra.mxu0 %v546
    %1161 = vmatprep.subr.bf16.mxu0 %v550
    %1162 = vmatpush1.bf16.msra.mxu0 %v549
    %1163 = vmatprep.subr.bf16.mxu0 %v553
    %1164 = vmatpush1.bf16.msra.mxu0 %v552
    %1165 = vmatprep.subr.bf16.mxu0 0
    %1166 = vmatpush1.bf16.msra.mxu0 0
    %1167 = vmatprep.subr.bf16.mxu0 0
    %1168 = vmatpush1.bf16.msra.mxu0 0
    %1169 = vmatprep.subr.bf16.mxu0 0
    %1170 = vmatpush1.bf16.msra.mxu0 0
    %1171 = vmatprep.subr.bf16.mxu0 0
    %1172 = vmatpush1.bf16.msra.mxu0 0
    %1173 = vmatprep.subr.bf16.mxu0 0
    %1174 = vmatpush1.bf16.msra.mxu0 0
    %1175 = vmatprep.subr.bf16.mxu0 0
    %1176 = vmatpush1.bf16.msra.mxu0 0
    %1177 = vmatprep.subr.bf16.mxu0 0
    %1178 = vmatpush1.bf16.msra.mxu0 0
    %1179 = vmatprep.subr.bf16.mxu0 0
    %1180 = vmatpush1.bf16.msra.mxu0 0
    %1181 = vmatprep.mubr.bf16.mxu0 0
    %1182 = vmatmul.mubr.bf16.gmra.mrb[0].mxu0 %v1148
    %v1183 = vpop.f32.mrb[0].mxu0
    %v1184 = vadd.f32 %v442, %v1183
    %v1185 = vpop.f32.mrb[0].mxu0
    %v1186 = vadd.f32 %v446, %v1185
    %v1187 = vpop.f32.mrb[0].mxu0
    %v1188 = vpop.f32.mrb[0].mxu0
    %1189 = vdwg.mxu0
    %1190 = vmatprep.subr.bf16.mxu0 0
    %1191 = vmatpush1.bf16.msra.mxu0 %v533
    %1192 = vmatprep.subr.bf16.mxu0 0
    %1193 = vmatpush1.bf16.msra.mxu0 %v536
    %1194 = vmatprep.subr.bf16.mxu0 0
    %1195 = vmatpush1.bf16.msra.mxu0 %v539
    %1196 = vmatprep.subr.bf16.mxu0 0
    %1197 = vmatpush1.bf16.msra.mxu0 %v542
    %1198 = vmatprep.subr.bf16.mxu0 0
    %1199 = vmatpush1.bf16.msra.mxu0 %v545
    %1200 = vmatprep.subr.bf16.mxu0 0
    %1201 = vmatpush1.bf16.msra.mxu0 %v548
    %1202 = vmatprep.subr.bf16.mxu0 0
    %1203 = vmatpush1.bf16.msra.mxu0 %v551
    %1204 = vmatprep.subr.bf16.mxu0 0
    %1205 = vmatpush1.bf16.msra.mxu0 %v554
    %1206 = vmatprep.subr.bf16.mxu0 0
    %1207 = vmatpush1.bf16.msra.mxu0 0
    %1208 = vmatprep.subr.bf16.mxu0 0
    %1209 = vmatpush1.bf16.msra.mxu0 0
    %1210 = vmatprep.subr.bf16.mxu0 0
    %1211 = vmatpush1.bf16.msra.mxu0 0
    %1212 = vmatprep.subr.bf16.mxu0 0
    %1213 = vmatpush1.bf16.msra.mxu0 0
    %1214 = vmatprep.subr.bf16.mxu0 0
    %1215 = vmatpush1.bf16.msra.mxu0 0
    %1216 = vmatprep.subr.bf16.mxu0 0
    %1217 = vmatpush1.bf16.msra.mxu0 0
    %1218 = vmatprep.subr.bf16.mxu0 0
    %1219 = vmatpush1.bf16.msra.mxu0 0
    %1220 = vmatprep.subr.bf16.mxu0 0
    %1221 = vmatpush1.bf16.msra.mxu0 0
    %1222 = vmatprep.mubr.bf16.mxu0 0
    %1223 = vmatmul.mubr.bf16.gmra.mrb[0].mxu0 %v1148
    %v1224 = vpop.f32.mrb[0].mxu0
    %v1225 = vadd.f32 %v450, %v1224
    %v1226 = vpop.f32.mrb[0].mxu0
    %v1227 = vpop.f32.mrb[0].mxu0
    %v1228 = vpop.f32.mrb[0].mxu0
    %1229 = vdwg.mxu0
    %v1231 = vrot.slane %v1184, 6
    %v1233 = vadd.f32 %v357, %v1231
    %v1234 = vxor.u32 %v1233, 2147483648
    %v1235 = vmul.f32 %v1234, 1.442695
    %v1236 = vpow.pop %v1235
    %v1237 = vadd.f32 %v1236, 1.0
    %v1238 = vrcp.pop %v1237
    %v1239 = vmul.f32 1.0, %v1238
    %v1241 = vrot.slane %v1186, 6
    %v1243 = vadd.f32 %v359, %v1241
    %v1244 = vxor.u32 %v1243, 2147483648
    %v1245 = vmul.f32 %v1244, 1.442695
    %v1246 = vpow.pop %v1245
    %v1247 = vadd.f32 %v1246, 1.0
    %v1248 = vrcp.pop %v1247
    %v1249 = vmul.f32 1.0, %v1248
    %v1251 = vrot.slane %v1225, 6
    %v1253 = vmul.f32 %v1239, %v1251
    %v1254 = vadd.f32 %v399, %v1253
    %v1255 = vtanh.pop %v1254
    %v1257 = vrot.slane %v1255, 2
    %v1259 = vsub.f32 %v1147, %v1257
    %v1261 = vrot.slane %v1259, 6
    %v1263 = vmul.f32 %v1249, %v1261
    %v1264 = vadd.f32 %v1255, %v1263
    %v1265 = vpack.c.bf16 %v1264, %v1264
    %v1267 = vrot.slane %v1265, 1
    %1269 = vmatprep.subr.bf16.mxu0 %v532
    %1270 = vmatpush1.bf16.msra.mxu0 %v531
    %1271 = vmatprep.subr.bf16.mxu0 %v535
    %1272 = vmatpush1.bf16.msra.mxu0 %v534
    %1273 = vmatprep.subr.bf16.mxu0 %v538
    %1274 = vmatpush1.bf16.msra.mxu0 %v537
    %1275 = vmatprep.subr.bf16.mxu0 %v541
    %1276 = vmatpush1.bf16.msra.mxu0 %v540
    %1277 = vmatprep.subr.bf16.mxu0 %v544
    %1278 = vmatpush1.bf16.msra.mxu0 %v543
    %1279 = vmatprep.subr.bf16.mxu0 %v547
    %1280 = vmatpush1.bf16.msra.mxu0 %v546
    %1281 = vmatprep.subr.bf16.mxu0 %v550
    %1282 = vmatpush1.bf16.msra.mxu0 %v549
    %1283 = vmatprep.subr.bf16.mxu0 %v553
    %1284 = vmatpush1.bf16.msra.mxu0 %v552
    %1285 = vmatprep.subr.bf16.mxu0 0
    %1286 = vmatpush1.bf16.msra.mxu0 0
    %1287 = vmatprep.subr.bf16.mxu0 0
    %1288 = vmatpush1.bf16.msra.mxu0 0
    %1289 = vmatprep.subr.bf16.mxu0 0
    %1290 = vmatpush1.bf16.msra.mxu0 0
    %1291 = vmatprep.subr.bf16.mxu0 0
    %1292 = vmatpush1.bf16.msra.mxu0 0
    %1293 = vmatprep.subr.bf16.mxu0 0
    %1294 = vmatpush1.bf16.msra.mxu0 0
    %1295 = vmatprep.subr.bf16.mxu0 0
    %1296 = vmatpush1.bf16.msra.mxu0 0
    %1297 = vmatprep.subr.bf16.mxu0 0
    %1298 = vmatpush1.bf16.msra.mxu0 0
    %1299 = vmatprep.subr.bf16.mxu0 0
    %1300 = vmatpush1.bf16.msra.mxu0 0
    %1301 = vmatprep.mubr.bf16.mxu0 0
    %1302 = vmatmul.mubr.bf16.gmra.mrb[0].mxu0 %v1267
    %v1303 = vpop.f32.mrb[0].mxu0
    %v1304 = vadd.f32 %v442, %v1303
    %v1305 = vpop.f32.mrb[0].mxu0
    %v1306 = vadd.f32 %v446, %v1305
    %v1307 = vpop.f32.mrb[0].mxu0
    %v1308 = vpop.f32.mrb[0].mxu0
    %1309 = vdwg.mxu0
    %1310 = vmatprep.subr.bf16.mxu0 0
    %1311 = vmatpush1.bf16.msra.mxu0 %v533
    %1312 = vmatprep.subr.bf16.mxu0 0
    %1313 = vmatpush1.bf16.msra.mxu0 %v536
    %1314 = vmatprep.subr.bf16.mxu0 0
    %1315 = vmatpush1.bf16.msra.mxu0 %v539
    %1316 = vmatprep.subr.bf16.mxu0 0
    %1317 = vmatpush1.bf16.msra.mxu0 %v542
    %1318 = vmatprep.subr.bf16.mxu0 0
    %1319 = vmatpush1.bf16.msra.mxu0 %v545
    %1320 = vmatprep.subr.bf16.mxu0 0
    %1321 = vmatpush1.bf16.msra.mxu0 %v548
    %1322 = vmatprep.subr.bf16.mxu0 0
    %1323 = vmatpush1.bf16.msra.mxu0 %v551
    %1324 = vmatprep.subr.bf16.mxu0 0
    %1325 = vmatpush1.bf16.msra.mxu0 %v554
    %1326 = vmatprep.subr.bf16.mxu0 0
    %1327 = vmatpush1.bf16.msra.mxu0 0
    %1328 = vmatprep.subr.bf16.mxu0 0
    %1329 = vmatpush1.bf16.msra.mxu0 0
    %1330 = vmatprep.subr.bf16.mxu0 0
    %1331 = vmatpush1.bf16.msra.mxu0 0
    %1332 = vmatprep.subr.bf16.mxu0 0
    %1333 = vmatpush1.bf16.msra.mxu0 0
    %1334 = vmatprep.subr.bf16.mxu0 0
    %1335 = vmatpush1.bf16.msra.mxu0 0
    %1336 = vmatprep.subr.bf16.mxu0 0
    %1337 = vmatpush1.bf16.msra.mxu0 0
    %1338 = vmatprep.subr.bf16.mxu0 0
    %1339 = vmatpush1.bf16.msra.mxu0 0
    %1340 = vmatprep.subr.bf16.mxu0 0
    %1341 = vmatpush1.bf16.msra.mxu0 0
    %1342 = vmatprep.mubr.bf16.mxu0 0
    %1343 = vmatmul.mubr.bf16.gmra.mrb[0].mxu0 %v1267
    %v1344 = vpop.f32.mrb[0].mxu0
    %v1345 = vadd.f32 %v450, %v1344
    %v1346 = vpop.f32.mrb[0].mxu0
    %v1347 = vpop.f32.mrb[0].mxu0
    %v1348 = vpop.f32.mrb[0].mxu0
    %1349 = vdwg.mxu0
    %v1351 = vrot.slane %v1304, 4
    %v1353 = vadd.f32 %v357, %v1351
    %v1354 = vxor.u32 %v1353, 2147483648
    %v1355 = vmul.f32 %v1354, 1.442695
    %v1356 = vpow.pop %v1355
    %v1357 = vadd.f32 %v1356, 1.0
    %v1358 = vrcp.pop %v1357
    %v1359 = vmul.f32 1.0, %v1358
    %v1361 = vrot.slane %v1306, 4
    %v1363 = vadd.f32 %v359, %v1361
    %v1364 = vxor.u32 %v1363, 2147483648
    %v1365 = vmul.f32 %v1364, 1.442695
    %v1366 = vpow.pop %v1365
    %v1367 = vadd.f32 %v1366, 1.0
    %v1368 = vrcp.pop %v1367
    %v1369 = vmul.f32 1.0, %v1368
    %v1371 = vrot.slane %v1345, 4
    %v1373 = vmul.f32 %v1359, %v1371
    %v1374 = vadd.f32 %v399, %v1373
    %v1375 = vtanh.pop %v1374
    %v1377 = vrot.slane %v1375, 2
    %v1379 = vsub.f32 %v1264, %v1377
    %v1381 = vrot.slane %v1379, 6
    %v1383 = vmul.f32 %v1369, %v1381
    %v1384 = vadd.f32 %v1375, %v1383
    %v1385 = vpack.c.bf16 %v1384, %v1384
    %v1387 = vrot.slane %v1385, 2
    %1389 = vmatprep.subr.bf16.mxu0 %v532
    %1390 = vmatpush1.bf16.msra.mxu0 %v531
    %1391 = vmatprep.subr.bf16.mxu0 %v535
    %1392 = vmatpush1.bf16.msra.mxu0 %v534
    %1393 = vmatprep.subr.bf16.mxu0 %v538
    %1394 = vmatpush1.bf16.msra.mxu0 %v537
    %1395 = vmatprep.subr.bf16.mxu0 %v541
    %1396 = vmatpush1.bf16.msra.mxu0 %v540
    %1397 = vmatprep.subr.bf16.mxu0 %v544
    %1398 = vmatpush1.bf16.msra.mxu0 %v543
    %1399 = vmatprep.subr.bf16.mxu0 %v547
    %1400 = vmatpush1.bf16.msra.mxu0 %v546
    %1401 = vmatprep.subr.bf16.mxu0 %v550
    %1402 = vmatpush1.bf16.msra.mxu0 %v549
    %1403 = vmatprep.subr.bf16.mxu0 %v553
    %1404 = vmatpush1.bf16.msra.mxu0 %v552
    %1405 = vmatprep.subr.bf16.mxu0 0
    %1406 = vmatpush1.bf16.msra.mxu0 0
    %1407 = vmatprep.subr.bf16.mxu0 0
    %1408 = vmatpush1.bf16.msra.mxu0 0
    %1409 = vmatprep.subr.bf16.mxu0 0
    %1410 = vmatpush1.bf16.msra.mxu0 0
    %1411 = vmatprep.subr.bf16.mxu0 0
    %1412 = vmatpush1.bf16.msra.mxu0 0
    %1413 = vmatprep.subr.bf16.mxu0 0
    %1414 = vmatpush1.bf16.msra.mxu0 0
    %1415 = vmatprep.subr.bf16.mxu0 0
    %1416 = vmatpush1.bf16.msra.mxu0 0
    %1417 = vmatprep.subr.bf16.mxu0 0
    %1418 = vmatpush1.bf16.msra.mxu0 0
    %1419 = vmatprep.subr.bf16.mxu0 0
    %1420 = vmatpush1.bf16.msra.mxu0 0
    %1421 = vmatprep.mubr.bf16.mxu0 0
    %1422 = vmatmul.mubr.bf16.gmra.mrb[0].mxu0 %v1387
    %v1423 = vpop.f32.mrb[0].mxu0
    %v1424 = vadd.f32 %v442, %v1423
    %v1425 = vpop.f32.mrb[0].mxu0
    %v1426 = vadd.f32 %v446, %v1425
    %v1427 = vpop.f32.mrb[0].mxu0
    %v1428 = vpop.f32.mrb[0].mxu0
    %1429 = vdwg.mxu0
    %1430 = vmatprep.subr.bf16.mxu0 0
    %1431 = vmatpush1.bf16.msra.mxu0 %v533
    %1432 = vmatprep.subr.bf16.mxu0 0
    %1433 = vmatpush1.bf16.msra.mxu0 %v536
    %1434 = vmatprep.subr.bf16.mxu0 0
    %1435 = vmatpush1.bf16.msra.mxu0 %v539
    %1436 = vmatprep.subr.bf16.mxu0 0
    %1437 = vmatpush1.bf16.msra.mxu0 %v542
    %1438 = vmatprep.subr.bf16.mxu0 0
    %1439 = vmatpush1.bf16.msra.mxu0 %v545
    %1440 = vmatprep.subr.bf16.mxu0 0
    %1441 = vmatpush1.bf16.msra.mxu0 %v548
    %1442 = vmatprep.subr.bf16.mxu0 0
    %1443 = vmatpush1.bf16.msra.mxu0 %v551
    %1444 = vmatprep.subr.bf16.mxu0 0
    %1445 = vmatpush1.bf16.msra.mxu0 %v554
    %1446 = vmatprep.subr.bf16.mxu0 0
    %1447 = vmatpush1.bf16.msra.mxu0 0
    %1448 = vmatprep.subr.bf16.mxu0 0
    %1449 = vmatpush1.bf16.msra.mxu0 0
    %1450 = vmatprep.subr.bf16.mxu0 0
    %1451 = vmatpush1.bf16.msra.mxu0 0
    %1452 = vmatprep.subr.bf16.mxu0 0
    %1453 = vmatpush1.bf16.msra.mxu0 0
    %1454 = vmatprep.subr.bf16.mxu0 0
    %1455 = vmatpush1.bf16.msra.mxu0 0
    %1456 = vmatprep.subr.bf16.mxu0 0
    %1457 = vmatpush1.bf16.msra.mxu0 0
    %1458 = vmatprep.subr.bf16.mxu0 0
    %1459 = vmatpush1.bf16.msra.mxu0 0
    %1460 = vmatprep.subr.bf16.mxu0 0
    %1461 = vmatpush1.bf16.msra.mxu0 0
    %1462 = vmatprep.mubr.bf16.mxu0 0
    %1463 = vmatmul.mubr.bf16.gmra.mrb[0].mxu0 %v1387
    %v1464 = vpop.f32.mrb[0].mxu0
    %v1465 = vadd.f32 %v450, %v1464
    %v1466 = vpop.f32.mrb[0].mxu0
    %v1467 = vpop.f32.mrb[0].mxu0
    %v1468 = vpop.f32.mrb[0].mxu0
    %1469 = vdwg.mxu0
    %v1471 = vrot.slane %v1424, 2
    %v1473 = vadd.f32 %v357, %v1471
    %v1474 = vxor.u32 %v1473, 2147483648
    %v1475 = vmul.f32 %v1474, 1.442695
    %v1476 = vpow.pop %v1475
    %v1477 = vadd.f32 %v1476, 1.0
    %v1478 = vrcp.pop %v1477
    %v1479 = vmul.f32 1.0, %v1478
    %v1481 = vrot.slane %v1426, 2
    %v1483 = vadd.f32 %v359, %v1481
    %v1484 = vxor.u32 %v1483, 2147483648
    %v1485 = vmul.f32 %v1484, 1.442695
    %v1486 = vpow.pop %v1485
    %v1487 = vadd.f32 %v1486, 1.0
    %v1488 = vrcp.pop %v1487
    %v1489 = vmul.f32 1.0, %v1488
    %v1491 = vrot.slane %v1465, 2
    %v1493 = vmul.f32 %v1479, %v1491
    %v1494 = vadd.f32 %v399, %v1493
    %v1495 = vtanh.pop %v1494
    %v1497 = vrot.slane %v1495, 2
    %v1499 = vsub.f32 %v1384, %v1497
    %v1501 = vrot.slane %v1499, 6
    %v1503 = vmul.f32 %v1489, %v1501
    %v1504 = vadd.f32 %v1495, %v1503
    %v1506 = vrot.slane %v796, 1
    %v1509 = vrot.slane %v916, 2
    %v1512 = vrot.slane %v1036, 3
    %v1515 = vrot.slane %v1147, 4
    %v1518 = vrot.slane %v1264, 5
    %v1521 = vrot.slane %v1384, 6
    %v1524 = vrot.slane %v1504, 7
    %vm1526 = vcmask 1040384
    %v1527 = vsel %vm1526, %v679, %v1506
    %vm1528 = vcmask 1041408
    %v1529 = vsel %vm1528, %v1527, %v1509
    %vm1530 = vcmask 1042432
    %v1531 = vsel %vm1530, %v1529, %v1512
    %vm1532 = vcmask 1043456
    %v1533 = vsel %vm1532, %v1531, %v1515
    %vm1534 = vcmask 1044480
    %v1535 = vsel %vm1534, %v1533, %v1518
    %vm1536 = vcmask 1045504
    %v1537 = vsel %vm1536, %v1535, %v1521
    %vm1538 = vcmask 1046528
    %v1539 = vsel %vm1538, %v1537, %v1524
    %s1540 = smul.u32 4, 36
    %s1541 = smul.u32 %s1540, 3
    %s1542 = sshll.u32 %s1541, 4
    %1543 = dma.done [#allocation4], %s1542
    %s1544 = smul.u32 4, 158
    %s1545 = smul.u32 %s1544, 1
    %s1546 = sshll.u32 %s1545, 4
    %1547 = dma.done %s66, %s1546
    %v1548 = vld [vmem:[%s1] sm:$0x3]
    %v1549 = vld [vmem:[#allocation3 + $0x1a0] sm:$0xff]
    %v1550 = vld [vmem:[#allocation3 + $0x1a8] sm:$0xff]
    %v1551 = vld [vmem:[#allocation3 + $0x1b0] sm:$0xff]
    %v1552 = vld [vmem:[#allocation3 + $0x1b8] sm:$0xff]
    %v1553 = vld [vmem:[#allocation3 + $0x1c0] sm:$0xff]
    %v1554 = vld [vmem:[#allocation3 + $0x1c8] sm:$0xff]
    %v1555 = vld [vmem:[#allocation3 + $0x1d0] sm:$0xff]
    %v1556 = vld [vmem:[#allocation3 + $0x1d8] sm:$0xff]
    %v1557 = vld [vmem:[#allocation3 + $0x1e0] sm:$0x1]
    %v1558 = vpack.c.bf16 %v1548, %v1548
    %v1559 = vunpack.c.l.bf16 %v1557
    %v1560 = vlaneseq
    %v1561 = vshrl.u32 %v1560, 7
    %v1562 = vsub.s32 0, %v1561
    %v1563 = vrot.slane %v1559, %v1562
    %1564 = vmatprep.subr.bf16.mxu0 0
    %1565 = vmatpush1.bf16.msra.mxu0 %v1549
    %1566 = vmatprep.subr.bf16.mxu0 0
    %1567 = vmatpush1.bf16.msra.mxu0 %v1550
    %1568 = vmatprep.subr.bf16.mxu0 0
    %1569 = vmatpush1.bf16.msra.mxu0 %v1551
    %1570 = vmatprep.subr.bf16.mxu0 0
    %1571 = vmatpush1.bf16.msra.mxu0 %v1552
    %1572 = vmatprep.subr.bf16.mxu0 0
    %1573 = vmatpush1.bf16.msra.mxu0 %v1553
    %1574 = vmatprep.subr.bf16.mxu0 0
    %1575 = vmatpush1.bf16.msra.mxu0 %v1554
    %1576 = vmatprep.subr.bf16.mxu0 0
    %1577 = vmatpush1.bf16.msra.mxu0 %v1555
    %1578 = vmatprep.subr.bf16.mxu0 0
    %1579 = vmatpush1.bf16.msra.mxu0 %v1556
    %1580 = vmatprep.subr.bf16.mxu0 0
    %1581 = vmatpush1.bf16.msra.mxu0 0
    %1582 = vmatprep.subr.bf16.mxu0 0
    %1583 = vmatpush1.bf16.msra.mxu0 0
    %1584 = vmatprep.subr.bf16.mxu0 0
    %1585 = vmatpush1.bf16.msra.mxu0 0
    %1586 = vmatprep.subr.bf16.mxu0 0
    %1587 = vmatpush1.bf16.msra.mxu0 0
    %1588 = vmatprep.subr.bf16.mxu0 0
    %1589 = vmatpush1.bf16.msra.mxu0 0
    %1590 = vmatprep.subr.bf16.mxu0 0
    %1591 = vmatpush1.bf16.msra.mxu0 0
    %1592 = vmatprep.subr.bf16.mxu0 0
    %1593 = vmatpush1.bf16.msra.mxu0 0
    %1594 = vmatprep.subr.bf16.mxu0 0
    %1595 = vmatpush1.bf16.msra.mxu0 0
    %1596 = vmatprep.mubr.bf16.mxu0 0
    %1597 = vmatmul.mubr.bf16.gmra.mrb[0].mxu0 %v1558
    %v1598 = vpop.f32.mrb[0].mxu0
    %v1599 = vadd.f32 %v1563, %v1598
    %v1600 = vpop.f32.mrb[0].mxu0
    %v1601 = vpop.f32.mrb[0].mxu0
    %v1602 = vpop.f32.mrb[0].mxu0
    %1603 = vdwg.mxu0
    %v1604 = vmax.f32 %v1599, 0.0
    %v1605 = vld [vmem:[#allocation3 + $0x1e8] sm:$0xff]
    %v1606 = vld [vmem:[#allocation3 + $0x1f0] sm:$0xff]
    %v1607 = vld [vmem:[#allocation3 + $0x1f8] sm:$0xff]
    %v1608 = vld [vmem:[#allocation3 + $0x200] sm:$0xff]
    %v1609 = vld [vmem:[#allocation3 + $0x208] sm:$0xff]
    %v1610 = vld [vmem:[#allocation3 + $0x210] sm:$0xff]
    %v1611 = vld [vmem:[#allocation3 + $0x218] sm:$0xff]
    %v1612 = vld [vmem:[#allocation3 + $0x220] sm:$0xff]
    %v1613 = vld [vmem:[#allocation3 + $0x228] sm:$0x1]
    %v1614 = vpack.c.bf16 %v1604, %v1604
    %v1615 = vunpack.c.l.bf16 %v1613
    %v1616 = vlaneseq
    %v1617 = vshrl.u32 %v1616, 7
    %v1618 = vsub.s32 0, %v1617
    %v1619 = vrot.slane %v1615, %v1618
    %1620 = vmatprep.subr.bf16.mxu0 0
    %1621 = vmatpush1.bf16.msra.mxu0 %v1605
    %1622 = vmatprep.subr.bf16.mxu0 0
    %1623 = vmatpush1.bf16.msra.mxu0 %v1606
    %1624 = vmatprep.subr.bf16.mxu0 0
    %1625 = vmatpush1.bf16.msra.mxu0 %v1607
    %1626 = vmatprep.subr.bf16.mxu0 0
    %1627 = vmatpush1.bf16.msra.mxu0 %v1608
    %1628 = vmatprep.subr.bf16.mxu0 0
    %1629 = vmatpush1.bf16.msra.mxu0 %v1609
    %1630 = vmatprep.subr.bf16.mxu0 0
    %1631 = vmatpush1.bf16.msra.mxu0 %v1610
    %1632 = vmatprep.subr.bf16.mxu0 0
    %1633 = vmatpush1.bf16.msra.mxu0 %v1611
    %1634 = vmatprep.subr.bf16.mxu0 0
    %1635 = vmatpush1.bf16.msra.mxu0 %v1612
    %1636 = vmatprep.subr.bf16.mxu0 0
    %1637 = vmatpush1.bf16.msra.mxu0 0
    %1638 = vmatprep.subr.bf16.mxu0 0
    %1639 = vmatpush1.bf16.msra.mxu0 0
    %1640 = vmatprep.subr.bf16.mxu0 0
    %1641 = vmatpush1.bf16.msra.mxu0 0
    %1642 = vmatprep.subr.bf16.mxu0 0
    %1643 = vmatpush1.bf16.msra.mxu0 0
    %1644 = vmatprep.subr.bf16.mxu0 0
    %1645 = vmatpush1.bf16.msra.mxu0 0
    %1646 = vmatprep.subr.bf16.mxu0 0
    %1647 = vmatpush1.bf16.msra.mxu0 0
    %1648 = vmatprep.subr.bf16.mxu0 0
    %1649 = vmatpush1.bf16.msra.mxu0 0
    %1650 = vmatprep.subr.bf16.mxu0 0
    %1651 = vmatpush1.bf16.msra.mxu0 0
    %1652 = vmatprep.mubr.bf16.mxu0 0
    %1653 = vmatmul.mubr.bf16.gmra.mrb[0].mxu0 %v1614
    %v1654 = vpop.f32.mrb[0].mxu0
    %v1655 = vadd.f32 %v1619, %v1654
    %v1656 = vpop.f32.mrb[0].mxu0
    %v1657 = vpop.f32.mrb[0].mxu0
    %v1658 = vpop.f32.mrb[0].mxu0
    %1659 = vdwg.mxu0
    %v1660 = vmax.f32 %v1655, 0.0
    %v1661 = vld [vmem:[#allocation3 + $0x230] sm:$0xff]
    %v1662 = vld [vmem:[#allocation3 + $0x238] sm:$0xff]
    %v1663 = vld [vmem:[#allocation3 + $0x240] sm:$0xff]
    %v1664 = vld [vmem:[#allocation3 + $0x248] sm:$0xff]
    %v1665 = vld [vmem:[#allocation3 + $0x250] sm:$0xff]
    %v1666 = vld [vmem:[#allocation3 + $0x258] sm:$0xff]
    %v1667 = vld [vmem:[#allocation3 + $0x260] sm:$0xff]
    %v1668 = vld [vmem:[#allocation3 + $0x268] sm:$0xff]
    %v1669 = vld [vmem:[#allocation3 + $0x270] sm:$0x1]
    %v1670 = vpack.c.bf16 %v1660, %v1660
    %v1671 = vunpack.c.l.bf16 %v1669
    %v1672 = vlaneseq
    %v1673 = vshrl.u32 %v1672, 7
    %v1674 = vsub.s32 0, %v1673
    %v1675 = vrot.slane %v1671, %v1674
    %1676 = vmatprep.subr.bf16.mxu0 0
    %1677 = vmatpush1.bf16.msra.mxu0 %v1661
    %1678 = vmatprep.subr.bf16.mxu0 0
    %1679 = vmatpush1.bf16.msra.mxu0 %v1662
    %1680 = vmatprep.subr.bf16.mxu0 0
    %1681 = vmatpush1.bf16.msra.mxu0 %v1663
    %1682 = vmatprep.subr.bf16.mxu0 0
    %1683 = vmatpush1.bf16.msra.mxu0 %v1664
    %1684 = vmatprep.subr.bf16.mxu0 0
    %1685 = vmatpush1.bf16.msra.mxu0 %v1665
    %1686 = vmatprep.subr.bf16.mxu0 0
    %1687 = vmatpush1.bf16.msra.mxu0 %v1666
    %1688 = vmatprep.subr.bf16.mxu0 0
    %1689 = vmatpush1.bf16.msra.mxu0 %v1667
    %1690 = vmatprep.subr.bf16.mxu0 0
    %1691 = vmatpush1.bf16.msra.mxu0 %v1668
    %1692 = vmatprep.subr.bf16.mxu0 0
    %1693 = vmatpush1.bf16.msra.mxu0 0
    %1694 = vmatprep.subr.bf16.mxu0 0
    %1695 = vmatpush1.bf16.msra.mxu0 0
    %1696 = vmatprep.subr.bf16.mxu0 0
    %1697 = vmatpush1.bf16.msra.mxu0 0
    %1698 = vmatprep.subr.bf16.mxu0 0
    %1699 = vmatpush1.bf16.msra.mxu0 0
    %1700 = vmatprep.subr.bf16.mxu0 0
    %1701 = vmatpush1.bf16.msra.mxu0 0
    %1702 = vmatprep.subr.bf16.mxu0 0
    %1703 = vmatpush1.bf16.msra.mxu0 0
    %1704 = vmatprep.subr.bf16.mxu0 0
    %1705 = vmatpush1.bf16.msra.mxu0 0
    %1706 = vmatprep.subr.bf16.mxu0 0
    %1707 = vmatpush1.bf16.msra.mxu0 0
    %1708 = vmatprep.mubr.bf16.mxu0 0
    %1709 = vmatmul.mubr.bf16.gmra.mrb[0].mxu0 %v1670
    %v1710 = vpop.f32.mrb[0].mxu0
    %v1711 = vadd.f32 %v1675, %v1710
    %v1712 = vpop.f32.mrb[0].mxu0
    %v1713 = vpop.f32.mrb[0].mxu0
    %v1714 = vpop.f32.mrb[0].mxu0
    %1715 = vdwg.mxu0
    %v1716 = vld [vmem:[#allocation3] sm:$0xff]
    %v1717 = vld [vmem:[#allocation3 + $0x8] sm:$0xff]
    %v1718 = vld [vmem:[#allocation3 + $0x10] sm:$0xff]
    %v1719 = vld [vmem:[#allocation3 + $0x18] sm:$0xff]
    %v1720 = vld [vmem:[#allocation3 + $0x20] sm:$0xff]
    %v1721 = vld [vmem:[#allocation3 + $0x28] sm:$0xff]
    %v1722 = vld [vmem:[#allocation3 + $0x30] sm:$0xff]
    %v1723 = vld [vmem:[#allocation3 + $0x38] sm:$0xff]
    %v1724 = vld [vmem:[#allocation3 + $0x40] sm:$0x1]
    %v1725 = vunpack.c.l.bf16 %v1724
    %v1726 = vlaneseq
    %v1727 = vshrl.u32 %v1726, 7
    %v1728 = vsub.s32 0, %v1727
    %v1729 = vrot.slane %v1725, %v1728
    %1730 = vmatprep.subr.bf16.mxu0 0
    %1731 = vmatpush1.bf16.msra.mxu0 %v1716
    %1732 = vmatprep.subr.bf16.mxu0 0
    %1733 = vmatpush1.bf16.msra.mxu0 %v1717
    %1734 = vmatprep.subr.bf16.mxu0 0
    %1735 = vmatpush1.bf16.msra.mxu0 %v1718
    %1736 = vmatprep.subr.bf16.mxu0 0
    %1737 = vmatpush1.bf16.msra.mxu0 %v1719
    %1738 = vmatprep.subr.bf16.mxu0 0
    %1739 = vmatpush1.bf16.msra.mxu0 %v1720
    %1740 = vmatprep.subr.bf16.mxu0 0
    %1741 = vmatpush1.bf16.msra.mxu0 %v1721
    %1742 = vmatprep.subr.bf16.mxu0 0
    %1743 = vmatpush1.bf16.msra.mxu0 %v1722
    %1744 = vmatprep.subr.bf16.mxu0 0
    %1745 = vmatpush1.bf16.msra.mxu0 %v1723
    %1746 = vmatprep.subr.bf16.mxu0 0
    %1747 = vmatpush1.bf16.msra.mxu0 0
    %1748 = vmatprep.subr.bf16.mxu0 0
    %1749 = vmatpush1.bf16.msra.mxu0 0
    %1750 = vmatprep.subr.bf16.mxu0 0
    %1751 = vmatpush1.bf16.msra.mxu0 0
    %1752 = vmatprep.subr.bf16.mxu0 0
    %1753 = vmatpush1.bf16.msra.mxu0 0
    %1754 = vmatprep.subr.bf16.mxu0 0
    %1755 = vmatpush1.bf16.msra.mxu0 0
    %1756 = vmatprep.subr.bf16.mxu0 0
    %1757 = vmatpush1.bf16.msra.mxu0 0
    %1758 = vmatprep.subr.bf16.mxu0 0
    %1759 = vmatpush1.bf16.msra.mxu0 0
    %1760 = vmatprep.subr.bf16.mxu0 0
    %1761 = vmatpush1.bf16.msra.mxu0 0
    %1762 = vmatprep.mubr.bf16.mxu0 0
    %1763 = vmatmul.mubr.bf16.gmra.mrb[0].mxu0 0
    %v1764 = vpop.f32.mrb[0].mxu0
    %v1765 = vadd.f32 %v1729, %v1764
    %v1766 = vpop.f32.mrb[0].mxu0
    %v1767 = vpop.f32.mrb[0].mxu0
    %v1768 = vpop.f32.mrb[0].mxu0
    %1769 = vdwg.mxu0
    %v1770 = vrot.slane %v1504, 6
    %v1772 = vld [vmem:[#allocation3 + $0x48] sm:$0xff]
    %v1773 = vld [vmem:[#allocation3 + $0x50] sm:$0xff]
    %v1774 = vld [vmem:[#allocation3 + $0x58] sm:$0xff]
    %v1775 = vld [vmem:[#allocation3 + $0x60] sm:$0xff]
    %v1776 = vld [vmem:[#allocation3 + $0x68] sm:$0xff]
    %v1777 = vld [vmem:[#allocation3 + $0x70] sm:$0xff]
    %v1778 = vld [vmem:[#allocation3 + $0x78] sm:$0xff]
    %v1779 = vld [vmem:[#allocation3 + $0x80] sm:$0xff]
    %v1780 = vld [vmem:[#allocation3 + $0x88] sm:$0xff]
    %v1781 = vld [vmem:[#allocation3 + $0x90] sm:$0xff]
    %v1782 = vld [vmem:[#allocation3 + $0x98] sm:$0xff]
    %v1783 = vld [vmem:[#allocation3 + $0xa0] sm:$0xff]
    %v1784 = vld [vmem:[#allocation3 + $0xa8] sm:$0xff]
    %v1785 = vld [vmem:[#allocation3 + $0xb0] sm:$0xff]
    %v1786 = vld [vmem:[#allocation3 + $0xb8] sm:$0xff]
    %v1787 = vld [vmem:[#allocation3 + $0xc0] sm:$0xff]
    %v1788 = vld [vmem:[#allocation3 + $0xc8] sm:$0x1]
    %v1789 = vpack.c.bf16 %v1765, %v1765
    %v1790 = vpack.c.bf16 %v1770, %v1770
    %v1791 = vunpack.c.l.bf16 %v1788
    %v1792 = vlaneseq
    %v1793 = vshrl.u32 %v1792, 7
    %v1794 = vsub.s32 0, %v1793
    %v1795 = vrot.slane %v1791, %v1794
    %1796 = vmatprep.subr.bf16.mxu0 0
    %1797 = vmatpush1.bf16.msra.mxu0 %v1772
    %1798 = vmatprep.subr.bf16.mxu0 0
    %1799 = vmatpush1.bf16.msra.mxu0 %v1773
    %1800 = vmatprep.subr.bf16.mxu0 0
    %1801 = vmatpush1.bf16.msra.mxu0 %v1774
    %1802 = vmatprep.subr.bf16.mxu0 0
    %1803 = vmatpush1.bf16.msra.mxu0 %v1775
    %1804 = vmatprep.subr.bf16.mxu0 0
    %1805 = vmatpush1.bf16.msra.mxu0 %v1776
    %1806 = vmatprep.subr.bf16.mxu0 0
    %1807 = vmatpush1.bf16.msra.mxu0 %v1777
    %1808 = vmatprep.subr.bf16.mxu0 0
    %1809 = vmatpush1.bf16.msra.mxu0 %v1778
    %1810 = vmatprep.subr.bf16.mxu0 0
    %1811 = vmatpush1.bf16.msra.mxu0 %v1779
    %1812 = vmatprep.subr.bf16.mxu0 0
    %1813 = vmatpush1.bf16.msra.mxu0 %v1780
    %1814 = vmatprep.subr.bf16.mxu0 0
    %1815 = vmatpush1.bf16.msra.mxu0 %v1781
    %1816 = vmatprep.subr.bf16.mxu0 0
    %1817 = vmatpush1.bf16.msra.mxu0 %v1782
    %1818 = vmatprep.subr.bf16.mxu0 0
    %1819 = vmatpush1.bf16.msra.mxu0 %v1783
    %1820 = vmatprep.subr.bf16.mxu0 0
    %1821 = vmatpush1.bf16.msra.mxu0 %v1784
    %1822 = vmatprep.subr.bf16.mxu0 0
    %1823 = vmatpush1.bf16.msra.mxu0 %v1785
    %1824 = vmatprep.subr.bf16.mxu0 0
    %1825 = vmatpush1.bf16.msra.mxu0 %v1786
    %1826 = vmatprep.subr.bf16.mxu0 0
    %1827 = vmatpush1.bf16.msra.mxu0 %v1787
    %1828 = vmatprep.mubr.bf16.mxu0 %v1790
    %1829 = vmatmul.mubr.bf16.gmra.mrb[0].mxu0 %v1789
    %v1830 = vpop.f32.mrb[0].mxu0
    %v1831 = vadd.f32 %v1795, %v1830
    %v1832 = vpop.f32.mrb[0].mxu0
    %v1833 = vpop.f32.mrb[0].mxu0
    %v1834 = vpop.f32.mrb[0].mxu0
    %1835 = vdwg.mxu0
    %v1836 = vsel %vm1528, %v1831, -inf
    %1837 = vmax.xlane.f32.xlu0 %v1836
    %v1838 = vpop.xlane.xlu0 %1837
    %v1839 = vsub.f32 %v1831, %v1838
    %v1840 = vmul.f32 %v1839, 1.442695
    %v1841 = vpow.pop %v1840
    %v1842 = vsel %vm1528, %v1841, 0.0
    %1843 = vadd.xlane.f32.xlu0 %v1842
    %v1844 = vpop.xlane.xlu0 %1843
    %v1845 = vrcp.pop %v1844
    %v1846 = vmul.f32 %v1841, %v1845
    %v1847 = vpack.c.bf16 %v1846, %v1846
    %v1848 = vpack.c.bf16 0.0, %v1539
    %v1849 = vpack.c.bf16 0.0, 0.0
    %1850 = vmatprep.subr.bf16.mxu0 0
    %1851 = vmatpush1.bf16.msra.mxu0 %v1848
    %1852 = vmatprep.subr.bf16.mxu0 0
    %1853 = vmatpush1.bf16.msra.mxu0 %v1849
    %1854 = vmatprep.subr.bf16.mxu0 0
    %1855 = vmatpush1.bf16.msra.mxu0 %v1849
    %1856 = vmatprep.subr.bf16.mxu0 0
    %1857 = vmatpush1.bf16.msra.mxu0 %v1849
    %1858 = vmatprep.subr.bf16.mxu0 0
    %1859 = vmatpush1.bf16.msra.mxu0 %v1849
    %1860 = vmatprep.subr.bf16.mxu0 0
    %1861 = vmatpush1.bf16.msra.mxu0 %v1849
    %1862 = vmatprep.subr.bf16.mxu0 0
    %1863 = vmatpush1.bf16.msra.mxu0 %v1849
    %1864 = vmatprep.subr.bf16.mxu0 0
    %1865 = vmatpush1.bf16.msra.mxu0 %v1849
    %1866 = vmatprep.subr.bf16.mxu0 0
    %1867 = vmatpush1.bf16.msra.mxu0 0
    %1868 = vmatprep.subr.bf16.mxu0 0
    %1869 = vmatpush1.bf16.msra.mxu0 0
    %1870 = vmatprep.subr.bf16.mxu0 0
    %1871 = vmatpush1.bf16.msra.mxu0 0
    %1872 = vmatprep.subr.bf16.mxu0 0
    %1873 = vmatpush1.bf16.msra.mxu0 0
    %1874 = vmatprep.subr.bf16.mxu0 0
    %1875 = vmatpush1.bf16.msra.mxu0 0
    %1876 = vmatprep.subr.bf16.mxu0 0
    %1877 = vmatpush1.bf16.msra.mxu0 0
    %1878 = vmatprep.subr.bf16.mxu0 0
    %1879 = vmatpush1.bf16.msra.mxu0 0
    %1880 = vmatprep.subr.bf16.mxu0 0
    %1881 = vmatpush1.bf16.msra.mxu0 0
    %1882 = vmatprep.mubr.bf16.mxu0 0
    %1883 = vmatmul.mubr.bf16.gmra.mrb[0].mxu0 %v1847
    %v1884 = vpop.f32.mrb[0].mxu0
    %v1885 = vadd.f32 0.0, %v1884
    %v1886 = vpop.f32.mrb[0].mxu0
    %v1887 = vpop.f32.mrb[0].mxu0
    %v1888 = vpop.f32.mrb[0].mxu0
    %1889 = vdwg.mxu0
    %v1890 = vld [vmem:[#allocation3 + $0xd0] sm:$0xff]
    %v1891 = vld [vmem:[#allocation3 + $0xd8] sm:$0xff]
    %v1892 = vld [vmem:[#allocation3 + $0xe0] sm:$0xff]
    %v1893 = vld [vmem:[#allocation3 + $0xe8] sm:$0xff]
    %v1894 = vld [vmem:[#allocation3 + $0xf0] sm:$0xff]
    %v1895 = vld [vmem:[#allocation3 + $0xf8] sm:$0xff]
    %v1896 = vld [vmem:[#allocation3 + $0x100] sm:$0xff]
    %v1897 = vld [vmem:[#allocation3 + $0x108] sm:$0xff]
    %v1898 = vld [vmem:[#allocation3 + $0x110] sm:$0xff]
    %v1899 = vld [vmem:[#allocation3 + $0x118] sm:$0xff]
    %v1900 = vld [vmem:[#allocation3 + $0x120] sm:$0xff]
    %v1901 = vld [vmem:[#allocation3 + $0x128] sm:$0xff]
    %v1902 = vld [vmem:[#allocation3 + $0x130] sm:$0xff]
    %v1903 = vld [vmem:[#allocation3 + $0x138] sm:$0xff]
    %v1904 = vld [vmem:[#allocation3 + $0x140] sm:$0xff]
    %v1905 = vld [vmem:[#allocation3 + $0x148] sm:$0xff]
    %v1906 = vld [vmem:[#allocation3 + $0x150] sm:$0x1]
    %v1907 = vpack.c.bf16 %v1885, %v1885
    %v1908 = vunpack.c.l.bf16 %v1906
    %v1909 = vlaneseq
    %v1910 = vshrl.u32 %v1909, 7
    %v1911 = vsub.s32 0, %v1910
    %v1912 = vrot.slane %v1908, %v1911
    %1913 = vmatprep.subr.bf16.mxu0 0
    %1914 = vmatpush1.bf16.msra.mxu0 %v1890
    %1915 = vmatprep.subr.bf16.mxu0 0
    %1916 = vmatpush1.bf16.msra.mxu0 %v1891
    %1917 = vmatprep.subr.bf16.mxu0 0
    %1918 = vmatpush1.bf16.msra.mxu0 %v1892
    %1919 = vmatprep.subr.bf16.mxu0 0
    %1920 = vmatpush1.bf16.msra.mxu0 %v1893
    %1921 = vmatprep.subr.bf16.mxu0 0
    %1922 = vmatpush1.bf16.msra.mxu0 %v1894
    %1923 = vmatprep.subr.bf16.mxu0 0
    %1924 = vmatpush1.bf16.msra.mxu0 %v1895
    %1925 = vmatprep.subr.bf16.mxu0 0
    %1926 = vmatpush1.bf16.msra.mxu0 %v1896
    %1927 = vmatprep.subr.bf16.mxu0 0
    %1928 = vmatpush1.bf16.msra.mxu0 %v1897
    %1929 = vmatprep.subr.bf16.mxu0 0
    %1930 = vmatpush1.bf16.msra.mxu0 %v1898
    %1931 = vmatprep.subr.bf16.mxu0 0
    %1932 = vmatpush1.bf16.msra.mxu0 %v1899
    %1933 = vmatprep.subr.bf16.mxu0 0
    %1934 = vmatpush1.bf16.msra.mxu0 %v1900
    %1935 = vmatprep.subr.bf16.mxu0 0
    %1936 = vmatpush1.bf16.msra.mxu0 %v1901
    %1937 = vmatprep.subr.bf16.mxu0 0
    %1938 = vmatpush1.bf16.msra.mxu0 %v1902
    %1939 = vmatprep.subr.bf16.mxu0 0
    %1940 = vmatpush1.bf16.msra.mxu0 %v1903
    %1941 = vmatprep.subr.bf16.mxu0 0
    %1942 = vmatpush1.bf16.msra.mxu0 %v1904
    %1943 = vmatprep.subr.bf16.mxu0 0
    %1944 = vmatpush1.bf16.msra.mxu0 %v1905
    %1945 = vmatprep.mubr.bf16.mxu0 %v1907
    %1946 = vmatmul.mubr.bf16.gmra.mrb[0].mxu0 %v1789
    %v1947 = vpop.f32.mrb[0].mxu0
    %v1948 = vadd.f32 %v1912, %v1947
    %v1949 = vpop.f32.mrb[0].mxu0
    %v1950 = vpop.f32.mrb[0].mxu0
    %v1951 = vpop.f32.mrb[0].mxu0
    %1952 = vdwg.mxu0
    %v1953 = vtanh.pop %v1948
    %v1954 = vld [vmem:[#allocation2] sm:$0xff]
    %v1955 = vld [vmem:[#allocation2 + $0x8] sm:$0xff]
    %v1956 = vld [vmem:[#allocation2 + $0x10] sm:$0xff]
    %v1957 = vld [vmem:[#allocation2 + $0x18] sm:$0xff]
    %v1958 = vld [vmem:[#allocation2 + $0x20] sm:$0xff]
    %v1959 = vld [vmem:[#allocation2 + $0x28] sm:$0xff]
    %v1960 = vld [vmem:[#allocation2 + $0x30] sm:$0xff]
    %v1961 = vld [vmem:[#allocation2 + $0x38] sm:$0xff]
    %v1962 = vld [vmem:[#allocation2 + $0x40] sm:$0xff]
    %v1963 = vld [vmem:[#allocation2 + $0x48] sm:$0xff]
    %v1964 = vld [vmem:[#allocation2 + $0x50] sm:$0xff]
    %v1965 = vld [vmem:[#allocation2 + $0x58] sm:$0xff]
    %v1966 = vld [vmem:[#allocation2 + $0x60] sm:$0xff]
    %v1967 = vld [vmem:[#allocation2 + $0x68] sm:$0xff]
    %v1968 = vld [vmem:[#allocation2 + $0x70] sm:$0xff]
    %v1969 = vld [vmem:[#allocation2 + $0x78] sm:$0xff]
    %v1970 = vld [vmem:[#allocation2 + $0x80] sm:$0xff]
    %v1971 = vld [vmem:[#allocation2 + $0x88] sm:$0xff]
    %v1972 = vld [vmem:[#allocation2 + $0x90] sm:$0xff]
    %v1973 = vld [vmem:[#allocation2 + $0x98] sm:$0xff]
    %v1974 = vld [vmem:[#allocation2 + $0xa0] sm:$0xff]
    %v1975 = vld [vmem:[#allocation2 + $0xa8] sm:$0xff]
    %v1976 = vld [vmem:[#allocation2 + $0xb0] sm:$0xff]
    %v1977 = vld [vmem:[#allocation2 + $0xb8] sm:$0xff]
    %v1978 = vld [vmem:[#allocation2 + $0xc0] sm:$0x1]
    %v1979 = vld [vmem:[#allocation2 + $0xc8] sm:$0x1]
    %v1980 = vld [vmem:[#allocation2 + $0xd0] sm:$0x1]
    %v1981 = vpack.c.bf16 %v1953, %v1953
    %v1982 = vunpack.c.l.bf16 %v1978
    %v1983 = vunpack.c.l.bf16 %v1979
    %v1984 = vunpack.c.l.bf16 %v1980
    %v1985 = vlaneseq
    %v1986 = vshrl.u32 %v1985, 7
    %v1987 = vsub.s32 0, %v1986
    %v1988 = vrot.slane %v1982, %v1987
    %v1989 = vlaneseq
    %v1990 = vshrl.u32 %v1989, 7
    %v1991 = vsub.s32 0, %v1990
    %v1992 = vrot.slane %v1983, %v1991
    %v1993 = vlaneseq
    %v1994 = vshrl.u32 %v1993, 7
    %v1995 = vsub.s32 0, %v1994
    %v1996 = vrot.slane %v1984, %v1995
    %1997 = vmatprep.subr.bf16.mxu0 %v1955
    %1998 = vmatpush1.bf16.msra.mxu0 %v1954
    %1999 = vmatprep.subr.bf16.mxu0 %v1958
    %2000 = vmatpush1.bf16.msra.mxu0 %v1957
    %2001 = vmatprep.subr.bf16.mxu0 %v1961
    %2002 = vmatpush1.bf16.msra.mxu0 %v1960
    %2003 = vmatprep.subr.bf16.mxu0 %v1964
    %2004 = vmatpush1.bf16.msra.mxu0 %v1963
    %2005 = vmatprep.subr.bf16.mxu0 %v1967
    %2006 = vmatpush1.bf16.msra.mxu0 %v1966
    %2007 = vmatprep.subr.bf16.mxu0 %v1970
    %2008 = vmatpush1.bf16.msra.mxu0 %v1969
    %2009 = vmatprep.subr.bf16.mxu0 %v1973
    %2010 = vmatpush1.bf16.msra.mxu0 %v1972
    %2011 = vmatprep.subr.bf16.mxu0 %v1976
    %2012 = vmatpush1.bf16.msra.mxu0 %v1975
    %2013 = vmatprep.subr.bf16.mxu0 0
    %2014 = vmatpush1.bf16.msra.mxu0 0
    %2015 = vmatprep.subr.bf16.mxu0 0
    %2016 = vmatpush1.bf16.msra.mxu0 0
    %2017 = vmatprep.subr.bf16.mxu0 0
    %2018 = vmatpush1.bf16.msra.mxu0 0
    %2019 = vmatprep.subr.bf16.mxu0 0
    %2020 = vmatpush1.bf16.msra.mxu0 0
    %2021 = vmatprep.subr.bf16.mxu0 0
    %2022 = vmatpush1.bf16.msra.mxu0 0
    %2023 = vmatprep.subr.bf16.mxu0 0
    %2024 = vmatpush1.bf16.msra.mxu0 0
    %2025 = vmatprep.subr.bf16.mxu0 0
    %2026 = vmatpush1.bf16.msra.mxu0 0
    %2027 = vmatprep.subr.bf16.mxu0 0
    %2028 = vmatpush1.bf16.msra.mxu0 0
    %2029 = vmatprep.mubr.bf16.mxu0 0
    %2030 = vmatmul.mubr.bf16.gmra.mrb[0].mxu0 %v1981
    %v2031 = vpop.f32.mrb[0].mxu0
    %v2032 = vadd.f32 %v1988, %v2031
    %v2033 = vpop.f32.mrb[0].mxu0
    %v2034 = vadd.f32 %v1992, %v2033
    %v2035 = vpop.f32.mrb[0].mxu0
    %v2036 = vpop.f32.mrb[0].mxu0
    %2037 = vdwg.mxu0
    %2038 = vmatprep.subr.bf16.mxu0 0
    %2039 = vmatpush1.bf16.msra.mxu0 %v1956
    %2040 = vmatprep.subr.bf16.mxu0 0
    %2041 = vmatpush1.bf16.msra.mxu0 %v1959
    %2042 = vmatprep.subr.bf16.mxu0 0
    %2043 = vmatpush1.bf16.msra.mxu0 %v1962
    %2044 = vmatprep.subr.bf16.mxu0 0
    %2045 = vmatpush1.bf16.msra.mxu0 %v1965
    %2046 = vmatprep.subr.bf16.mxu0 0
    %2047 = vmatpush1.bf16.msra.mxu0 %v1968
    %2048 = vmatprep.subr.bf16.mxu0 0
    %2049 = vmatpush1.bf16.msra.mxu0 %v1971
    %2050 = vmatprep.subr.bf16.mxu0 0
    %2051 = vmatpush1.bf16.msra.mxu0 %v1974
    %2052 = vmatprep.subr.bf16.mxu0 0
    %2053 = vmatpush1.bf16.msra.mxu0 %v1977
    %2054 = vmatprep.subr.bf16.mxu0 0
    %2055 = vmatpush1.bf16.msra.mxu0 0
    %2056 = vmatprep.subr.bf16.mxu0 0
    %2057 = vmatpush1.bf16.msra.mxu0 0
    %2058 = vmatprep.subr.bf16.mxu0 0
    %2059 = vmatpush1.bf16.msra.mxu0 0
    %2060 = vmatprep.subr.bf16.mxu0 0
    %2061 = vmatpush1.bf16.msra.mxu0 0
    %2062 = vmatprep.subr.bf16.mxu0 0
    %2063 = vmatpush1.bf16.msra.mxu0 0
    %2064 = vmatprep.subr.bf16.mxu0 0
    %2065 = vmatpush1.bf16.msra.mxu0 0
    %2066 = vmatprep.subr.bf16.mxu0 0
    %2067 = vmatpush1.bf16.msra.mxu0 0
    %2068 = vmatprep.subr.bf16.mxu0 0
    %2069 = vmatpush1.bf16.msra.mxu0 0
    %2070 = vmatprep.mubr.bf16.mxu0 0
    %2071 = vmatmul.mubr.bf16.gmra.mrb[0].mxu0 %v1981
    %v2072 = vpop.f32.mrb[0].mxu0
    %v2073 = vadd.f32 %v1996, %v2072
    %v2074 = vpop.f32.mrb[0].mxu0
    %v2075 = vpop.f32.mrb[0].mxu0
    %v2076 = vpop.f32.mrb[0].mxu0
    %2077 = vdwg.mxu0
    %v2078 = vld [vmem:[#allocation2 + $0xd8] sm:$0xff]
    %v2079 = vld [vmem:[#allocation2 + $0xe0] sm:$0xff]
    %v2080 = vld [vmem:[#allocation2 + $0xe8] sm:$0xff]
    %v2081 = vld [vmem:[#allocation2 + $0xf0] sm:$0xff]
    %v2082 = vld [vmem:[#allocation2 + $0xf8] sm:$0xff]
    %v2083 = vld [vmem:[#allocation2 + $0x100] sm:$0xff]
    %v2084 = vld [vmem:[#allocation2 + $0x108] sm:$0xff]
    %v2085 = vld [vmem:[#allocation2 + $0x110] sm:$0xff]
    %v2086 = vld [vmem:[#allocation2 + $0x118] sm:$0xff]
    %v2087 = vld [vmem:[#allocation2 + $0x120] sm:$0xff]
    %v2088 = vld [vmem:[#allocation2 + $0x128] sm:$0xff]
    %v2089 = vld [vmem:[#allocation2 + $0x130] sm:$0xff]
    %v2090 = vld [vmem:[#allocation2 + $0x138] sm:$0xff]
    %v2091 = vld [vmem:[#allocation2 + $0x140] sm:$0xff]
    %v2092 = vld [vmem:[#allocation2 + $0x148] sm:$0xff]
    %v2093 = vld [vmem:[#allocation2 + $0x150] sm:$0xff]
    %v2094 = vld [vmem:[#allocation2 + $0x158] sm:$0xff]
    %v2095 = vld [vmem:[#allocation2 + $0x160] sm:$0xff]
    %v2096 = vld [vmem:[#allocation2 + $0x168] sm:$0xff]
    %v2097 = vld [vmem:[#allocation2 + $0x170] sm:$0xff]
    %v2098 = vld [vmem:[#allocation2 + $0x178] sm:$0xff]
    %v2099 = vld [vmem:[#allocation2 + $0x180] sm:$0xff]
    %v2100 = vld [vmem:[#allocation2 + $0x188] sm:$0xff]
    %v2101 = vld [vmem:[#allocation2 + $0x190] sm:$0xff]
    %v2102 = vld [vmem:[#allocation2 + $0x198] sm:$0x1]
    %v2103 = vld [vmem:[#allocation2 + $0x1a0] sm:$0x1]
    %v2104 = vld [vmem:[#allocation2 + $0x1a8] sm:$0x1]
    %v2105 = vpack.c.bf16 %v1504, %v1504
    %v2106 = vunpack.c.l.bf16 %v2102
    %v2107 = vunpack.c.l.bf16 %v2103
    %v2108 = vunpack.c.l.bf16 %v2104
    %v2109 = vlaneseq
    %v2110 = vshrl.u32 %v2109, 7
    %v2111 = vsub.s32 0, %v2110
    %v2112 = vrot.slane %v2106, %v2111
    %v2113 = vlaneseq
    %v2114 = vshrl.u32 %v2113, 7
    %v2115 = vsub.s32 0, %v2114
    %v2116 = vrot.slane %v2107, %v2115
    %v2117 = vlaneseq
    %v2118 = vshrl.u32 %v2117, 7
    %v2119 = vsub.s32 0, %v2118
    %v2120 = vrot.slane %v2108, %v2119
    %v2122 = vrot.slane %v2105, 3
    %2124 = vmatprep.subr.bf16.mxu0 %v2079
    %2125 = vmatpush1.bf16.msra.mxu0 %v2078
    %2126 = vmatprep.subr.bf16.mxu0 %v2082
    %2127 = vmatpush1.bf16.msra.mxu0 %v2081
    %2128 = vmatprep.subr.bf16.mxu0 %v2085
    %2129 = vmatpush1.bf16.msra.mxu0 %v2084
    %2130 = vmatprep.subr.bf16.mxu0 %v2088
    %2131 = vmatpush1.bf16.msra.mxu0 %v2087
    %2132 = vmatprep.subr.bf16.mxu0 %v2091
    %2133 = vmatpush1.bf16.msra.mxu0 %v2090
    %2134 = vmatprep.subr.bf16.mxu0 %v2094
    %2135 = vmatpush1.bf16.msra.mxu0 %v2093
    %2136 = vmatprep.subr.bf16.mxu0 %v2097
    %2137 = vmatpush1.bf16.msra.mxu0 %v2096
    %2138 = vmatprep.subr.bf16.mxu0 %v2100
    %2139 = vmatpush1.bf16.msra.mxu0 %v2099
    %2140 = vmatprep.subr.bf16.mxu0 0
    %2141 = vmatpush1.bf16.msra.mxu0 0
    %2142 = vmatprep.subr.bf16.mxu0 0
    %2143 = vmatpush1.bf16.msra.mxu0 0
    %2144 = vmatprep.subr.bf16.mxu0 0
    %2145 = vmatpush1.bf16.msra.mxu0 0
    %2146 = vmatprep.subr.bf16.mxu0 0
    %2147 = vmatpush1.bf16.msra.mxu0 0
    %2148 = vmatprep.subr.bf16.mxu0 0
    %2149 = vmatpush1.bf16.msra.mxu0 0
    %2150 = vmatprep.subr.bf16.mxu0 0
    %2151 = vmatpush1.bf16.msra.mxu0 0
    %2152 = vmatprep.subr.bf16.mxu0 0
    %2153 = vmatpush1.bf16.msra.mxu0 0
    %2154 = vmatprep.subr.bf16.mxu0 0
    %2155 = vmatpush1.bf16.msra.mxu0 0
    %2156 = vmatprep.mubr.bf16.mxu0 0
    %2157 = vmatmul.mubr.bf16.gmra.mrb[0].mxu0 %v2122
    %v2158 = vpop.f32.mrb[0].mxu0
    %v2159 = vadd.f32 %v2112, %v2158
    %v2160 = vpop.f32.mrb[0].mxu0
    %v2161 = vadd.f32 %v2116, %v2160
    %v2162 = vpop.f32.mrb[0].mxu0
    %v2163 = vpop.f32.mrb[0].mxu0
    %2164 = vdwg.mxu0
    %2165 = vmatprep.subr.bf16.mxu0 0
    %2166 = vmatpush1.bf16.msra.mxu0 %v2080
    %2167 = vmatprep.subr.bf16.mxu0 0
    %2168 = vmatpush1.bf16.msra.mxu0 %v2083
    %2169 = vmatprep.subr.bf16.mxu0 0
    %2170 = vmatpush1.bf16.msra.mxu0 %v2086
    %2171 = vmatprep.subr.bf16.mxu0 0
    %2172 = vmatpush1.bf16.msra.mxu0 %v2089
    %2173 = vmatprep.subr.bf16.mxu0 0
    %2174 = vmatpush1.bf16.msra.mxu0 %v2092
    %2175 = vmatprep.subr.bf16.mxu0 0
    %2176 = vmatpush1.bf16.msra.mxu0 %v2095
    %2177 = vmatprep.subr.bf16.mxu0 0
    %2178 = vmatpush1.bf16.msra.mxu0 %v2098
    %2179 = vmatprep.subr.bf16.mxu0 0
    %2180 = vmatpush1.bf16.msra.mxu0 %v2101
    %2181 = vmatprep.subr.bf16.mxu0 0
    %2182 = vmatpush1.bf16.msra.mxu0 0
    %2183 = vmatprep.subr.bf16.mxu0 0
    %2184 = vmatpush1.bf16.msra.mxu0 0
    %2185 = vmatprep.subr.bf16.mxu0 0
    %2186 = vmatpush1.bf16.msra.mxu0 0
    %2187 = vmatprep.subr.bf16.mxu0 0
    %2188 = vmatpush1.bf16.msra.mxu0 0
    %2189 = vmatprep.subr.bf16.mxu0 0
    %2190 = vmatpush1.bf16.msra.mxu0 0
    %2191 = vmatprep.subr.bf16.mxu0 0
    %2192 = vmatpush1.bf16.msra.mxu0 0
    %2193 = vmatprep.subr.bf16.mxu0 0
    %2194 = vmatpush1.bf16.msra.mxu0 0
    %2195 = vmatprep.subr.bf16.mxu0 0
    %2196 = vmatpush1.bf16.msra.mxu0 0
    %2197 = vmatprep.mubr.bf16.mxu0 0
    %2198 = vmatmul.mubr.bf16.gmra.mrb[0].mxu0 %v2122
    %v2199 = vpop.f32.mrb[0].mxu0
    %v2200 = vadd.f32 %v2120, %v2199
    %v2201 = vpop.f32.mrb[0].mxu0
    %v2202 = vpop.f32.mrb[0].mxu0
    %v2203 = vpop.f32.mrb[0].mxu0
    %2204 = vdwg.mxu0
    %v2205 = vadd.f32 %v2032, %v2159
    %v2206 = vxor.u32 %v2205, 2147483648
    %v2207 = vmul.f32 %v2206, 1.442695
    %v2208 = vpow.pop %v2207
    %v2209 = vadd.f32 %v2208, 1.0
    %v2210 = vrcp.pop %v2209
    %v2211 = vmul.f32 1.0, %v2210
    %v2212 = vadd.f32 %v2034, %v2161
    %v2213 = vxor.u32 %v2212, 2147483648
    %v2214 = vmul.f32 %v2213, 1.442695
    %v2215 = vpow.pop %v2214
    %v2216 = vadd.f32 %v2215, 1.0
    %v2217 = vrcp.pop %v2216
    %v2218 = vmul.f32 1.0, %v2217
    %v2219 = vmul.f32 %v2211, %v2200
    %v2220 = vadd.f32 %v2073, %v2219
    %v2221 = vtanh.pop %v2220
    %v2223 = vrot.slane %v2221, 2
    %v2225 = vsub.f32 %v1504, %v2223
    %v2227 = vrot.slane %v2225, 6
    %v2229 = vmul.f32 %v2218, %v2227
    %v2230 = vadd.f32 %v2221, %v2229
    %v2231 = vld [vmem:[#allocation3 + $0x158] sm:$0xff]
    %v2232 = vld [vmem:[#allocation3 + $0x160] sm:$0xff]
    %v2233 = vld [vmem:[#allocation3 + $0x168] sm:$0xff]
    %v2234 = vld [vmem:[#allocation3 + $0x170] sm:$0xff]
    %v2235 = vld [vmem:[#allocation3 + $0x178] sm:$0xff]
    %v2236 = vld [vmem:[#allocation3 + $0x180] sm:$0xff]
    %v2237 = vld [vmem:[#allocation3 + $0x188] sm:$0xff]
    %v2238 = vld [vmem:[#allocation3 + $0x190] sm:$0xff]
    %v2239 = vld [vmem:[#allocation3 + $0x198] sm:$0x1]
    %v2240 = vpack.c.bf16 %v2230, %v2230
    %v2241 = vunpack.c.l.bf16 %v2239
    %v2242 = vlaneseq
    %v2243 = vshrl.u32 %v2242, 7
    %v2244 = vsub.s32 0, %v2243
    %v2245 = vrot.slane %v2241, %v2244
    %2246 = vmatprep.subr.bf16.mxu0 0
    %2247 = vmatpush1.bf16.msra.mxu0 %v2231
    %2248 = vmatprep.subr.bf16.mxu0 0
    %2249 = vmatpush1.bf16.msra.mxu0 %v2232
    %2250 = vmatprep.subr.bf16.mxu0 0
    %2251 = vmatpush1.bf16.msra.mxu0 %v2233
    %2252 = vmatprep.subr.bf16.mxu0 0
    %2253 = vmatpush1.bf16.msra.mxu0 %v2234
    %2254 = vmatprep.subr.bf16.mxu0 0
    %2255 = vmatpush1.bf16.msra.mxu0 %v2235
    %2256 = vmatprep.subr.bf16.mxu0 0
    %2257 = vmatpush1.bf16.msra.mxu0 %v2236
    %2258 = vmatprep.subr.bf16.mxu0 0
    %2259 = vmatpush1.bf16.msra.mxu0 %v2237
    %2260 = vmatprep.subr.bf16.mxu0 0
    %2261 = vmatpush1.bf16.msra.mxu0 %v2238
    %2262 = vmatprep.subr.bf16.mxu0 0
    %2263 = vmatpush1.bf16.msra.mxu0 0
    %2264 = vmatprep.subr.bf16.mxu0 0
    %2265 = vmatpush1.bf16.msra.mxu0 0
    %2266 = vmatprep.subr.bf16.mxu0 0
    %2267 = vmatpush1.bf16.msra.mxu0 0
    %2268 = vmatprep.subr.bf16.mxu0 0
    %2269 = vmatpush1.bf16.msra.mxu0 0
    %2270 = vmatprep.subr.bf16.mxu0 0
    %2271 = vmatpush1.bf16.msra.mxu0 0
    %2272 = vmatprep.subr.bf16.mxu0 0
    %2273 = vmatpush1.bf16.msra.mxu0 0
    %2274 = vmatprep.subr.bf16.mxu0 0
    %2275 = vmatpush1.bf16.msra.mxu0 0
    %2276 = vmatprep.subr.bf16.mxu0 0
    %2277 = vmatpush1.bf16.msra.mxu0 0
    %2278 = vmatprep.mubr.bf16.mxu0 0
    %2279 = vmatmul.mubr.bf16.gmra.mrb[0].mxu0 %v2240
    %v2280 = vpop.f32.mrb[0].mxu0
    %v2281 = vadd.f32 %v2245, %v2280
    %v2282 = vpop.f32.mrb[0].mxu0
    %v2283 = vpop.f32.mrb[0].mxu0
    %v2284 = vpop.f32.mrb[0].mxu0
    %2285 = vdwg.mxu0
    %v2286 = vtanh.pop %v2281
    %v2287 = vpack.c.bf16 %v2286, %v2286
    %2288 = vmatprep.subr.bf16.mxu0 0
    %2289 = vmatpush1.bf16.msra.mxu0 %v1716
    %2290 = vmatprep.subr.bf16.mxu0 0
    %2291 = vmatpush1.bf16.msra.mxu0 %v1717
    %2292 = vmatprep.subr.bf16.mxu0 0
    %2293 = vmatpush1.bf16.msra.mxu0 %v1718
    %2294 = vmatprep.subr.bf16.mxu0 0
    %2295 = vmatpush1.bf16.msra.mxu0 %v1719
    %2296 = vmatprep.subr.bf16.mxu0 0
    %2297 = vmatpush1.bf16.msra.mxu0 %v1720
    %2298 = vmatprep.subr.bf16.mxu0 0
    %2299 = vmatpush1.bf16.msra.mxu0 %v1721
    %2300 = vmatprep.subr.bf16.mxu0 0
    %2301 = vmatpush1.bf16.msra.mxu0 %v1722
    %2302 = vmatprep.subr.bf16.mxu0 0
    %2303 = vmatpush1.bf16.msra.mxu0 %v1723
    %2304 = vmatprep.subr.bf16.mxu0 0
    %2305 = vmatpush1.bf16.msra.mxu0 0
    %2306 = vmatprep.subr.bf16.mxu0 0
    %2307 = vmatpush1.bf16.msra.mxu0 0
    %2308 = vmatprep.subr.bf16.mxu0 0
    %2309 = vmatpush1.bf16.msra.mxu0 0
    %2310 = vmatprep.subr.bf16.mxu0 0
    %2311 = vmatpush1.bf16.msra.mxu0 0
    %2312 = vmatprep.subr.bf16.mxu0 0
    %2313 = vmatpush1.bf16.msra.mxu0 0
    %2314 = vmatprep.subr.bf16.mxu0 0
    %2315 = vmatpush1.bf16.msra.mxu0 0
    %2316 = vmatprep.subr.bf16.mxu0 0
    %2317 = vmatpush1.bf16.msra.mxu0 0
    %2318 = vmatprep.subr.bf16.mxu0 0
    %2319 = vmatpush1.bf16.msra.mxu0 0
    %2320 = vmatprep.mubr.bf16.mxu0 0
    %2321 = vmatmul.mubr.bf16.gmra.mrb[0].mxu0 %v2287
    %v2322 = vpop.f32.mrb[0].mxu0
    %v2323 = vadd.f32 %v1729, %v2322
    %v2324 = vpop.f32.mrb[0].mxu0
    %v2325 = vpop.f32.mrb[0].mxu0
    %v2326 = vpop.f32.mrb[0].mxu0
    %2327 = vdwg.mxu0
    %v2328 = vpack.c.bf16 %v2323, %v2323
    %2329 = vmatprep.subr.bf16.mxu0 0
    %2330 = vmatpush1.bf16.msra.mxu0 %v1772
    %2331 = vmatprep.subr.bf16.mxu0 0
    %2332 = vmatpush1.bf16.msra.mxu0 %v1773
    %2333 = vmatprep.subr.bf16.mxu0 0
    %2334 = vmatpush1.bf16.msra.mxu0 %v1774
    %2335 = vmatprep.subr.bf16.mxu0 0
    %2336 = vmatpush1.bf16.msra.mxu0 %v1775
    %2337 = vmatprep.subr.bf16.mxu0 0
    %2338 = vmatpush1.bf16.msra.mxu0 %v1776
    %2339 = vmatprep.subr.bf16.mxu0 0
    %2340 = vmatpush1.bf16.msra.mxu0 %v1777
    %2341 = vmatprep.subr.bf16.mxu0 0
    %2342 = vmatpush1.bf16.msra.mxu0 %v1778
    %2343 = vmatprep.subr.bf16.mxu0 0
    %2344 = vmatpush1.bf16.msra.mxu0 %v1779
    %2345 = vmatprep.subr.bf16.mxu0 0
    %2346 = vmatpush1.bf16.msra.mxu0 %v1780
    %2347 = vmatprep.subr.bf16.mxu0 0
    %2348 = vmatpush1.bf16.msra.mxu0 %v1781
    %2349 = vmatprep.subr.bf16.mxu0 0
    %2350 = vmatpush1.bf16.msra.mxu0 %v1782
    %2351 = vmatprep.subr.bf16.mxu0 0
    %2352 = vmatpush1.bf16.msra.mxu0 %v1783
    %2353 = vmatprep.subr.bf16.mxu0 0
    %2354 = vmatpush1.bf16.msra.mxu0 %v1784
    %2355 = vmatprep.subr.bf16.mxu0 0
    %2356 = vmatpush1.bf16.msra.mxu0 %v1785
    %2357 = vmatprep.subr.bf16.mxu0 0
    %2358 = vmatpush1.bf16.msra.mxu0 %v1786
    %2359 = vmatprep.subr.bf16.mxu0 0
    %2360 = vmatpush1.bf16.msra.mxu0 %v1787
    %2361 = vmatprep.mubr.bf16.mxu0 %v2240
    %2362 = vmatmul.mubr.bf16.gmra.mrb[0].mxu0 %v2328
    %v2363 = vpop.f32.mrb[0].mxu0
    %v2364 = vadd.f32 %v1795, %v2363
    %v2365 = vpop.f32.mrb[0].mxu0
    %v2366 = vpop.f32.mrb[0].mxu0
    %v2367 = vpop.f32.mrb[0].mxu0
    %2368 = vdwg.mxu0
    %v2369 = vsel %vm1528, %v2364, -inf
    %2370 = vmax.xlane.f32.xlu0 %v2369
    %v2371 = vpop.xlane.xlu0 %2370
    %v2372 = vsub.f32 %v2364, %v2371
    %v2373 = vmul.f32 %v2372, 1.442695
    %v2374 = vpow.pop %v2373
    %v2375 = vsel %vm1528, %v2374, 0.0
    %2376 = vadd.xlane.f32.xlu0 %v2375
    %v2377 = vpop.xlane.xlu0 %2376
    %v2378 = vrcp.pop %v2377
    %v2379 = vmul.f32 %v2374, %v2378
    %v2380 = vpack.c.bf16 %v2379, %v2379
    %2381 = vmatprep.subr.bf16.mxu0 0
    %2382 = vmatpush1.bf16.msra.mxu0 %v1848
    %2383 = vmatprep.subr.bf16.mxu0 0
    %2384 = vmatpush1.bf16.msra.mxu0 %v1849
    %2385 = vmatprep.subr.bf16.mxu0 0
    %2386 = vmatpush1.bf16.msra.mxu0 %v1849
    %2387 = vmatprep.subr.bf16.mxu0 0
    %2388 = vmatpush1.bf16.msra.mxu0 %v1849
    %2389 = vmatprep.subr.bf16.mxu0 0
    %2390 = vmatpush1.bf16.msra.mxu0 %v1849
    %2391 = vmatprep.subr.bf16.mxu0 0
    %2392 = vmatpush1.bf16.msra.mxu0 %v1849
    %2393 = vmatprep.subr.bf16.mxu0 0
    %2394 = vmatpush1.bf16.msra.mxu0 %v1849
    %2395 = vmatprep.subr.bf16.mxu0 0
    %2396 = vmatpush1.bf16.msra.mxu0 %v1849
    %2397 = vmatprep.subr.bf16.mxu0 0
    %2398 = vmatpush1.bf16.msra.mxu0 0
    %2399 = vmatprep.subr.bf16.mxu0 0
    %2400 = vmatpush1.bf16.msra.mxu0 0
    %2401 = vmatprep.subr.bf16.mxu0 0
    %2402 = vmatpush1.bf16.msra.mxu0 0
    %2403 = vmatprep.subr.bf16.mxu0 0
    %2404 = vmatpush1.bf16.msra.mxu0 0
    %2405 = vmatprep.subr.bf16.mxu0 0
    %2406 = vmatpush1.bf16.msra.mxu0 0
    %2407 = vmatprep.subr.bf16.mxu0 0
    %2408 = vmatpush1.bf16.msra.mxu0 0
    %2409 = vmatprep.subr.bf16.mxu0 0
    %2410 = vmatpush1.bf16.msra.mxu0 0
    %2411 = vmatprep.subr.bf16.mxu0 0
    %2412 = vmatpush1.bf16.msra.mxu0 0
    %2413 = vmatprep.mubr.bf16.mxu0 0
    %2414 = vmatmul.mubr.bf16.gmra.mrb[0].mxu0 %v2380
    %v2415 = vpop.f32.mrb[0].mxu0
    %v2416 = vadd.f32 0.0, %v2415
    %v2417 = vpop.f32.mrb[0].mxu0
    %v2418 = vpop.f32.mrb[0].mxu0
    %v2419 = vpop.f32.mrb[0].mxu0
    %2420 = vdwg.mxu0
    %v2421 = vpack.c.bf16 %v2416, %v2416
    %2422 = vmatprep.subr.bf16.mxu0 0
    %2423 = vmatpush1.bf16.msra.mxu0 %v1890
    %2424 = vmatprep.subr.bf16.mxu0 0
    %2425 = vmatpush1.bf16.msra.mxu0 %v1891
    %2426 = vmatprep.subr.bf16.mxu0 0
    %2427 = vmatpush1.bf16.msra.mxu0 %v1892
    %2428 = vmatprep.subr.bf16.mxu0 0
    %2429 = vmatpush1.bf16.msra.mxu0 %v1893
    %2430 = vmatprep.subr.bf16.mxu0 0
    %2431 = vmatpush1.bf16.msra.mxu0 %v1894
    %2432 = vmatprep.subr.bf16.mxu0 0
    %2433 = vmatpush1.bf16.msra.mxu0 %v1895
    %2434 = vmatprep.subr.bf16.mxu0 0
    %2435 = vmatpush1.bf16.msra.mxu0 %v1896
    %2436 = vmatprep.subr.bf16.mxu0 0
    %2437 = vmatpush1.bf16.msra.mxu0 %v1897
    %2438 = vmatprep.subr.bf16.mxu0 0
    %2439 = vmatpush1.bf16.msra.mxu0 %v1898
    %2440 = vmatprep.subr.bf16.mxu0 0
    %2441 = vmatpush1.bf16.msra.mxu0 %v1899
    %2442 = vmatprep.subr.bf16.mxu0 0
    %2443 = vmatpush1.bf16.msra.mxu0 %v1900
    %2444 = vmatprep.subr.bf16.mxu0 0
    %2445 = vmatpush1.bf16.msra.mxu0 %v1901
    %2446 = vmatprep.subr.bf16.mxu0 0
    %2447 = vmatpush1.bf16.msra.mxu0 %v1902
    %2448 = vmatprep.subr.bf16.mxu0 0
    %2449 = vmatpush1.bf16.msra.mxu0 %v1903
    %2450 = vmatprep.subr.bf16.mxu0 0
    %2451 = vmatpush1.bf16.msra.mxu0 %v1904
    %2452 = vmatprep.subr.bf16.mxu0 0
    %2453 = vmatpush1.bf16.msra.mxu0 %v1905
    %2454 = vmatprep.mubr.bf16.mxu0 %v2421
    %2455 = vmatmul.mubr.bf16.gmra.mrb[0].mxu0 %v2328
    %v2456 = vpop.f32.mrb[0].mxu0
    %v2457 = vadd.f32 %v1912, %v2456
    %v2458 = vpop.f32.mrb[0].mxu0
    %v2459 = vpop.f32.mrb[0].mxu0
    %v2460 = vpop.f32.mrb[0].mxu0
    %2461 = vdwg.mxu0
    %v2462 = vtanh.pop %v2457
    %v2463 = vpack.c.bf16 %v2462, %v2462
    %2464 = vmatprep.subr.bf16.mxu0 %v1955
    %2465 = vmatpush1.bf16.msra.mxu0 %v1954
    %2466 = vmatprep.subr.bf16.mxu0 %v1958
    %2467 = vmatpush1.bf16.msra.mxu0 %v1957
    %2468 = vmatprep.subr.bf16.mxu0 %v1961
    %2469 = vmatpush1.bf16.msra.mxu0 %v1960
    %2470 = vmatprep.subr.bf16.mxu0 %v1964
    %2471 = vmatpush1.bf16.msra.mxu0 %v1963
    %2472 = vmatprep.subr.bf16.mxu0 %v1967
    %2473 = vmatpush1.bf16.msra.mxu0 %v1966
    %2474 = vmatprep.subr.bf16.mxu0 %v1970
    %2475 = vmatpush1.bf16.msra.mxu0 %v1969
    %2476 = vmatprep.subr.bf16.mxu0 %v1973
    %2477 = vmatpush1.bf16.msra.mxu0 %v1972
    %2478 = vmatprep.subr.bf16.mxu0 %v1976
    %2479 = vmatpush1.bf16.msra.mxu0 %v1975
    %2480 = vmatprep.subr.bf16.mxu0 0
    %2481 = vmatpush1.bf16.msra.mxu0 0
    %2482 = vmatprep.subr.bf16.mxu0 0
    %2483 = vmatpush1.bf16.msra.mxu0 0
    %2484 = vmatprep.subr.bf16.mxu0 0
    %2485 = vmatpush1.bf16.msra.mxu0 0
    %2486 = vmatprep.subr.bf16.mxu0 0
    %2487 = vmatpush1.bf16.msra.mxu0 0
    %2488 = vmatprep.subr.bf16.mxu0 0
    %2489 = vmatpush1.bf16.msra.mxu0 0
    %2490 = vmatprep.subr.bf16.mxu0 0
    %2491 = vmatpush1.bf16.msra.mxu0 0
    %2492 = vmatprep.subr.bf16.mxu0 0
    %2493 = vmatpush1.bf16.msra.mxu0 0
    %2494 = vmatprep.subr.bf16.mxu0 0
    %2495 = vmatpush1.bf16.msra.mxu0 0
    %2496 = vmatprep.mubr.bf16.mxu0 0
    %2497 = vmatmul.mubr.bf16.gmra.mrb[0].mxu0 %v2463
    %v2498 = vpop.f32.mrb[0].mxu0
    %v2499 = vadd.f32 %v1988, %v2498
    %v2500 = vpop.f32.mrb[0].mxu0
    %v2501 = vadd.f32 %v1992, %v2500
    %v2502 = vpop.f32.mrb[0].mxu0
    %v2503 = vpop.f32.mrb[0].mxu0
    %2504 = vdwg.mxu0
    %2505 = vmatprep.subr.bf16.mxu0 0
    %2506 = vmatpush1.bf16.msra.mxu0 %v1956
    %2507 = vmatprep.subr.bf16.mxu0 0
    %2508 = vmatpush1.bf16.msra.mxu0 %v1959
    %2509 = vmatprep.subr.bf16.mxu0 0
    %2510 = vmatpush1.bf16.msra.mxu0 %v1962
    %2511 = vmatprep.subr.bf16.mxu0 0
    %2512 = vmatpush1.bf16.msra.mxu0 %v1965
    %2513 = vmatprep.subr.bf16.mxu0 0
    %2514 = vmatpush1.bf16.msra.mxu0 %v1968
    %2515 = vmatprep.subr.bf16.mxu0 0
    %2516 = vmatpush1.bf16.msra.mxu0 %v1971
    %2517 = vmatprep.subr.bf16.mxu0 0
    %2518 = vmatpush1.bf16.msra.mxu0 %v1974
    %2519 = vmatprep.subr.bf16.mxu0 0
    %2520 = vmatpush1.bf16.msra.mxu0 %v1977
    %2521 = vmatprep.subr.bf16.mxu0 0
    %2522 = vmatpush1.bf16.msra.mxu0 0
    %2523 = vmatprep.subr.bf16.mxu0 0
    %2524 = vmatpush1.bf16.msra.mxu0 0
    %2525 = vmatprep.subr.bf16.mxu0 0
    %2526 = vmatpush1.bf16.msra.mxu0 0
    %2527 = vmatprep.subr.bf16.mxu0 0
    %2528 = vmatpush1.bf16.msra.mxu0 0
    %2529 = vmatprep.subr.bf16.mxu0 0
    %2530 = vmatpush1.bf16.msra.mxu0 0
    %2531 = vmatprep.subr.bf16.mxu0 0
    %2532 = vmatpush1.bf16.msra.mxu0 0
    %2533 = vmatprep.subr.bf16.mxu0 0
    %2534 = vmatpush1.bf16.msra.mxu0 0
    %2535 = vmatprep.subr.bf16.mxu0 0
    %2536 = vmatpush1.bf16.msra.mxu0 0
    %2537 = vmatprep.mubr.bf16.mxu0 0
    %2538 = vmatmul.mubr.bf16.gmra.mrb[0].mxu0 %v2463
    %v2539 = vpop.f32.mrb[0].mxu0
    %v2540 = vadd.f32 %v1996, %v2539
    %v2541 = vpop.f32.mrb[0].mxu0
    %v2542 = vpop.f32.mrb[0].mxu0
    %v2543 = vpop.f32.mrb[0].mxu0
    %2544 = vdwg.mxu0
    %2545 = vmatprep.subr.bf16.mxu0 %v2079
    %2546 = vmatpush1.bf16.msra.mxu0 %v2078
    %2547 = vmatprep.subr.bf16.mxu0 %v2082
    %2548 = vmatpush1.bf16.msra.mxu0 %v2081
    %2549 = vmatprep.subr.bf16.mxu0 %v2085
    %2550 = vmatpush1.bf16.msra.mxu0 %v2084
    %2551 = vmatprep.subr.bf16.mxu0 %v2088
    %2552 = vmatpush1.bf16.msra.mxu0 %v2087
    %2553 = vmatprep.subr.bf16.mxu0 %v2091
    %2554 = vmatpush1.bf16.msra.mxu0 %v2090
    %2555 = vmatprep.subr.bf16.mxu0 %v2094
    %2556 = vmatpush1.bf16.msra.mxu0 %v2093
    %2557 = vmatprep.subr.bf16.mxu0 %v2097
    %2558 = vmatpush1.bf16.msra.mxu0 %v2096
    %2559 = vmatprep.subr.bf16.mxu0 %v2100
    %2560 = vmatpush1.bf16.msra.mxu0 %v2099
    %2561 = vmatprep.subr.bf16.mxu0 0
    %2562 = vmatpush1.bf16.msra.mxu0 0
    %2563 = vmatprep.subr.bf16.mxu0 0
    %2564 = vmatpush1.bf16.msra.mxu0 0
    %2565 = vmatprep.subr.bf16.mxu0 0
    %2566 = vmatpush1.bf16.msra.mxu0 0
    %2567 = vmatprep.subr.bf16.mxu0 0
    %2568 = vmatpush1.bf16.msra.mxu0 0
    %2569 = vmatprep.subr.bf16.mxu0 0
    %2570 = vmatpush1.bf16.msra.mxu0 0
    %2571 = vmatprep.subr.bf16.mxu0 0
    %2572 = vmatpush1.bf16.msra.mxu0 0
    %2573 = vmatprep.subr.bf16.mxu0 0
    %2574 = vmatpush1.bf16.msra.mxu0 0
    %2575 = vmatprep.subr.bf16.mxu0 0
    %2576 = vmatpush1.bf16.msra.mxu0 0
    %2577 = vmatprep.mubr.bf16.mxu0 0
    %2578 = vmatmul.mubr.bf16.gmra.mrb[0].mxu0 %v2240
    %v2579 = vpop.f32.mrb[0].mxu0
    %v2580 = vadd.f32 %v2112, %v2579
    %v2581 = vpop.f32.mrb[0].mxu0
    %v2582 = vadd.f32 %v2116, %v2581
    %v2583 = vpop.f32.mrb[0].mxu0
    %v2584 = vpop.f32.mrb[0].mxu0
    %2585 = vdwg.mxu0
    %2586 = vmatprep.subr.bf16.mxu0 0
    %2587 = vmatpush1.bf16.msra.mxu0 %v2080
    %2588 = vmatprep.subr.bf16.mxu0 0
    %2589 = vmatpush1.bf16.msra.mxu0 %v2083
    %2590 = vmatprep.subr.bf16.mxu0 0
    %2591 = vmatpush1.bf16.msra.mxu0 %v2086
    %2592 = vmatprep.subr.bf16.mxu0 0
    %2593 = vmatpush1.bf16.msra.mxu0 %v2089
    %2594 = vmatprep.subr.bf16.mxu0 0
    %2595 = vmatpush1.bf16.msra.mxu0 %v2092
    %2596 = vmatprep.subr.bf16.mxu0 0
    %2597 = vmatpush1.bf16.msra.mxu0 %v2095
    %2598 = vmatprep.subr.bf16.mxu0 0
    %2599 = vmatpush1.bf16.msra.mxu0 %v2098
    %2600 = vmatprep.subr.bf16.mxu0 0
    %2601 = vmatpush1.bf16.msra.mxu0 %v2101
    %2602 = vmatprep.subr.bf16.mxu0 0
    %2603 = vmatpush1.bf16.msra.mxu0 0
    %2604 = vmatprep.subr.bf16.mxu0 0
    %2605 = vmatpush1.bf16.msra.mxu0 0
    %2606 = vmatprep.subr.bf16.mxu0 0
    %2607 = vmatpush1.bf16.msra.mxu0 0
    %2608 = vmatprep.subr.bf16.mxu0 0
    %2609 = vmatpush1.bf16.msra.mxu0 0
    %2610 = vmatprep.subr.bf16.mxu0 0
    %2611 = vmatpush1.bf16.msra.mxu0 0
    %2612 = vmatprep.subr.bf16.mxu0 0
    %2613 = vmatpush1.bf16.msra.mxu0 0
    %2614 = vmatprep.subr.bf16.mxu0 0
    %2615 = vmatpush1.bf16.msra.mxu0 0
    %2616 = vmatprep.subr.bf16.mxu0 0
    %2617 = vmatpush1.bf16.msra.mxu0 0
    %2618 = vmatprep.mubr.bf16.mxu0 0
    %2619 = vmatmul.mubr.bf16.gmra.mrb[0].mxu0 %v2240
    %v2620 = vpop.f32.mrb[0].mxu0
    %v2621 = vadd.f32 %v2120, %v2620
    %v2622 = vpop.f32.mrb[0].mxu0
    %v2623 = vpop.f32.mrb[0].mxu0
    %v2624 = vpop.f32.mrb[0].mxu0
    %2625 = vdwg.mxu0
    %v2626 = vadd.f32 %v2499, %v2580
    %v2627 = vxor.u32 %v2626, 2147483648
    %v2628 = vmul.f32 %v2627, 1.442695
    %v2629 = vpow.pop %v2628
    %v2630 = vadd.f32 %v2629, 1.0
    %v2631 = vrcp.pop %v2630
    %v2632 = vmul.f32 1.0, %v2631
    %v2633 = vadd.f32 %v2501, %v2582
    %v2634 = vxor.u32 %v2633, 2147483648
    %v2635 = vmul.f32 %v2634, 1.442695
    %v2636 = vpow.pop %v2635
    %v2637 = vadd.f32 %v2636, 1.0
    %v2638 = vrcp.pop %v2637
    %v2639 = vmul.f32 1.0, %v2638
    %v2640 = vmul.f32 %v2632, %v2621
    %v2641 = vadd.f32 %v2540, %v2640
    %v2642 = vtanh.pop %v2641
    %v2643 = vsub.f32 %v2230, %v2642
    %v2644 = vmul.f32 %v2639, %v2643
    %v2645 = vadd.f32 %v2642, %v2644
    %v2646 = vpack.c.bf16 %v2645, %v2645
    %2647 = vmatprep.subr.bf16.mxu0 0
    %2648 = vmatpush1.bf16.msra.mxu0 %v2231
    %2649 = vmatprep.subr.bf16.mxu0 0
    %2650 = vmatpush1.bf16.msra.mxu0 %v2232
    %2651 = vmatprep.subr.bf16.mxu0 0
    %2652 = vmatpush1.bf16.msra.mxu0 %v2233
    %2653 = vmatprep.subr.bf16.mxu0 0
    %2654 = vmatpush1.bf16.msra.mxu0 %v2234
    %2655 = vmatprep.subr.bf16.mxu0 0
    %2656 = vmatpush1.bf16.msra.mxu0 %v2235
    %2657 = vmatprep.subr.bf16.mxu0 0
    %2658 = vmatpush1.bf16.msra.mxu0 %v2236
    %2659 = vmatprep.subr.bf16.mxu0 0
    %2660 = vmatpush1.bf16.msra.mxu0 %v2237
    %2661 = vmatprep.subr.bf16.mxu0 0
    %2662 = vmatpush1.bf16.msra.mxu0 %v2238
    %2663 = vmatprep.subr.bf16.mxu0 0
    %2664 = vmatpush1.bf16.msra.mxu0 0
    %2665 = vmatprep.subr.bf16.mxu0 0
    %2666 = vmatpush1.bf16.msra.mxu0 0
    %2667 = vmatprep.subr.bf16.mxu0 0
    %2668 = vmatpush1.bf16.msra.mxu0 0
    %2669 = vmatprep.subr.bf16.mxu0 0
    %2670 = vmatpush1.bf16.msra.mxu0 0
    %2671 = vmatprep.subr.bf16.mxu0 0
    %2672 = vmatpush1.bf16.msra.mxu0 0
    %2673 = vmatprep.subr.bf16.mxu0 0
    %2674 = vmatpush1.bf16.msra.mxu0 0
    %2675 = vmatprep.subr.bf16.mxu0 0
    %2676 = vmatpush1.bf16.msra.mxu0 0
    %2677 = vmatprep.subr.bf16.mxu0 0
    %2678 = vmatpush1.bf16.msra.mxu0 0
    %2679 = vmatprep.mubr.bf16.mxu0 0
    %2680 = vmatmul.mubr.bf16.gmra.mrb[0].mxu0 %v2646
    %v2681 = vpop.f32.mrb[0].mxu0
    %v2682 = vadd.f32 %v2245, %v2681
    %v2683 = vpop.f32.mrb[0].mxu0
    %v2684 = vpop.f32.mrb[0].mxu0
    %v2685 = vpop.f32.mrb[0].mxu0
    %2686 = vdwg.mxu0
    %v2687 = vtanh.pop %v2682
    %v2688 = vpack.c.bf16 %v2687, %v2687
    %2689 = vmatprep.subr.bf16.mxu0 0
    %2690 = vmatpush1.bf16.msra.mxu0 %v1716
    %2691 = vmatprep.subr.bf16.mxu0 0
    %2692 = vmatpush1.bf16.msra.mxu0 %v1717
    %2693 = vmatprep.subr.bf16.mxu0 0
    %2694 = vmatpush1.bf16.msra.mxu0 %v1718
    %2695 = vmatprep.subr.bf16.mxu0 0
    %2696 = vmatpush1.bf16.msra.mxu0 %v1719
    %2697 = vmatprep.subr.bf16.mxu0 0
    %2698 = vmatpush1.bf16.msra.mxu0 %v1720
    %2699 = vmatprep.subr.bf16.mxu0 0
    %2700 = vmatpush1.bf16.msra.mxu0 %v1721
    %2701 = vmatprep.subr.bf16.mxu0 0
    %2702 = vmatpush1.bf16.msra.mxu0 %v1722
    %2703 = vmatprep.subr.bf16.mxu0 0
    %2704 = vmatpush1.bf16.msra.mxu0 %v1723
    %2705 = vmatprep.subr.bf16.mxu0 0
    %2706 = vmatpush1.bf16.msra.mxu0 0
    %2707 = vmatprep.subr.bf16.mxu0 0
    %2708 = vmatpush1.bf16.msra.mxu0 0
    %2709 = vmatprep.subr.bf16.mxu0 0
    %2710 = vmatpush1.bf16.msra.mxu0 0
    %2711 = vmatprep.subr.bf16.mxu0 0
    %2712 = vmatpush1.bf16.msra.mxu0 0
    %2713 = vmatprep.subr.bf16.mxu0 0
    %2714 = vmatpush1.bf16.msra.mxu0 0
    %2715 = vmatprep.subr.bf16.mxu0 0
    %2716 = vmatpush1.bf16.msra.mxu0 0
    %2717 = vmatprep.subr.bf16.mxu0 0
    %2718 = vmatpush1.bf16.msra.mxu0 0
    %2719 = vmatprep.subr.bf16.mxu0 0
    %2720 = vmatpush1.bf16.msra.mxu0 0
    %2721 = vmatprep.mubr.bf16.mxu0 0
    %2722 = vmatmul.mubr.bf16.gmra.mrb[0].mxu0 %v2688
    %v2723 = vpop.f32.mrb[0].mxu0
    %v2724 = vadd.f32 %v1729, %v2723
    %v2725 = vpop.f32.mrb[0].mxu0
    %v2726 = vpop.f32.mrb[0].mxu0
    %v2727 = vpop.f32.mrb[0].mxu0
    %2728 = vdwg.mxu0
    %v2729 = vpack.c.bf16 %v2724, %v2724
    %2730 = vmatprep.subr.bf16.mxu0 0
    %2731 = vmatpush1.bf16.msra.mxu0 %v1772
    %2732 = vmatprep.subr.bf16.mxu0 0
    %2733 = vmatpush1.bf16.msra.mxu0 %v1773
    %2734 = vmatprep.subr.bf16.mxu0 0
    %2735 = vmatpush1.bf16.msra.mxu0 %v1774
    %2736 = vmatprep.subr.bf16.mxu0 0
    %2737 = vmatpush1.bf16.msra.mxu0 %v1775
    %2738 = vmatprep.subr.bf16.mxu0 0
    %2739 = vmatpush1.bf16.msra.mxu0 %v1776
    %2740 = vmatprep.subr.bf16.mxu0 0
    %2741 = vmatpush1.bf16.msra.mxu0 %v1777
    %2742 = vmatprep.subr.bf16.mxu0 0
    %2743 = vmatpush1.bf16.msra.mxu0 %v1778
    %2744 = vmatprep.subr.bf16.mxu0 0
    %2745 = vmatpush1.bf16.msra.mxu0 %v1779
    %2746 = vmatprep.subr.bf16.mxu0 0
    %2747 = vmatpush1.bf16.msra.mxu0 %v1780
    %2748 = vmatprep.subr.bf16.mxu0 0
    %2749 = vmatpush1.bf16.msra.mxu0 %v1781
    %2750 = vmatprep.subr.bf16.mxu0 0
    %2751 = vmatpush1.bf16.msra.mxu0 %v1782
    %2752 = vmatprep.subr.bf16.mxu0 0
    %2753 = vmatpush1.bf16.msra.mxu0 %v1783
    %2754 = vmatprep.subr.bf16.mxu0 0
    %2755 = vmatpush1.bf16.msra.mxu0 %v1784
    %2756 = vmatprep.subr.bf16.mxu0 0
    %2757 = vmatpush1.bf16.msra.mxu0 %v1785
    %2758 = vmatprep.subr.bf16.mxu0 0
    %2759 = vmatpush1.bf16.msra.mxu0 %v1786
    %2760 = vmatprep.subr.bf16.mxu0 0
    %2761 = vmatpush1.bf16.msra.mxu0 %v1787
    %2762 = vmatprep.mubr.bf16.mxu0 %v2646
    %2763 = vmatmul.mubr.bf16.gmra.mrb[0].mxu0 %v2729
    %v2764 = vpop.f32.mrb[0].mxu0
    %v2765 = vadd.f32 %v1795, %v2764
    %v2766 = vpop.f32.mrb[0].mxu0
    %v2767 = vpop.f32.mrb[0].mxu0
    %v2768 = vpop.f32.mrb[0].mxu0
    %2769 = vdwg.mxu0
    %v2770 = vsel %vm1528, %v2765, -inf
    %2771 = vmax.xlane.f32.xlu0 %v2770
    %v2772 = vpop.xlane.xlu0 %2771
    %v2773 = vsub.f32 %v2765, %v2772
    %v2774 = vmul.f32 %v2773, 1.442695
    %v2775 = vpow.pop %v2774
    %v2776 = vsel %vm1528, %v2775, 0.0
    %2777 = vadd.xlane.f32.xlu0 %v2776
    %v2778 = vpop.xlane.xlu0 %2777
    %v2779 = vrcp.pop %v2778
    %v2780 = vmul.f32 %v2775, %v2779
    %v2781 = vpack.c.bf16 %v2780, %v2780
    %2782 = vmatprep.subr.bf16.mxu0 0
    %2783 = vmatpush1.bf16.msra.mxu0 %v1848
    %2784 = vmatprep.subr.bf16.mxu0 0
    %2785 = vmatpush1.bf16.msra.mxu0 %v1849
    %2786 = vmatprep.subr.bf16.mxu0 0
    %2787 = vmatpush1.bf16.msra.mxu0 %v1849
    %2788 = vmatprep.subr.bf16.mxu0 0
    %2789 = vmatpush1.bf16.msra.mxu0 %v1849
    %2790 = vmatprep.subr.bf16.mxu0 0
    %2791 = vmatpush1.bf16.msra.mxu0 %v1849
    %2792 = vmatprep.subr.bf16.mxu0 0
    %2793 = vmatpush1.bf16.msra.mxu0 %v1849
    %2794 = vmatprep.subr.bf16.mxu0 0
    %2795 = vmatpush1.bf16.msra.mxu0 %v1849
    %2796 = vmatprep.subr.bf16.mxu0 0
    %2797 = vmatpush1.bf16.msra.mxu0 %v1849
    %2798 = vmatprep.subr.bf16.mxu0 0
    %2799 = vmatpush1.bf16.msra.mxu0 0
    %2800 = vmatprep.subr.bf16.mxu0 0
    %2801 = vmatpush1.bf16.msra.mxu0 0
    %2802 = vmatprep.subr.bf16.mxu0 0
    %2803 = vmatpush1.bf16.msra.mxu0 0
    %2804 = vmatprep.subr.bf16.mxu0 0
    %2805 = vmatpush1.bf16.msra.mxu0 0
    %2806 = vmatprep.subr.bf16.mxu0 0
    %2807 = vmatpush1.bf16.msra.mxu0 0
    %2808 = vmatprep.subr.bf16.mxu0 0
    %2809 = vmatpush1.bf16.msra.mxu0 0
    %2810 = vmatprep.subr.bf16.mxu0 0
    %2811 = vmatpush1.bf16.msra.mxu0 0
    %2812 = vmatprep.subr.bf16.mxu0 0
    %2813 = vmatpush1.bf16.msra.mxu0 0
    %2814 = vmatprep.mubr.bf16.mxu0 0
    %2815 = vmatmul.mubr.bf16.gmra.mrb[0].mxu0 %v2781
    %v2816 = vpop.f32.mrb[0].mxu0
    %v2817 = vadd.f32 0.0, %v2816
    %v2818 = vpop.f32.mrb[0].mxu0
    %v2819 = vpop.f32.mrb[0].mxu0
    %v2820 = vpop.f32.mrb[0].mxu0
    %2821 = vdwg.mxu0
    %v2822 = vpack.c.bf16 %v2817, %v2817
    %2823 = vmatprep.subr.bf16.mxu0 0
    %2824 = vmatpush1.bf16.msra.mxu0 %v1890
    %2825 = vmatprep.subr.bf16.mxu0 0
    %2826 = vmatpush1.bf16.msra.mxu0 %v1891
    %2827 = vmatprep.subr.bf16.mxu0 0
    %2828 = vmatpush1.bf16.msra.mxu0 %v1892
    %2829 = vmatprep.subr.bf16.mxu0 0
    %2830 = vmatpush1.bf16.msra.mxu0 %v1893
    %2831 = vmatprep.subr.bf16.mxu0 0
    %2832 = vmatpush1.bf16.msra.mxu0 %v1894
    %2833 = vmatprep.subr.bf16.mxu0 0
    %2834 = vmatpush1.bf16.msra.mxu0 %v1895
    %2835 = vmatprep.subr.bf16.mxu0 0
    %2836 = vmatpush1.bf16.msra.mxu0 %v1896
    %2837 = vmatprep.subr.bf16.mxu0 0
    %2838 = vmatpush1.bf16.msra.mxu0 %v1897
    %2839 = vmatprep.subr.bf16.mxu0 0
    %2840 = vmatpush1.bf16.msra.mxu0 %v1898
    %2841 = vmatprep.subr.bf16.mxu0 0
    %2842 = vmatpush1.bf16.msra.mxu0 %v1899
    %2843 = vmatprep.subr.bf16.mxu0 0
    %2844 = vmatpush1.bf16.msra.mxu0 %v1900
    %2845 = vmatprep.subr.bf16.mxu0 0
    %2846 = vmatpush1.bf16.msra.mxu0 %v1901
    %2847 = vmatprep.subr.bf16.mxu0 0
    %2848 = vmatpush1.bf16.msra.mxu0 %v1902
    %2849 = vmatprep.subr.bf16.mxu0 0
    %2850 = vmatpush1.bf16.msra.mxu0 %v1903
    %2851 = vmatprep.subr.bf16.mxu0 0
    %2852 = vmatpush1.bf16.msra.mxu0 %v1904
    %2853 = vmatprep.subr.bf16.mxu0 0
    %2854 = vmatpush1.bf16.msra.mxu0 %v1905
    %2855 = vmatprep.mubr.bf16.mxu0 %v2822
    %2856 = vmatmul.mubr.bf16.gmra.mrb[0].mxu0 %v2729
    %v2857 = vpop.f32.mrb[0].mxu0
    %v2858 = vadd.f32 %v1912, %v2857
    %v2859 = vpop.f32.mrb[0].mxu0
    %v2860 = vpop.f32.mrb[0].mxu0
    %v2861 = vpop.f32.mrb[0].mxu0
    %2862 = vdwg.mxu0
    %v2863 = vtanh.pop %v2858
    %v2864 = vpack.c.bf16 %v2863, %v2863
    %2865 = vmatprep.subr.bf16.mxu0 %v1955
    %2866 = vmatpush1.bf16.msra.mxu0 %v1954
    %2867 = vmatprep.subr.bf16.mxu0 %v1958
    %2868 = vmatpush1.bf16.msra.mxu0 %v1957
    %2869 = vmatprep.subr.bf16.mxu0 %v1961
    %2870 = vmatpush1.bf16.msra.mxu0 %v1960
    %2871 = vmatprep.subr.bf16.mxu0 %v1964
    %2872 = vmatpush1.bf16.msra.mxu0 %v1963
    %2873 = vmatprep.subr.bf16.mxu0 %v1967
    %2874 = vmatpush1.bf16.msra.mxu0 %v1966
    %2875 = vmatprep.subr.bf16.mxu0 %v1970
    %2876 = vmatpush1.bf16.msra.mxu0 %v1969
    %2877 = vmatprep.subr.bf16.mxu0 %v1973
    %2878 = vmatpush1.bf16.msra.mxu0 %v1972
    %2879 = vmatprep.subr.bf16.mxu0 %v1976
    %2880 = vmatpush1.bf16.msra.mxu0 %v1975
    %2881 = vmatprep.subr.bf16.mxu0 0
    %2882 = vmatpush1.bf16.msra.mxu0 0
    %2883 = vmatprep.subr.bf16.mxu0 0
    %2884 = vmatpush1.bf16.msra.mxu0 0
    %2885 = vmatprep.subr.bf16.mxu0 0
    %2886 = vmatpush1.bf16.msra.mxu0 0
    %2887 = vmatprep.subr.bf16.mxu0 0
    %2888 = vmatpush1.bf16.msra.mxu0 0
    %2889 = vmatprep.subr.bf16.mxu0 0
    %2890 = vmatpush1.bf16.msra.mxu0 0
    %2891 = vmatprep.subr.bf16.mxu0 0
    %2892 = vmatpush1.bf16.msra.mxu0 0
    %2893 = vmatprep.subr.bf16.mxu0 0
    %2894 = vmatpush1.bf16.msra.mxu0 0
    %2895 = vmatprep.subr.bf16.mxu0 0
    %2896 = vmatpush1.bf16.msra.mxu0 0
    %2897 = vmatprep.mubr.bf16.mxu0 0
    %2898 = vmatmul.mubr.bf16.gmra.mrb[0].mxu0 %v2864
    %v2899 = vpop.f32.mrb[0].mxu0
    %v2900 = vadd.f32 %v1988, %v2899
    %v2901 = vpop.f32.mrb[0].mxu0
    %v2902 = vadd.f32 %v1992, %v2901
    %v2903 = vpop.f32.mrb[0].mxu0
    %v2904 = vpop.f32.mrb[0].mxu0
    %2905 = vdwg.mxu0
    %2906 = vmatprep.subr.bf16.mxu0 0
    %2907 = vmatpush1.bf16.msra.mxu0 %v1956
    %2908 = vmatprep.subr.bf16.mxu0 0
    %2909 = vmatpush1.bf16.msra.mxu0 %v1959
    %2910 = vmatprep.subr.bf16.mxu0 0
    %2911 = vmatpush1.bf16.msra.mxu0 %v1962
    %2912 = vmatprep.subr.bf16.mxu0 0
    %2913 = vmatpush1.bf16.msra.mxu0 %v1965
    %2914 = vmatprep.subr.bf16.mxu0 0
    %2915 = vmatpush1.bf16.msra.mxu0 %v1968
    %2916 = vmatprep.subr.bf16.mxu0 0
    %2917 = vmatpush1.bf16.msra.mxu0 %v1971
    %2918 = vmatprep.subr.bf16.mxu0 0
    %2919 = vmatpush1.bf16.msra.mxu0 %v1974
    %2920 = vmatprep.subr.bf16.mxu0 0
    %2921 = vmatpush1.bf16.msra.mxu0 %v1977
    %2922 = vmatprep.subr.bf16.mxu0 0
    %2923 = vmatpush1.bf16.msra.mxu0 0
    %2924 = vmatprep.subr.bf16.mxu0 0
    %2925 = vmatpush1.bf16.msra.mxu0 0
    %2926 = vmatprep.subr.bf16.mxu0 0
    %2927 = vmatpush1.bf16.msra.mxu0 0
    %2928 = vmatprep.subr.bf16.mxu0 0
    %2929 = vmatpush1.bf16.msra.mxu0 0
    %2930 = vmatprep.subr.bf16.mxu0 0
    %2931 = vmatpush1.bf16.msra.mxu0 0
    %2932 = vmatprep.subr.bf16.mxu0 0
    %2933 = vmatpush1.bf16.msra.mxu0 0
    %2934 = vmatprep.subr.bf16.mxu0 0
    %2935 = vmatpush1.bf16.msra.mxu0 0
    %2936 = vmatprep.subr.bf16.mxu0 0
    %2937 = vmatpush1.bf16.msra.mxu0 0
    %2938 = vmatprep.mubr.bf16.mxu0 0
    %2939 = vmatmul.mubr.bf16.gmra.mrb[0].mxu0 %v2864
    %v2940 = vpop.f32.mrb[0].mxu0
    %v2941 = vadd.f32 %v1996, %v2940
    %v2942 = vpop.f32.mrb[0].mxu0
    %v2943 = vpop.f32.mrb[0].mxu0
    %v2944 = vpop.f32.mrb[0].mxu0
    %2945 = vdwg.mxu0
    %2946 = vmatprep.subr.bf16.mxu0 %v2079
    %2947 = vmatpush1.bf16.msra.mxu0 %v2078
    %2948 = vmatprep.subr.bf16.mxu0 %v2082
    %2949 = vmatpush1.bf16.msra.mxu0 %v2081
    %2950 = vmatprep.subr.bf16.mxu0 %v2085
    %2951 = vmatpush1.bf16.msra.mxu0 %v2084
    %2952 = vmatprep.subr.bf16.mxu0 %v2088
    %2953 = vmatpush1.bf16.msra.mxu0 %v2087
    %2954 = vmatprep.subr.bf16.mxu0 %v2091
    %2955 = vmatpush1.bf16.msra.mxu0 %v2090
    %2956 = vmatprep.subr.bf16.mxu0 %v2094
    %2957 = vmatpush1.bf16.msra.mxu0 %v2093
    %2958 = vmatprep.subr.bf16.mxu0 %v2097
    %2959 = vmatpush1.bf16.msra.mxu0 %v2096
    %2960 = vmatprep.subr.bf16.mxu0 %v2100
    %2961 = vmatpush1.bf16.msra.mxu0 %v2099
    %2962 = vmatprep.subr.bf16.mxu0 0
    %2963 = vmatpush1.bf16.msra.mxu0 0
    %2964 = vmatprep.subr.bf16.mxu0 0
    %2965 = vmatpush1.bf16.msra.mxu0 0
    %2966 = vmatprep.subr.bf16.mxu0 0
    %2967 = vmatpush1.bf16.msra.mxu0 0
    %2968 = vmatprep.subr.bf16.mxu0 0
    %2969 = vmatpush1.bf16.msra.mxu0 0
    %2970 = vmatprep.subr.bf16.mxu0 0
    %2971 = vmatpush1.bf16.msra.mxu0 0
    %2972 = vmatprep.subr.bf16.mxu0 0
    %2973 = vmatpush1.bf16.msra.mxu0 0
    %2974 = vmatprep.subr.bf16.mxu0 0
    %2975 = vmatpush1.bf16.msra.mxu0 0
    %2976 = vmatprep.subr.bf16.mxu0 0
    %2977 = vmatpush1.bf16.msra.mxu0 0
    %2978 = vmatprep.mubr.bf16.mxu0 0
    %2979 = vmatmul.mubr.bf16.gmra.mrb[0].mxu0 %v2646
    %v2980 = vpop.f32.mrb[0].mxu0
    %v2981 = vadd.f32 %v2112, %v2980
    %v2982 = vpop.f32.mrb[0].mxu0
    %v2983 = vadd.f32 %v2116, %v2982
    %v2984 = vpop.f32.mrb[0].mxu0
    %v2985 = vpop.f32.mrb[0].mxu0
    %2986 = vdwg.mxu0
    %2987 = vmatprep.subr.bf16.mxu0 0
    %2988 = vmatpush1.bf16.msra.mxu0 %v2080
    %2989 = vmatprep.subr.bf16.mxu0 0
    %2990 = vmatpush1.bf16.msra.mxu0 %v2083
    %2991 = vmatprep.subr.bf16.mxu0 0
    %2992 = vmatpush1.bf16.msra.mxu0 %v2086
    %2993 = vmatprep.subr.bf16.mxu0 0
    %2994 = vmatpush1.bf16.msra.mxu0 %v2089
    %2995 = vmatprep.subr.bf16.mxu0 0
    %2996 = vmatpush1.bf16.msra.mxu0 %v2092
    %2997 = vmatprep.subr.bf16.mxu0 0
    %2998 = vmatpush1.bf16.msra.mxu0 %v2095
    %2999 = vmatprep.subr.bf16.mxu0 0
    %3000 = vmatpush1.bf16.msra.mxu0 %v2098
    %3001 = vmatprep.subr.bf16.mxu0 0
    %3002 = vmatpush1.bf16.msra.mxu0 %v2101
    %3003 = vmatprep.subr.bf16.mxu0 0
    %3004 = vmatpush1.bf16.msra.mxu0 0
    %3005 = vmatprep.subr.bf16.mxu0 0
    %3006 = vmatpush1.bf16.msra.mxu0 0
    %3007 = vmatprep.subr.bf16.mxu0 0
    %3008 = vmatpush1.bf16.msra.mxu0 0
    %3009 = vmatprep.subr.bf16.mxu0 0
    %3010 = vmatpush1.bf16.msra.mxu0 0
    %3011 = vmatprep.subr.bf16.mxu0 0
    %3012 = vmatpush1.bf16.msra.mxu0 0
    %3013 = vmatprep.subr.bf16.mxu0 0
    %3014 = vmatpush1.bf16.msra.mxu0 0
    %3015 = vmatprep.subr.bf16.mxu0 0
    %3016 = vmatpush1.bf16.msra.mxu0 0
    %3017 = vmatprep.subr.bf16.mxu0 0
    %3018 = vmatpush1.bf16.msra.mxu0 0
    %3019 = vmatprep.mubr.bf16.mxu0 0
    %3020 = vmatmul.mubr.bf16.gmra.mrb[0].mxu0 %v2646
    %v3021 = vpop.f32.mrb[0].mxu0
    %v3022 = vadd.f32 %v2120, %v3021
    %v3023 = vpop.f32.mrb[0].mxu0
    %v3024 = vpop.f32.mrb[0].mxu0
    %v3025 = vpop.f32.mrb[0].mxu0
    %3026 = vdwg.mxu0
    %v3027 = vadd.f32 %v2900, %v2981
    %v3028 = vxor.u32 %v3027, 2147483648
    %v3029 = vmul.f32 %v3028, 1.442695
    %v3030 = vpow.pop %v3029
    %v3031 = vadd.f32 %v3030, 1.0
    %v3032 = vrcp.pop %v3031
    %v3033 = vmul.f32 1.0, %v3032
    %v3034 = vadd.f32 %v2902, %v2983
    %v3035 = vxor.u32 %v3034, 2147483648
    %v3036 = vmul.f32 %v3035, 1.442695
    %v3037 = vpow.pop %v3036
    %v3038 = vadd.f32 %v3037, 1.0
    %v3039 = vrcp.pop %v3038
    %v3040 = vmul.f32 1.0, %v3039
    %v3041 = vmul.f32 %v3033, %v3022
    %v3042 = vadd.f32 %v2941, %v3041
    %v3043 = vtanh.pop %v3042
    %v3044 = vsub.f32 %v2645, %v3043
    %v3045 = vmul.f32 %v3040, %v3044
    %v3046 = vadd.f32 %v3043, %v3045
    %v3047 = vpack.c.bf16 %v3046, %v3046
    %3048 = vmatprep.subr.bf16.mxu0 0
    %3049 = vmatpush1.bf16.msra.mxu0 %v2231
    %3050 = vmatprep.subr.bf16.mxu0 0
    %3051 = vmatpush1.bf16.msra.mxu0 %v2232
    %3052 = vmatprep.subr.bf16.mxu0 0
    %3053 = vmatpush1.bf16.msra.mxu0 %v2233
    %3054 = vmatprep.subr.bf16.mxu0 0
    %3055 = vmatpush1.bf16.msra.mxu0 %v2234
    %3056 = vmatprep.subr.bf16.mxu0 0
    %3057 = vmatpush1.bf16.msra.mxu0 %v2235
    %3058 = vmatprep.subr.bf16.mxu0 0
    %3059 = vmatpush1.bf16.msra.mxu0 %v2236
    %3060 = vmatprep.subr.bf16.mxu0 0
    %3061 = vmatpush1.bf16.msra.mxu0 %v2237
    %3062 = vmatprep.subr.bf16.mxu0 0
    %3063 = vmatpush1.bf16.msra.mxu0 %v2238
    %3064 = vmatprep.subr.bf16.mxu0 0
    %3065 = vmatpush1.bf16.msra.mxu0 0
    %3066 = vmatprep.subr.bf16.mxu0 0
    %3067 = vmatpush1.bf16.msra.mxu0 0
    %3068 = vmatprep.subr.bf16.mxu0 0
    %3069 = vmatpush1.bf16.msra.mxu0 0
    %3070 = vmatprep.subr.bf16.mxu0 0
    %3071 = vmatpush1.bf16.msra.mxu0 0
    %3072 = vmatprep.subr.bf16.mxu0 0
    %3073 = vmatpush1.bf16.msra.mxu0 0
    %3074 = vmatprep.subr.bf16.mxu0 0
    %3075 = vmatpush1.bf16.msra.mxu0 0
    %3076 = vmatprep.subr.bf16.mxu0 0
    %3077 = vmatpush1.bf16.msra.mxu0 0
    %3078 = vmatprep.subr.bf16.mxu0 0
    %3079 = vmatpush1.bf16.msra.mxu0 0
    %3080 = vmatprep.mubr.bf16.mxu0 0
    %3081 = vmatmul.mubr.bf16.gmra.mrb[0].mxu0 %v3047
    %v3082 = vpop.f32.mrb[0].mxu0
    %v3083 = vadd.f32 %v2245, %v3082
    %v3084 = vpop.f32.mrb[0].mxu0
    %v3085 = vpop.f32.mrb[0].mxu0
    %v3086 = vpop.f32.mrb[0].mxu0
    %3087 = vdwg.mxu0
    %v3088 = vtanh.pop %v3083
    %v3089 = vpack.c.bf16 %v3088, %v3088
    %3090 = vmatprep.subr.bf16.mxu0 0
    %3091 = vmatpush1.bf16.msra.mxu0 %v1716
    %3092 = vmatprep.subr.bf16.mxu0 0
    %3093 = vmatpush1.bf16.msra.mxu0 %v1717
    %3094 = vmatprep.subr.bf16.mxu0 0
    %3095 = vmatpush1.bf16.msra.mxu0 %v1718
    %3096 = vmatprep.subr.bf16.mxu0 0
    %3097 = vmatpush1.bf16.msra.mxu0 %v1719
    %3098 = vmatprep.subr.bf16.mxu0 0
    %3099 = vmatpush1.bf16.msra.mxu0 %v1720
    %3100 = vmatprep.subr.bf16.mxu0 0
    %3101 = vmatpush1.bf16.msra.mxu0 %v1721
    %3102 = vmatprep.subr.bf16.mxu0 0
    %3103 = vmatpush1.bf16.msra.mxu0 %v1722
    %3104 = vmatprep.subr.bf16.mxu0 0
    %3105 = vmatpush1.bf16.msra.mxu0 %v1723
    %3106 = vmatprep.subr.bf16.mxu0 0
    %3107 = vmatpush1.bf16.msra.mxu0 0
    %3108 = vmatprep.subr.bf16.mxu0 0
    %3109 = vmatpush1.bf16.msra.mxu0 0
    %3110 = vmatprep.subr.bf16.mxu0 0
    %3111 = vmatpush1.bf16.msra.mxu0 0
    %3112 = vmatprep.subr.bf16.mxu0 0
    %3113 = vmatpush1.bf16.msra.mxu0 0
    %3114 = vmatprep.subr.bf16.mxu0 0
    %3115 = vmatpush1.bf16.msra.mxu0 0
    %3116 = vmatprep.subr.bf16.mxu0 0
    %3117 = vmatpush1.bf16.msra.mxu0 0
    %3118 = vmatprep.subr.bf16.mxu0 0
    %3119 = vmatpush1.bf16.msra.mxu0 0
    %3120 = vmatprep.subr.bf16.mxu0 0
    %3121 = vmatpush1.bf16.msra.mxu0 0
    %3122 = vmatprep.mubr.bf16.mxu0 0
    %3123 = vmatmul.mubr.bf16.gmra.mrb[0].mxu0 %v3089
    %v3124 = vpop.f32.mrb[0].mxu0
    %v3125 = vadd.f32 %v1729, %v3124
    %v3126 = vpop.f32.mrb[0].mxu0
    %v3127 = vpop.f32.mrb[0].mxu0
    %v3128 = vpop.f32.mrb[0].mxu0
    %3129 = vdwg.mxu0
    %v3130 = vpack.c.bf16 %v3125, %v3125
    %3131 = vmatprep.subr.bf16.mxu0 0
    %3132 = vmatpush1.bf16.msra.mxu0 %v1772
    %3133 = vmatprep.subr.bf16.mxu0 0
    %3134 = vmatpush1.bf16.msra.mxu0 %v1773
    %3135 = vmatprep.subr.bf16.mxu0 0
    %3136 = vmatpush1.bf16.msra.mxu0 %v1774
    %3137 = vmatprep.subr.bf16.mxu0 0
    %3138 = vmatpush1.bf16.msra.mxu0 %v1775
    %3139 = vmatprep.subr.bf16.mxu0 0
    %3140 = vmatpush1.bf16.msra.mxu0 %v1776
    %3141 = vmatprep.subr.bf16.mxu0 0
    %3142 = vmatpush1.bf16.msra.mxu0 %v1777
    %3143 = vmatprep.subr.bf16.mxu0 0
    %3144 = vmatpush1.bf16.msra.mxu0 %v1778
    %3145 = vmatprep.subr.bf16.mxu0 0
    %3146 = vmatpush1.bf16.msra.mxu0 %v1779
    %3147 = vmatprep.subr.bf16.mxu0 0
    %3148 = vmatpush1.bf16.msra.mxu0 %v1780
    %3149 = vmatprep.subr.bf16.mxu0 0
    %3150 = vmatpush1.bf16.msra.mxu0 %v1781
    %3151 = vmatprep.subr.bf16.mxu0 0
    %3152 = vmatpush1.bf16.msra.mxu0 %v1782
    %3153 = vmatprep.subr.bf16.mxu0 0
    %3154 = vmatpush1.bf16.msra.mxu0 %v1783
    %3155 = vmatprep.subr.bf16.mxu0 0
    %3156 = vmatpush1.bf16.msra.mxu0 %v1784
    %3157 = vmatprep.subr.bf16.mxu0 0
    %3158 = vmatpush1.bf16.msra.mxu0 %v1785
    %3159 = vmatprep.subr.bf16.mxu0 0
    %3160 = vmatpush1.bf16.msra.mxu0 %v1786
    %3161 = vmatprep.subr.bf16.mxu0 0
    %3162 = vmatpush1.bf16.msra.mxu0 %v1787
    %3163 = vmatprep.mubr.bf16.mxu0 %v3047
    %3164 = vmatmul.mubr.bf16.gmra.mrb[0].mxu0 %v3130
    %v3165 = vpop.f32.mrb[0].mxu0
    %v3166 = vadd.f32 %v1795, %v3165
    %v3167 = vpop.f32.mrb[0].mxu0
    %v3168 = vpop.f32.mrb[0].mxu0
    %v3169 = vpop.f32.mrb[0].mxu0
    %3170 = vdwg.mxu0
    %v3171 = vsel %vm1528, %v3166, -inf
    %3172 = vmax.xlane.f32.xlu0 %v3171
    %v3173 = vpop.xlane.xlu0 %3172
    %v3174 = vsub.f32 %v3166, %v3173
    %v3175 = vmul.f32 %v3174, 1.442695
    %v3176 = vpow.pop %v3175
    %v3177 = vsel %vm1528, %v3176, 0.0
    %3178 = vadd.xlane.f32.xlu0 %v3177
    %v3179 = vpop.xlane.xlu0 %3178
    %v3180 = vrcp.pop %v3179
    %v3181 = vmul.f32 %v3176, %v3180
    %v3182 = vpack.c.bf16 %v3181, %v3181
    %3183 = vmatprep.subr.bf16.mxu0 0
    %3184 = vmatpush1.bf16.msra.mxu0 %v1848
    %3185 = vmatprep.subr.bf16.mxu0 0
    %3186 = vmatpush1.bf16.msra.mxu0 %v1849
    %3187 = vmatprep.subr.bf16.mxu0 0
    %3188 = vmatpush1.bf16.msra.mxu0 %v1849
    %3189 = vmatprep.subr.bf16.mxu0 0
    %3190 = vmatpush1.bf16.msra.mxu0 %v1849
    %3191 = vmatprep.subr.bf16.mxu0 0
    %3192 = vmatpush1.bf16.msra.mxu0 %v1849
    %3193 = vmatprep.subr.bf16.mxu0 0
    %3194 = vmatpush1.bf16.msra.mxu0 %v1849
    %3195 = vmatprep.subr.bf16.mxu0 0
    %3196 = vmatpush1.bf16.msra.mxu0 %v1849
    %3197 = vmatprep.subr.bf16.mxu0 0
    %3198 = vmatpush1.bf16.msra.mxu0 %v1849
    %3199 = vmatprep.subr.bf16.mxu0 0
    %3200 = vmatpush1.bf16.msra.mxu0 0
    %3201 = vmatprep.subr.bf16.mxu0 0
    %3202 = vmatpush1.bf16.msra.mxu0 0
    %3203 = vmatprep.subr.bf16.mxu0 0
    %3204 = vmatpush1.bf16.msra.mxu0 0
    %3205 = vmatprep.subr.bf16.mxu0 0
    %3206 = vmatpush1.bf16.msra.mxu0 0
    %3207 = vmatprep.subr.bf16.mxu0 0
    %3208 = vmatpush1.bf16.msra.mxu0 0
    %3209 = vmatprep.subr.bf16.mxu0 0
    %3210 = vmatpush1.bf16.msra.mxu0 0
    %3211 = vmatprep.subr.bf16.mxu0 0
    %3212 = vmatpush1.bf16.msra.mxu0 0
    %3213 = vmatprep.subr.bf16.mxu0 0
    %3214 = vmatpush1.bf16.msra.mxu0 0
    %3215 = vmatprep.mubr.bf16.mxu0 0
    %3216 = vmatmul.mubr.bf16.gmra.mrb[0].mxu0 %v3182
    %v3217 = vpop.f32.mrb[0].mxu0
    %v3218 = vadd.f32 0.0, %v3217
    %v3219 = vpop.f32.mrb[0].mxu0
    %v3220 = vpop.f32.mrb[0].mxu0
    %v3221 = vpop.f32.mrb[0].mxu0
    %3222 = vdwg.mxu0
    %v3223 = vpack.c.bf16 %v3218, %v3218
    %3224 = vmatprep.subr.bf16.mxu0 0
    %3225 = vmatpush1.bf16.msra.mxu0 %v1890
    %3226 = vmatprep.subr.bf16.mxu0 0
    %3227 = vmatpush1.bf16.msra.mxu0 %v1891
    %3228 = vmatprep.subr.bf16.mxu0 0
    %3229 = vmatpush1.bf16.msra.mxu0 %v1892
    %3230 = vmatprep.subr.bf16.mxu0 0
    %3231 = vmatpush1.bf16.msra.mxu0 %v1893
    %3232 = vmatprep.subr.bf16.mxu0 0
    %3233 = vmatpush1.bf16.msra.mxu0 %v1894
    %3234 = vmatprep.subr.bf16.mxu0 0
    %3235 = vmatpush1.bf16.msra.mxu0 %v1895
    %3236 = vmatprep.subr.bf16.mxu0 0
    %3237 = vmatpush1.bf16.msra.mxu0 %v1896
    %3238 = vmatprep.subr.bf16.mxu0 0
    %3239 = vmatpush1.bf16.msra.mxu0 %v1897
    %3240 = vmatprep.subr.bf16.mxu0 0
    %3241 = vmatpush1.bf16.msra.mxu0 %v1898
    %3242 = vmatprep.subr.bf16.mxu0 0
    %3243 = vmatpush1.bf16.msra.mxu0 %v1899
    %3244 = vmatprep.subr.bf16.mxu0 0
    %3245 = vmatpush1.bf16.msra.mxu0 %v1900
    %3246 = vmatprep.subr.bf16.mxu0 0
    %3247 = vmatpush1.bf16.msra.mxu0 %v1901
    %3248 = vmatprep.subr.bf16.mxu0 0
    %3249 = vmatpush1.bf16.msra.mxu0 %v1902
    %3250 = vmatprep.subr.bf16.mxu0 0
    %3251 = vmatpush1.bf16.msra.mxu0 %v1903
    %3252 = vmatprep.subr.bf16.mxu0 0
    %3253 = vmatpush1.bf16.msra.mxu0 %v1904
    %3254 = vmatprep.subr.bf16.mxu0 0
    %3255 = vmatpush1.bf16.msra.mxu0 %v1905
    %3256 = vmatprep.mubr.bf16.mxu0 %v3223
    %3257 = vmatmul.mubr.bf16.gmra.mrb[0].mxu0 %v3130
    %v3258 = vpop.f32.mrb[0].mxu0
    %v3259 = vadd.f32 %v1912, %v3258
    %v3260 = vpop.f32.mrb[0].mxu0
    %v3261 = vpop.f32.mrb[0].mxu0
    %v3262 = vpop.f32.mrb[0].mxu0
    %3263 = vdwg.mxu0
    %v3264 = vtanh.pop %v3259
    %v3265 = vpack.c.bf16 %v3264, %v3264
    %3266 = vmatprep.subr.bf16.mxu0 %v1955
    %3267 = vmatpush1.bf16.msra.mxu0 %v1954
    %3268 = vmatprep.subr.bf16.mxu0 %v1958
    %3269 = vmatpush1.bf16.msra.mxu0 %v1957
    %3270 = vmatprep.subr.bf16.mxu0 %v1961
    %3271 = vmatpush1.bf16.msra.mxu0 %v1960
    %3272 = vmatprep.subr.bf16.mxu0 %v1964
    %3273 = vmatpush1.bf16.msra.mxu0 %v1963
    %3274 = vmatprep.subr.bf16.mxu0 %v1967
    %3275 = vmatpush1.bf16.msra.mxu0 %v1966
    %3276 = vmatprep.subr.bf16.mxu0 %v1970
    %3277 = vmatpush1.bf16.msra.mxu0 %v1969
    %3278 = vmatprep.subr.bf16.mxu0 %v1973
    %3279 = vmatpush1.bf16.msra.mxu0 %v1972
    %3280 = vmatprep.subr.bf16.mxu0 %v1976
    %3281 = vmatpush1.bf16.msra.mxu0 %v1975
    %3282 = vmatprep.subr.bf16.mxu0 0
    %3283 = vmatpush1.bf16.msra.mxu0 0
    %3284 = vmatprep.subr.bf16.mxu0 0
    %3285 = vmatpush1.bf16.msra.mxu0 0
    %3286 = vmatprep.subr.bf16.mxu0 0
    %3287 = vmatpush1.bf16.msra.mxu0 0
    %3288 = vmatprep.subr.bf16.mxu0 0
    %3289 = vmatpush1.bf16.msra.mxu0 0
    %3290 = vmatprep.subr.bf16.mxu0 0
    %3291 = vmatpush1.bf16.msra.mxu0 0
    %3292 = vmatprep.subr.bf16.mxu0 0
    %3293 = vmatpush1.bf16.msra.mxu0 0
    %3294 = vmatprep.subr.bf16.mxu0 0
    %3295 = vmatpush1.bf16.msra.mxu0 0
    %3296 = vmatprep.subr.bf16.mxu0 0
    %3297 = vmatpush1.bf16.msra.mxu0 0
    %3298 = vmatprep.mubr.bf16.mxu0 0
    %3299 = vmatmul.mubr.bf16.gmra.mrb[0].mxu0 %v3265
    %v3300 = vpop.f32.mrb[0].mxu0
    %v3301 = vadd.f32 %v1988, %v3300
    %v3302 = vpop.f32.mrb[0].mxu0
    %v3303 = vadd.f32 %v1992, %v3302
    %v3304 = vpop.f32.mrb[0].mxu0
    %v3305 = vpop.f32.mrb[0].mxu0
    %3306 = vdwg.mxu0
    %3307 = vmatprep.subr.bf16.mxu0 0
    %3308 = vmatpush1.bf16.msra.mxu0 %v1956
    %3309 = vmatprep.subr.bf16.mxu0 0
    %3310 = vmatpush1.bf16.msra.mxu0 %v1959
    %3311 = vmatprep.subr.bf16.mxu0 0
    %3312 = vmatpush1.bf16.msra.mxu0 %v1962
    %3313 = vmatprep.subr.bf16.mxu0 0
    %3314 = vmatpush1.bf16.msra.mxu0 %v1965
    %3315 = vmatprep.subr.bf16.mxu0 0
    %3316 = vmatpush1.bf16.msra.mxu0 %v1968
    %3317 = vmatprep.subr.bf16.mxu0 0
    %3318 = vmatpush1.bf16.msra.mxu0 %v1971
    %3319 = vmatprep.subr.bf16.mxu0 0
    %3320 = vmatpush1.bf16.msra.mxu0 %v1974
    %3321 = vmatprep.subr.bf16.mxu0 0
    %3322 = vmatpush1.bf16.msra.mxu0 %v1977
    %3323 = vmatprep.subr.bf16.mxu0 0
    %3324 = vmatpush1.bf16.msra.mxu0 0
    %3325 = vmatprep.subr.bf16.mxu0 0
    %3326 = vmatpush1.bf16.msra.mxu0 0
    %3327 = vmatprep.subr.bf16.mxu0 0
    %3328 = vmatpush1.bf16.msra.mxu0 0
    %3329 = vmatprep.subr.bf16.mxu0 0
    %3330 = vmatpush1.bf16.msra.mxu0 0
    %3331 = vmatprep.subr.bf16.mxu0 0
    %3332 = vmatpush1.bf16.msra.mxu0 0
    %3333 = vmatprep.subr.bf16.mxu0 0
    %3334 = vmatpush1.bf16.msra.mxu0 0
    %3335 = vmatprep.subr.bf16.mxu0 0
    %3336 = vmatpush1.bf16.msra.mxu0 0
    %3337 = vmatprep.subr.bf16.mxu0 0
    %3338 = vmatpush1.bf16.msra.mxu0 0
    %3339 = vmatprep.mubr.bf16.mxu0 0
    %3340 = vmatmul.mubr.bf16.gmra.mrb[0].mxu0 %v3265
    %v3341 = vpop.f32.mrb[0].mxu0
    %v3342 = vadd.f32 %v1996, %v3341
    %v3343 = vpop.f32.mrb[0].mxu0
    %v3344 = vpop.f32.mrb[0].mxu0
    %v3345 = vpop.f32.mrb[0].mxu0
    %3346 = vdwg.mxu0
    %3347 = vmatprep.subr.bf16.mxu0 %v2079
    %3348 = vmatpush1.bf16.msra.mxu0 %v2078
    %3349 = vmatprep.subr.bf16.mxu0 %v2082
    %3350 = vmatpush1.bf16.msra.mxu0 %v2081
    %3351 = vmatprep.subr.bf16.mxu0 %v2085
    %3352 = vmatpush1.bf16.msra.mxu0 %v2084
    %3353 = vmatprep.subr.bf16.mxu0 %v2088
    %3354 = vmatpush1.bf16.msra.mxu0 %v2087
    %3355 = vmatprep.subr.bf16.mxu0 %v2091
    %3356 = vmatpush1.bf16.msra.mxu0 %v2090
    %3357 = vmatprep.subr.bf16.mxu0 %v2094
    %3358 = vmatpush1.bf16.msra.mxu0 %v2093
    %3359 = vmatprep.subr.bf16.mxu0 %v2097
    %3360 = vmatpush1.bf16.msra.mxu0 %v2096
    %3361 = vmatprep.subr.bf16.mxu0 %v2100
    %3362 = vmatpush1.bf16.msra.mxu0 %v2099
    %3363 = vmatprep.subr.bf16.mxu0 0
    %3364 = vmatpush1.bf16.msra.mxu0 0
    %3365 = vmatprep.subr.bf16.mxu0 0
    %3366 = vmatpush1.bf16.msra.mxu0 0
    %3367 = vmatprep.subr.bf16.mxu0 0
    %3368 = vmatpush1.bf16.msra.mxu0 0
    %3369 = vmatprep.subr.bf16.mxu0 0
    %3370 = vmatpush1.bf16.msra.mxu0 0
    %3371 = vmatprep.subr.bf16.mxu0 0
    %3372 = vmatpush1.bf16.msra.mxu0 0
    %3373 = vmatprep.subr.bf16.mxu0 0
    %3374 = vmatpush1.bf16.msra.mxu0 0
    %3375 = vmatprep.subr.bf16.mxu0 0
    %3376 = vmatpush1.bf16.msra.mxu0 0
    %3377 = vmatprep.subr.bf16.mxu0 0
    %3378 = vmatpush1.bf16.msra.mxu0 0
    %3379 = vmatprep.mubr.bf16.mxu0 0
    %3380 = vmatmul.mubr.bf16.gmra.mrb[0].mxu0 %v3047
    %v3381 = vpop.f32.mrb[0].mxu0
    %v3382 = vadd.f32 %v2112, %v3381
    %v3383 = vpop.f32.mrb[0].mxu0
    %v3384 = vadd.f32 %v2116, %v3383
    %v3385 = vpop.f32.mrb[0].mxu0
    %v3386 = vpop.f32.mrb[0].mxu0
    %3387 = vdwg.mxu0
    %3388 = vmatprep.subr.bf16.mxu0 0
    %3389 = vmatpush1.bf16.msra.mxu0 %v2080
    %3390 = vmatprep.subr.bf16.mxu0 0
    %3391 = vmatpush1.bf16.msra.mxu0 %v2083
    %3392 = vmatprep.subr.bf16.mxu0 0
    %3393 = vmatpush1.bf16.msra.mxu0 %v2086
    %3394 = vmatprep.subr.bf16.mxu0 0
    %3395 = vmatpush1.bf16.msra.mxu0 %v2089
    %3396 = vmatprep.subr.bf16.mxu0 0
    %3397 = vmatpush1.bf16.msra.mxu0 %v2092
    %3398 = vmatprep.subr.bf16.mxu0 0
    %3399 = vmatpush1.bf16.msra.mxu0 %v2095
    %3400 = vmatprep.subr.bf16.mxu0 0
    %3401 = vmatpush1.bf16.msra.mxu0 %v2098
    %3402 = vmatprep.subr.bf16.mxu0 0
    %3403 = vmatpush1.bf16.msra.mxu0 %v2101
    %3404 = vmatprep.subr.bf16.mxu0 0
    %3405 = vmatpush1.bf16.msra.mxu0 0
    %3406 = vmatprep.subr.bf16.mxu0 0
    %3407 = vmatpush1.bf16.msra.mxu0 0
    %3408 = vmatprep.subr.bf16.mxu0 0
    %3409 = vmatpush1.bf16.msra.mxu0 0
    %3410 = vmatprep.subr.bf16.mxu0 0
    %3411 = vmatpush1.bf16.msra.mxu0 0
    %3412 = vmatprep.subr.bf16.mxu0 0
    %3413 = vmatpush1.bf16.msra.mxu0 0
    %3414 = vmatprep.subr.bf16.mxu0 0
    %3415 = vmatpush1.bf16.msra.mxu0 0
    %3416 = vmatprep.subr.bf16.mxu0 0
    %3417 = vmatpush1.bf16.msra.mxu0 0
    %3418 = vmatprep.subr.bf16.mxu0 0
    %3419 = vmatpush1.bf16.msra.mxu0 0
    %3420 = vmatprep.mubr.bf16.mxu0 0
    %3421 = vmatmul.mubr.bf16.gmra.mrb[0].mxu0 %v3047
    %v3422 = vpop.f32.mrb[0].mxu0
    %v3423 = vadd.f32 %v2120, %v3422
    %v3424 = vpop.f32.mrb[0].mxu0
    %v3425 = vpop.f32.mrb[0].mxu0
    %v3426 = vpop.f32.mrb[0].mxu0
    %3427 = vdwg.mxu0
    %v3428 = vadd.f32 %v3301, %v3382
    %v3429 = vxor.u32 %v3428, 2147483648
    %v3430 = vmul.f32 %v3429, 1.442695
    %v3431 = vpow.pop %v3430
    %v3432 = vadd.f32 %v3431, 1.0
    %v3433 = vrcp.pop %v3432
    %v3434 = vmul.f32 1.0, %v3433
    %v3435 = vadd.f32 %v3303, %v3384
    %v3436 = vxor.u32 %v3435, 2147483648
    %v3437 = vmul.f32 %v3436, 1.442695
    %v3438 = vpow.pop %v3437
    %v3439 = vadd.f32 %v3438, 1.0
    %v3440 = vrcp.pop %v3439
    %v3441 = vmul.f32 1.0, %v3440
    %v3442 = vmul.f32 %v3434, %v3423
    %v3443 = vadd.f32 %v3342, %v3442
    %v3444 = vtanh.pop %v3443
    %v3445 = vsub.f32 %v3046, %v3444
    %v3446 = vmul.f32 %v3441, %v3445
    %v3447 = vadd.f32 %v3444, %v3446
    %v3448 = vpack.c.bf16 %v3447, %v3447
    %3449 = vmatprep.subr.bf16.mxu0 0
    %3450 = vmatpush1.bf16.msra.mxu0 %v2231
    %3451 = vmatprep.subr.bf16.mxu0 0
    %3452 = vmatpush1.bf16.msra.mxu0 %v2232
    %3453 = vmatprep.subr.bf16.mxu0 0
    %3454 = vmatpush1.bf16.msra.mxu0 %v2233
    %3455 = vmatprep.subr.bf16.mxu0 0
    %3456 = vmatpush1.bf16.msra.mxu0 %v2234
    %3457 = vmatprep.subr.bf16.mxu0 0
    %3458 = vmatpush1.bf16.msra.mxu0 %v2235
    %3459 = vmatprep.subr.bf16.mxu0 0
    %3460 = vmatpush1.bf16.msra.mxu0 %v2236
    %3461 = vmatprep.subr.bf16.mxu0 0
    %3462 = vmatpush1.bf16.msra.mxu0 %v2237
    %3463 = vmatprep.subr.bf16.mxu0 0
    %3464 = vmatpush1.bf16.msra.mxu0 %v2238
    %3465 = vmatprep.subr.bf16.mxu0 0
    %3466 = vmatpush1.bf16.msra.mxu0 0
    %3467 = vmatprep.subr.bf16.mxu0 0
    %3468 = vmatpush1.bf16.msra.mxu0 0
    %3469 = vmatprep.subr.bf16.mxu0 0
    %3470 = vmatpush1.bf16.msra.mxu0 0
    %3471 = vmatprep.subr.bf16.mxu0 0
    %3472 = vmatpush1.bf16.msra.mxu0 0
    %3473 = vmatprep.subr.bf16.mxu0 0
    %3474 = vmatpush1.bf16.msra.mxu0 0
    %3475 = vmatprep.subr.bf16.mxu0 0
    %3476 = vmatpush1.bf16.msra.mxu0 0
    %3477 = vmatprep.subr.bf16.mxu0 0
    %3478 = vmatpush1.bf16.msra.mxu0 0
    %3479 = vmatprep.subr.bf16.mxu0 0
    %3480 = vmatpush1.bf16.msra.mxu0 0
    %3481 = vmatprep.mubr.bf16.mxu0 0
    %3482 = vmatmul.mubr.bf16.gmra.mrb[0].mxu0 %v3448
    %v3483 = vpop.f32.mrb[0].mxu0
    %v3484 = vadd.f32 %v2245, %v3483
    %v3485 = vpop.f32.mrb[0].mxu0
    %v3486 = vpop.f32.mrb[0].mxu0
    %v3487 = vpop.f32.mrb[0].mxu0
    %3488 = vdwg.mxu0
    %v3489 = vtanh.pop %v3484
    %v3490 = vpack.c.bf16 %v3489, %v3489
    %3491 = vmatprep.subr.bf16.mxu0 0
    %3492 = vmatpush1.bf16.msra.mxu0 %v1716
    %3493 = vmatprep.subr.bf16.mxu0 0
    %3494 = vmatpush1.bf16.msra.mxu0 %v1717
    %3495 = vmatprep.subr.bf16.mxu0 0
    %3496 = vmatpush1.bf16.msra.mxu0 %v1718
    %3497 = vmatprep.subr.bf16.mxu0 0
    %3498 = vmatpush1.bf16.msra.mxu0 %v1719
    %3499 = vmatprep.subr.bf16.mxu0 0
    %3500 = vmatpush1.bf16.msra.mxu0 %v1720
    %3501 = vmatprep.subr.bf16.mxu0 0
    %3502 = vmatpush1.bf16.msra.mxu0 %v1721
    %3503 = vmatprep.subr.bf16.mxu0 0
    %3504 = vmatpush1.bf16.msra.mxu0 %v1722
    %3505 = vmatprep.subr.bf16.mxu0 0
    %3506 = vmatpush1.bf16.msra.mxu0 %v1723
    %3507 = vmatprep.subr.bf16.mxu0 0
    %3508 = vmatpush1.bf16.msra.mxu0 0
    %3509 = vmatprep.subr.bf16.mxu0 0
    %3510 = vmatpush1.bf16.msra.mxu0 0
    %3511 = vmatprep.subr.bf16.mxu0 0
    %3512 = vmatpush1.bf16.msra.mxu0 0
    %3513 = vmatprep.subr.bf16.mxu0 0
    %3514 = vmatpush1.bf16.msra.mxu0 0
    %3515 = vmatprep.subr.bf16.mxu0 0
    %3516 = vmatpush1.bf16.msra.mxu0 0
    %3517 = vmatprep.subr.bf16.mxu0 0
    %3518 = vmatpush1.bf16.msra.mxu0 0
    %3519 = vmatprep.subr.bf16.mxu0 0
    %3520 = vmatpush1.bf16.msra.mxu0 0
    %3521 = vmatprep.subr.bf16.mxu0 0
    %3522 = vmatpush1.bf16.msra.mxu0 0
    %3523 = vmatprep.mubr.bf16.mxu0 0
    %3524 = vmatmul.mubr.bf16.gmra.mrb[0].mxu0 %v3490
    %v3525 = vpop.f32.mrb[0].mxu0
    %v3526 = vadd.f32 %v1729, %v3525
    %v3527 = vpop.f32.mrb[0].mxu0
    %v3528 = vpop.f32.mrb[0].mxu0
    %v3529 = vpop.f32.mrb[0].mxu0
    %3530 = vdwg.mxu0
    %v3531 = vpack.c.bf16 %v3526, %v3526
    %3532 = vmatprep.subr.bf16.mxu0 0
    %3533 = vmatpush1.bf16.msra.mxu0 %v1772
    %3534 = vmatprep.subr.bf16.mxu0 0
    %3535 = vmatpush1.bf16.msra.mxu0 %v1773
    %3536 = vmatprep.subr.bf16.mxu0 0
    %3537 = vmatpush1.bf16.msra.mxu0 %v1774
    %3538 = vmatprep.subr.bf16.mxu0 0
    %3539 = vmatpush1.bf16.msra.mxu0 %v1775
    %3540 = vmatprep.subr.bf16.mxu0 0
    %3541 = vmatpush1.bf16.msra.mxu0 %v1776
    %3542 = vmatprep.subr.bf16.mxu0 0
    %3543 = vmatpush1.bf16.msra.mxu0 %v1777
    %3544 = vmatprep.subr.bf16.mxu0 0
    %3545 = vmatpush1.bf16.msra.mxu0 %v1778
    %3546 = vmatprep.subr.bf16.mxu0 0
    %3547 = vmatpush1.bf16.msra.mxu0 %v1779
    %3548 = vmatprep.subr.bf16.mxu0 0
    %3549 = vmatpush1.bf16.msra.mxu0 %v1780
    %3550 = vmatprep.subr.bf16.mxu0 0
    %3551 = vmatpush1.bf16.msra.mxu0 %v1781
    %3552 = vmatprep.subr.bf16.mxu0 0
    %3553 = vmatpush1.bf16.msra.mxu0 %v1782
    %3554 = vmatprep.subr.bf16.mxu0 0
    %3555 = vmatpush1.bf16.msra.mxu0 %v1783
    %3556 = vmatprep.subr.bf16.mxu0 0
    %3557 = vmatpush1.bf16.msra.mxu0 %v1784
    %3558 = vmatprep.subr.bf16.mxu0 0
    %3559 = vmatpush1.bf16.msra.mxu0 %v1785
    %3560 = vmatprep.subr.bf16.mxu0 0
    %3561 = vmatpush1.bf16.msra.mxu0 %v1786
    %3562 = vmatprep.subr.bf16.mxu0 0
    %3563 = vmatpush1.bf16.msra.mxu0 %v1787
    %3564 = vmatprep.mubr.bf16.mxu0 %v3448
    %3565 = vmatmul.mubr.bf16.gmra.mrb[0].mxu0 %v3531
    %v3566 = vpop.f32.mrb[0].mxu0
    %v3567 = vadd.f32 %v1795, %v3566
    %v3568 = vpop.f32.mrb[0].mxu0
    %v3569 = vpop.f32.mrb[0].mxu0
    %v3570 = vpop.f32.mrb[0].mxu0
    %3571 = vdwg.mxu0
    %v3572 = vsel %vm1528, %v3567, -inf
    %3573 = vmax.xlane.f32.xlu0 %v3572
    %v3574 = vpop.xlane.xlu0 %3573
    %v3575 = vsub.f32 %v3567, %v3574
    %v3576 = vmul.f32 %v3575, 1.442695
    %v3577 = vpow.pop %v3576
    %v3578 = vsel %vm1528, %v3577, 0.0
    %3579 = vadd.xlane.f32.xlu0 %v3578
    %v3580 = vpop.xlane.xlu0 %3579
    %v3581 = vrcp.pop %v3580
    %v3582 = vmul.f32 %v3577, %v3581
    %v3583 = vpack.c.bf16 %v3582, %v3582
    %3584 = vmatprep.subr.bf16.mxu0 0
    %3585 = vmatpush1.bf16.msra.mxu0 %v1848
    %3586 = vmatprep.subr.bf16.mxu0 0
    %3587 = vmatpush1.bf16.msra.mxu0 %v1849
    %3588 = vmatprep.subr.bf16.mxu0 0
    %3589 = vmatpush1.bf16.msra.mxu0 %v1849
    %3590 = vmatprep.subr.bf16.mxu0 0
    %3591 = vmatpush1.bf16.msra.mxu0 %v1849
    %3592 = vmatprep.subr.bf16.mxu0 0
    %3593 = vmatpush1.bf16.msra.mxu0 %v1849
    %3594 = vmatprep.subr.bf16.mxu0 0
    %3595 = vmatpush1.bf16.msra.mxu0 %v1849
    %3596 = vmatprep.subr.bf16.mxu0 0
    %3597 = vmatpush1.bf16.msra.mxu0 %v1849
    %3598 = vmatprep.subr.bf16.mxu0 0
    %3599 = vmatpush1.bf16.msra.mxu0 %v1849
    %3600 = vmatprep.subr.bf16.mxu0 0
    %3601 = vmatpush1.bf16.msra.mxu0 0
    %3602 = vmatprep.subr.bf16.mxu0 0
    %3603 = vmatpush1.bf16.msra.mxu0 0
    %3604 = vmatprep.subr.bf16.mxu0 0
    %3605 = vmatpush1.bf16.msra.mxu0 0
    %3606 = vmatprep.subr.bf16.mxu0 0
    %3607 = vmatpush1.bf16.msra.mxu0 0
    %3608 = vmatprep.subr.bf16.mxu0 0
    %3609 = vmatpush1.bf16.msra.mxu0 0
    %3610 = vmatprep.subr.bf16.mxu0 0
    %3611 = vmatpush1.bf16.msra.mxu0 0
    %3612 = vmatprep.subr.bf16.mxu0 0
    %3613 = vmatpush1.bf16.msra.mxu0 0
    %3614 = vmatprep.subr.bf16.mxu0 0
    %3615 = vmatpush1.bf16.msra.mxu0 0
    %3616 = vmatprep.mubr.bf16.mxu0 0
    %3617 = vmatmul.mubr.bf16.gmra.mrb[0].mxu0 %v3583
    %v3618 = vpop.f32.mrb[0].mxu0
    %v3619 = vadd.f32 0.0, %v3618
    %v3620 = vpop.f32.mrb[0].mxu0
    %v3621 = vpop.f32.mrb[0].mxu0
    %v3622 = vpop.f32.mrb[0].mxu0
    %3623 = vdwg.mxu0
    %v3624 = vpack.c.bf16 %v3619, %v3619
    %3625 = vmatprep.subr.bf16.mxu0 0
    %3626 = vmatpush1.bf16.msra.mxu0 %v1890
    %3627 = vmatprep.subr.bf16.mxu0 0
    %3628 = vmatpush1.bf16.msra.mxu0 %v1891
    %3629 = vmatprep.subr.bf16.mxu0 0
    %3630 = vmatpush1.bf16.msra.mxu0 %v1892
    %3631 = vmatprep.subr.bf16.mxu0 0
    %3632 = vmatpush1.bf16.msra.mxu0 %v1893
    %3633 = vmatprep.subr.bf16.mxu0 0
    %3634 = vmatpush1.bf16.msra.mxu0 %v1894
    %3635 = vmatprep.subr.bf16.mxu0 0
    %3636 = vmatpush1.bf16.msra.mxu0 %v1895
    %3637 = vmatprep.subr.bf16.mxu0 0
    %3638 = vmatpush1.bf16.msra.mxu0 %v1896
    %3639 = vmatprep.subr.bf16.mxu0 0
    %3640 = vmatpush1.bf16.msra.mxu0 %v1897
    %3641 = vmatprep.subr.bf16.mxu0 0
    %3642 = vmatpush1.bf16.msra.mxu0 %v1898
    %3643 = vmatprep.subr.bf16.mxu0 0
    %3644 = vmatpush1.bf16.msra.mxu0 %v1899
    %3645 = vmatprep.subr.bf16.mxu0 0
    %3646 = vmatpush1.bf16.msra.mxu0 %v1900
    %3647 = vmatprep.subr.bf16.mxu0 0
    %3648 = vmatpush1.bf16.msra.mxu0 %v1901
    %3649 = vmatprep.subr.bf16.mxu0 0
    %3650 = vmatpush1.bf16.msra.mxu0 %v1902
    %3651 = vmatprep.subr.bf16.mxu0 0
    %3652 = vmatpush1.bf16.msra.mxu0 %v1903
    %3653 = vmatprep.subr.bf16.mxu0 0
    %3654 = vmatpush1.bf16.msra.mxu0 %v1904
    %3655 = vmatprep.subr.bf16.mxu0 0
    %3656 = vmatpush1.bf16.msra.mxu0 %v1905
    %3657 = vmatprep.mubr.bf16.mxu0 %v3624
    %3658 = vmatmul.mubr.bf16.gmra.mrb[0].mxu0 %v3531
    %v3659 = vpop.f32.mrb[0].mxu0
    %v3660 = vadd.f32 %v1912, %v3659
    %v3661 = vpop.f32.mrb[0].mxu0
    %v3662 = vpop.f32.mrb[0].mxu0
    %v3663 = vpop.f32.mrb[0].mxu0
    %3664 = vdwg.mxu0
    %v3665 = vtanh.pop %v3660
    %v3666 = vpack.c.bf16 %v3665, %v3665
    %3667 = vmatprep.subr.bf16.mxu0 %v1955
    %3668 = vmatpush1.bf16.msra.mxu0 %v1954
    %3669 = vmatprep.subr.bf16.mxu0 %v1958
    %3670 = vmatpush1.bf16.msra.mxu0 %v1957
    %3671 = vmatprep.subr.bf16.mxu0 %v1961
    %3672 = vmatpush1.bf16.msra.mxu0 %v1960
    %3673 = vmatprep.subr.bf16.mxu0 %v1964
    %3674 = vmatpush1.bf16.msra.mxu0 %v1963
    %3675 = vmatprep.subr.bf16.mxu0 %v1967
    %3676 = vmatpush1.bf16.msra.mxu0 %v1966
    %3677 = vmatprep.subr.bf16.mxu0 %v1970
    %3678 = vmatpush1.bf16.msra.mxu0 %v1969
    %3679 = vmatprep.subr.bf16.mxu0 %v1973
    %3680 = vmatpush1.bf16.msra.mxu0 %v1972
    %3681 = vmatprep.subr.bf16.mxu0 %v1976
    %3682 = vmatpush1.bf16.msra.mxu0 %v1975
    %3683 = vmatprep.subr.bf16.mxu0 0
    %3684 = vmatpush1.bf16.msra.mxu0 0
    %3685 = vmatprep.subr.bf16.mxu0 0
    %3686 = vmatpush1.bf16.msra.mxu0 0
    %3687 = vmatprep.subr.bf16.mxu0 0
    %3688 = vmatpush1.bf16.msra.mxu0 0
    %3689 = vmatprep.subr.bf16.mxu0 0
    %3690 = vmatpush1.bf16.msra.mxu0 0
    %3691 = vmatprep.subr.bf16.mxu0 0
    %3692 = vmatpush1.bf16.msra.mxu0 0
    %3693 = vmatprep.subr.bf16.mxu0 0
    %3694 = vmatpush1.bf16.msra.mxu0 0
    %3695 = vmatprep.subr.bf16.mxu0 0
    %3696 = vmatpush1.bf16.msra.mxu0 0
    %3697 = vmatprep.subr.bf16.mxu0 0
    %3698 = vmatpush1.bf16.msra.mxu0 0
    %3699 = vmatprep.mubr.bf16.mxu0 0
    %3700 = vmatmul.mubr.bf16.gmra.mrb[0].mxu0 %v3666
    %v3701 = vpop.f32.mrb[0].mxu0
    %v3702 = vadd.f32 %v1988, %v3701
    %v3703 = vpop.f32.mrb[0].mxu0
    %v3704 = vadd.f32 %v1992, %v3703
    %v3705 = vpop.f32.mrb[0].mxu0
    %v3706 = vpop.f32.mrb[0].mxu0
    %3707 = vdwg.mxu0
    %3708 = vmatprep.subr.bf16.mxu0 0
    %3709 = vmatpush1.bf16.msra.mxu0 %v1956
    %3710 = vmatprep.subr.bf16.mxu0 0
    %3711 = vmatpush1.bf16.msra.mxu0 %v1959
    %3712 = vmatprep.subr.bf16.mxu0 0
    %3713 = vmatpush1.bf16.msra.mxu0 %v1962
    %3714 = vmatprep.subr.bf16.mxu0 0
    %3715 = vmatpush1.bf16.msra.mxu0 %v1965
    %3716 = vmatprep.subr.bf16.mxu0 0
    %3717 = vmatpush1.bf16.msra.mxu0 %v1968
    %3718 = vmatprep.subr.bf16.mxu0 0
    %3719 = vmatpush1.bf16.msra.mxu0 %v1971
    %3720 = vmatprep.subr.bf16.mxu0 0
    %3721 = vmatpush1.bf16.msra.mxu0 %v1974
    %3722 = vmatprep.subr.bf16.mxu0 0
    %3723 = vmatpush1.bf16.msra.mxu0 %v1977
    %3724 = vmatprep.subr.bf16.mxu0 0
    %3725 = vmatpush1.bf16.msra.mxu0 0
    %3726 = vmatprep.subr.bf16.mxu0 0
    %3727 = vmatpush1.bf16.msra.mxu0 0
    %3728 = vmatprep.subr.bf16.mxu0 0
    %3729 = vmatpush1.bf16.msra.mxu0 0
    %3730 = vmatprep.subr.bf16.mxu0 0
    %3731 = vmatpush1.bf16.msra.mxu0 0
    %3732 = vmatprep.subr.bf16.mxu0 0
    %3733 = vmatpush1.bf16.msra.mxu0 0
    %3734 = vmatprep.subr.bf16.mxu0 0
    %3735 = vmatpush1.bf16.msra.mxu0 0
    %3736 = vmatprep.subr.bf16.mxu0 0
    %3737 = vmatpush1.bf16.msra.mxu0 0
    %3738 = vmatprep.subr.bf16.mxu0 0
    %3739 = vmatpush1.bf16.msra.mxu0 0
    %3740 = vmatprep.mubr.bf16.mxu0 0
    %3741 = vmatmul.mubr.bf16.gmra.mrb[0].mxu0 %v3666
    %v3742 = vpop.f32.mrb[0].mxu0
    %v3743 = vadd.f32 %v1996, %v3742
    %v3744 = vpop.f32.mrb[0].mxu0
    %v3745 = vpop.f32.mrb[0].mxu0
    %v3746 = vpop.f32.mrb[0].mxu0
    %3747 = vdwg.mxu0
    %3748 = vmatprep.subr.bf16.mxu0 %v2079
    %3749 = vmatpush1.bf16.msra.mxu0 %v2078
    %3750 = vmatprep.subr.bf16.mxu0 %v2082
    %3751 = vmatpush1.bf16.msra.mxu0 %v2081
    %3752 = vmatprep.subr.bf16.mxu0 %v2085
    %3753 = vmatpush1.bf16.msra.mxu0 %v2084
    %3754 = vmatprep.subr.bf16.mxu0 %v2088
    %3755 = vmatpush1.bf16.msra.mxu0 %v2087
    %3756 = vmatprep.subr.bf16.mxu0 %v2091
    %3757 = vmatpush1.bf16.msra.mxu0 %v2090
    %3758 = vmatprep.subr.bf16.mxu0 %v2094
    %3759 = vmatpush1.bf16.msra.mxu0 %v2093
    %3760 = vmatprep.subr.bf16.mxu0 %v2097
    %3761 = vmatpush1.bf16.msra.mxu0 %v2096
    %3762 = vmatprep.subr.bf16.mxu0 %v2100
    %3763 = vmatpush1.bf16.msra.mxu0 %v2099
    %3764 = vmatprep.subr.bf16.mxu0 0
    %3765 = vmatpush1.bf16.msra.mxu0 0
    %3766 = vmatprep.subr.bf16.mxu0 0
    %3767 = vmatpush1.bf16.msra.mxu0 0
    %3768 = vmatprep.subr.bf16.mxu0 0
    %3769 = vmatpush1.bf16.msra.mxu0 0
    %3770 = vmatprep.subr.bf16.mxu0 0
    %3771 = vmatpush1.bf16.msra.mxu0 0
    %3772 = vmatprep.subr.bf16.mxu0 0
    %3773 = vmatpush1.bf16.msra.mxu0 0
    %3774 = vmatprep.subr.bf16.mxu0 0
    %3775 = vmatpush1.bf16.msra.mxu0 0
    %3776 = vmatprep.subr.bf16.mxu0 0
    %3777 = vmatpush1.bf16.msra.mxu0 0
    %3778 = vmatprep.subr.bf16.mxu0 0
    %3779 = vmatpush1.bf16.msra.mxu0 0
    %3780 = vmatprep.mubr.bf16.mxu0 0
    %3781 = vmatmul.mubr.bf16.gmra.mrb[0].mxu0 %v3448
    %v3782 = vpop.f32.mrb[0].mxu0
    %v3783 = vadd.f32 %v2112, %v3782
    %v3784 = vpop.f32.mrb[0].mxu0
    %v3785 = vadd.f32 %v2116, %v3784
    %v3786 = vpop.f32.mrb[0].mxu0
    %v3787 = vpop.f32.mrb[0].mxu0
    %3788 = vdwg.mxu0
    %3789 = vmatprep.subr.bf16.mxu0 0
    %3790 = vmatpush1.bf16.msra.mxu0 %v2080
    %3791 = vmatprep.subr.bf16.mxu0 0
    %3792 = vmatpush1.bf16.msra.mxu0 %v2083
    %3793 = vmatprep.subr.bf16.mxu0 0
    %3794 = vmatpush1.bf16.msra.mxu0 %v2086
    %3795 = vmatprep.subr.bf16.mxu0 0
    %3796 = vmatpush1.bf16.msra.mxu0 %v2089
    %3797 = vmatprep.subr.bf16.mxu0 0
    %3798 = vmatpush1.bf16.msra.mxu0 %v2092
    %3799 = vmatprep.subr.bf16.mxu0 0
    %3800 = vmatpush1.bf16.msra.mxu0 %v2095
    %3801 = vmatprep.subr.bf16.mxu0 0
    %3802 = vmatpush1.bf16.msra.mxu0 %v2098
    %3803 = vmatprep.subr.bf16.mxu0 0
    %3804 = vmatpush1.bf16.msra.mxu0 %v2101
    %3805 = vmatprep.subr.bf16.mxu0 0
    %3806 = vmatpush1.bf16.msra.mxu0 0
    %3807 = vmatprep.subr.bf16.mxu0 0
    %3808 = vmatpush1.bf16.msra.mxu0 0
    %3809 = vmatprep.subr.bf16.mxu0 0
    %3810 = vmatpush1.bf16.msra.mxu0 0
    %3811 = vmatprep.subr.bf16.mxu0 0
    %3812 = vmatpush1.bf16.msra.mxu0 0
    %3813 = vmatprep.subr.bf16.mxu0 0
    %3814 = vmatpush1.bf16.msra.mxu0 0
    %3815 = vmatprep.subr.bf16.mxu0 0
    %3816 = vmatpush1.bf16.msra.mxu0 0
    %3817 = vmatprep.subr.bf16.mxu0 0
    %3818 = vmatpush1.bf16.msra.mxu0 0
    %3819 = vmatprep.subr.bf16.mxu0 0
    %3820 = vmatpush1.bf16.msra.mxu0 0
    %3821 = vmatprep.mubr.bf16.mxu0 0
    %3822 = vmatmul.mubr.bf16.gmra.mrb[0].mxu0 %v3448
    %v3823 = vpop.f32.mrb[0].mxu0
    %v3824 = vadd.f32 %v2120, %v3823
    %v3825 = vpop.f32.mrb[0].mxu0
    %v3826 = vpop.f32.mrb[0].mxu0
    %v3827 = vpop.f32.mrb[0].mxu0
    %3828 = vdwg.mxu0
    %v3829 = vadd.f32 %v3702, %v3783
    %v3830 = vxor.u32 %v3829, 2147483648
    %v3831 = vmul.f32 %v3830, 1.442695
    %v3832 = vpow.pop %v3831
    %v3833 = vadd.f32 %v3832, 1.0
    %v3834 = vrcp.pop %v3833
    %v3835 = vmul.f32 1.0, %v3834
    %v3836 = vadd.f32 %v3704, %v3785
    %v3837 = vxor.u32 %v3836, 2147483648
    %v3838 = vmul.f32 %v3837, 1.442695
    %v3839 = vpow.pop %v3838
    %v3840 = vadd.f32 %v3839, 1.0
    %v3841 = vrcp.pop %v3840
    %v3842 = vmul.f32 1.0, %v3841
    %v3843 = vmul.f32 %v3835, %v3824
    %v3844 = vadd.f32 %v3743, %v3843
    %v3845 = vtanh.pop %v3844
    %v3846 = vsub.f32 %v3447, %v3845
    %v3847 = vmul.f32 %v3842, %v3846
    %v3848 = vadd.f32 %v3845, %v3847
    %v3849 = vpack.c.bf16 %v3848, %v3848
    %3850 = vmatprep.subr.bf16.mxu0 0
    %3851 = vmatpush1.bf16.msra.mxu0 %v2231
    %3852 = vmatprep.subr.bf16.mxu0 0
    %3853 = vmatpush1.bf16.msra.mxu0 %v2232
    %3854 = vmatprep.subr.bf16.mxu0 0
    %3855 = vmatpush1.bf16.msra.mxu0 %v2233
    %3856 = vmatprep.subr.bf16.mxu0 0
    %3857 = vmatpush1.bf16.msra.mxu0 %v2234
    %3858 = vmatprep.subr.bf16.mxu0 0
    %3859 = vmatpush1.bf16.msra.mxu0 %v2235
    %3860 = vmatprep.subr.bf16.mxu0 0
    %3861 = vmatpush1.bf16.msra.mxu0 %v2236
    %3862 = vmatprep.subr.bf16.mxu0 0
    %3863 = vmatpush1.bf16.msra.mxu0 %v2237
    %3864 = vmatprep.subr.bf16.mxu0 0
    %3865 = vmatpush1.bf16.msra.mxu0 %v2238
    %3866 = vmatprep.subr.bf16.mxu0 0
    %3867 = vmatpush1.bf16.msra.mxu0 0
    %3868 = vmatprep.subr.bf16.mxu0 0
    %3869 = vmatpush1.bf16.msra.mxu0 0
    %3870 = vmatprep.subr.bf16.mxu0 0
    %3871 = vmatpush1.bf16.msra.mxu0 0
    %3872 = vmatprep.subr.bf16.mxu0 0
    %3873 = vmatpush1.bf16.msra.mxu0 0
    %3874 = vmatprep.subr.bf16.mxu0 0
    %3875 = vmatpush1.bf16.msra.mxu0 0
    %3876 = vmatprep.subr.bf16.mxu0 0
    %3877 = vmatpush1.bf16.msra.mxu0 0
    %3878 = vmatprep.subr.bf16.mxu0 0
    %3879 = vmatpush1.bf16.msra.mxu0 0
    %3880 = vmatprep.subr.bf16.mxu0 0
    %3881 = vmatpush1.bf16.msra.mxu0 0
    %3882 = vmatprep.mubr.bf16.mxu0 0
    %3883 = vmatmul.mubr.bf16.gmra.mrb[0].mxu0 %v3849
    %v3884 = vpop.f32.mrb[0].mxu0
    %v3885 = vadd.f32 %v2245, %v3884
    %v3886 = vpop.f32.mrb[0].mxu0
    %v3887 = vpop.f32.mrb[0].mxu0
    %v3888 = vpop.f32.mrb[0].mxu0
    %3889 = vdwg.mxu0
    %v3890 = vtanh.pop %v3885
    %v3891 = vpack.c.bf16 %v3890, %v3890
    %3892 = vmatprep.subr.bf16.mxu0 0
    %3893 = vmatpush1.bf16.msra.mxu0 %v1716
    %3894 = vmatprep.subr.bf16.mxu0 0
    %3895 = vmatpush1.bf16.msra.mxu0 %v1717
    %3896 = vmatprep.subr.bf16.mxu0 0
    %3897 = vmatpush1.bf16.msra.mxu0 %v1718
    %3898 = vmatprep.subr.bf16.mxu0 0
    %3899 = vmatpush1.bf16.msra.mxu0 %v1719
    %3900 = vmatprep.subr.bf16.mxu0 0
    %3901 = vmatpush1.bf16.msra.mxu0 %v1720
    %3902 = vmatprep.subr.bf16.mxu0 0
    %3903 = vmatpush1.bf16.msra.mxu0 %v1721
    %3904 = vmatprep.subr.bf16.mxu0 0
    %3905 = vmatpush1.bf16.msra.mxu0 %v1722
    %3906 = vmatprep.subr.bf16.mxu0 0
    %3907 = vmatpush1.bf16.msra.mxu0 %v1723
    %3908 = vmatprep.subr.bf16.mxu0 0
    %3909 = vmatpush1.bf16.msra.mxu0 0
    %3910 = vmatprep.subr.bf16.mxu0 0
    %3911 = vmatpush1.bf16.msra.mxu0 0
    %3912 = vmatprep.subr.bf16.mxu0 0
    %3913 = vmatpush1.bf16.msra.mxu0 0
    %3914 = vmatprep.subr.bf16.mxu0 0
    %3915 = vmatpush1.bf16.msra.mxu0 0
    %3916 = vmatprep.subr.bf16.mxu0 0
    %3917 = vmatpush1.bf16.msra.mxu0 0
    %3918 = vmatprep.subr.bf16.mxu0 0
    %3919 = vmatpush1.bf16.msra.mxu0 0
    %3920 = vmatprep.subr.bf16.mxu0 0
    %3921 = vmatpush1.bf16.msra.mxu0 0
    %3922 = vmatprep.subr.bf16.mxu0 0
    %3923 = vmatpush1.bf16.msra.mxu0 0
    %3924 = vmatprep.mubr.bf16.mxu0 0
    %3925 = vmatmul.mubr.bf16.gmra.mrb[0].mxu0 %v3891
    %v3926 = vpop.f32.mrb[0].mxu0
    %v3927 = vadd.f32 %v1729, %v3926
    %v3928 = vpop.f32.mrb[0].mxu0
    %v3929 = vpop.f32.mrb[0].mxu0
    %v3930 = vpop.f32.mrb[0].mxu0
    %3931 = vdwg.mxu0
    %v3932 = vpack.c.bf16 %v3927, %v3927
    %3933 = vmatprep.subr.bf16.mxu0 0
    %3934 = vmatpush1.bf16.msra.mxu0 %v1772
    %3935 = vmatprep.subr.bf16.mxu0 0
    %3936 = vmatpush1.bf16.msra.mxu0 %v1773
    %3937 = vmatprep.subr.bf16.mxu0 0
    %3938 = vmatpush1.bf16.msra.mxu0 %v1774
    %3939 = vmatprep.subr.bf16.mxu0 0
    %3940 = vmatpush1.bf16.msra.mxu0 %v1775
    %3941 = vmatprep.subr.bf16.mxu0 0
    %3942 = vmatpush1.bf16.msra.mxu0 %v1776
    %3943 = vmatprep.subr.bf16.mxu0 0
    %3944 = vmatpush1.bf16.msra.mxu0 %v1777
    %3945 = vmatprep.subr.bf16.mxu0 0
    %3946 = vmatpush1.bf16.msra.mxu0 %v1778
    %3947 = vmatprep.subr.bf16.mxu0 0
    %3948 = vmatpush1.bf16.msra.mxu0 %v1779
    %3949 = vmatprep.subr.bf16.mxu0 0
    %3950 = vmatpush1.bf16.msra.mxu0 %v1780
    %3951 = vmatprep.subr.bf16.mxu0 0
    %3952 = vmatpush1.bf16.msra.mxu0 %v1781
    %3953 = vmatprep.subr.bf16.mxu0 0
    %3954 = vmatpush1.bf16.msra.mxu0 %v1782
    %3955 = vmatprep.subr.bf16.mxu0 0
    %3956 = vmatpush1.bf16.msra.mxu0 %v1783
    %3957 = vmatprep.subr.bf16.mxu0 0
    %3958 = vmatpush1.bf16.msra.mxu0 %v1784
    %3959 = vmatprep.subr.bf16.mxu0 0
    %3960 = vmatpush1.bf16.msra.mxu0 %v1785
    %3961 = vmatprep.subr.bf16.mxu0 0
    %3962 = vmatpush1.bf16.msra.mxu0 %v1786
    %3963 = vmatprep.subr.bf16.mxu0 0
    %3964 = vmatpush1.bf16.msra.mxu0 %v1787
    %3965 = vmatprep.mubr.bf16.mxu0 %v3849
    %3966 = vmatmul.mubr.bf16.gmra.mrb[0].mxu0 %v3932
    %v3967 = vpop.f32.mrb[0].mxu0
    %v3968 = vadd.f32 %v1795, %v3967
    %v3969 = vpop.f32.mrb[0].mxu0
    %v3970 = vpop.f32.mrb[0].mxu0
    %v3971 = vpop.f32.mrb[0].mxu0
    %3972 = vdwg.mxu0
    %v3973 = vsel %vm1528, %v3968, -inf
    %3974 = vmax.xlane.f32.xlu0 %v3973
    %v3975 = vpop.xlane.xlu0 %3974
    %v3976 = vsub.f32 %v3968, %v3975
    %v3977 = vmul.f32 %v3976, 1.442695
    %v3978 = vpow.pop %v3977
    %v3979 = vsel %vm1528, %v3978, 0.0
    %3980 = vadd.xlane.f32.xlu0 %v3979
    %v3981 = vpop.xlane.xlu0 %3980
    %v3982 = vrcp.pop %v3981
    %v3983 = vmul.f32 %v3978, %v3982
    %v3984 = vpack.c.bf16 %v3983, %v3983
    %3985 = vmatprep.subr.bf16.mxu0 0
    %3986 = vmatpush1.bf16.msra.mxu0 %v1848
    %3987 = vmatprep.subr.bf16.mxu0 0
    %3988 = vmatpush1.bf16.msra.mxu0 %v1849
    %3989 = vmatprep.subr.bf16.mxu0 0
    %3990 = vmatpush1.bf16.msra.mxu0 %v1849
    %3991 = vmatprep.subr.bf16.mxu0 0
    %3992 = vmatpush1.bf16.msra.mxu0 %v1849
    %3993 = vmatprep.subr.bf16.mxu0 0
    %3994 = vmatpush1.bf16.msra.mxu0 %v1849
    %3995 = vmatprep.subr.bf16.mxu0 0
    %3996 = vmatpush1.bf16.msra.mxu0 %v1849
    %3997 = vmatprep.subr.bf16.mxu0 0
    %3998 = vmatpush1.bf16.msra.mxu0 %v1849
    %3999 = vmatprep.subr.bf16.mxu0 0
    %4000 = vmatpush1.bf16.msra.mxu0 %v1849
    %4001 = vmatprep.subr.bf16.mxu0 0
    %4002 = vmatpush1.bf16.msra.mxu0 0
    %4003 = vmatprep.subr.bf16.mxu0 0
    %4004 = vmatpush1.bf16.msra.mxu0 0
    %4005 = vmatprep.subr.bf16.mxu0 0
    %4006 = vmatpush1.bf16.msra.mxu0 0
    %4007 = vmatprep.subr.bf16.mxu0 0
    %4008 = vmatpush1.bf16.msra.mxu0 0
    %4009 = vmatprep.subr.bf16.mxu0 0
    %4010 = vmatpush1.bf16.msra.mxu0 0
    %4011 = vmatprep.subr.bf16.mxu0 0
    %4012 = vmatpush1.bf16.msra.mxu0 0
    %4013 = vmatprep.subr.bf16.mxu0 0
    %4014 = vmatpush1.bf16.msra.mxu0 0
    %4015 = vmatprep.subr.bf16.mxu0 0
    %4016 = vmatpush1.bf16.msra.mxu0 0
    %4017 = vmatprep.mubr.bf16.mxu0 0
    %4018 = vmatmul.mubr.bf16.gmra.mrb[0].mxu0 %v3984
    %v4019 = vpop.f32.mrb[0].mxu0
    %v4020 = vadd.f32 0.0, %v4019
    %v4021 = vpop.f32.mrb[0].mxu0
    %v4022 = vpop.f32.mrb[0].mxu0
    %v4023 = vpop.f32.mrb[0].mxu0
    %4024 = vdwg.mxu0
    %v4025 = vpack.c.bf16 %v4020, %v4020
    %4026 = vmatprep.subr.bf16.mxu0 0
    %4027 = vmatpush1.bf16.msra.mxu0 %v1890
    %4028 = vmatprep.subr.bf16.mxu0 0
    %4029 = vmatpush1.bf16.msra.mxu0 %v1891
    %4030 = vmatprep.subr.bf16.mxu0 0
    %4031 = vmatpush1.bf16.msra.mxu0 %v1892
    %4032 = vmatprep.subr.bf16.mxu0 0
    %4033 = vmatpush1.bf16.msra.mxu0 %v1893
    %4034 = vmatprep.subr.bf16.mxu0 0
    %4035 = vmatpush1.bf16.msra.mxu0 %v1894
    %4036 = vmatprep.subr.bf16.mxu0 0
    %4037 = vmatpush1.bf16.msra.mxu0 %v1895
    %4038 = vmatprep.subr.bf16.mxu0 0
    %4039 = vmatpush1.bf16.msra.mxu0 %v1896
    %4040 = vmatprep.subr.bf16.mxu0 0
    %4041 = vmatpush1.bf16.msra.mxu0 %v1897
    %4042 = vmatprep.subr.bf16.mxu0 0
    %4043 = vmatpush1.bf16.msra.mxu0 %v1898
    %4044 = vmatprep.subr.bf16.mxu0 0
    %4045 = vmatpush1.bf16.msra.mxu0 %v1899
    %4046 = vmatprep.subr.bf16.mxu0 0
    %4047 = vmatpush1.bf16.msra.mxu0 %v1900
    %4048 = vmatprep.subr.bf16.mxu0 0
    %4049 = vmatpush1.bf16.msra.mxu0 %v1901
    %4050 = vmatprep.subr.bf16.mxu0 0
    %4051 = vmatpush1.bf16.msra.mxu0 %v1902
    %4052 = vmatprep.subr.bf16.mxu0 0
    %4053 = vmatpush1.bf16.msra.mxu0 %v1903
    %4054 = vmatprep.subr.bf16.mxu0 0
    %4055 = vmatpush1.bf16.msra.mxu0 %v1904
    %4056 = vmatprep.subr.bf16.mxu0 0
    %4057 = vmatpush1.bf16.msra.mxu0 %v1905
    %4058 = vmatprep.mubr.bf16.mxu0 %v4025
    %4059 = vmatmul.mubr.bf16.gmra.mrb[0].mxu0 %v3932
    %v4060 = vpop.f32.mrb[0].mxu0
    %v4061 = vadd.f32 %v1912, %v4060
    %v4062 = vpop.f32.mrb[0].mxu0
    %v4063 = vpop.f32.mrb[0].mxu0
    %v4064 = vpop.f32.mrb[0].mxu0
    %4065 = vdwg.mxu0
    %v4066 = vtanh.pop %v4061
    %v4067 = vpack.c.bf16 %v4066, %v4066
    %4068 = vmatprep.subr.bf16.mxu0 %v1955
    %4069 = vmatpush1.bf16.msra.mxu0 %v1954
    %4070 = vmatprep.subr.bf16.mxu0 %v1958
    %4071 = vmatpush1.bf16.msra.mxu0 %v1957
    %4072 = vmatprep.subr.bf16.mxu0 %v1961
    %4073 = vmatpush1.bf16.msra.mxu0 %v1960
    %4074 = vmatprep.subr.bf16.mxu0 %v1964
    %4075 = vmatpush1.bf16.msra.mxu0 %v1963
    %4076 = vmatprep.subr.bf16.mxu0 %v1967
    %4077 = vmatpush1.bf16.msra.mxu0 %v1966
    %4078 = vmatprep.subr.bf16.mxu0 %v1970
    %4079 = vmatpush1.bf16.msra.mxu0 %v1969
    %4080 = vmatprep.subr.bf16.mxu0 %v1973
    %4081 = vmatpush1.bf16.msra.mxu0 %v1972
    %4082 = vmatprep.subr.bf16.mxu0 %v1976
    %4083 = vmatpush1.bf16.msra.mxu0 %v1975
    %4084 = vmatprep.subr.bf16.mxu0 0
    %4085 = vmatpush1.bf16.msra.mxu0 0
    %4086 = vmatprep.subr.bf16.mxu0 0
    %4087 = vmatpush1.bf16.msra.mxu0 0
    %4088 = vmatprep.subr.bf16.mxu0 0
    %4089 = vmatpush1.bf16.msra.mxu0 0
    %4090 = vmatprep.subr.bf16.mxu0 0
    %4091 = vmatpush1.bf16.msra.mxu0 0
    %4092 = vmatprep.subr.bf16.mxu0 0
    %4093 = vmatpush1.bf16.msra.mxu0 0
    %4094 = vmatprep.subr.bf16.mxu0 0
    %4095 = vmatpush1.bf16.msra.mxu0 0
    %4096 = vmatprep.subr.bf16.mxu0 0
    %4097 = vmatpush1.bf16.msra.mxu0 0
    %4098 = vmatprep.subr.bf16.mxu0 0
    %4099 = vmatpush1.bf16.msra.mxu0 0
    %4100 = vmatprep.mubr.bf16.mxu0 0
    %4101 = vmatmul.mubr.bf16.gmra.mrb[0].mxu0 %v4067
    %v4102 = vpop.f32.mrb[0].mxu0
    %v4103 = vadd.f32 %v1988, %v4102
    %v4104 = vpop.f32.mrb[0].mxu0
    %v4105 = vadd.f32 %v1992, %v4104
    %v4106 = vpop.f32.mrb[0].mxu0
    %v4107 = vpop.f32.mrb[0].mxu0
    %4108 = vdwg.mxu0
    %4109 = vmatprep.subr.bf16.mxu0 0
    %4110 = vmatpush1.bf16.msra.mxu0 %v1956
    %4111 = vmatprep.subr.bf16.mxu0 0
    %4112 = vmatpush1.bf16.msra.mxu0 %v1959
    %4113 = vmatprep.subr.bf16.mxu0 0
    %4114 = vmatpush1.bf16.msra.mxu0 %v1962
    %4115 = vmatprep.subr.bf16.mxu0 0
    %4116 = vmatpush1.bf16.msra.mxu0 %v1965
    %4117 = vmatprep.subr.bf16.mxu0 0
    %4118 = vmatpush1.bf16.msra.mxu0 %v1968
    %4119 = vmatprep.subr.bf16.mxu0 0
    %4120 = vmatpush1.bf16.msra.mxu0 %v1971
    %4121 = vmatprep.subr.bf16.mxu0 0
    %4122 = vmatpush1.bf16.msra.mxu0 %v1974
    %4123 = vmatprep.subr.bf16.mxu0 0
    %4124 = vmatpush1.bf16.msra.mxu0 %v1977
    %4125 = vmatprep.subr.bf16.mxu0 0
    %4126 = vmatpush1.bf16.msra.mxu0 0
    %4127 = vmatprep.subr.bf16.mxu0 0
    %4128 = vmatpush1.bf16.msra.mxu0 0
    %4129 = vmatprep.subr.bf16.mxu0 0
    %4130 = vmatpush1.bf16.msra.mxu0 0
    %4131 = vmatprep.subr.bf16.mxu0 0
    %4132 = vmatpush1.bf16.msra.mxu0 0
    %4133 = vmatprep.subr.bf16.mxu0 0
    %4134 = vmatpush1.bf16.msra.mxu0 0
    %4135 = vmatprep.subr.bf16.mxu0 0
    %4136 = vmatpush1.bf16.msra.mxu0 0
    %4137 = vmatprep.subr.bf16.mxu0 0
    %4138 = vmatpush1.bf16.msra.mxu0 0
    %4139 = vmatprep.subr.bf16.mxu0 0
    %4140 = vmatpush1.bf16.msra.mxu0 0
    %4141 = vmatprep.mubr.bf16.mxu0 0
    %4142 = vmatmul.mubr.bf16.gmra.mrb[0].mxu0 %v4067
    %v4143 = vpop.f32.mrb[0].mxu0
    %v4144 = vadd.f32 %v1996, %v4143
    %v4145 = vpop.f32.mrb[0].mxu0
    %v4146 = vpop.f32.mrb[0].mxu0
    %v4147 = vpop.f32.mrb[0].mxu0
    %4148 = vdwg.mxu0
    %4149 = vmatprep.subr.bf16.mxu0 %v2079
    %4150 = vmatpush1.bf16.msra.mxu0 %v2078
    %4151 = vmatprep.subr.bf16.mxu0 %v2082
    %4152 = vmatpush1.bf16.msra.mxu0 %v2081
    %4153 = vmatprep.subr.bf16.mxu0 %v2085
    %4154 = vmatpush1.bf16.msra.mxu0 %v2084
    %4155 = vmatprep.subr.bf16.mxu0 %v2088
    %4156 = vmatpush1.bf16.msra.mxu0 %v2087
    %4157 = vmatprep.subr.bf16.mxu0 %v2091
    %4158 = vmatpush1.bf16.msra.mxu0 %v2090
    %4159 = vmatprep.subr.bf16.mxu0 %v2094
    %4160 = vmatpush1.bf16.msra.mxu0 %v2093
    %4161 = vmatprep.subr.bf16.mxu0 %v2097
    %4162 = vmatpush1.bf16.msra.mxu0 %v2096
    %4163 = vmatprep.subr.bf16.mxu0 %v2100
    %4164 = vmatpush1.bf16.msra.mxu0 %v2099
    %4165 = vmatprep.subr.bf16.mxu0 0
    %4166 = vmatpush1.bf16.msra.mxu0 0
    %4167 = vmatprep.subr.bf16.mxu0 0
    %4168 = vmatpush1.bf16.msra.mxu0 0
    %4169 = vmatprep.subr.bf16.mxu0 0
    %4170 = vmatpush1.bf16.msra.mxu0 0
    %4171 = vmatprep.subr.bf16.mxu0 0
    %4172 = vmatpush1.bf16.msra.mxu0 0
    %4173 = vmatprep.subr.bf16.mxu0 0
    %4174 = vmatpush1.bf16.msra.mxu0 0
    %4175 = vmatprep.subr.bf16.mxu0 0
    %4176 = vmatpush1.bf16.msra.mxu0 0
    %4177 = vmatprep.subr.bf16.mxu0 0
    %4178 = vmatpush1.bf16.msra.mxu0 0
    %4179 = vmatprep.subr.bf16.mxu0 0
    %4180 = vmatpush1.bf16.msra.mxu0 0
    %4181 = vmatprep.mubr.bf16.mxu0 0
    %4182 = vmatmul.mubr.bf16.gmra.mrb[0].mxu0 %v3849
    %v4183 = vpop.f32.mrb[0].mxu0
    %v4184 = vadd.f32 %v2112, %v4183
    %v4185 = vpop.f32.mrb[0].mxu0
    %v4186 = vadd.f32 %v2116, %v4185
    %v4187 = vpop.f32.mrb[0].mxu0
    %v4188 = vpop.f32.mrb[0].mxu0
    %4189 = vdwg.mxu0
    %4190 = vmatprep.subr.bf16.mxu0 0
    %4191 = vmatpush1.bf16.msra.mxu0 %v2080
    %4192 = vmatprep.subr.bf16.mxu0 0
    %4193 = vmatpush1.bf16.msra.mxu0 %v2083
    %4194 = vmatprep.subr.bf16.mxu0 0
    %4195 = vmatpush1.bf16.msra.mxu0 %v2086
    %4196 = vmatprep.subr.bf16.mxu0 0
    %4197 = vmatpush1.bf16.msra.mxu0 %v2089
    %4198 = vmatprep.subr.bf16.mxu0 0
    %4199 = vmatpush1.bf16.msra.mxu0 %v2092
    %4200 = vmatprep.subr.bf16.mxu0 0
    %4201 = vmatpush1.bf16.msra.mxu0 %v2095
    %4202 = vmatprep.subr.bf16.mxu0 0
    %4203 = vmatpush1.bf16.msra.mxu0 %v2098
    %4204 = vmatprep.subr.bf16.mxu0 0
    %4205 = vmatpush1.bf16.msra.mxu0 %v2101
    %4206 = vmatprep.subr.bf16.mxu0 0
    %4207 = vmatpush1.bf16.msra.mxu0 0
    %4208 = vmatprep.subr.bf16.mxu0 0
    %4209 = vmatpush1.bf16.msra.mxu0 0
    %4210 = vmatprep.subr.bf16.mxu0 0
    %4211 = vmatpush1.bf16.msra.mxu0 0
    %4212 = vmatprep.subr.bf16.mxu0 0
    %4213 = vmatpush1.bf16.msra.mxu0 0
    %4214 = vmatprep.subr.bf16.mxu0 0
    %4215 = vmatpush1.bf16.msra.mxu0 0
    %4216 = vmatprep.subr.bf16.mxu0 0
    %4217 = vmatpush1.bf16.msra.mxu0 0
    %4218 = vmatprep.subr.bf16.mxu0 0
    %4219 = vmatpush1.bf16.msra.mxu0 0
    %4220 = vmatprep.subr.bf16.mxu0 0
    %4221 = vmatpush1.bf16.msra.mxu0 0
    %4222 = vmatprep.mubr.bf16.mxu0 0
    %4223 = vmatmul.mubr.bf16.gmra.mrb[0].mxu0 %v3849
    %v4224 = vpop.f32.mrb[0].mxu0
    %v4225 = vadd.f32 %v2120, %v4224
    %v4226 = vpop.f32.mrb[0].mxu0
    %v4227 = vpop.f32.mrb[0].mxu0
    %v4228 = vpop.f32.mrb[0].mxu0
    %4229 = vdwg.mxu0
    %v4230 = vadd.f32 %v4103, %v4184
    %v4231 = vxor.u32 %v4230, 2147483648
    %v4232 = vmul.f32 %v4231, 1.442695
    %v4233 = vpow.pop %v4232
    %v4234 = vadd.f32 %v4233, 1.0
    %v4235 = vrcp.pop %v4234
    %v4236 = vmul.f32 1.0, %v4235
    %v4237 = vadd.f32 %v4105, %v4186
    %v4238 = vxor.u32 %v4237, 2147483648
    %v4239 = vmul.f32 %v4238, 1.442695
    %v4240 = vpow.pop %v4239
    %v4241 = vadd.f32 %v4240, 1.0
    %v4242 = vrcp.pop %v4241
    %v4243 = vmul.f32 1.0, %v4242
    %v4244 = vmul.f32 %v4236, %v4225
    %v4245 = vadd.f32 %v4144, %v4244
    %v4246 = vtanh.pop %v4245
    %v4247 = vsub.f32 %v3848, %v4246
    %v4248 = vmul.f32 %v4243, %v4247
    %v4249 = vadd.f32 %v4246, %v4248
    %v4250 = vpack.c.bf16 %v4249, %v4249
    %4251 = vmatprep.subr.bf16.mxu0 0
    %4252 = vmatpush1.bf16.msra.mxu0 %v2231
    %4253 = vmatprep.subr.bf16.mxu0 0
    %4254 = vmatpush1.bf16.msra.mxu0 %v2232
    %4255 = vmatprep.subr.bf16.mxu0 0
    %4256 = vmatpush1.bf16.msra.mxu0 %v2233
    %4257 = vmatprep.subr.bf16.mxu0 0
    %4258 = vmatpush1.bf16.msra.mxu0 %v2234
    %4259 = vmatprep.subr.bf16.mxu0 0
    %4260 = vmatpush1.bf16.msra.mxu0 %v2235
    %4261 = vmatprep.subr.bf16.mxu0 0
    %4262 = vmatpush1.bf16.msra.mxu0 %v2236
    %4263 = vmatprep.subr.bf16.mxu0 0
    %4264 = vmatpush1.bf16.msra.mxu0 %v2237
    %4265 = vmatprep.subr.bf16.mxu0 0
    %4266 = vmatpush1.bf16.msra.mxu0 %v2238
    %4267 = vmatprep.subr.bf16.mxu0 0
    %4268 = vmatpush1.bf16.msra.mxu0 0
    %4269 = vmatprep.subr.bf16.mxu0 0
    %4270 = vmatpush1.bf16.msra.mxu0 0
    %4271 = vmatprep.subr.bf16.mxu0 0
    %4272 = vmatpush1.bf16.msra.mxu0 0
    %4273 = vmatprep.subr.bf16.mxu0 0
    %4274 = vmatpush1.bf16.msra.mxu0 0
    %4275 = vmatprep.subr.bf16.mxu0 0
    %4276 = vmatpush1.bf16.msra.mxu0 0
    %4277 = vmatprep.subr.bf16.mxu0 0
    %4278 = vmatpush1.bf16.msra.mxu0 0
    %4279 = vmatprep.subr.bf16.mxu0 0
    %4280 = vmatpush1.bf16.msra.mxu0 0
    %4281 = vmatprep.subr.bf16.mxu0 0
    %4282 = vmatpush1.bf16.msra.mxu0 0
    %4283 = vmatprep.mubr.bf16.mxu0 0
    %4284 = vmatmul.mubr.bf16.gmra.mrb[0].mxu0 %v4250
    %v4285 = vpop.f32.mrb[0].mxu0
    %v4286 = vadd.f32 %v2245, %v4285
    %v4287 = vpop.f32.mrb[0].mxu0
    %v4288 = vpop.f32.mrb[0].mxu0
    %v4289 = vpop.f32.mrb[0].mxu0
    %4290 = vdwg.mxu0
    %v4291 = vtanh.pop %v4286
    %v4292 = vpack.c.bf16 %v4291, %v4291
    %4293 = vmatprep.subr.bf16.mxu0 0
    %4294 = vmatpush1.bf16.msra.mxu0 %v1716
    %4295 = vmatprep.subr.bf16.mxu0 0
    %4296 = vmatpush1.bf16.msra.mxu0 %v1717
    %4297 = vmatprep.subr.bf16.mxu0 0
    %4298 = vmatpush1.bf16.msra.mxu0 %v1718
    %4299 = vmatprep.subr.bf16.mxu0 0
    %4300 = vmatpush1.bf16.msra.mxu0 %v1719
    %4301 = vmatprep.subr.bf16.mxu0 0
    %4302 = vmatpush1.bf16.msra.mxu0 %v1720
    %4303 = vmatprep.subr.bf16.mxu0 0
    %4304 = vmatpush1.bf16.msra.mxu0 %v1721
    %4305 = vmatprep.subr.bf16.mxu0 0
    %4306 = vmatpush1.bf16.msra.mxu0 %v1722
    %4307 = vmatprep.subr.bf16.mxu0 0
    %4308 = vmatpush1.bf16.msra.mxu0 %v1723
    %4309 = vmatprep.subr.bf16.mxu0 0
    %4310 = vmatpush1.bf16.msra.mxu0 0
    %4311 = vmatprep.subr.bf16.mxu0 0
    %4312 = vmatpush1.bf16.msra.mxu0 0
    %4313 = vmatprep.subr.bf16.mxu0 0
    %4314 = vmatpush1.bf16.msra.mxu0 0
    %4315 = vmatprep.subr.bf16.mxu0 0
    %4316 = vmatpush1.bf16.msra.mxu0 0
    %4317 = vmatprep.subr.bf16.mxu0 0
    %4318 = vmatpush1.bf16.msra.mxu0 0
    %4319 = vmatprep.subr.bf16.mxu0 0
    %4320 = vmatpush1.bf16.msra.mxu0 0
    %4321 = vmatprep.subr.bf16.mxu0 0
    %4322 = vmatpush1.bf16.msra.mxu0 0
    %4323 = vmatprep.subr.bf16.mxu0 0
    %4324 = vmatpush1.bf16.msra.mxu0 0
    %4325 = vmatprep.mubr.bf16.mxu0 0
    %4326 = vmatmul.mubr.bf16.gmra.mrb[0].mxu0 %v4292
    %v4327 = vpop.f32.mrb[0].mxu0
    %v4328 = vadd.f32 %v1729, %v4327
    %v4329 = vpop.f32.mrb[0].mxu0
    %v4330 = vpop.f32.mrb[0].mxu0
    %v4331 = vpop.f32.mrb[0].mxu0
    %4332 = vdwg.mxu0
    %v4333 = vpack.c.bf16 %v4328, %v4328
    %4334 = vmatprep.subr.bf16.mxu0 0
    %4335 = vmatpush1.bf16.msra.mxu0 %v1772
    %4336 = vmatprep.subr.bf16.mxu0 0
    %4337 = vmatpush1.bf16.msra.mxu0 %v1773
    %4338 = vmatprep.subr.bf16.mxu0 0
    %4339 = vmatpush1.bf16.msra.mxu0 %v1774
    %4340 = vmatprep.subr.bf16.mxu0 0
    %4341 = vmatpush1.bf16.msra.mxu0 %v1775
    %4342 = vmatprep.subr.bf16.mxu0 0
    %4343 = vmatpush1.bf16.msra.mxu0 %v1776
    %4344 = vmatprep.subr.bf16.mxu0 0
    %4345 = vmatpush1.bf16.msra.mxu0 %v1777
    %4346 = vmatprep.subr.bf16.mxu0 0
    %4347 = vmatpush1.bf16.msra.mxu0 %v1778
    %4348 = vmatprep.subr.bf16.mxu0 0
    %4349 = vmatpush1.bf16.msra.mxu0 %v1779
    %4350 = vmatprep.subr.bf16.mxu0 0
    %4351 = vmatpush1.bf16.msra.mxu0 %v1780
    %4352 = vmatprep.subr.bf16.mxu0 0
    %4353 = vmatpush1.bf16.msra.mxu0 %v1781
    %4354 = vmatprep.subr.bf16.mxu0 0
    %4355 = vmatpush1.bf16.msra.mxu0 %v1782
    %4356 = vmatprep.subr.bf16.mxu0 0
    %4357 = vmatpush1.bf16.msra.mxu0 %v1783
    %4358 = vmatprep.subr.bf16.mxu0 0
    %4359 = vmatpush1.bf16.msra.mxu0 %v1784
    %4360 = vmatprep.subr.bf16.mxu0 0
    %4361 = vmatpush1.bf16.msra.mxu0 %v1785
    %4362 = vmatprep.subr.bf16.mxu0 0
    %4363 = vmatpush1.bf16.msra.mxu0 %v1786
    %4364 = vmatprep.subr.bf16.mxu0 0
    %4365 = vmatpush1.bf16.msra.mxu0 %v1787
    %4366 = vmatprep.mubr.bf16.mxu0 %v4250
    %4367 = vmatmul.mubr.bf16.gmra.mrb[0].mxu0 %v4333
    %v4368 = vpop.f32.mrb[0].mxu0
    %v4369 = vadd.f32 %v1795, %v4368
    %v4370 = vpop.f32.mrb[0].mxu0
    %v4371 = vpop.f32.mrb[0].mxu0
    %v4372 = vpop.f32.mrb[0].mxu0
    %4373 = vdwg.mxu0
    %v4374 = vsel %vm1528, %v4369, -inf
    %4375 = vmax.xlane.f32.xlu0 %v4374
    %v4376 = vpop.xlane.xlu0 %4375
    %v4377 = vsub.f32 %v4369, %v4376
    %v4378 = vmul.f32 %v4377, 1.442695
    %v4379 = vpow.pop %v4378
    %v4380 = vsel %vm1528, %v4379, 0.0
    %4381 = vadd.xlane.f32.xlu0 %v4380
    %v4382 = vpop.xlane.xlu0 %4381
    %v4383 = vrcp.pop %v4382
    %v4384 = vmul.f32 %v4379, %v4383
    %v4385 = vpack.c.bf16 %v4384, %v4384
    %4386 = vmatprep.subr.bf16.mxu0 0
    %4387 = vmatpush1.bf16.msra.mxu0 %v1848
    %4388 = vmatprep.subr.bf16.mxu0 0
    %4389 = vmatpush1.bf16.msra.mxu0 %v1849
    %4390 = vmatprep.subr.bf16.mxu0 0
    %4391 = vmatpush1.bf16.msra.mxu0 %v1849
    %4392 = vmatprep.subr.bf16.mxu0 0
    %4393 = vmatpush1.bf16.msra.mxu0 %v1849
    %4394 = vmatprep.subr.bf16.mxu0 0
    %4395 = vmatpush1.bf16.msra.mxu0 %v1849
    %4396 = vmatprep.subr.bf16.mxu0 0
    %4397 = vmatpush1.bf16.msra.mxu0 %v1849
    %4398 = vmatprep.subr.bf16.mxu0 0
    %4399 = vmatpush1.bf16.msra.mxu0 %v1849
    %4400 = vmatprep.subr.bf16.mxu0 0
    %4401 = vmatpush1.bf16.msra.mxu0 %v1849
    %4402 = vmatprep.subr.bf16.mxu0 0
    %4403 = vmatpush1.bf16.msra.mxu0 0
    %4404 = vmatprep.subr.bf16.mxu0 0
    %4405 = vmatpush1.bf16.msra.mxu0 0
    %4406 = vmatprep.subr.bf16.mxu0 0
    %4407 = vmatpush1.bf16.msra.mxu0 0
    %4408 = vmatprep.subr.bf16.mxu0 0
    %4409 = vmatpush1.bf16.msra.mxu0 0
    %4410 = vmatprep.subr.bf16.mxu0 0
    %4411 = vmatpush1.bf16.msra.mxu0 0
    %4412 = vmatprep.subr.bf16.mxu0 0
    %4413 = vmatpush1.bf16.msra.mxu0 0
    %4414 = vmatprep.subr.bf16.mxu0 0
    %4415 = vmatpush1.bf16.msra.mxu0 0
    %4416 = vmatprep.subr.bf16.mxu0 0
    %4417 = vmatpush1.bf16.msra.mxu0 0
    %4418 = vmatprep.mubr.bf16.mxu0 0
    %4419 = vmatmul.mubr.bf16.gmra.mrb[0].mxu0 %v4385
    %v4420 = vpop.f32.mrb[0].mxu0
    %v4421 = vadd.f32 0.0, %v4420
    %v4422 = vpop.f32.mrb[0].mxu0
    %v4423 = vpop.f32.mrb[0].mxu0
    %v4424 = vpop.f32.mrb[0].mxu0
    %4425 = vdwg.mxu0
    %v4426 = vpack.c.bf16 %v4421, %v4421
    %4427 = vmatprep.subr.bf16.mxu0 0
    %4428 = vmatpush1.bf16.msra.mxu0 %v1890
    %4429 = vmatprep.subr.bf16.mxu0 0
    %4430 = vmatpush1.bf16.msra.mxu0 %v1891
    %4431 = vmatprep.subr.bf16.mxu0 0
    %4432 = vmatpush1.bf16.msra.mxu0 %v1892
    %4433 = vmatprep.subr.bf16.mxu0 0
    %4434 = vmatpush1.bf16.msra.mxu0 %v1893
    %4435 = vmatprep.subr.bf16.mxu0 0
    %4436 = vmatpush1.bf16.msra.mxu0 %v1894
    %4437 = vmatprep.subr.bf16.mxu0 0
    %4438 = vmatpush1.bf16.msra.mxu0 %v1895
    %4439 = vmatprep.subr.bf16.mxu0 0
    %4440 = vmatpush1.bf16.msra.mxu0 %v1896
    %4441 = vmatprep.subr.bf16.mxu0 0
    %4442 = vmatpush1.bf16.msra.mxu0 %v1897
    %4443 = vmatprep.subr.bf16.mxu0 0
    %4444 = vmatpush1.bf16.msra.mxu0 %v1898
    %4445 = vmatprep.subr.bf16.mxu0 0
    %4446 = vmatpush1.bf16.msra.mxu0 %v1899
    %4447 = vmatprep.subr.bf16.mxu0 0
    %4448 = vmatpush1.bf16.msra.mxu0 %v1900
    %4449 = vmatprep.subr.bf16.mxu0 0
    %4450 = vmatpush1.bf16.msra.mxu0 %v1901
    %4451 = vmatprep.subr.bf16.mxu0 0
    %4452 = vmatpush1.bf16.msra.mxu0 %v1902
    %4453 = vmatprep.subr.bf16.mxu0 0
    %4454 = vmatpush1.bf16.msra.mxu0 %v1903
    %4455 = vmatprep.subr.bf16.mxu0 0
    %4456 = vmatpush1.bf16.msra.mxu0 %v1904
    %4457 = vmatprep.subr.bf16.mxu0 0
    %4458 = vmatpush1.bf16.msra.mxu0 %v1905
    %4459 = vmatprep.mubr.bf16.mxu0 %v4426
    %4460 = vmatmul.mubr.bf16.gmra.mrb[0].mxu0 %v4333
    %v4461 = vpop.f32.mrb[0].mxu0
    %v4462 = vadd.f32 %v1912, %v4461
    %v4463 = vpop.f32.mrb[0].mxu0
    %v4464 = vpop.f32.mrb[0].mxu0
    %v4465 = vpop.f32.mrb[0].mxu0
    %4466 = vdwg.mxu0
    %v4467 = vtanh.pop %v4462
    %v4468 = vpack.c.bf16 %v4467, %v4467
    %4469 = vmatprep.subr.bf16.mxu0 %v1955
    %4470 = vmatpush1.bf16.msra.mxu0 %v1954
    %4471 = vmatprep.subr.bf16.mxu0 %v1958
    %4472 = vmatpush1.bf16.msra.mxu0 %v1957
    %4473 = vmatprep.subr.bf16.mxu0 %v1961
    %4474 = vmatpush1.bf16.msra.mxu0 %v1960
    %4475 = vmatprep.subr.bf16.mxu0 %v1964
    %4476 = vmatpush1.bf16.msra.mxu0 %v1963
    %4477 = vmatprep.subr.bf16.mxu0 %v1967
    %4478 = vmatpush1.bf16.msra.mxu0 %v1966
    %4479 = vmatprep.subr.bf16.mxu0 %v1970
    %4480 = vmatpush1.bf16.msra.mxu0 %v1969
    %4481 = vmatprep.subr.bf16.mxu0 %v1973
    %4482 = vmatpush1.bf16.msra.mxu0 %v1972
    %4483 = vmatprep.subr.bf16.mxu0 %v1976
    %4484 = vmatpush1.bf16.msra.mxu0 %v1975
    %4485 = vmatprep.subr.bf16.mxu0 0
    %4486 = vmatpush1.bf16.msra.mxu0 0
    %4487 = vmatprep.subr.bf16.mxu0 0
    %4488 = vmatpush1.bf16.msra.mxu0 0
    %4489 = vmatprep.subr.bf16.mxu0 0
    %4490 = vmatpush1.bf16.msra.mxu0 0
    %4491 = vmatprep.subr.bf16.mxu0 0
    %4492 = vmatpush1.bf16.msra.mxu0 0
    %4493 = vmatprep.subr.bf16.mxu0 0
    %4494 = vmatpush1.bf16.msra.mxu0 0
    %4495 = vmatprep.subr.bf16.mxu0 0
    %4496 = vmatpush1.bf16.msra.mxu0 0
    %4497 = vmatprep.subr.bf16.mxu0 0
    %4498 = vmatpush1.bf16.msra.mxu0 0
    %4499 = vmatprep.subr.bf16.mxu0 0
    %4500 = vmatpush1.bf16.msra.mxu0 0
    %4501 = vmatprep.mubr.bf16.mxu0 0
    %4502 = vmatmul.mubr.bf16.gmra.mrb[0].mxu0 %v4468
    %v4503 = vpop.f32.mrb[0].mxu0
    %v4504 = vadd.f32 %v1988, %v4503
    %v4505 = vpop.f32.mrb[0].mxu0
    %v4506 = vadd.f32 %v1992, %v4505
    %v4507 = vpop.f32.mrb[0].mxu0
    %v4508 = vpop.f32.mrb[0].mxu0
    %4509 = vdwg.mxu0
    %4510 = vmatprep.subr.bf16.mxu0 0
    %4511 = vmatpush1.bf16.msra.mxu0 %v1956
    %4512 = vmatprep.subr.bf16.mxu0 0
    %4513 = vmatpush1.bf16.msra.mxu0 %v1959
    %4514 = vmatprep.subr.bf16.mxu0 0
    %4515 = vmatpush1.bf16.msra.mxu0 %v1962
    %4516 = vmatprep.subr.bf16.mxu0 0
    %4517 = vmatpush1.bf16.msra.mxu0 %v1965
    %4518 = vmatprep.subr.bf16.mxu0 0
    %4519 = vmatpush1.bf16.msra.mxu0 %v1968
    %4520 = vmatprep.subr.bf16.mxu0 0
    %4521 = vmatpush1.bf16.msra.mxu0 %v1971
    %4522 = vmatprep.subr.bf16.mxu0 0
    %4523 = vmatpush1.bf16.msra.mxu0 %v1974
    %4524 = vmatprep.subr.bf16.mxu0 0
    %4525 = vmatpush1.bf16.msra.mxu0 %v1977
    %4526 = vmatprep.subr.bf16.mxu0 0
    %4527 = vmatpush1.bf16.msra.mxu0 0
    %4528 = vmatprep.subr.bf16.mxu0 0
    %4529 = vmatpush1.bf16.msra.mxu0 0
    %4530 = vmatprep.subr.bf16.mxu0 0
    %4531 = vmatpush1.bf16.msra.mxu0 0
    %4532 = vmatprep.subr.bf16.mxu0 0
    %4533 = vmatpush1.bf16.msra.mxu0 0
    %4534 = vmatprep.subr.bf16.mxu0 0
    %4535 = vmatpush1.bf16.msra.mxu0 0
    %4536 = vmatprep.subr.bf16.mxu0 0
    %4537 = vmatpush1.bf16.msra.mxu0 0
    %4538 = vmatprep.subr.bf16.mxu0 0
    %4539 = vmatpush1.bf16.msra.mxu0 0
    %4540 = vmatprep.subr.bf16.mxu0 0
    %4541 = vmatpush1.bf16.msra.mxu0 0
    %4542 = vmatprep.mubr.bf16.mxu0 0
    %4543 = vmatmul.mubr.bf16.gmra.mrb[0].mxu0 %v4468
    %v4544 = vpop.f32.mrb[0].mxu0
    %v4545 = vadd.f32 %v1996, %v4544
    %v4546 = vpop.f32.mrb[0].mxu0
    %v4547 = vpop.f32.mrb[0].mxu0
    %v4548 = vpop.f32.mrb[0].mxu0
    %4549 = vdwg.mxu0
    %4550 = vmatprep.subr.bf16.mxu0 %v2079
    %4551 = vmatpush1.bf16.msra.mxu0 %v2078
    %4552 = vmatprep.subr.bf16.mxu0 %v2082
    %4553 = vmatpush1.bf16.msra.mxu0 %v2081
    %4554 = vmatprep.subr.bf16.mxu0 %v2085
    %4555 = vmatpush1.bf16.msra.mxu0 %v2084
    %4556 = vmatprep.subr.bf16.mxu0 %v2088
    %4557 = vmatpush1.bf16.msra.mxu0 %v2087
    %4558 = vmatprep.subr.bf16.mxu0 %v2091
    %4559 = vmatpush1.bf16.msra.mxu0 %v2090
    %4560 = vmatprep.subr.bf16.mxu0 %v2094
    %4561 = vmatpush1.bf16.msra.mxu0 %v2093
    %4562 = vmatprep.subr.bf16.mxu0 %v2097
    %4563 = vmatpush1.bf16.msra.mxu0 %v2096
    %4564 = vmatprep.subr.bf16.mxu0 %v2100
    %4565 = vmatpush1.bf16.msra.mxu0 %v2099
    %4566 = vmatprep.subr.bf16.mxu0 0
    %4567 = vmatpush1.bf16.msra.mxu0 0
    %4568 = vmatprep.subr.bf16.mxu0 0
    %4569 = vmatpush1.bf16.msra.mxu0 0
    %4570 = vmatprep.subr.bf16.mxu0 0
    %4571 = vmatpush1.bf16.msra.mxu0 0
    %4572 = vmatprep.subr.bf16.mxu0 0
    %4573 = vmatpush1.bf16.msra.mxu0 0
    %4574 = vmatprep.subr.bf16.mxu0 0
    %4575 = vmatpush1.bf16.msra.mxu0 0
    %4576 = vmatprep.subr.bf16.mxu0 0
    %4577 = vmatpush1.bf16.msra.mxu0 0
    %4578 = vmatprep.subr.bf16.mxu0 0
    %4579 = vmatpush1.bf16.msra.mxu0 0
    %4580 = vmatprep.subr.bf16.mxu0 0
    %4581 = vmatpush1.bf16.msra.mxu0 0
    %4582 = vmatprep.mubr.bf16.mxu0 0
    %4583 = vmatmul.mubr.bf16.gmra.mrb[0].mxu0 %v4250
    %v4584 = vpop.f32.mrb[0].mxu0
    %v4585 = vadd.f32 %v2112, %v4584
    %v4586 = vpop.f32.mrb[0].mxu0
    %v4587 = vadd.f32 %v2116, %v4586
    %v4588 = vpop.f32.mrb[0].mxu0
    %v4589 = vpop.f32.mrb[0].mxu0
    %4590 = vdwg.mxu0
    %4591 = vmatprep.subr.bf16.mxu0 0
    %4592 = vmatpush1.bf16.msra.mxu0 %v2080
    %4593 = vmatprep.subr.bf16.mxu0 0
    %4594 = vmatpush1.bf16.msra.mxu0 %v2083
    %4595 = vmatprep.subr.bf16.mxu0 0
    %4596 = vmatpush1.bf16.msra.mxu0 %v2086
    %4597 = vmatprep.subr.bf16.mxu0 0
    %4598 = vmatpush1.bf16.msra.mxu0 %v2089
    %4599 = vmatprep.subr.bf16.mxu0 0
    %4600 = vmatpush1.bf16.msra.mxu0 %v2092
    %4601 = vmatprep.subr.bf16.mxu0 0
    %4602 = vmatpush1.bf16.msra.mxu0 %v2095
    %4603 = vmatprep.subr.bf16.mxu0 0
    %4604 = vmatpush1.bf16.msra.mxu0 %v2098
    %4605 = vmatprep.subr.bf16.mxu0 0
    %4606 = vmatpush1.bf16.msra.mxu0 %v2101
    %4607 = vmatprep.subr.bf16.mxu0 0
    %4608 = vmatpush1.bf16.msra.mxu0 0
    %4609 = vmatprep.subr.bf16.mxu0 0
    %4610 = vmatpush1.bf16.msra.mxu0 0
    %4611 = vmatprep.subr.bf16.mxu0 0
    %4612 = vmatpush1.bf16.msra.mxu0 0
    %4613 = vmatprep.subr.bf16.mxu0 0
    %4614 = vmatpush1.bf16.msra.mxu0 0
    %4615 = vmatprep.subr.bf16.mxu0 0
    %4616 = vmatpush1.bf16.msra.mxu0 0
    %4617 = vmatprep.subr.bf16.mxu0 0
    %4618 = vmatpush1.bf16.msra.mxu0 0
    %4619 = vmatprep.subr.bf16.mxu0 0
    %4620 = vmatpush1.bf16.msra.mxu0 0
    %4621 = vmatprep.subr.bf16.mxu0 0
    %4622 = vmatpush1.bf16.msra.mxu0 0
    %4623 = vmatprep.mubr.bf16.mxu0 0
    %4624 = vmatmul.mubr.bf16.gmra.mrb[0].mxu0 %v4250
    %v4625 = vpop.f32.mrb[0].mxu0
    %v4626 = vadd.f32 %v2120, %v4625
    %v4627 = vpop.f32.mrb[0].mxu0
    %v4628 = vpop.f32.mrb[0].mxu0
    %v4629 = vpop.f32.mrb[0].mxu0
    %4630 = vdwg.mxu0
    %v4631 = vadd.f32 %v4504, %v4585
    %v4632 = vxor.u32 %v4631, 2147483648
    %v4633 = vmul.f32 %v4632, 1.442695
    %v4634 = vpow.pop %v4633
    %v4635 = vadd.f32 %v4634, 1.0
    %v4636 = vrcp.pop %v4635
    %v4637 = vmul.f32 1.0, %v4636
    %v4638 = vadd.f32 %v4506, %v4587
    %v4639 = vxor.u32 %v4638, 2147483648
    %v4640 = vmul.f32 %v4639, 1.442695
    %v4641 = vpow.pop %v4640
    %v4642 = vadd.f32 %v4641, 1.0
    %v4643 = vrcp.pop %v4642
    %v4644 = vmul.f32 1.0, %v4643
    %v4645 = vmul.f32 %v4637, %v4626
    %v4646 = vadd.f32 %v4545, %v4645
    %v4647 = vtanh.pop %v4646
    %v4648 = vsub.f32 %v4249, %v4647
    %v4649 = vmul.f32 %v4644, %v4648
    %v4650 = vadd.f32 %v4647, %v4649
    %v4651 = vpack.c.bf16 %v4650, %v4650
    %4652 = vmatprep.subr.bf16.mxu0 0
    %4653 = vmatpush1.bf16.msra.mxu0 %v2231
    %4654 = vmatprep.subr.bf16.mxu0 0
    %4655 = vmatpush1.bf16.msra.mxu0 %v2232
    %4656 = vmatprep.subr.bf16.mxu0 0
    %4657 = vmatpush1.bf16.msra.mxu0 %v2233
    %4658 = vmatprep.subr.bf16.mxu0 0
    %4659 = vmatpush1.bf16.msra.mxu0 %v2234
    %4660 = vmatprep.subr.bf16.mxu0 0
    %4661 = vmatpush1.bf16.msra.mxu0 %v2235
    %4662 = vmatprep.subr.bf16.mxu0 0
    %4663 = vmatpush1.bf16.msra.mxu0 %v2236
    %4664 = vmatprep.subr.bf16.mxu0 0
    %4665 = vmatpush1.bf16.msra.mxu0 %v2237
    %4666 = vmatprep.subr.bf16.mxu0 0
    %4667 = vmatpush1.bf16.msra.mxu0 %v2238
    %4668 = vmatprep.subr.bf16.mxu0 0
    %4669 = vmatpush1.bf16.msra.mxu0 0
    %4670 = vmatprep.subr.bf16.mxu0 0
    %4671 = vmatpush1.bf16.msra.mxu0 0
    %4672 = vmatprep.subr.bf16.mxu0 0
    %4673 = vmatpush1.bf16.msra.mxu0 0
    %4674 = vmatprep.subr.bf16.mxu0 0
    %4675 = vmatpush1.bf16.msra.mxu0 0
    %4676 = vmatprep.subr.bf16.mxu0 0
    %4677 = vmatpush1.bf16.msra.mxu0 0
    %4678 = vmatprep.subr.bf16.mxu0 0
    %4679 = vmatpush1.bf16.msra.mxu0 0
    %4680 = vmatprep.subr.bf16.mxu0 0
    %4681 = vmatpush1.bf16.msra.mxu0 0
    %4682 = vmatprep.subr.bf16.mxu0 0
    %4683 = vmatpush1.bf16.msra.mxu0 0
    %4684 = vmatprep.mubr.bf16.mxu0 0
    %4685 = vmatmul.mubr.bf16.gmra.mrb[0].mxu0 %v4651
    %v4686 = vpop.f32.mrb[0].mxu0
    %v4687 = vadd.f32 %v2245, %v4686
    %v4688 = vpop.f32.mrb[0].mxu0
    %v4689 = vpop.f32.mrb[0].mxu0
    %v4690 = vpop.f32.mrb[0].mxu0
    %4691 = vdwg.mxu0
    %v4692 = vtanh.pop %v4687
    %v4693 = vpack.c.bf16 %v4692, %v4692
    %4694 = vmatprep.subr.bf16.mxu0 0
    %4695 = vmatpush1.bf16.msra.mxu0 %v1716
    %4696 = vmatprep.subr.bf16.mxu0 0
    %4697 = vmatpush1.bf16.msra.mxu0 %v1717
    %4698 = vmatprep.subr.bf16.mxu0 0
    %4699 = vmatpush1.bf16.msra.mxu0 %v1718
    %4700 = vmatprep.subr.bf16.mxu0 0
    %4701 = vmatpush1.bf16.msra.mxu0 %v1719
    %4702 = vmatprep.subr.bf16.mxu0 0
    %4703 = vmatpush1.bf16.msra.mxu0 %v1720
    %4704 = vmatprep.subr.bf16.mxu0 0
    %4705 = vmatpush1.bf16.msra.mxu0 %v1721
    %4706 = vmatprep.subr.bf16.mxu0 0
    %4707 = vmatpush1.bf16.msra.mxu0 %v1722
    %4708 = vmatprep.subr.bf16.mxu0 0
    %4709 = vmatpush1.bf16.msra.mxu0 %v1723
    %4710 = vmatprep.subr.bf16.mxu0 0
    %4711 = vmatpush1.bf16.msra.mxu0 0
    %4712 = vmatprep.subr.bf16.mxu0 0
    %4713 = vmatpush1.bf16.msra.mxu0 0
    %4714 = vmatprep.subr.bf16.mxu0 0
    %4715 = vmatpush1.bf16.msra.mxu0 0
    %4716 = vmatprep.subr.bf16.mxu0 0
    %4717 = vmatpush1.bf16.msra.mxu0 0
    %4718 = vmatprep.subr.bf16.mxu0 0
    %4719 = vmatpush1.bf16.msra.mxu0 0
    %4720 = vmatprep.subr.bf16.mxu0 0
    %4721 = vmatpush1.bf16.msra.mxu0 0
    %4722 = vmatprep.subr.bf16.mxu0 0
    %4723 = vmatpush1.bf16.msra.mxu0 0
    %4724 = vmatprep.subr.bf16.mxu0 0
    %4725 = vmatpush1.bf16.msra.mxu0 0
    %4726 = vmatprep.mubr.bf16.mxu0 0
    %4727 = vmatmul.mubr.bf16.gmra.mrb[0].mxu0 %v4693
    %v4728 = vpop.f32.mrb[0].mxu0
    %v4729 = vadd.f32 %v1729, %v4728
    %v4730 = vpop.f32.mrb[0].mxu0
    %v4731 = vpop.f32.mrb[0].mxu0
    %v4732 = vpop.f32.mrb[0].mxu0
    %4733 = vdwg.mxu0
    %v4734 = vpack.c.bf16 %v4729, %v4729
    %4735 = vmatprep.subr.bf16.mxu0 0
    %4736 = vmatpush1.bf16.msra.mxu0 %v1772
    %4737 = vmatprep.subr.bf16.mxu0 0
    %4738 = vmatpush1.bf16.msra.mxu0 %v1773
    %4739 = vmatprep.subr.bf16.mxu0 0
    %4740 = vmatpush1.bf16.msra.mxu0 %v1774
    %4741 = vmatprep.subr.bf16.mxu0 0
    %4742 = vmatpush1.bf16.msra.mxu0 %v1775
    %4743 = vmatprep.subr.bf16.mxu0 0
    %4744 = vmatpush1.bf16.msra.mxu0 %v1776
    %4745 = vmatprep.subr.bf16.mxu0 0
    %4746 = vmatpush1.bf16.msra.mxu0 %v1777
    %4747 = vmatprep.subr.bf16.mxu0 0
    %4748 = vmatpush1.bf16.msra.mxu0 %v1778
    %4749 = vmatprep.subr.bf16.mxu0 0
    %4750 = vmatpush1.bf16.msra.mxu0 %v1779
    %4751 = vmatprep.subr.bf16.mxu0 0
    %4752 = vmatpush1.bf16.msra.mxu0 %v1780
    %4753 = vmatprep.subr.bf16.mxu0 0
    %4754 = vmatpush1.bf16.msra.mxu0 %v1781
    %4755 = vmatprep.subr.bf16.mxu0 0
    %4756 = vmatpush1.bf16.msra.mxu0 %v1782
    %4757 = vmatprep.subr.bf16.mxu0 0
    %4758 = vmatpush1.bf16.msra.mxu0 %v1783
    %4759 = vmatprep.subr.bf16.mxu0 0
    %4760 = vmatpush1.bf16.msra.mxu0 %v1784
    %4761 = vmatprep.subr.bf16.mxu0 0
    %4762 = vmatpush1.bf16.msra.mxu0 %v1785
    %4763 = vmatprep.subr.bf16.mxu0 0
    %4764 = vmatpush1.bf16.msra.mxu0 %v1786
    %4765 = vmatprep.subr.bf16.mxu0 0
    %4766 = vmatpush1.bf16.msra.mxu0 %v1787
    %4767 = vmatprep.mubr.bf16.mxu0 %v4651
    %4768 = vmatmul.mubr.bf16.gmra.mrb[0].mxu0 %v4734
    %v4769 = vpop.f32.mrb[0].mxu0
    %v4770 = vadd.f32 %v1795, %v4769
    %v4771 = vpop.f32.mrb[0].mxu0
    %v4772 = vpop.f32.mrb[0].mxu0
    %v4773 = vpop.f32.mrb[0].mxu0
    %4774 = vdwg.mxu0
    %v4775 = vsel %vm1528, %v4770, -inf
    %4776 = vmax.xlane.f32.xlu0 %v4775
    %v4777 = vpop.xlane.xlu0 %4776
    %v4778 = vsub.f32 %v4770, %v4777
    %v4779 = vmul.f32 %v4778, 1.442695
    %v4780 = vpow.pop %v4779
    %v4781 = vsel %vm1528, %v4780, 0.0
    %4782 = vadd.xlane.f32.xlu0 %v4781
    %v4783 = vpop.xlane.xlu0 %4782
    %v4784 = vrcp.pop %v4783
    %v4785 = vmul.f32 %v4780, %v4784
    %v4786 = vpack.c.bf16 %v4785, %v4785
    %4787 = vmatprep.subr.bf16.mxu0 0
    %4788 = vmatpush1.bf16.msra.mxu0 %v1848
    %4789 = vmatprep.subr.bf16.mxu0 0
    %4790 = vmatpush1.bf16.msra.mxu0 %v1849
    %4791 = vmatprep.subr.bf16.mxu0 0
    %4792 = vmatpush1.bf16.msra.mxu0 %v1849
    %4793 = vmatprep.subr.bf16.mxu0 0
    %4794 = vmatpush1.bf16.msra.mxu0 %v1849
    %4795 = vmatprep.subr.bf16.mxu0 0
    %4796 = vmatpush1.bf16.msra.mxu0 %v1849
    %4797 = vmatprep.subr.bf16.mxu0 0
    %4798 = vmatpush1.bf16.msra.mxu0 %v1849
    %4799 = vmatprep.subr.bf16.mxu0 0
    %4800 = vmatpush1.bf16.msra.mxu0 %v1849
    %4801 = vmatprep.subr.bf16.mxu0 0
    %4802 = vmatpush1.bf16.msra.mxu0 %v1849
    %4803 = vmatprep.subr.bf16.mxu0 0
    %4804 = vmatpush1.bf16.msra.mxu0 0
    %4805 = vmatprep.subr.bf16.mxu0 0
    %4806 = vmatpush1.bf16.msra.mxu0 0
    %4807 = vmatprep.subr.bf16.mxu0 0
    %4808 = vmatpush1.bf16.msra.mxu0 0
    %4809 = vmatprep.subr.bf16.mxu0 0
    %4810 = vmatpush1.bf16.msra.mxu0 0
    %4811 = vmatprep.subr.bf16.mxu0 0
    %4812 = vmatpush1.bf16.msra.mxu0 0
    %4813 = vmatprep.subr.bf16.mxu0 0
    %4814 = vmatpush1.bf16.msra.mxu0 0
    %4815 = vmatprep.subr.bf16.mxu0 0
    %4816 = vmatpush1.bf16.msra.mxu0 0
    %4817 = vmatprep.subr.bf16.mxu0 0
    %4818 = vmatpush1.bf16.msra.mxu0 0
    %4819 = vmatprep.mubr.bf16.mxu0 0
    %4820 = vmatmul.mubr.bf16.gmra.mrb[0].mxu0 %v4786
    %v4821 = vpop.f32.mrb[0].mxu0
    %v4822 = vadd.f32 0.0, %v4821
    %v4823 = vpop.f32.mrb[0].mxu0
    %v4824 = vpop.f32.mrb[0].mxu0
    %v4825 = vpop.f32.mrb[0].mxu0
    %4826 = vdwg.mxu0
    %v4827 = vpack.c.bf16 %v4822, %v4822
    %4828 = vmatprep.subr.bf16.mxu0 0
    %4829 = vmatpush1.bf16.msra.mxu0 %v1890
    %4830 = vmatprep.subr.bf16.mxu0 0
    %4831 = vmatpush1.bf16.msra.mxu0 %v1891
    %4832 = vmatprep.subr.bf16.mxu0 0
    %4833 = vmatpush1.bf16.msra.mxu0 %v1892
    %4834 = vmatprep.subr.bf16.mxu0 0
    %4835 = vmatpush1.bf16.msra.mxu0 %v1893
    %4836 = vmatprep.subr.bf16.mxu0 0
    %4837 = vmatpush1.bf16.msra.mxu0 %v1894
    %4838 = vmatprep.subr.bf16.mxu0 0
    %4839 = vmatpush1.bf16.msra.mxu0 %v1895
    %4840 = vmatprep.subr.bf16.mxu0 0
    %4841 = vmatpush1.bf16.msra.mxu0 %v1896
    %4842 = vmatprep.subr.bf16.mxu0 0
    %4843 = vmatpush1.bf16.msra.mxu0 %v1897
    %4844 = vmatprep.subr.bf16.mxu0 0
    %4845 = vmatpush1.bf16.msra.mxu0 %v1898
    %4846 = vmatprep.subr.bf16.mxu0 0
    %4847 = vmatpush1.bf16.msra.mxu0 %v1899
    %4848 = vmatprep.subr.bf16.mxu0 0
    %4849 = vmatpush1.bf16.msra.mxu0 %v1900
    %4850 = vmatprep.subr.bf16.mxu0 0
    %4851 = vmatpush1.bf16.msra.mxu0 %v1901
    %4852 = vmatprep.subr.bf16.mxu0 0
    %4853 = vmatpush1.bf16.msra.mxu0 %v1902
    %4854 = vmatprep.subr.bf16.mxu0 0
    %4855 = vmatpush1.bf16.msra.mxu0 %v1903
    %4856 = vmatprep.subr.bf16.mxu0 0
    %4857 = vmatpush1.bf16.msra.mxu0 %v1904
    %4858 = vmatprep.subr.bf16.mxu0 0
    %4859 = vmatpush1.bf16.msra.mxu0 %v1905
    %4860 = vmatprep.mubr.bf16.mxu0 %v4827
    %4861 = vmatmul.mubr.bf16.gmra.mrb[0].mxu0 %v4734
    %v4862 = vpop.f32.mrb[0].mxu0
    %v4863 = vadd.f32 %v1912, %v4862
    %v4864 = vpop.f32.mrb[0].mxu0
    %v4865 = vpop.f32.mrb[0].mxu0
    %v4866 = vpop.f32.mrb[0].mxu0
    %4867 = vdwg.mxu0
    %v4868 = vtanh.pop %v4863
    %v4869 = vpack.c.bf16 %v4868, %v4868
    %4870 = vmatprep.subr.bf16.mxu0 %v1955
    %4871 = vmatpush1.bf16.msra.mxu0 %v1954
    %4872 = vmatprep.subr.bf16.mxu0 %v1958
    %4873 = vmatpush1.bf16.msra.mxu0 %v1957
    %4874 = vmatprep.subr.bf16.mxu0 %v1961
    %4875 = vmatpush1.bf16.msra.mxu0 %v1960
    %4876 = vmatprep.subr.bf16.mxu0 %v1964
    %4877 = vmatpush1.bf16.msra.mxu0 %v1963
    %4878 = vmatprep.subr.bf16.mxu0 %v1967
    %4879 = vmatpush1.bf16.msra.mxu0 %v1966
    %4880 = vmatprep.subr.bf16.mxu0 %v1970
    %4881 = vmatpush1.bf16.msra.mxu0 %v1969
    %4882 = vmatprep.subr.bf16.mxu0 %v1973
    %4883 = vmatpush1.bf16.msra.mxu0 %v1972
    %4884 = vmatprep.subr.bf16.mxu0 %v1976
    %4885 = vmatpush1.bf16.msra.mxu0 %v1975
    %4886 = vmatprep.subr.bf16.mxu0 0
    %4887 = vmatpush1.bf16.msra.mxu0 0
    %4888 = vmatprep.subr.bf16.mxu0 0
    %4889 = vmatpush1.bf16.msra.mxu0 0
    %4890 = vmatprep.subr.bf16.mxu0 0
    %4891 = vmatpush1.bf16.msra.mxu0 0
    %4892 = vmatprep.subr.bf16.mxu0 0
    %4893 = vmatpush1.bf16.msra.mxu0 0
    %4894 = vmatprep.subr.bf16.mxu0 0
    %4895 = vmatpush1.bf16.msra.mxu0 0
    %4896 = vmatprep.subr.bf16.mxu0 0
    %4897 = vmatpush1.bf16.msra.mxu0 0
    %4898 = vmatprep.subr.bf16.mxu0 0
    %4899 = vmatpush1.bf16.msra.mxu0 0
    %4900 = vmatprep.subr.bf16.mxu0 0
    %4901 = vmatpush1.bf16.msra.mxu0 0
    %4902 = vmatprep.mubr.bf16.mxu0 0
    %4903 = vmatmul.mubr.bf16.gmra.mrb[0].mxu0 %v4869
    %v4904 = vpop.f32.mrb[0].mxu0
    %v4905 = vadd.f32 %v1988, %v4904
    %v4906 = vpop.f32.mrb[0].mxu0
    %v4907 = vadd.f32 %v1992, %v4906
    %v4908 = vpop.f32.mrb[0].mxu0
    %v4909 = vpop.f32.mrb[0].mxu0
    %4910 = vdwg.mxu0
    %4911 = vmatprep.subr.bf16.mxu0 0
    %4912 = vmatpush1.bf16.msra.mxu0 %v1956
    %4913 = vmatprep.subr.bf16.mxu0 0
    %4914 = vmatpush1.bf16.msra.mxu0 %v1959
    %4915 = vmatprep.subr.bf16.mxu0 0
    %4916 = vmatpush1.bf16.msra.mxu0 %v1962
    %4917 = vmatprep.subr.bf16.mxu0 0
    %4918 = vmatpush1.bf16.msra.mxu0 %v1965
    %4919 = vmatprep.subr.bf16.mxu0 0
    %4920 = vmatpush1.bf16.msra.mxu0 %v1968
    %4921 = vmatprep.subr.bf16.mxu0 0
    %4922 = vmatpush1.bf16.msra.mxu0 %v1971
    %4923 = vmatprep.subr.bf16.mxu0 0
    %4924 = vmatpush1.bf16.msra.mxu0 %v1974
    %4925 = vmatprep.subr.bf16.mxu0 0
    %4926 = vmatpush1.bf16.msra.mxu0 %v1977
    %4927 = vmatprep.subr.bf16.mxu0 0
    %4928 = vmatpush1.bf16.msra.mxu0 0
    %4929 = vmatprep.subr.bf16.mxu0 0
    %4930 = vmatpush1.bf16.msra.mxu0 0
    %4931 = vmatprep.subr.bf16.mxu0 0
    %4932 = vmatpush1.bf16.msra.mxu0 0
    %4933 = vmatprep.subr.bf16.mxu0 0
    %4934 = vmatpush1.bf16.msra.mxu0 0
    %4935 = vmatprep.subr.bf16.mxu0 0
    %4936 = vmatpush1.bf16.msra.mxu0 0
    %4937 = vmatprep.subr.bf16.mxu0 0
    %4938 = vmatpush1.bf16.msra.mxu0 0
    %4939 = vmatprep.subr.bf16.mxu0 0
    %4940 = vmatpush1.bf16.msra.mxu0 0
    %4941 = vmatprep.subr.bf16.mxu0 0
    %4942 = vmatpush1.bf16.msra.mxu0 0
    %4943 = vmatprep.mubr.bf16.mxu0 0
    %4944 = vmatmul.mubr.bf16.gmra.mrb[0].mxu0 %v4869
    %v4945 = vpop.f32.mrb[0].mxu0
    %v4946 = vadd.f32 %v1996, %v4945
    %v4947 = vpop.f32.mrb[0].mxu0
    %v4948 = vpop.f32.mrb[0].mxu0
    %v4949 = vpop.f32.mrb[0].mxu0
    %4950 = vdwg.mxu0
    %4951 = vmatprep.subr.bf16.mxu0 %v2079
    %4952 = vmatpush1.bf16.msra.mxu0 %v2078
    %4953 = vmatprep.subr.bf16.mxu0 %v2082
    %4954 = vmatpush1.bf16.msra.mxu0 %v2081
    %4955 = vmatprep.subr.bf16.mxu0 %v2085
    %4956 = vmatpush1.bf16.msra.mxu0 %v2084
    %4957 = vmatprep.subr.bf16.mxu0 %v2088
    %4958 = vmatpush1.bf16.msra.mxu0 %v2087
    %4959 = vmatprep.subr.bf16.mxu0 %v2091
    %4960 = vmatpush1.bf16.msra.mxu0 %v2090
    %4961 = vmatprep.subr.bf16.mxu0 %v2094
    %4962 = vmatpush1.bf16.msra.mxu0 %v2093
    %4963 = vmatprep.subr.bf16.mxu0 %v2097
    %4964 = vmatpush1.bf16.msra.mxu0 %v2096
    %4965 = vmatprep.subr.bf16.mxu0 %v2100
    %4966 = vmatpush1.bf16.msra.mxu0 %v2099
    %4967 = vmatprep.subr.bf16.mxu0 0
    %4968 = vmatpush1.bf16.msra.mxu0 0
    %4969 = vmatprep.subr.bf16.mxu0 0
    %4970 = vmatpush1.bf16.msra.mxu0 0
    %4971 = vmatprep.subr.bf16.mxu0 0
    %4972 = vmatpush1.bf16.msra.mxu0 0
    %4973 = vmatprep.subr.bf16.mxu0 0
    %4974 = vmatpush1.bf16.msra.mxu0 0
    %4975 = vmatprep.subr.bf16.mxu0 0
    %4976 = vmatpush1.bf16.msra.mxu0 0
    %4977 = vmatprep.subr.bf16.mxu0 0
    %4978 = vmatpush1.bf16.msra.mxu0 0
    %4979 = vmatprep.subr.bf16.mxu0 0
    %4980 = vmatpush1.bf16.msra.mxu0 0
    %4981 = vmatprep.subr.bf16.mxu0 0
    %4982 = vmatpush1.bf16.msra.mxu0 0
    %4983 = vmatprep.mubr.bf16.mxu0 0
    %4984 = vmatmul.mubr.bf16.gmra.mrb[0].mxu0 %v4651
    %v4985 = vpop.f32.mrb[0].mxu0
    %v4986 = vadd.f32 %v2112, %v4985
    %v4987 = vpop.f32.mrb[0].mxu0
    %v4988 = vadd.f32 %v2116, %v4987
    %v4989 = vpop.f32.mrb[0].mxu0
    %v4990 = vpop.f32.mrb[0].mxu0
    %4991 = vdwg.mxu0
    %4992 = vmatprep.subr.bf16.mxu0 0
    %4993 = vmatpush1.bf16.msra.mxu0 %v2080
    %4994 = vmatprep.subr.bf16.mxu0 0
    %4995 = vmatpush1.bf16.msra.mxu0 %v2083
    %4996 = vmatprep.subr.bf16.mxu0 0
    %4997 = vmatpush1.bf16.msra.mxu0 %v2086
    %4998 = vmatprep.subr.bf16.mxu0 0
    %4999 = vmatpush1.bf16.msra.mxu0 %v2089
    %5000 = vmatprep.subr.bf16.mxu0 0
    %5001 = vmatpush1.bf16.msra.mxu0 %v2092
    %5002 = vmatprep.subr.bf16.mxu0 0
    %5003 = vmatpush1.bf16.msra.mxu0 %v2095
    %5004 = vmatprep.subr.bf16.mxu0 0
    %5005 = vmatpush1.bf16.msra.mxu0 %v2098
    %5006 = vmatprep.subr.bf16.mxu0 0
    %5007 = vmatpush1.bf16.msra.mxu0 %v2101
    %5008 = vmatprep.subr.bf16.mxu0 0
    %5009 = vmatpush1.bf16.msra.mxu0 0
    %5010 = vmatprep.subr.bf16.mxu0 0
    %5011 = vmatpush1.bf16.msra.mxu0 0
    %5012 = vmatprep.subr.bf16.mxu0 0
    %5013 = vmatpush1.bf16.msra.mxu0 0
    %5014 = vmatprep.subr.bf16.mxu0 0
    %5015 = vmatpush1.bf16.msra.mxu0 0
    %5016 = vmatprep.subr.bf16.mxu0 0
    %5017 = vmatpush1.bf16.msra.mxu0 0
    %5018 = vmatprep.subr.bf16.mxu0 0
    %5019 = vmatpush1.bf16.msra.mxu0 0
    %5020 = vmatprep.subr.bf16.mxu0 0
    %5021 = vmatpush1.bf16.msra.mxu0 0
    %5022 = vmatprep.subr.bf16.mxu0 0
    %5023 = vmatpush1.bf16.msra.mxu0 0
    %5024 = vmatprep.mubr.bf16.mxu0 0
    %5025 = vmatmul.mubr.bf16.gmra.mrb[0].mxu0 %v4651
    %v5026 = vpop.f32.mrb[0].mxu0
    %v5027 = vadd.f32 %v2120, %v5026
    %v5028 = vpop.f32.mrb[0].mxu0
    %v5029 = vpop.f32.mrb[0].mxu0
    %v5030 = vpop.f32.mrb[0].mxu0
    %5031 = vdwg.mxu0
    %v5032 = vadd.f32 %v4905, %v4986
    %v5033 = vxor.u32 %v5032, 2147483648
    %v5034 = vmul.f32 %v5033, 1.442695
    %v5035 = vpow.pop %v5034
    %v5036 = vadd.f32 %v5035, 1.0
    %v5037 = vrcp.pop %v5036
    %v5038 = vmul.f32 1.0, %v5037
    %v5039 = vadd.f32 %v4907, %v4988
    %v5040 = vxor.u32 %v5039, 2147483648
    %v5041 = vmul.f32 %v5040, 1.442695
    %v5042 = vpow.pop %v5041
    %v5043 = vadd.f32 %v5042, 1.0
    %v5044 = vrcp.pop %v5043
    %v5045 = vmul.f32 1.0, %v5044
    %v5046 = vmul.f32 %v5038, %v5027
    %v5047 = vadd.f32 %v4946, %v5046
    %v5048 = vtanh.pop %v5047
    %v5049 = vsub.f32 %v4650, %v5048
    %v5050 = vmul.f32 %v5045, %v5049
    %v5051 = vadd.f32 %v5048, %v5050
    %v5052 = vpack.c.bf16 %v5051, %v5051
    %5053 = vmatprep.subr.bf16.mxu0 0
    %5054 = vmatpush1.bf16.msra.mxu0 %v2231
    %5055 = vmatprep.subr.bf16.mxu0 0
    %5056 = vmatpush1.bf16.msra.mxu0 %v2232
    %5057 = vmatprep.subr.bf16.mxu0 0
    %5058 = vmatpush1.bf16.msra.mxu0 %v2233
    %5059 = vmatprep.subr.bf16.mxu0 0
    %5060 = vmatpush1.bf16.msra.mxu0 %v2234
    %5061 = vmatprep.subr.bf16.mxu0 0
    %5062 = vmatpush1.bf16.msra.mxu0 %v2235
    %5063 = vmatprep.subr.bf16.mxu0 0
    %5064 = vmatpush1.bf16.msra.mxu0 %v2236
    %5065 = vmatprep.subr.bf16.mxu0 0
    %5066 = vmatpush1.bf16.msra.mxu0 %v2237
    %5067 = vmatprep.subr.bf16.mxu0 0
    %5068 = vmatpush1.bf16.msra.mxu0 %v2238
    %5069 = vmatprep.subr.bf16.mxu0 0
    %5070 = vmatpush1.bf16.msra.mxu0 0
    %5071 = vmatprep.subr.bf16.mxu0 0
    %5072 = vmatpush1.bf16.msra.mxu0 0
    %5073 = vmatprep.subr.bf16.mxu0 0
    %5074 = vmatpush1.bf16.msra.mxu0 0
    %5075 = vmatprep.subr.bf16.mxu0 0
    %5076 = vmatpush1.bf16.msra.mxu0 0
    %5077 = vmatprep.subr.bf16.mxu0 0
    %5078 = vmatpush1.bf16.msra.mxu0 0
    %5079 = vmatprep.subr.bf16.mxu0 0
    %5080 = vmatpush1.bf16.msra.mxu0 0
    %5081 = vmatprep.subr.bf16.mxu0 0
    %5082 = vmatpush1.bf16.msra.mxu0 0
    %5083 = vmatprep.subr.bf16.mxu0 0
    %5084 = vmatpush1.bf16.msra.mxu0 0
    %5085 = vmatprep.mubr.bf16.mxu0 0
    %5086 = vmatmul.mubr.bf16.gmra.mrb[0].mxu0 %v5052
    %v5087 = vpop.f32.mrb[0].mxu0
    %v5088 = vadd.f32 %v2245, %v5087
    %v5089 = vpop.f32.mrb[0].mxu0
    %v5090 = vpop.f32.mrb[0].mxu0
    %v5091 = vpop.f32.mrb[0].mxu0
    %5092 = vdwg.mxu0
    %v5093 = vtanh.pop %v5088
    %v5094 = vadd.f32 %v5093, %v1711
    %5095 = vst [vmem:[%s5] sm:$0x3] %v5094
    // Predicated region
    $region22: #{attention_seq_forward.1} parent=1 // pred_check
      _
    $region23: #{attention_seq_forward.1} parent=1 // pred_check_branch
      %5097 = sbr.rel (0) target = $region25
    $region24: #{attention_seq_forward.1} parent=1 // pred_region
      _
    $region25: #{attention_seq_forward.1} parent=1 // pred_fallthru
      _
    // Predicated region
    $region26: #{attention_seq_forward.1} parent=1 // pred_check
      _
    $region27: #{attention_seq_forward.1} parent=1 // pred_check_branch
      %5099 = sbr.rel (0) target = $region29
    $region28: #{attention_seq_forward.1} parent=1 // pred_region
      _
    $region29: #{attention_seq_forward.1} parent=1 // pred_fallthru
      _
    %5100 = vsyncpa [#allocation6], 1
  %5101 = vsyncmov [#allocation4]
  %s5102 = vpop.sfrf %5101
  %p5103 = scmp.eq.s32.totalorder %s5102, 0
  %p5104 = pneg %p5103
  %5106 = shalt.err (%p5104)
  %s5107 = scalar_lea.sflag [#allocation4], 1
  %5108 = vsyncmov %s5107
  %s5109 = vpop.sfrf %5108
  %p5110 = scmp.eq.s32.totalorder %s5109, 0
  %p5111 = pneg %p5110
  %5113 = shalt.err (%p5111)

</llo_original>
